<compile_context>
chip_gen: v6e
topology: v6e:2x2x1
jax: 0.10.0
libtpu: 0.0.40
codegen_flags: <defaults>
</compile_context>

<pallas_src>
import functools

import jax
import jax.numpy as jnp
from jax import lax
from jax.experimental import pallas as pl
from jax.experimental.pallas import tpu as pltpu

EPS = 1e-5  # PyTorch BatchNorm default eps


def _round_up(x, m):
    return ((x + m - 1) // m) * m


def _pick_bb(B, rows_per_sample, target_rows, bytes_per_sample=0, byte_budget=None):
    """Largest batch block Bb such that
       * Bb divides B,
       * the grid keeps >= 2 steps whenever B >= 2 (v7x has 2 TensorCores and
         dimension_semantics=("parallel",) shards the grid across them),
       * the stacked MXU M tile (Bb*rows) stays near `target_rows` (256 fills a
         v6e/v7x 256x256 MXU; a v5e 128x128 MXU saturates earlier),
       * the largest per-step output block stays inside a conservative
         cross-generation VMEM budget (v5e scoped default is 16 MiB and every
         BlockSpec output is double buffered)."""
    best = 1
    for bb in range(2, B + 1):
        if B % bb:
            continue
        if B >= 2 and B // bb < 2:
            continue
        if bb * rows_per_sample > target_rows:
            continue
        if byte_budget is not None and bb * bytes_per_sample > byte_budget:
            continue
        best = bb
    return best


# ----------------------------------------------------------------------------
# Kernel 1: Conv1d + bias + ReLU + BN partial statistics, batch-blocked.
# One MXU call per block: (Bb*L, C) x (C, KW*OC), taps combined by sublane
# shifts of the 128-wide column groups (jnp.roll -> slice/concat, off the MXU).
# ----------------------------------------------------------------------------
def _conv_relu_kernel(x_ref, w_ref, b_ref, o_ref, stat_ref, *, L, Lout, OC):
    M = x_ref.shape[0]                                   # Bb * L
    KW = w_ref.shape[1] // OC
    y = jnp.dot(x_ref[...], w_ref[...],
                preferred_element_type=jnp.float32)      # (M, KW*OC), single MXU push
    z = y[:, 0:OC]
    for dt in range(1, KW):                              # static (KW = 3)
        z = z + jnp.roll(y[:, dt * OC:(dt + 1) * OC], -dt, axis=0)
    z = jnp.maximum(z + b_ref[...], 0.0)
    # Zero rows past the valid conv length: keeps the padded-L layout clean for
    # the next layer and for the BN statistics (wrapped roll rows land here too).
    row = lax.broadcasted_iota(jnp.int32, (M, 1), 0)
    z = jnp.where(row % L < Lout, z, 0.0)
    o_ref[...] = z.astype(o_ref.dtype)
    # Per-block BN partial statistics (sum, sum of squares) via MXU ones-row matmuls.
    ones = jnp.ones((1, M), jnp.float32)
    s1 = jnp.dot(ones, z, preferred_element_type=jnp.float32)
    s2 = jnp.dot(ones, z * z, preferred_element_type=jnp.float32)
    stat_ref[0, :, :] = jnp.concatenate([s1, s2], axis=0)


def conv_relu_stats(x2, w_cat, bias, *, B, L, Lout, OC):
    """x2: (B*L, C) bf16 (seq axis padded to L, invalid rows zero); returns the
    next layer's (B*L, OC) bf16 activations and per-block BN partial stats."""
    _, C = x2.shape
    KWOC = w_cat.shape[1]
    Bb = _pick_bb(B, rows_per_sample=L, target_rows=256)
    nblk = B // Bb
    M = Bb * L
    y, stats = pl.pallas_call(
        functools.partial(_conv_relu_kernel, L=L, Lout=Lout, OC=OC),
        grid=(nblk,),
        in_specs=[
            pl.BlockSpec((M, C), lambda i: (i, 0)),
            pl.BlockSpec((C, KWOC), lambda i: (0, 0)),
            pl.BlockSpec((1, OC), lambda i: (0, 0)),
        ],
        out_specs=[
            pl.BlockSpec((M, OC), lambda i: (i, 0)),
            pl.BlockSpec((1, 2, OC), lambda i: (i, 0, 0)),
        ],
        out_shape=[
            jax.ShapeDtypeStruct((B * L, OC), jnp.bfloat16),
            jax.ShapeDtypeStruct((nblk, 2, OC), jnp.float32),
        ],
        compiler_params=pltpu.CompilerParams(dimension_semantics=("parallel",)),
    )(x2, w_cat, bias)
    return y, stats


# ----------------------------------------------------------------------------
# Kernel 2: BAN layer = FCNet projections + bilinear attention + fusion + pool.
# Projections batch-stacked on M; head-stacked attention LHS built once per
# block; att written as one lane-dense bf16 slab; AvgPool(k)*k folded in as a
# 0/1 MXU matmul so the kernel emits the pooled (Bb,256) fusion logits.
# ----------------------------------------------------------------------------
def _ban_kernel(vd_ref, vp_ref, wv_ref, bv_ref, wq_ref, bq_ref, hm_ref, hb_ref,
                p_ref, att_ref, pool_ref, *, H, Nv, Nq, Nv_pad, Nq_pad):
    K = wv_ref.shape[1]
    Bb = vd_ref.shape[0] // Nv_pad
    # FCNet projections (Dropout(0.2) == identity in this deterministic forward),
    # batch-stacked along the MXU M axis: one (Bb*N, 128)x(128, 768) call each.
    v_flat = jnp.maximum(
        jnp.dot(vd_ref[...], wv_ref[...], preferred_element_type=jnp.float32)
        + bv_ref[...], 0.0)
    q_flat = jnp.maximum(
        jnp.dot(vp_ref[...], wq_ref[...], preferred_element_type=jnp.float32)
        + bq_ref[...], 0.0)
    # Zero padded rows (bias + ReLU of padding is non-zero and would leak into fusion).
    vrow = lax.broadcasted_iota(jnp.int32, (vd_ref.shape[0], 1), 0)
    qrow = lax.broadcasted_iota(jnp.int32, (vp_ref.shape[0], 1), 0)
    v_flat = jnp.where(vrow % Nv_pad < Nv, v_flat, 0.0)
    q_flat = jnp.where(qrow % Nq_pad < Nq, q_flat, 0.0)
    # Tile-aligned splits (Nv_pad, Nq_pad are multiples of 8): no relayout.
    v3 = v_flat.reshape(Bb, Nv_pad, K)
    q3 = q_flat.reshape(Bb, Nq_pad, K)
    q3b = q3.astype(jnp.bfloat16)
    hm = hm_ref[...]
    # Head-stacked LHS built once for the whole batch block.
    lhs = jnp.concatenate(
        [(v3 * hm[h:h + 1, :][None]).astype(jnp.bfloat16) for h in range(H)], axis=1)
    att = jnp.einsum('bmk,bqk->bmq', lhs, q3b,
                     preferred_element_type=jnp.float32)      # (Bb, H*Nv_pad, Nq_pad)
    att = att + hb_ref[...][None]                             # per-head bias rows
    att_ref[...] = att.astype(att_ref.dtype)                  # one lane-dense bf16 store
    # fusion[b,k] = sum_h sum_{v,q} v_[b,v,k] * att[b,h,v,q] * q_[b,q,k]
    att_sum = att[:, 0:Nv_pad, :]
    for h in range(1, H):                                     # static, tile-aligned slices
        att_sum = att_sum + att[:, h * Nv_pad:(h + 1) * Nv_pad, :]
    tmp = jnp.einsum('bvq,bqk->bvk', att_sum.astype(jnp.bfloat16), q3b,
                     preferred_element_type=jnp.float32)      # (Bb, Nv_pad, K)
    fus = jnp.sum(v3 * tmp, axis=1)                           # (Bb, K)
    # AvgPool1d(k=3, stride=3) * k  ==  grouped sum, done on the MXU with a 0/1 matrix.
    pool_ref[:, 0, :] = jnp.dot(fus, p_ref[...], preferred_element_type=jnp.float32)


def ban_attention(v_d, v_q, Wv, bv, Wq, bq, h_mat, h_bias):
    B, Nv, C = v_d.shape
    Nq = v_q.shape[1]
    H, K = h_mat.shape
    Nv_pad = _round_up(Nv, 8)
    Nq_pad = _round_up(Nq, 128)
    vd = jnp.pad(v_d, ((0, 0), (0, Nv_pad - Nv), (0, 0))).reshape(B * Nv_pad, C)
    vp = jnp.pad(v_q, ((0, 0), (0, Nq_pad - Nq), (0, 0))).reshape(B * Nq_pad, C)
    hb_rows = jnp.repeat(h_bias.reshape(H, 1), Nv_pad, axis=0).reshape(H * Nv_pad, 1)
    pool_mat = (jnp.arange(K)[:, None] // 3 ==
                jnp.arange(K // 3)[None, :]).astype(jnp.float32)     # (768, 256)
    # Batch block: >=2 grid steps (v7x 2 TCs), ~2-4 samples worth of q rows for
    # MXU fill, and the double-buffered bf16 att output block kept << v5e's
    # 16 MiB scoped-VMEM default.
    att_bytes_per_sample = H * Nv_pad * Nq_pad * 2
    Bb = _pick_bb(B, rows_per_sample=Nq_pad, target_rows=512,
                  bytes_per_sample=att_bytes_per_sample, byte_budget=4 << 20)
    att_slab, pooled = pl.pallas_call(
        functools.partial(_ban_kernel, H=H, Nv=Nv, Nq=Nq,
                          Nv_pad=Nv_pad, Nq_pad=Nq_pad),
        grid=(B // Bb,),
        in_specs=[
            pl.BlockSpec((Bb * Nv_pad, C), lambda i: (i, 0)),
            pl.BlockSpec((Bb * Nq_pad, C), lambda i: (i, 0)),
            pl.BlockSpec((C, K), lambda i: (0, 0)),
            pl.BlockSpec((1, K), lambda i: (0, 0)),
            pl.BlockSpec((C, K), lambda i: (0, 0)),
            pl.BlockSpec((1, K), lambda i: (0, 0)),
            pl.BlockSpec((H, K), lambda i: (0, 0)),
            pl.BlockSpec((H * Nv_pad, 1), lambda i: (0, 0)),
            pl.BlockSpec((K, K // 3), lambda i: (0, 0)),
        ],
        out_specs=[
            pl.BlockSpec((Bb, H * Nv_pad, Nq_pad), lambda i: (i, 0, 0)),
            pl.BlockSpec((Bb, 1, K // 3), lambda i: (i, 0, 0)),
        ],
        out_shape=[
            jax.ShapeDtypeStruct((B, H * Nv_pad, Nq_pad), jnp.bfloat16),
            jax.ShapeDtypeStruct((B, 1, K // 3), jnp.float32),
        ],
        compiler_params=pltpu.CompilerParams(dimension_semantics=("parallel",)),
    )(vd.astype(jnp.bfloat16), vp.astype(jnp.bfloat16),
      Wv.astype(jnp.bfloat16), bv.reshape(1, K).astype(jnp.float32),
      Wq.astype(jnp.bfloat16), bq.reshape(1, K).astype(jnp.float32),
      h_mat.astype(jnp.float32), hb_rows.astype(jnp.float32), pool_mat)
    att = att_slab.reshape(B, H, Nv_pad, Nq_pad)[:, :, :Nv, :Nq]   # bf16 (only returned)
    return att, pooled[:, 0, :]


# ----------------------------------------------------------------------------
# Kernel 3: fused MLP decoder (BANLayer BN + fc1..fc4 + ReLU + train-mode BNs).
# Whole batch resident; batch stats via MXU ones-row matmuls.
# ----------------------------------------------------------------------------
def _decoder_kernel(x_ref, w1_ref, b1_ref, w2_ref, b2_ref, w3_ref, b3_ref,
                    w4_ref, b4_ref, o_ref):
    B = x_ref.shape[0]
    ones_b = jnp.ones((1, B), jnp.float32)
    inv_b = 1.0 / B

    def bn(h):  # train-mode BatchNorm1d forward (batch stats, gamma=1, beta=0)
        mean = jnp.dot(ones_b, h, preferred_element_type=jnp.float32) * inv_b
        msq = jnp.dot(ones_b, h * h, preferred_element_type=jnp.float32) * inv_b
        var = jnp.maximum(msq - mean * mean, 0.0)
        return (h - mean) * lax.rsqrt(var + EPS)

    def layer(h, w_ref, b_ref):
        z = jnp.dot(h, w_ref[...], preferred_element_type=jnp.float32) + b_ref[...]
        return bn(jnp.maximum(z, 0.0)).astype(jnp.bfloat16)

    h = bn(x_ref[...]).astype(jnp.bfloat16)       # BANLayer.bn folded in (no XLA glue)
    h = layer(h, w1_ref, b1_ref)
    h = layer(h, w2_ref, b2_ref)
    h = layer(h, w3_ref, b3_ref)
    o_ref[...] = jnp.dot(h, w4_ref[...], preferred_element_type=jnp.float32) + b4_ref[...]


def mlp_decoder(x, params):
    B = x.shape[0]
    W4, b4 = params['W4'], params['b4']
    n_out = W4.shape[1]
    n_pad = 128 - n_out                            # lane-dense final store; slice outside
    W4p = jnp.pad(W4, ((0, 0), (0, n_pad)))
    b4p = jnp.pad(b4, ((0, n_pad),))
    args = [x.astype(jnp.float32),
            params['W1'].astype(jnp.bfloat16), params['b1'].reshape(1, -1),
            params['W2'].astype(jnp.bfloat16), params['b2'].reshape(1, -1),
            params['W3'].astype(jnp.bfloat16), params['b3'].reshape(1, -1),
            W4p.astype(jnp.bfloat16), b4p.reshape(1, -1)]
    out = pl.pallas_call(
        _decoder_kernel,
        out_shape=jax.ShapeDtypeStruct((B, 128), jnp.float32),
        in_specs=[pl.BlockSpec(memory_space=pltpu.MemorySpace.VMEM)] * len(args),
        out_specs=pl.BlockSpec(memory_space=pltpu.MemorySpace.VMEM),
    )(*args)
    return out[:, :n_out]


# ----------------------------------------------------------------------------
# Plain-JAX glue
# ----------------------------------------------------------------------------
def cnn_extractor(x_blc, conv_params):
    """DNACNN / ProteinCNN: (conv1d -> ReLU -> BN) x3, then PyTorch `.view`.
    The BN of layer k is folded into layer k+1's conv weights; the sequence
    axis stays padded at L across layers (invalid rows zeroed in-kernel)."""
    B, L, _ = x_blc.shape
    x2 = x_blc.reshape(B * L, -1).astype(jnp.bfloat16)
    mean = rstd = None
    Lv = L                                          # valid sequence length
    OC = None
    for (W, b) in conv_params:                      # W in torch layout (OC, IC, KW)
        OC, IC, KW = W.shape
        if mean is None:
            Wf, bf = W, b
        else:                                       # conv(BN(x)) == conv'(x)
            Wf = W * rstd[None, :, None]
            bf = b - jnp.einsum('oik,i->o', W, mean * rstd)
        # Tap-major column groups: w_cat[:, dt*OC:(dt+1)*OC] = Wf[:, :, dt].T
        w_cat = jnp.transpose(Wf, (1, 2, 0)).reshape(IC, KW * OC)
        Lout = Lv - KW + 1
        x2, stats = conv_relu_stats(x2, w_cat.astype(jnp.bfloat16),
                                    bf.reshape(1, OC).astype(jnp.float32),
                                    B=B, L=L, Lout=Lout, OC=OC)
        n = B * Lout
        mean = jnp.sum(stats[:, 0, :], axis=0) / n
        var = jnp.maximum(jnp.sum(stats[:, 1, :], axis=0) / n - mean * mean, 0.0)
        rstd = lax.rsqrt(var + EPS)                 # biased var, as in PyTorch train fwd
        Lv = Lout
    # Final BN + replicate `v.view(B, v.size(2), -1)` on the NCL tensor (raw reshape).
    # TODO(synk): left in XLA (fused into one transpose pass); the view interleaves
    # channels/positions so the BN cannot be folded per-channel into the BAN weights.
    xf = (x2.reshape(B, L, OC)[:, :Lv, :].astype(jnp.float32) - mean) * rstd
    return jnp.transpose(xf, (0, 2, 1)).reshape(B, Lv, OC)


def drugban_forward(params, bg_d, v_p):
    # DNA branch: Embedding(5, 1280, padding_idx=0) + DNACNN
    x_d = jnp.take(params['emb'], bg_d.astype(jnp.int32), axis=0)    # (B, Ld, 1280)
    v_d = cnn_extractor(x_d, params['dna_convs'])                    # (B, Ld-6, 128)
    v_pf = cnn_extractor(v_p, params['prot_convs'])                  # (B, Lp-6, 128)
    # BAN layer (FCNet projections + AvgPool-as-grouped-sum fused in).
    # TODO(synk): FCNet Dropout(0.2) is stochastic; treated as identity (eval-mode).
    att, pooled = ban_attention(v_d, v_pf, params['Wv'], params['bv'],
                                params['Wq'], params['bq'],
                                params['h_mat'], params['h_bias'])
    score = mlp_decoder(pooled, params)             # BANLayer.bn + MLPDecoder fused
    return score, att


# ----------------------------------------------------------------------------
# Deterministic parameter init (weight_norm with dim=None is identity at init)
# ----------------------------------------------------------------------------
def init_params(key):
    ks = jax.random.split(key, 32)
    it = iter(ks)

    def nrm(shape, scale=0.05):
        return jax.random.normal(next(it), shape, jnp.float32) * scale

    p = {}
    emb = nrm((5, 1280), 1.0)
    p['emb'] = emb.at[0].set(0.0)          # padding_idx=0
    p['dna_convs'] = [(nrm((128, 1280, 3)), nrm((128,))),
                      (nrm((128, 128, 3)), nrm((128,))),
                      (nrm((128, 128, 3)), nrm((128,)))]
    p['prot_convs'] = [(nrm((128, 1280, 3)), nrm((128,))),
                       (nrm((128, 128, 3)), nrm((128,))),
                       (nrm((128, 128, 3)), nrm((128,)))]
    # BANLayer: v_net / q_net FCNet([128, 768]), h_mat (1,2,1,768), h_bias (1,2,1,1)
    p['Wv'] = nrm((128, 768)); p['bv'] = nrm((768,))
    p['Wq'] = nrm((128, 768)); p['bq'] = nrm((768,))
    p['h_mat'] = nrm((2, 768), 1.0)
    p['h_bias'] = nrm((2,), 1.0)
    # MLPDecoder(256, 512, 128, binary=2)
    p['W1'] = nrm((256, 512)); p['b1'] = nrm((512,))
    p['W2'] = nrm((512, 512)); p['b2'] = nrm((512,))
    p['W3'] = nrm((512, 128)); p['b3'] = nrm((128,))
    p['W4'] = nrm((128, 2));   p['b4'] = nrm((2,))
    return p


if __name__ == "__main__":
    key = jax.random.PRNGKey(0)
    kp, kd, kprot = jax.random.split(key, 3)
    params = init_params(kp)

    B, Ld, Lp = 2, 16, 16
    bg_d = jax.random.randint(kd, (B, Ld), 0, 5, dtype=jnp.int32)       # DNA token ids
    v_p = jax.random.normal(kprot, (B, Lp, 1280), jnp.float32)          # protein embeddings

    score, att = jax.jit(drugban_forward)(params, bg_d, v_p)
    jax.block_until_ready((score, att))

    assert score.shape == (B, 2), score.shape
    assert att.shape == (B, 2, Ld - 6, Lp - 6), att.shape
    assert bool(jnp.all(jnp.isfinite(score))), "non-finite logits"
    print("KERNEL_OK")
</pallas_src>

<mosaic_0001>
module attributes {stable_mosaic.version = 11 : i64} {
  func.func @_conv_relu_kernel(%arg0: i32, %arg1: memref<16x1280xbf16, #tpu.memory_space<vmem>>, %arg2: memref<1280x384xbf16, #tpu.memory_space<vmem>>, %arg3: memref<1x128xf32, #tpu.memory_space<vmem>>, %arg4: memref<16x128xbf16, #tpu.memory_space<vmem>>, %arg5: memref<1x2x128xf32, #tpu.memory_space<vmem>>) attributes {dimension_semantics = [#tpu.dimension_semantics<parallel>], iteration_bounds = array<i64: 2>, scalar_prefetch = 0 : i64, scratch_operands = 0 : i64, tpu.core_type = #tpu.core_type<tc>, window_params = [{transform_indices = @transform_0, window_bounds = array<i64: 16, 1280>}, {pipeline_mode = #tpu.pipeline_mode<synchronous>, transform_indices = @transform_1, window_bounds = array<i64: 1280, 384>}, {pipeline_mode = #tpu.pipeline_mode<synchronous>, transform_indices = @transform_2, window_bounds = array<i64: 1, 128>}, {transform_indices = @transform_3, window_bounds = array<i64: 16, 128>}, {transform_indices = @transform_4, window_bounds = array<i64: 1, 2, 128>}]} {
    %c0 = arith.constant 0 : index
    %c0_0 = arith.constant 0 : index
    %0 = vector.load %arg1[%c0, %c0_0] : memref<16x1280xbf16, #tpu.memory_space<vmem>>, vector<16x1280xbf16>
    %c0_1 = arith.constant 0 : index
    %c0_2 = arith.constant 0 : index
    %1 = vector.load %arg2[%c0_1, %c0_2] : memref<1280x384xbf16, #tpu.memory_space<vmem>>, vector<1280x384xbf16>
    %cst = arith.constant dense<0.000000e+00> : vector<16x384xf32>
    %2 = tpu.matmul %0, %1, %cst {dimension_numbers = #tpu.dot_dimension_numbers<[1], [0], [0], [1], [0, 0, 1, 1], [], []>} : vector<16x1280xbf16>, vector<1280x384xbf16>, vector<16x384xf32> -> vector<16x384xf32>
    %3 = vector.extract_strided_slice %2 {offsets = [0, 0], sizes = [16, 128], strides = [1, 1]} : vector<16x384xf32> to vector<16x128xf32>
    %4 = vector.extract_strided_slice %2 {offsets = [0, 128], sizes = [16, 128], strides = [1, 1]} : vector<16x384xf32> to vector<16x128xf32>
    %5 = vector.extract_strided_slice %4 {offsets = [1, 0], sizes = [15, 128], strides = [1, 1]} : vector<16x128xf32> to vector<15x128xf32>
    %6 = vector.extract_strided_slice %4 {offsets = [0, 0], sizes = [1, 128], strides = [1, 1]} : vector<16x128xf32> to vector<1x128xf32>
    %7 = tpu.concatenate %5, %6 in 0 : vector<15x128xf32>, vector<1x128xf32> -> vector<16x128xf32>
    %8 = arith.addf %3, %7 : vector<16x128xf32>
    %9 = vector.extract_strided_slice %2 {offsets = [0, 256], sizes = [16, 128], strides = [1, 1]} : vector<16x384xf32> to vector<16x128xf32>
    %10 = vector.extract_strided_slice %9 {offsets = [2, 0], sizes = [14, 128], strides = [1, 1]} : vector<16x128xf32> to vector<14x128xf32>
    %11 = vector.extract_strided_slice %9 {offsets = [0, 0], sizes = [2, 128], strides = [1, 1]} : vector<16x128xf32> to vector<2x128xf32>
    %12 = tpu.concatenate %10, %11 in 0 : vector<14x128xf32>, vector<2x128xf32> -> vector<16x128xf32>
    %13 = arith.addf %8, %12 : vector<16x128xf32>
    %c0_3 = arith.constant 0 : index
    %c0_4 = arith.constant 0 : index
    %14 = vector.load %arg3[%c0_3, %c0_4] : memref<1x128xf32, #tpu.memory_space<vmem>>, vector<1x128xf32>
    %15 = vector.broadcast %14 : vector<1x128xf32> to vector<16x128xf32>
    %16 = arith.addf %13, %15 : vector<16x128xf32>
    %cst_5 = arith.constant 0.000000e+00 : f32
    %17 = vector.broadcast %cst_5 : f32 to vector<16x128xf32>
    %18 = arith.maximumf %16, %17 : vector<16x128xf32>
    %19 = tpu.iota {dimensions = array<i32: 0>} : vector<16x1xi32>
    %c16_i32 = arith.constant 16 : i32
    %c0_i32 = arith.constant 0 : i32
    %20 = arith.cmpi eq, %c16_i32, %c0_i32 : i32
    %c1_i32 = arith.constant 1 : i32
    %21 = arith.select %20, %c1_i32, %c16_i32 : i32
    %22 = vector.broadcast %21 : i32 to vector<16x1xi32>
    %23 = arith.remsi %19, %22 : vector<16x1xi32>
    %c0_i32_6 = arith.constant 0 : i32
    %24 = vector.broadcast %c0_i32_6 : i32 to vector<16x1xi32>
    %25 = arith.cmpi ne, %23, %24 : vector<16x1xi32>
    %c0_i32_7 = arith.constant 0 : i32
    %26 = vector.broadcast %c0_i32_7 : i32 to vector<16x1xi32>
    %27 = arith.cmpi slt, %23, %26 : vector<16x1xi32>
    %c0_i32_8 = arith.constant 0 : i32
    %28 = arith.cmpi slt, %21, %c0_i32_8 : i32
    %29 = vector.broadcast %28 : i1 to vector<16x1xi1>
    %30 = vector.broadcast %29 : vector<16x1xi1> to vector<16x1xi1>
    %31 = arith.xori %27, %30 : vector<16x1xi1>
    %32 = arith.andi %31, %25 : vector<16x1xi1>
    %33 = vector.broadcast %21 : i32 to vector<16x1xi32>
    %34 = arith.addi %23, %33 : vector<16x1xi32>
    %35 = arith.select %32, %34, %23 : vector<16x1xi1>, vector<16x1xi32>
    %c14_i32 = arith.constant 14 : i32
    %36 = vector.broadcast %c14_i32 : i32 to vector<16x1xi32>
    %37 = arith.cmpi slt, %35, %36 : vector<16x1xi32>
    %cst_9 = arith.constant 0.000000e+00 : f32
    %38 = vector.shape_cast %37 : vector<16x1xi1> to vector<16x1xi1>
    %39 = vector.broadcast %38 : vector<16x1xi1> to vector<16x128xi1>
    %40 = vector.broadcast %cst_9 : f32 to vector<16x128xf32>
    %41 = arith.select %39, %18, %40 : vector<16x128xi1>, vector<16x128xf32>
    %42 = arith.truncf %41 : vector<16x128xf32> to vector<16x128xbf16>
    %c0_10 = arith.constant 0 : index
    %c0_11 = arith.constant 0 : index
    %43 = vector.load %arg4[%c0_10, %c0_11] : memref<16x128xbf16, #tpu.memory_space<vmem>>, vector<16x128xbf16>
    tpu.vector_store %arg4[%c0_10, %c0_11], %42 {strides = array<i32>} : memref<16x128xbf16, #tpu.memory_space<vmem>>, vector<16x128xbf16>,
    %cst_12 = arith.constant 1.000000e+00 : f32
    %44 = vector.broadcast %cst_12 : f32 to vector<1x16xf32>
    %cst_13 = arith.constant dense<0.000000e+00> : vector<1x128xf32>
    %45 = tpu.matmul %44, %41, %cst_13 {dimension_numbers = #tpu.dot_dimension_numbers<[1], [0], [0], [1], [0, 0, 1, 1], [], []>} : vector<1x16xf32>, vector<16x128xf32>, vector<1x128xf32> -> vector<1x128xf32>
    %46 = arith.mulf %41, %41 : vector<16x128xf32>
    %cst_14 = arith.constant dense<0.000000e+00> : vector<1x128xf32>
    %47 = tpu.matmul %44, %46, %cst_14 {dimension_numbers = #tpu.dot_dimension_numbers<[1], [0], [0], [1], [0, 0, 1, 1], [], []>} : vector<1x16xf32>, vector<16x128xf32>, vector<1x128xf32> -> vector<1x128xf32>
    %48 = tpu.concatenate %45, %47 in 0 : vector<1x128xf32>, vector<1x128xf32> -> vector<2x128xf32>
    %c0_15 = arith.constant 0 : index
    %c0_16 = arith.constant 0 : index
    %c0_17 = arith.constant 0 : index
    %49 = vector.load %arg5[%c0_15, %c0_16, %c0_17] : memref<1x2x128xf32, #tpu.memory_space<vmem>>, vector<1x2x128xf32>
    %50 = vector.shape_cast %49 : vector<1x2x128xf32> to vector<2x128xf32>
    %51 = vector.shape_cast %48 : vector<2x128xf32> to vector<1x2x128xf32>
    tpu.vector_store %arg5[%c0_15, %c0_16, %c0_17], %51 {strides = array<i32>} : memref<1x2x128xf32, #tpu.memory_space<vmem>>, vector<1x2x128xf32>,
    return
  }
  func.func @transform_0(%arg0: i32) -> (i32, i32) {
    %c0_i32 = arith.constant 0 : i32
    %c0_i32_0 = arith.constant 0 : i32
    return %arg0, %c0_i32 : i32, i32
  }
  func.func @transform_1(%arg0: i32) -> (i32, i32) {
    %c0_i32 = arith.constant 0 : i32
    %c0_i32_0 = arith.constant 0 : i32
    %c0_i32_1 = arith.constant 0 : i32
    return %c0_i32, %c0_i32_0 : i32, i32
  }
  func.func @transform_2(%arg0: i32) -> (i32, i32) {
    %c0_i32 = arith.constant 0 : i32
    %c0_i32_0 = arith.constant 0 : i32
    %c0_i32_1 = arith.constant 0 : i32
    return %c0_i32, %c0_i32_0 : i32, i32
  }
  func.func @transform_3(%arg0: i32) -> (i32, i32) {
    %c0_i32 = arith.constant 0 : i32
    %c0_i32_0 = arith.constant 0 : i32
    return %arg0, %c0_i32 : i32, i32
  }
  func.func @transform_4(%arg0: i32) -> (i32, i32, i32) {
    %c0_i32 = arith.constant 0 : i32
    %c0_i32_0 = arith.constant 0 : i32
    %c0_i32_1 = arith.constant 0 : i32
    return %arg0, %c0_i32, %c0_i32_0 : i32, i32, i32
  }
}

module attributes {stable_mosaic.version = 11 : i64} {
  func.func @_conv_relu_kernel(%arg0: i32, %arg1: memref<16x128xbf16, #tpu.memory_space<vmem>>, %arg2: memref<128x384xbf16, #tpu.memory_space<vmem>>, %arg3: memref<1x128xf32, #tpu.memory_space<vmem>>, %arg4: memref<16x128xbf16, #tpu.memory_space<vmem>>, %arg5: memref<1x2x128xf32, #tpu.memory_space<vmem>>) attributes {dimension_semantics = [#tpu.dimension_semantics<parallel>], iteration_bounds = array<i64: 2>, scalar_prefetch = 0 : i64, scratch_operands = 0 : i64, tpu.core_type = #tpu.core_type<tc>, window_params = [{transform_indices = @transform_0, window_bounds = array<i64: 16, 128>}, {pipeline_mode = #tpu.pipeline_mode<synchronous>, transform_indices = @transform_1, window_bounds = array<i64: 128, 384>}, {pipeline_mode = #tpu.pipeline_mode<synchronous>, transform_indices = @transform_2, window_bounds = array<i64: 1, 128>}, {transform_indices = @transform_3, window_bounds = array<i64: 16, 128>}, {transform_indices = @transform_4, window_bounds = array<i64: 1, 2, 128>}]} {
    %c0 = arith.constant 0 : index
    %c0_0 = arith.constant 0 : index
    %0 = vector.load %arg1[%c0, %c0_0] : memref<16x128xbf16, #tpu.memory_space<vmem>>, vector<16x128xbf16>
    %c0_1 = arith.constant 0 : index
    %c0_2 = arith.constant 0 : index
    %1 = vector.load %arg2[%c0_1, %c0_2] : memref<128x384xbf16, #tpu.memory_space<vmem>>, vector<128x384xbf16>
    %cst = arith.constant dense<0.000000e+00> : vector<16x384xf32>
    %2 = tpu.matmul %0, %1, %cst {dimension_numbers = #tpu.dot_dimension_numbers<[1], [0], [0], [1], [0, 0, 1, 1], [], []>} : vector<16x128xbf16>, vector<128x384xbf16>, vector<16x384xf32> -> vector<16x384xf32>
    %3 = vector.extract_strided_slice %2 {offsets = [0, 0], sizes = [16, 128], strides = [1, 1]} : vector<16x384xf32> to vector<16x128xf32>
    %4 = vector.extract_strided_slice %2 {offsets = [0, 128], sizes = [16, 128], strides = [1, 1]} : vector<16x384xf32> to vector<16x128xf32>
    %5 = vector.extract_strided_slice %4 {offsets = [1, 0], sizes = [15, 128], strides = [1, 1]} : vector<16x128xf32> to vector<15x128xf32>
    %6 = vector.extract_strided_slice %4 {offsets = [0, 0], sizes = [1, 128], strides = [1, 1]} : vector<16x128xf32> to vector<1x128xf32>
    %7 = tpu.concatenate %5, %6 in 0 : vector<15x128xf32>, vector<1x128xf32> -> vector<16x128xf32>
    %8 = arith.addf %3, %7 : vector<16x128xf32>
    %9 = vector.extract_strided_slice %2 {offsets = [0, 256], sizes = [16, 128], strides = [1, 1]} : vector<16x384xf32> to vector<16x128xf32>
    %10 = vector.extract_strided_slice %9 {offsets = [2, 0], sizes = [14, 128], strides = [1, 1]} : vector<16x128xf32> to vector<14x128xf32>
    %11 = vector.extract_strided_slice %9 {offsets = [0, 0], sizes = [2, 128], strides = [1, 1]} : vector<16x128xf32> to vector<2x128xf32>
    %12 = tpu.concatenate %10, %11 in 0 : vector<14x128xf32>, vector<2x128xf32> -> vector<16x128xf32>
    %13 = arith.addf %8, %12 : vector<16x128xf32>
    %c0_3 = arith.constant 0 : index
    %c0_4 = arith.constant 0 : index
    %14 = vector.load %arg3[%c0_3, %c0_4] : memref<1x128xf32, #tpu.memory_space<vmem>>, vector<1x128xf32>
    %15 = vector.broadcast %14 : vector<1x128xf32> to vector<16x128xf32>
    %16 = arith.addf %13, %15 : vector<16x128xf32>
    %cst_5 = arith.constant 0.000000e+00 : f32
    %17 = vector.broadcast %cst_5 : f32 to vector<16x128xf32>
    %18 = arith.maximumf %16, %17 : vector<16x128xf32>
    %19 = tpu.iota {dimensions = array<i32: 0>} : vector<16x1xi32>
    %c16_i32 = arith.constant 16 : i32
    %c0_i32 = arith.constant 0 : i32
    %20 = arith.cmpi eq, %c16_i32, %c0_i32 : i32
    %c1_i32 = arith.constant 1 : i32
    %21 = arith.select %20, %c1_i32, %c16_i32 : i32
    %22 = vector.broadcast %21 : i32 to vector<16x1xi32>
    %23 = arith.remsi %19, %22 : vector<16x1xi32>
    %c0_i32_6 = arith.constant 0 : i32
    %24 = vector.broadcast %c0_i32_6 : i32 to vector<16x1xi32>
    %25 = arith.cmpi ne, %23, %24 : vector<16x1xi32>
    %c0_i32_7 = arith.constant 0 : i32
    %26 = vector.broadcast %c0_i32_7 : i32 to vector<16x1xi32>
    %27 = arith.cmpi slt, %23, %26 : vector<16x1xi32>
    %c0_i32_8 = arith.constant 0 : i32
    %28 = arith.cmpi slt, %21, %c0_i32_8 : i32
    %29 = vector.broadcast %28 : i1 to vector<16x1xi1>
    %30 = vector.broadcast %29 : vector<16x1xi1> to vector<16x1xi1>
    %31 = arith.xori %27, %30 : vector<16x1xi1>
    %32 = arith.andi %31, %25 : vector<16x1xi1>
    %33 = vector.broadcast %21 : i32 to vector<16x1xi32>
    %34 = arith.addi %23, %33 : vector<16x1xi32>
    %35 = arith.select %32, %34, %23 : vector<16x1xi1>, vector<16x1xi32>
    %c12_i32 = arith.constant 12 : i32
    %36 = vector.broadcast %c12_i32 : i32 to vector<16x1xi32>
    %37 = arith.cmpi slt, %35, %36 : vector<16x1xi32>
    %cst_9 = arith.constant 0.000000e+00 : f32
    %38 = vector.shape_cast %37 : vector<16x1xi1> to vector<16x1xi1>
    %39 = vector.broadcast %38 : vector<16x1xi1> to vector<16x128xi1>
    %40 = vector.broadcast %cst_9 : f32 to vector<16x128xf32>
    %41 = arith.select %39, %18, %40 : vector<16x128xi1>, vector<16x128xf32>
    %42 = arith.truncf %41 : vector<16x128xf32> to vector<16x128xbf16>
    %c0_10 = arith.constant 0 : index
    %c0_11 = arith.constant 0 : index
    %43 = vector.load %arg4[%c0_10, %c0_11] : memref<16x128xbf16, #tpu.memory_space<vmem>>, vector<16x128xbf16>
    tpu.vector_store %arg4[%c0_10, %c0_11], %42 {strides = array<i32>} : memref<16x128xbf16, #tpu.memory_space<vmem>>, vector<16x128xbf16>,
    %cst_12 = arith.constant 1.000000e+00 : f32
    %44 = vector.broadcast %cst_12 : f32 to vector<1x16xf32>
    %cst_13 = arith.constant dense<0.000000e+00> : vector<1x128xf32>
    %45 = tpu.matmul %44, %41, %cst_13 {dimension_numbers = #tpu.dot_dimension_numbers<[1], [0], [0], [1], [0, 0, 1, 1], [], []>} : vector<1x16xf32>, vector<16x128xf32>, vector<1x128xf32> -> vector<1x128xf32>
    %46 = arith.mulf %41, %41 : vector<16x128xf32>
    %cst_14 = arith.constant dense<0.000000e+00> : vector<1x128xf32>
    %47 = tpu.matmul %44, %46, %cst_14 {dimension_numbers = #tpu.dot_dimension_numbers<[1], [0], [0], [1], [0, 0, 1, 1], [], []>} : vector<1x16xf32>, vector<16x128xf32>, vector<1x128xf32> -> vector<1x128xf32>
    %48 = tpu.concatenate %45, %47 in 0 : vector<1x128xf32>, vector<1x128xf32> -> vector<2x128xf32>
    %c0_15 = arith.constant 0 : index
    %c0_16 = arith.constant 0 : index
    %c0_17 = arith.constant 0 : index
    %49 = vector.load %arg5[%c0_15, %c0_16, %c0_17] : memref<1x2x128xf32, #tpu.memory_space<vmem>>, vector<1x2x128xf32>
    %50 = vector.shape_cast %49 : vector<1x2x128xf32> to vector<2x128xf32>
    %51 = vector.shape_cast %48 : vector<2x128xf32> to vector<1x2x128xf32>
    tpu.vector_store %arg5[%c0_15, %c0_16, %c0_17], %51 {strides = array<i32>} : memref<1x2x128xf32, #tpu.memory_space<vmem>>, vector<1x2x128xf32>,
    return
  }
  func.func @transform_0(%arg0: i32) -> (i32, i32) {
    %c0_i32 = arith.constant 0 : i32
    %c0_i32_0 = arith.constant 0 : i32
    return %arg0, %c0_i32 : i32, i32
  }
  func.func @transform_1(%arg0: i32) -> (i32, i32) {
    %c0_i32 = arith.constant 0 : i32
    %c0_i32_0 = arith.constant 0 : i32
    %c0_i32_1 = arith.constant 0 : i32
    return %c0_i32, %c0_i32_0 : i32, i32
  }
  func.func @transform_2(%arg0: i32) -> (i32, i32) {
    %c0_i32 = arith.constant 0 : i32
    %c0_i32_0 = arith.constant 0 : i32
    %c0_i32_1 = arith.constant 0 : i32
    return %c0_i32, %c0_i32_0 : i32, i32
  }
  func.func @transform_3(%arg0: i32) -> (i32, i32) {
    %c0_i32 = arith.constant 0 : i32
    %c0_i32_0 = arith.constant 0 : i32
    return %arg0, %c0_i32 : i32, i32
  }
  func.func @transform_4(%arg0: i32) -> (i32, i32, i32) {
    %c0_i32 = arith.constant 0 : i32
    %c0_i32_0 = arith.constant 0 : i32
    %c0_i32_1 = arith.constant 0 : i32
    return %arg0, %c0_i32, %c0_i32_0 : i32, i32, i32
  }
}

module attributes {stable_mosaic.version = 11 : i64} {
  func.func @_conv_relu_kernel(%arg0: i32, %arg1: memref<16x128xbf16, #tpu.memory_space<vmem>>, %arg2: memref<128x384xbf16, #tpu.memory_space<vmem>>, %arg3: memref<1x128xf32, #tpu.memory_space<vmem>>, %arg4: memref<16x128xbf16, #tpu.memory_space<vmem>>, %arg5: memref<1x2x128xf32, #tpu.memory_space<vmem>>) attributes {dimension_semantics = [#tpu.dimension_semantics<parallel>], iteration_bounds = array<i64: 2>, scalar_prefetch = 0 : i64, scratch_operands = 0 : i64, tpu.core_type = #tpu.core_type<tc>, window_params = [{transform_indices = @transform_0, window_bounds = array<i64: 16, 128>}, {pipeline_mode = #tpu.pipeline_mode<synchronous>, transform_indices = @transform_1, window_bounds = array<i64: 128, 384>}, {pipeline_mode = #tpu.pipeline_mode<synchronous>, transform_indices = @transform_2, window_bounds = array<i64: 1, 128>}, {transform_indices = @transform_3, window_bounds = array<i64: 16, 128>}, {transform_indices = @transform_4, window_bounds = array<i64: 1, 2, 128>}]} {
    %c0 = arith.constant 0 : index
    %c0_0 = arith.constant 0 : index
    %0 = vector.load %arg1[%c0, %c0_0] : memref<16x128xbf16, #tpu.memory_space<vmem>>, vector<16x128xbf16>
    %c0_1 = arith.constant 0 : index
    %c0_2 = arith.constant 0 : index
    %1 = vector.load %arg2[%c0_1, %c0_2] : memref<128x384xbf16, #tpu.memory_space<vmem>>, vector<128x384xbf16>
    %cst = arith.constant dense<0.000000e+00> : vector<16x384xf32>
    %2 = tpu.matmul %0, %1, %cst {dimension_numbers = #tpu.dot_dimension_numbers<[1], [0], [0], [1], [0, 0, 1, 1], [], []>} : vector<16x128xbf16>, vector<128x384xbf16>, vector<16x384xf32> -> vector<16x384xf32>
    %3 = vector.extract_strided_slice %2 {offsets = [0, 0], sizes = [16, 128], strides = [1, 1]} : vector<16x384xf32> to vector<16x128xf32>
    %4 = vector.extract_strided_slice %2 {offsets = [0, 128], sizes = [16, 128], strides = [1, 1]} : vector<16x384xf32> to vector<16x128xf32>
    %5 = vector.extract_strided_slice %4 {offsets = [1, 0], sizes = [15, 128], strides = [1, 1]} : vector<16x128xf32> to vector<15x128xf32>
    %6 = vector.extract_strided_slice %4 {offsets = [0, 0], sizes = [1, 128], strides = [1, 1]} : vector<16x128xf32> to vector<1x128xf32>
    %7 = tpu.concatenate %5, %6 in 0 : vector<15x128xf32>, vector<1x128xf32> -> vector<16x128xf32>
    %8 = arith.addf %3, %7 : vector<16x128xf32>
    %9 = vector.extract_strided_slice %2 {offsets = [0, 256], sizes = [16, 128], strides = [1, 1]} : vector<16x384xf32> to vector<16x128xf32>
    %10 = vector.extract_strided_slice %9 {offsets = [2, 0], sizes = [14, 128], strides = [1, 1]} : vector<16x128xf32> to vector<14x128xf32>
    %11 = vector.extract_strided_slice %9 {offsets = [0, 0], sizes = [2, 128], strides = [1, 1]} : vector<16x128xf32> to vector<2x128xf32>
    %12 = tpu.concatenate %10, %11 in 0 : vector<14x128xf32>, vector<2x128xf32> -> vector<16x128xf32>
    %13 = arith.addf %8, %12 : vector<16x128xf32>
    %c0_3 = arith.constant 0 : index
    %c0_4 = arith.constant 0 : index
    %14 = vector.load %arg3[%c0_3, %c0_4] : memref<1x128xf32, #tpu.memory_space<vmem>>, vector<1x128xf32>
    %15 = vector.broadcast %14 : vector<1x128xf32> to vector<16x128xf32>
    %16 = arith.addf %13, %15 : vector<16x128xf32>
    %cst_5 = arith.constant 0.000000e+00 : f32
    %17 = vector.broadcast %cst_5 : f32 to vector<16x128xf32>
    %18 = arith.maximumf %16, %17 : vector<16x128xf32>
    %19 = tpu.iota {dimensions = array<i32: 0>} : vector<16x1xi32>
    %c16_i32 = arith.constant 16 : i32
    %c0_i32 = arith.constant 0 : i32
    %20 = arith.cmpi eq, %c16_i32, %c0_i32 : i32
    %c1_i32 = arith.constant 1 : i32
    %21 = arith.select %20, %c1_i32, %c16_i32 : i32
    %22 = vector.broadcast %21 : i32 to vector<16x1xi32>
    %23 = arith.remsi %19, %22 : vector<16x1xi32>
    %c0_i32_6 = arith.constant 0 : i32
    %24 = vector.broadcast %c0_i32_6 : i32 to vector<16x1xi32>
    %25 = arith.cmpi ne, %23, %24 : vector<16x1xi32>
    %c0_i32_7 = arith.constant 0 : i32
    %26 = vector.broadcast %c0_i32_7 : i32 to vector<16x1xi32>
    %27 = arith.cmpi slt, %23, %26 : vector<16x1xi32>
    %c0_i32_8 = arith.constant 0 : i32
    %28 = arith.cmpi slt, %21, %c0_i32_8 : i32
    %29 = vector.broadcast %28 : i1 to vector<16x1xi1>
    %30 = vector.broadcast %29 : vector<16x1xi1> to vector<16x1xi1>
    %31 = arith.xori %27, %30 : vector<16x1xi1>
    %32 = arith.andi %31, %25 : vector<16x1xi1>
    %33 = vector.broadcast %21 : i32 to vector<16x1xi32>
    %34 = arith.addi %23, %33 : vector<16x1xi32>
    %35 = arith.select %32, %34, %23 : vector<16x1xi1>, vector<16x1xi32>
    %c10_i32 = arith.constant 10 : i32
    %36 = vector.broadcast %c10_i32 : i32 to vector<16x1xi32>
    %37 = arith.cmpi slt, %35, %36 : vector<16x1xi32>
    %cst_9 = arith.constant 0.000000e+00 : f32
    %38 = vector.shape_cast %37 : vector<16x1xi1> to vector<16x1xi1>
    %39 = vector.broadcast %38 : vector<16x1xi1> to vector<16x128xi1>
    %40 = vector.broadcast %cst_9 : f32 to vector<16x128xf32>
    %41 = arith.select %39, %18, %40 : vector<16x128xi1>, vector<16x128xf32>
    %42 = arith.truncf %41 : vector<16x128xf32> to vector<16x128xbf16>
    %c0_10 = arith.constant 0 : index
    %c0_11 = arith.constant 0 : index
    %43 = vector.load %arg4[%c0_10, %c0_11] : memref<16x128xbf16, #tpu.memory_space<vmem>>, vector<16x128xbf16>
    tpu.vector_store %arg4[%c0_10, %c0_11], %42 {strides = array<i32>} : memref<16x128xbf16, #tpu.memory_space<vmem>>, vector<16x128xbf16>,
    %cst_12 = arith.constant 1.000000e+00 : f32
    %44 = vector.broadcast %cst_12 : f32 to vector<1x16xf32>
    %cst_13 = arith.constant dense<0.000000e+00> : vector<1x128xf32>
    %45 = tpu.matmul %44, %41, %cst_13 {dimension_numbers = #tpu.dot_dimension_numbers<[1], [0], [0], [1], [0, 0, 1, 1], [], []>} : vector<1x16xf32>, vector<16x128xf32>, vector<1x128xf32> -> vector<1x128xf32>
    %46 = arith.mulf %41, %41 : vector<16x128xf32>
    %cst_14 = arith.constant dense<0.000000e+00> : vector<1x128xf32>
    %47 = tpu.matmul %44, %46, %cst_14 {dimension_numbers = #tpu.dot_dimension_numbers<[1], [0], [0], [1], [0, 0, 1, 1], [], []>} : vector<1x16xf32>, vector<16x128xf32>, vector<1x128xf32> -> vector<1x128xf32>
    %48 = tpu.concatenate %45, %47 in 0 : vector<1x128xf32>, vector<1x128xf32> -> vector<2x128xf32>
    %c0_15 = arith.constant 0 : index
    %c0_16 = arith.constant 0 : index
    %c0_17 = arith.constant 0 : index
    %49 = vector.load %arg5[%c0_15, %c0_16, %c0_17] : memref<1x2x128xf32, #tpu.memory_space<vmem>>, vector<1x2x128xf32>
    %50 = vector.shape_cast %49 : vector<1x2x128xf32> to vector<2x128xf32>
    %51 = vector.shape_cast %48 : vector<2x128xf32> to vector<1x2x128xf32>
    tpu.vector_store %arg5[%c0_15, %c0_16, %c0_17], %51 {strides = array<i32>} : memref<1x2x128xf32, #tpu.memory_space<vmem>>, vector<1x2x128xf32>,
    return
  }
  func.func @transform_0(%arg0: i32) -> (i32, i32) {
    %c0_i32 = arith.constant 0 : i32
    %c0_i32_0 = arith.constant 0 : i32
    return %arg0, %c0_i32 : i32, i32
  }
  func.func @transform_1(%arg0: i32) -> (i32, i32) {
    %c0_i32 = arith.constant 0 : i32
    %c0_i32_0 = arith.constant 0 : i32
    %c0_i32_1 = arith.constant 0 : i32
    return %c0_i32, %c0_i32_0 : i32, i32
  }
  func.func @transform_2(%arg0: i32) -> (i32, i32) {
    %c0_i32 = arith.constant 0 : i32
    %c0_i32_0 = arith.constant 0 : i32
    %c0_i32_1 = arith.constant 0 : i32
    return %c0_i32, %c0_i32_0 : i32, i32
  }
  func.func @transform_3(%arg0: i32) -> (i32, i32) {
    %c0_i32 = arith.constant 0 : i32
    %c0_i32_0 = arith.constant 0 : i32
    return %arg0, %c0_i32 : i32, i32
  }
  func.func @transform_4(%arg0: i32) -> (i32, i32, i32) {
    %c0_i32 = arith.constant 0 : i32
    %c0_i32_0 = arith.constant 0 : i32
    %c0_i32_1 = arith.constant 0 : i32
    return %arg0, %c0_i32, %c0_i32_0 : i32, i32, i32
  }
}

module attributes {stable_mosaic.version = 11 : i64} {
  func.func @_ban_kernel(%arg0: i32, %arg1: memref<16x128xbf16, #tpu.memory_space<vmem>>, %arg2: memref<128x128xbf16, #tpu.memory_space<vmem>>, %arg3: memref<128x768xbf16, #tpu.memory_space<vmem>>, %arg4: memref<1x768xf32, #tpu.memory_space<vmem>>, %arg5: memref<128x768xbf16, #tpu.memory_space<vmem>>, %arg6: memref<1x768xf32, #tpu.memory_space<vmem>>, %arg7: memref<2x768xf32, #tpu.memory_space<vmem>>, %arg8: memref<32x1xf32, #tpu.memory_space<vmem>>, %arg9: memref<768x256xf32, #tpu.memory_space<vmem>>, %arg10: memref<1x32x128xbf16, #tpu.memory_space<vmem>>, %arg11: memref<1x1x256xf32, #tpu.memory_space<vmem>>) attributes {dimension_semantics = [#tpu.dimension_semantics<parallel>], iteration_bounds = array<i64: 2>, scalar_prefetch = 0 : i64, scratch_operands = 0 : i64, tpu.core_type = #tpu.core_type<tc>, window_params = [{transform_indices = @transform_0, window_bounds = array<i64: 16, 128>}, {transform_indices = @transform_1, window_bounds = array<i64: 128, 128>}, {pipeline_mode = #tpu.pipeline_mode<synchronous>, transform_indices = @transform_2, window_bounds = array<i64: 128, 768>}, {pipeline_mode = #tpu.pipeline_mode<synchronous>, transform_indices = @transform_3, window_bounds = array<i64: 1, 768>}, {pipeline_mode = #tpu.pipeline_mode<synchronous>, transform_indices = @transform_4, window_bounds = array<i64: 128, 768>}, {pipeline_mode = #tpu.pipeline_mode<synchronous>, transform_indices = @transform_5, window_bounds = array<i64: 1, 768>}, {pipeline_mode = #tpu.pipeline_mode<synchronous>, transform_indices = @transform_6, window_bounds = array<i64: 2, 768>}, {pipeline_mode = #tpu.pipeline_mode<synchronous>, transform_indices = @transform_7, window_bounds = array<i64: 32, 1>}, {pipeline_mode = #tpu.pipeline_mode<synchronous>, transform_indices = @transform_8, window_bounds = array<i64: 768, 256>}, {transform_indices = @transform_9, window_bounds = array<i64: 1, 32, 128>}, {transform_indices = @transform_10, window_bounds = array<i64: 1, 1, 256>}]} {
    %c0 = arith.constant 0 : index
    %c0_0 = arith.constant 0 : index
    %0 = vector.load %arg1[%c0, %c0_0] : memref<16x128xbf16, #tpu.memory_space<vmem>>, vector<16x128xbf16>
    %c0_1 = arith.constant 0 : index
    %c0_2 = arith.constant 0 : index
    %1 = vector.load %arg3[%c0_1, %c0_2] : memref<128x768xbf16, #tpu.memory_space<vmem>>, vector<128x768xbf16>
    %cst = arith.constant dense<0.000000e+00> : vector<16x768xf32>
    %2 = tpu.matmul %0, %1, %cst {dimension_numbers = #tpu.dot_dimension_numbers<[1], [0], [0], [1], [0, 0, 1, 1], [], []>} : vector<16x128xbf16>, vector<128x768xbf16>, vector<16x768xf32> -> vector<16x768xf32>
    %c0_3 = arith.constant 0 : index
    %c0_4 = arith.constant 0 : index
    %3 = vector.load %arg4[%c0_3, %c0_4] : memref<1x768xf32, #tpu.memory_space<vmem>>, vector<1x768xf32>
    %4 = vector.broadcast %3 : vector<1x768xf32> to vector<16x768xf32>
    %5 = arith.addf %2, %4 : vector<16x768xf32>
    %cst_5 = arith.constant 0.000000e+00 : f32
    %6 = vector.broadcast %cst_5 : f32 to vector<16x768xf32>
    %7 = arith.maximumf %5, %6 : vector<16x768xf32>
    %c0_6 = arith.constant 0 : index
    %c0_7 = arith.constant 0 : index
    %8 = vector.load %arg2[%c0_6, %c0_7] : memref<128x128xbf16, #tpu.memory_space<vmem>>, vector<128x128xbf16>
    %c0_8 = arith.constant 0 : index
    %c0_9 = arith.constant 0 : index
    %9 = vector.load %arg5[%c0_8, %c0_9] : memref<128x768xbf16, #tpu.memory_space<vmem>>, vector<128x768xbf16>
    %cst_10 = arith.constant dense<0.000000e+00> : vector<128x768xf32>
    %10 = tpu.matmul %8, %9, %cst_10 {dimension_numbers = #tpu.dot_dimension_numbers<[1], [0], [0], [1], [0, 0, 1, 1], [], []>} : vector<128x128xbf16>, vector<128x768xbf16>, vector<128x768xf32> -> vector<128x768xf32>
    %c0_11 = arith.constant 0 : index
    %c0_12 = arith.constant 0 : index
    %11 = vector.load %arg6[%c0_11, %c0_12] : memref<1x768xf32, #tpu.memory_space<vmem>>, vector<1x768xf32>
    %12 = vector.broadcast %11 : vector<1x768xf32> to vector<128x768xf32>
    %13 = arith.addf %10, %12 : vector<128x768xf32>
    %cst_13 = arith.constant 0.000000e+00 : f32
    %14 = vector.broadcast %cst_13 : f32 to vector<128x768xf32>
    %15 = arith.maximumf %13, %14 : vector<128x768xf32>
    %16 = tpu.iota {dimensions = array<i32: 0>} : vector<16x1xi32>
    %17 = tpu.iota {dimensions = array<i32: 0>} : vector<128x1xi32>
    %c16_i32 = arith.constant 16 : i32
    %c0_i32 = arith.constant 0 : i32
    %18 = arith.cmpi eq, %c16_i32, %c0_i32 : i32
    %c1_i32 = arith.constant 1 : i32
    %19 = arith.select %18, %c1_i32, %c16_i32 : i32
    %20 = vector.broadcast %19 : i32 to vector<16x1xi32>
    %21 = arith.remsi %16, %20 : vector<16x1xi32>
    %c0_i32_14 = arith.constant 0 : i32
    %22 = vector.broadcast %c0_i32_14 : i32 to vector<16x1xi32>
    %23 = arith.cmpi ne, %21, %22 : vector<16x1xi32>
    %c0_i32_15 = arith.constant 0 : i32
    %24 = vector.broadcast %c0_i32_15 : i32 to vector<16x1xi32>
    %25 = arith.cmpi slt, %21, %24 : vector<16x1xi32>
    %c0_i32_16 = arith.constant 0 : i32
    %26 = arith.cmpi slt, %19, %c0_i32_16 : i32
    %27 = vector.broadcast %26 : i1 to vector<16x1xi1>
    %28 = vector.broadcast %27 : vector<16x1xi1> to vector<16x1xi1>
    %29 = arith.xori %25, %28 : vector<16x1xi1>
    %30 = arith.andi %29, %23 : vector<16x1xi1>
    %31 = vector.broadcast %19 : i32 to vector<16x1xi32>
    %32 = arith.addi %21, %31 : vector<16x1xi32>
    %33 = arith.select %30, %32, %21 : vector<16x1xi1>, vector<16x1xi32>
    %c10_i32 = arith.constant 10 : i32
    %34 = vector.broadcast %c10_i32 : i32 to vector<16x1xi32>
    %35 = arith.cmpi slt, %33, %34 : vector<16x1xi32>
    %cst_17 = arith.constant 0.000000e+00 : f32
    %36 = vector.shape_cast %35 : vector<16x1xi1> to vector<16x1xi1>
    %37 = vector.broadcast %36 : vector<16x1xi1> to vector<16x768xi1>
    %38 = vector.broadcast %cst_17 : f32 to vector<16x768xf32>
    %39 = arith.select %37, %7, %38 : vector<16x768xi1>, vector<16x768xf32>
    %c128_i32 = arith.constant 128 : i32
    %c0_i32_18 = arith.constant 0 : i32
    %40 = arith.cmpi eq, %c128_i32, %c0_i32_18 : i32
    %c1_i32_19 = arith.constant 1 : i32
    %41 = arith.select %40, %c1_i32_19, %c128_i32 : i32
    %42 = vector.broadcast %41 : i32 to vector<128x1xi32>
    %43 = arith.remsi %17, %42 : vector<128x1xi32>
    %c0_i32_20 = arith.constant 0 : i32
    %44 = vector.broadcast %c0_i32_20 : i32 to vector<128x1xi32>
    %45 = arith.cmpi ne, %43, %44 : vector<128x1xi32>
    %c0_i32_21 = arith.constant 0 : i32
    %46 = vector.broadcast %c0_i32_21 : i32 to vector<128x1xi32>
    %47 = arith.cmpi slt, %43, %46 : vector<128x1xi32>
    %c0_i32_22 = arith.constant 0 : i32
    %48 = arith.cmpi slt, %41, %c0_i32_22 : i32
    %49 = vector.broadcast %48 : i1 to vector<128x1xi1>
    %50 = vector.broadcast %49 : vector<128x1xi1> to vector<128x1xi1>
    %51 = arith.xori %47, %50 : vector<128x1xi1>
    %52 = arith.andi %51, %45 : vector<128x1xi1>
    %53 = vector.broadcast %41 : i32 to vector<128x1xi32>
    %54 = arith.addi %43, %53 : vector<128x1xi32>
    %55 = arith.select %52, %54, %43 : vector<128x1xi1>, vector<128x1xi32>
    %c10_i32_23 = arith.constant 10 : i32
    %56 = vector.broadcast %c10_i32_23 : i32 to vector<128x1xi32>
    %57 = arith.cmpi slt, %55, %56 : vector<128x1xi32>
    %cst_24 = arith.constant 0.000000e+00 : f32
    %58 = vector.shape_cast %57 : vector<128x1xi1> to vector<128x1xi1>
    %59 = vector.broadcast %58 : vector<128x1xi1> to vector<128x768xi1>
    %60 = vector.broadcast %cst_24 : f32 to vector<128x768xf32>
    %61 = arith.select %59, %15, %60 : vector<128x768xi1>, vector<128x768xf32>
    %62 = vector.shape_cast %39 : vector<16x768xf32> to vector<1x16x768xf32>
    %63 = vector.shape_cast %61 : vector<128x768xf32> to vector<1x128x768xf32>
    %64 = arith.truncf %63 : vector<1x128x768xf32> to vector<1x128x768xbf16>
    %c0_25 = arith.constant 0 : index
    %c0_26 = arith.constant 0 : index
    %65 = vector.load %arg7[%c0_25, %c0_26] : memref<2x768xf32, #tpu.memory_space<vmem>>, vector<2x768xf32>
    %66 = vector.extract_strided_slice %65 {offsets = [0, 0], sizes = [1, 768], strides = [1, 1]} : vector<2x768xf32> to vector<1x768xf32>
    %67 = vector.shape_cast %66 : vector<1x768xf32> to vector<1x1x768xf32>
    %68 = vector.broadcast %67 : vector<1x1x768xf32> to vector<1x16x768xf32>
    %69 = arith.mulf %62, %68 : vector<1x16x768xf32>
    %70 = arith.truncf %69 : vector<1x16x768xf32> to vector<1x16x768xbf16>
    %71 = vector.extract_strided_slice %65 {offsets = [1, 0], sizes = [1, 768], strides = [1, 1]} : vector<2x768xf32> to vector<1x768xf32>
    %72 = vector.shape_cast %71 : vector<1x768xf32> to vector<1x1x768xf32>
    %73 = vector.broadcast %72 : vector<1x1x768xf32> to vector<1x16x768xf32>
    %74 = arith.mulf %62, %73 : vector<1x16x768xf32>
    %75 = arith.truncf %74 : vector<1x16x768xf32> to vector<1x16x768xbf16>
    %76 = tpu.concatenate %70, %75 in 1 : vector<1x16x768xbf16>, vector<1x16x768xbf16> -> vector<1x32x768xbf16>
    "tpu.trace_start"() <{level = 10 : i32, message = "bmk,bqk->bmq"}> : () -> ()
    %cst_27 = arith.constant dense<0.000000e+00> : vector<1x32x128xf32>
    %77 = tpu.matmul %76, %64, %cst_27 {dimension_numbers = #tpu.dot_dimension_numbers<[2], [2], [1], [1], [0, 0, 0, 1, 1, 1], [0], [0]>} : vector<1x32x768xbf16>, vector<1x128x768xbf16>, vector<1x32x128xf32> -> vector<1x32x128xf32>
    "tpu.trace_stop"() : () -> ()
    %c0_28 = arith.constant 0 : index
    %c0_29 = arith.constant 0 : index
    %78 = vector.load %arg8[%c0_28, %c0_29] : memref<32x1xf32, #tpu.memory_space<vmem>>, vector<32x1xf32>
    %79 = vector.shape_cast %78 : vector<32x1xf32> to vector<1x32x1xf32>
    %80 = vector.broadcast %79 : vector<1x32x1xf32> to vector<1x32x128xf32>
    %81 = arith.addf %77, %80 : vector<1x32x128xf32>
    %82 = arith.truncf %81 : vector<1x32x128xf32> to vector<1x32x128xbf16>
    %c0_30 = arith.constant 0 : index
    %c0_31 = arith.constant 0 : index
    %c0_32 = arith.constant 0 : index
    %83 = vector.load %arg10[%c0_30, %c0_31, %c0_32] : memref<1x32x128xbf16, #tpu.memory_space<vmem>>, vector<1x32x128xbf16>
    tpu.vector_store %arg10[%c0_30, %c0_31, %c0_32], %82 {strides = array<i32>} : memref<1x32x128xbf16, #tpu.memory_space<vmem>>, vector<1x32x128xbf16>,
    %84 = vector.extract_strided_slice %81 {offsets = [0, 0, 0], sizes = [1, 16, 128], strides = [1, 1, 1]} : vector<1x32x128xf32> to vector<1x16x128xf32>
    %85 = vector.extract_strided_slice %81 {offsets = [0, 16, 0], sizes = [1, 16, 128], strides = [1, 1, 1]} : vector<1x32x128xf32> to vector<1x16x128xf32>
    %86 = arith.addf %84, %85 : vector<1x16x128xf32>
    %87 = arith.truncf %86 : vector<1x16x128xf32> to vector<1x16x128xbf16>
    "tpu.trace_start"() <{level = 10 : i32, message = "bvq,bqk->bvk"}> : () -> ()
    %cst_33 = arith.constant dense<0.000000e+00> : vector<1x16x768xf32>
    %88 = tpu.matmul %87, %64, %cst_33 {dimension_numbers = #tpu.dot_dimension_numbers<[2], [1], [1], [2], [0, 0, 0, 1, 1, 2], [0], [0]>} : vector<1x16x128xbf16>, vector<1x128x768xbf16>, vector<1x16x768xf32> -> vector<1x16x768xf32>
    "tpu.trace_stop"() : () -> ()
    %89 = arith.mulf %62, %88 : vector<1x16x768xf32>
    %cst_34 = arith.constant dense<0.000000e+00> : vector<1x768xf32>
    %90 = vector.multi_reduction <add>, %89, %cst_34 [1] : vector<1x16x768xf32> to vector<1x768xf32>
    %c0_35 = arith.constant 0 : index
    %c0_36 = arith.constant 0 : index
    %91 = vector.load %arg9[%c0_35, %c0_36] : memref<768x256xf32, #tpu.memory_space<vmem>>, vector<768x256xf32>
    %cst_37 = arith.constant dense<0.000000e+00> : vector<1x256xf32>
    %92 = tpu.matmul %90, %91, %cst_37 {dimension_numbers = #tpu.dot_dimension_numbers<[1], [0], [0], [1], [0, 0, 1, 1], [], []>} : vector<1x768xf32>, vector<768x256xf32>, vector<1x256xf32> -> vector<1x256xf32>
    %c0_38 = arith.constant 0 : index
    %c0_39 = arith.constant 0 : index
    %c0_40 = arith.constant 0 : index
    %93 = vector.load %arg11[%c0_38, %c0_39, %c0_40] : memref<1x1x256xf32, #tpu.memory_space<vmem>>, vector<1x1x256xf32>
    %94 = vector.shape_cast %93 : vector<1x1x256xf32> to vector<1x256xf32>
    %95 = vector.shape_cast %92 : vector<1x256xf32> to vector<1x1x256xf32>
    tpu.vector_store %arg11[%c0_38, %c0_39, %c0_40], %95 {strides = array<i32>} : memref<1x1x256xf32, #tpu.memory_space<vmem>>, vector<1x1x256xf32>,
    return
  }
  func.func @transform_0(%arg0: i32) -> (i32, i32) {
    %c0_i32 = arith.constant 0 : i32
    %c0_i32_0 = arith.constant 0 : i32
    return %arg0, %c0_i32 : i32, i32
  }
  func.func @transform_1(%arg0: i32) -> (i32, i32) {
    %c0_i32 = arith.constant 0 : i32
    %c0_i32_0 = arith.constant 0 : i32
    return %arg0, %c0_i32 : i32, i32
  }
  func.func @transform_2(%arg0: i32) -> (i32, i32) {
    %c0_i32 = arith.constant 0 : i32
    %c0_i32_0 = arith.constant 0 : i32
    %c0_i32_1 = arith.constant 0 : i32
    return %c0_i32, %c0_i32_0 : i32, i32
  }
  func.func @transform_3(%arg0: i32) -> (i32, i32) {
    %c0_i32 = arith.constant 0 : i32
    %c0_i32_0 = arith.constant 0 : i32
    %c0_i32_1 = arith.constant 0 : i32
    return %c0_i32, %c0_i32_0 : i32, i32
  }
  func.func @transform_4(%arg0: i32) -> (i32, i32) {
    %c0_i32 = arith.constant 0 : i32
    %c0_i32_0 = arith.constant 0 : i32
    %c0_i32_1 = arith.constant 0 : i32
    return %c0_i32, %c0_i32_0 : i32, i32
  }
  func.func @transform_5(%arg0: i32) -> (i32, i32) {
    %c0_i32 = arith.constant 0 : i32
    %c0_i32_0 = arith.constant 0 : i32
    %c0_i32_1 = arith.constant 0 : i32
    return %c0_i32, %c0_i32_0 : i32, i32
  }
  func.func @transform_6(%arg0: i32) -> (i32, i32) {
    %c0_i32 = arith.constant 0 : i32
    %c0_i32_0 = arith.constant 0 : i32
    %c0_i32_1 = arith.constant 0 : i32
    return %c0_i32, %c0_i32_0 : i32, i32
  }
  func.func @transform_7(%arg0: i32) -> (i32, i32) {
    %c0_i32 = arith.constant 0 : i32
    %c0_i32_0 = arith.constant 0 : i32
    %c0_i32_1 = arith.constant 0 : i32
    return %c0_i32, %c0_i32_0 : i32, i32
  }
  func.func @transform_8(%arg0: i32) -> (i32, i32) {
    %c0_i32 = arith.constant 0 : i32
    %c0_i32_0 = arith.constant 0 : i32
    %c0_i32_1 = arith.constant 0 : i32
    return %c0_i32, %c0_i32_0 : i32, i32
  }
  func.func @transform_9(%arg0: i32) -> (i32, i32, i32) {
    %c0_i32 = arith.constant 0 : i32
    %c0_i32_0 = arith.constant 0 : i32
    %c0_i32_1 = arith.constant 0 : i32
    return %arg0, %c0_i32, %c0_i32_0 : i32, i32, i32
  }
  func.func @transform_10(%arg0: i32) -> (i32, i32, i32) {
    %c0_i32 = arith.constant 0 : i32
    %c0_i32_0 = arith.constant 0 : i32
    %c0_i32_1 = arith.constant 0 : i32
    return %arg0, %c0_i32, %c0_i32_0 : i32, i32, i32
  }
}

module attributes {stable_mosaic.version = 11 : i64} {
  func.func @_decoder_kernel(%arg0: memref<2x256xf32, #tpu.memory_space<vmem>>, %arg1: memref<256x512xbf16, #tpu.memory_space<vmem>>, %arg2: memref<1x512xf32, #tpu.memory_space<vmem>>, %arg3: memref<512x512xbf16, #tpu.memory_space<vmem>>, %arg4: memref<1x512xf32, #tpu.memory_space<vmem>>, %arg5: memref<512x128xbf16, #tpu.memory_space<vmem>>, %arg6: memref<1x128xf32, #tpu.memory_space<vmem>>, %arg7: memref<128x128xbf16, #tpu.memory_space<vmem>>, %arg8: memref<1x128xf32, #tpu.memory_space<vmem>>, %arg9: memref<2x128xf32, #tpu.memory_space<vmem>>) attributes {dimension_semantics = [], scalar_prefetch = 0 : i64, scratch_operands = 0 : i64, tpu.core_type = #tpu.core_type<tc>} {
    %cst = arith.constant 1.000000e+00 : f32
    %0 = vector.broadcast %cst : f32 to vector<1x2xf32>
    %c0 = arith.constant 0 : index
    %c0_0 = arith.constant 0 : index
    %1 = vector.load %arg0[%c0, %c0_0] : memref<2x256xf32, #tpu.memory_space<vmem>>, vector<2x256xf32>
    %cst_1 = arith.constant dense<0.000000e+00> : vector<1x256xf32>
    %2 = tpu.matmul %0, %1, %cst_1 {dimension_numbers = #tpu.dot_dimension_numbers<[1], [0], [0], [1], [0, 0, 1, 1], [], []>} : vector<1x2xf32>, vector<2x256xf32>, vector<1x256xf32> -> vector<1x256xf32>
    %cst_2 = arith.constant 5.000000e-01 : f32
    %3 = vector.broadcast %cst_2 : f32 to vector<1x256xf32>
    %4 = arith.mulf %2, %3 : vector<1x256xf32>
    %5 = arith.mulf %1, %1 : vector<2x256xf32>
    %cst_3 = arith.constant dense<0.000000e+00> : vector<1x256xf32>
    %6 = tpu.matmul %0, %5, %cst_3 {dimension_numbers = #tpu.dot_dimension_numbers<[1], [0], [0], [1], [0, 0, 1, 1], [], []>} : vector<1x2xf32>, vector<2x256xf32>, vector<1x256xf32> -> vector<1x256xf32>
    %cst_4 = arith.constant 5.000000e-01 : f32
    %7 = vector.broadcast %cst_4 : f32 to vector<1x256xf32>
    %8 = arith.mulf %6, %7 : vector<1x256xf32>
    %9 = arith.mulf %4, %4 : vector<1x256xf32>
    %10 = arith.subf %8, %9 : vector<1x256xf32>
    %cst_5 = arith.constant 0.000000e+00 : f32
    %11 = vector.broadcast %cst_5 : f32 to vector<1x256xf32>
    %12 = arith.maximumf %10, %11 : vector<1x256xf32>
    %13 = vector.broadcast %4 : vector<1x256xf32> to vector<2x256xf32>
    %14 = arith.subf %1, %13 : vector<2x256xf32>
    %cst_6 = arith.constant 9.99999974E-6 : f32
    %15 = vector.broadcast %cst_6 : f32 to vector<1x256xf32>
    %16 = arith.addf %12, %15 : vector<1x256xf32>
    %17 = math.rsqrt %16 : vector<1x256xf32>
    %18 = vector.broadcast %17 : vector<1x256xf32> to vector<2x256xf32>
    %19 = arith.mulf %14, %18 : vector<2x256xf32>
    %20 = arith.truncf %19 : vector<2x256xf32> to vector<2x256xbf16>
    %c0_7 = arith.constant 0 : index
    %c0_8 = arith.constant 0 : index
    %21 = vector.load %arg1[%c0_7, %c0_8] : memref<256x512xbf16, #tpu.memory_space<vmem>>, vector<256x512xbf16>
    %cst_9 = arith.constant dense<0.000000e+00> : vector<2x512xf32>
    %22 = tpu.matmul %20, %21, %cst_9 {dimension_numbers = #tpu.dot_dimension_numbers<[1], [0], [0], [1], [0, 0, 1, 1], [], []>} : vector<2x256xbf16>, vector<256x512xbf16>, vector<2x512xf32> -> vector<2x512xf32>
    %c0_10 = arith.constant 0 : index
    %c0_11 = arith.constant 0 : index
    %23 = vector.load %arg2[%c0_10, %c0_11] : memref<1x512xf32, #tpu.memory_space<vmem>>, vector<1x512xf32>
    %24 = vector.broadcast %23 : vector<1x512xf32> to vector<2x512xf32>
    %25 = arith.addf %22, %24 : vector<2x512xf32>
    %cst_12 = arith.constant 0.000000e+00 : f32
    %26 = vector.broadcast %cst_12 : f32 to vector<2x512xf32>
    %27 = arith.maximumf %25, %26 : vector<2x512xf32>
    %cst_13 = arith.constant dense<0.000000e+00> : vector<1x512xf32>
    %28 = tpu.matmul %0, %27, %cst_13 {dimension_numbers = #tpu.dot_dimension_numbers<[1], [0], [0], [1], [0, 0, 1, 1], [], []>} : vector<1x2xf32>, vector<2x512xf32>, vector<1x512xf32> -> vector<1x512xf32>
    %cst_14 = arith.constant 5.000000e-01 : f32
    %29 = vector.broadcast %cst_14 : f32 to vector<1x512xf32>
    %30 = arith.mulf %28, %29 : vector<1x512xf32>
    %31 = arith.mulf %27, %27 : vector<2x512xf32>
    %cst_15 = arith.constant dense<0.000000e+00> : vector<1x512xf32>
    %32 = tpu.matmul %0, %31, %cst_15 {dimension_numbers = #tpu.dot_dimension_numbers<[1], [0], [0], [1], [0, 0, 1, 1], [], []>} : vector<1x2xf32>, vector<2x512xf32>, vector<1x512xf32> -> vector<1x512xf32>
    %cst_16 = arith.constant 5.000000e-01 : f32
    %33 = vector.broadcast %cst_16 : f32 to vector<1x512xf32>
    %34 = arith.mulf %32, %33 : vector<1x512xf32>
    %35 = arith.mulf %30, %30 : vector<1x512xf32>
    %36 = arith.subf %34, %35 : vector<1x512xf32>
    %cst_17 = arith.constant 0.000000e+00 : f32
    %37 = vector.broadcast %cst_17 : f32 to vector<1x512xf32>
    %38 = arith.maximumf %36, %37 : vector<1x512xf32>
    %39 = vector.broadcast %30 : vector<1x512xf32> to vector<2x512xf32>
    %40 = arith.subf %27, %39 : vector<2x512xf32>
    %cst_18 = arith.constant 9.99999974E-6 : f32
    %41 = vector.broadcast %cst_18 : f32 to vector<1x512xf32>
    %42 = arith.addf %38, %41 : vector<1x512xf32>
    %43 = math.rsqrt %42 : vector<1x512xf32>
    %44 = vector.broadcast %43 : vector<1x512xf32> to vector<2x512xf32>
    %45 = arith.mulf %40, %44 : vector<2x512xf32>
    %46 = arith.truncf %45 : vector<2x512xf32> to vector<2x512xbf16>
    %c0_19 = arith.constant 0 : index
    %c0_20 = arith.constant 0 : index
    %47 = vector.load %arg3[%c0_19, %c0_20] : memref<512x512xbf16, #tpu.memory_space<vmem>>, vector<512x512xbf16>
    %cst_21 = arith.constant dense<0.000000e+00> : vector<2x512xf32>
    %48 = tpu.matmul %46, %47, %cst_21 {dimension_numbers = #tpu.dot_dimension_numbers<[1], [0], [0], [1], [0, 0, 1, 1], [], []>} : vector<2x512xbf16>, vector<512x512xbf16>, vector<2x512xf32> -> vector<2x512xf32>
    %c0_22 = arith.constant 0 : index
    %c0_23 = arith.constant 0 : index
    %49 = vector.load %arg4[%c0_22, %c0_23] : memref<1x512xf32, #tpu.memory_space<vmem>>, vector<1x512xf32>
    %50 = vector.broadcast %49 : vector<1x512xf32> to vector<2x512xf32>
    %51 = arith.addf %48, %50 : vector<2x512xf32>
    %cst_24 = arith.constant 0.000000e+00 : f32
    %52 = vector.broadcast %cst_24 : f32 to vector<2x512xf32>
    %53 = arith.maximumf %51, %52 : vector<2x512xf32>
    %cst_25 = arith.constant dense<0.000000e+00> : vector<1x512xf32>
    %54 = tpu.matmul %0, %53, %cst_25 {dimension_numbers = #tpu.dot_dimension_numbers<[1], [0], [0], [1], [0, 0, 1, 1], [], []>} : vector<1x2xf32>, vector<2x512xf32>, vector<1x512xf32> -> vector<1x512xf32>
    %cst_26 = arith.constant 5.000000e-01 : f32
    %55 = vector.broadcast %cst_26 : f32 to vector<1x512xf32>
    %56 = arith.mulf %54, %55 : vector<1x512xf32>
    %57 = arith.mulf %53, %53 : vector<2x512xf32>
    %cst_27 = arith.constant dense<0.000000e+00> : vector<1x512xf32>
    %58 = tpu.matmul %0, %57, %cst_27 {dimension_numbers = #tpu.dot_dimension_numbers<[1], [0], [0], [1], [0, 0, 1, 1], [], []>} : vector<1x2xf32>, vector<2x512xf32>, vector<1x512xf32> -> vector<1x512xf32>
    %cst_28 = arith.constant 5.000000e-01 : f32
    %59 = vector.broadcast %cst_28 : f32 to vector<1x512xf32>
    %60 = arith.mulf %58, %59 : vector<1x512xf32>
    %61 = arith.mulf %56, %56 : vector<1x512xf32>
    %62 = arith.subf %60, %61 : vector<1x512xf32>
    %cst_29 = arith.constant 0.000000e+00 : f32
    %63 = vector.broadcast %cst_29 : f32 to vector<1x512xf32>
    %64 = arith.maximumf %62, %63 : vector<1x512xf32>
    %65 = vector.broadcast %56 : vector<1x512xf32> to vector<2x512xf32>
    %66 = arith.subf %53, %65 : vector<2x512xf32>
    %cst_30 = arith.constant 9.99999974E-6 : f32
    %67 = vector.broadcast %cst_30 : f32 to vector<1x512xf32>
    %68 = arith.addf %64, %67 : vector<1x512xf32>
    %69 = math.rsqrt %68 : vector<1x512xf32>
    %70 = vector.broadcast %69 : vector<1x512xf32> to vector<2x512xf32>
    %71 = arith.mulf %66, %70 : vector<2x512xf32>
    %72 = arith.truncf %71 : vector<2x512xf32> to vector<2x512xbf16>
    %c0_31 = arith.constant 0 : index
    %c0_32 = arith.constant 0 : index
    %73 = vector.load %arg5[%c0_31, %c0_32] : memref<512x128xbf16, #tpu.memory_space<vmem>>, vector<512x128xbf16>
    %cst_33 = arith.constant dense<0.000000e+00> : vector<2x128xf32>
    %74 = tpu.matmul %72, %73, %cst_33 {dimension_numbers = #tpu.dot_dimension_numbers<[1], [0], [0], [1], [0, 0, 1, 1], [], []>} : vector<2x512xbf16>, vector<512x128xbf16>, vector<2x128xf32> -> vector<2x128xf32>
    %c0_34 = arith.constant 0 : index
    %c0_35 = arith.constant 0 : index
    %75 = vector.load %arg6[%c0_34, %c0_35] : memref<1x128xf32, #tpu.memory_space<vmem>>, vector<1x128xf32>
    %76 = vector.broadcast %75 : vector<1x128xf32> to vector<2x128xf32>
    %77 = arith.addf %74, %76 : vector<2x128xf32>
    %cst_36 = arith.constant 0.000000e+00 : f32
    %78 = vector.broadcast %cst_36 : f32 to vector<2x128xf32>
    %79 = arith.maximumf %77, %78 : vector<2x128xf32>
    %cst_37 = arith.constant dense<0.000000e+00> : vector<1x128xf32>
    %80 = tpu.matmul %0, %79, %cst_37 {dimension_numbers = #tpu.dot_dimension_numbers<[1], [0], [0], [1], [0, 0, 1, 1], [], []>} : vector<1x2xf32>, vector<2x128xf32>, vector<1x128xf32> -> vector<1x128xf32>
    %cst_38 = arith.constant 5.000000e-01 : f32
    %81 = vector.broadcast %cst_38 : f32 to vector<1x128xf32>
    %82 = arith.mulf %80, %81 : vector<1x128xf32>
    %83 = arith.mulf %79, %79 : vector<2x128xf32>
    %cst_39 = arith.constant dense<0.000000e+00> : vector<1x128xf32>
    %84 = tpu.matmul %0, %83, %cst_39 {dimension_numbers = #tpu.dot_dimension_numbers<[1], [0], [0], [1], [0, 0, 1, 1], [], []>} : vector<1x2xf32>, vector<2x128xf32>, vector<1x128xf32> -> vector<1x128xf32>
    %cst_40 = arith.constant 5.000000e-01 : f32
    %85 = vector.broadcast %cst_40 : f32 to vector<1x128xf32>
    %86 = arith.mulf %84, %85 : vector<1x128xf32>
    %87 = arith.mulf %82, %82 : vector<1x128xf32>
    %88 = arith.subf %86, %87 : vector<1x128xf32>
    %cst_41 = arith.constant 0.000000e+00 : f32
    %89 = vector.broadcast %cst_41 : f32 to vector<1x128xf32>
    %90 = arith.maximumf %88, %89 : vector<1x128xf32>
    %91 = vector.broadcast %82 : vector<1x128xf32> to vector<2x128xf32>
    %92 = arith.subf %79, %91 : vector<2x128xf32>
    %cst_42 = arith.constant 9.99999974E-6 : f32
    %93 = vector.broadcast %cst_42 : f32 to vector<1x128xf32>
    %94 = arith.addf %90, %93 : vector<1x128xf32>
    %95 = math.rsqrt %94 : vector<1x128xf32>
    %96 = vector.broadcast %95 : vector<1x128xf32> to vector<2x128xf32>
    %97 = arith.mulf %92, %96 : vector<2x128xf32>
    %98 = arith.truncf %97 : vector<2x128xf32> to vector<2x128xbf16>
    %c0_43 = arith.constant 0 : index
    %c0_44 = arith.constant 0 : index
    %99 = vector.load %arg7[%c0_43, %c0_44] : memref<128x128xbf16, #tpu.memory_space<vmem>>, vector<128x128xbf16>
    %cst_45 = arith.constant dense<0.000000e+00> : vector<2x128xf32>
    %100 = tpu.matmul %98, %99, %cst_45 {dimension_numbers = #tpu.dot_dimension_numbers<[1], [0], [0], [1], [0, 0, 1, 1], [], []>} : vector<2x128xbf16>, vector<128x128xbf16>, vector<2x128xf32> -> vector<2x128xf32>
    %c0_46 = arith.constant 0 : index
    %c0_47 = arith.constant 0 : index
    %101 = vector.load %arg8[%c0_46, %c0_47] : memref<1x128xf32, #tpu.memory_space<vmem>>, vector<1x128xf32>
    %102 = vector.broadcast %101 : vector<1x128xf32> to vector<2x128xf32>
    %103 = arith.addf %100, %102 : vector<2x128xf32>
    %c0_48 = arith.constant 0 : index
    %c0_49 = arith.constant 0 : index
    %104 = vector.load %arg9[%c0_48, %c0_49] : memref<2x128xf32, #tpu.memory_space<vmem>>, vector<2x128xf32>
    tpu.vector_store %arg9[%c0_48, %c0_49], %103 {strides = array<i32>} : memref<2x128xf32, #tpu.memory_space<vmem>>, vector<2x128xf32>,
    return
  }
}

</mosaic_0001>

<llo_original>
// kernel: drugban_forward.9
$region0: #{drugban_forward.9}
  #allocation0 [shape = 'u32[]', space=smem, size = 0x4, offset = 0x4, fixed_abs, tag = 'smem constant byte address 0x4 - core index']
  #allocation1 [shape = 'u32[144,128]{1,0:T(1,128)}', space=vmem, size = 0x12000, scoped, tag = 'internal scratch']
  %s0 = inlined_call_operand.vmem [shape: bf16[32,128], index: 0, kind: input, shape index: {}]
  %s1 = inlined_call_operand.vmem [shape: bf16[128,384], index: 1, kind: input, shape index: {}]
  %s2 = inlined_call_operand.vmem [shape: f32[1,128], index: 2, kind: input, shape index: {}]
  %s3 = inlined_call_operand.vmem [shape: bf16[32,128], index: 3, kind: output, shape index: {0}]
  %s4 = inlined_call_operand.vmem [shape: f32[2,2,128], index: 4, kind: output, shape index: {1}]
  %5 = xla_tuple %s3, %s4
  %s6 = sld [smem:[#allocation0]]
  $region53: #{drugban_forward.9} parent=0
    _
  %s8 = ssub.s32 1, %s6
  %s9 = scalar_select 0, %s8, %s6
  loop: start=0, step=1, limit=4
  $region2: #{drugban_forward.9} parent=0 // loop_pre_header
    _
  $region3: #{drugban_forward.9} parent=0 // loop_header
    %s11 = sphi 0, %s15
    %p12 = scmp.ge.s32.totalorder %s11, 4
    %s21 = sphi 0, %s23
    %s24 = sphi 0, %s21
    %s25 = sphi 0, %s24
    %s41 = sphi 0, %s25
    %s45 = sphi 0, %s45
    %s47 = sphi 0, %s45
    %s48 = sphi 0, %s47
    %s62 = sphi 0, %s48
    %s66 = sphi 0, %s66
    %s68 = sphi 0, %s66
    %s69 = sphi 0, %s68
    %s83 = sphi 0, %s69
    %s89 = sphi 0, %s91
    %s92 = sphi 0, %s89
    %s93 = sphi 0, %s92
    %s109 = sphi 0, %s93
    %s115 = sphi 0, %s117
    %s118 = sphi 0, %s115
    %s119 = sphi 0, %s118
    %s135 = sphi 0, %s119
  $region4: #{drugban_forward.9} parent=0 // loop_header_branch
    %14 = sbr.rel (%p12) target = $region8
  $region5: #{drugban_forward.9} parent=0 // loop_body
    %s16 = ssub.s32 %s11, 1
    %s17 = ssub.s32 %s11, 2
    %s18 = sadd.s32 %s11, 1
    %s19 = ssub.s32 %s11, %s18
    %p20 = scmp.eq.s32.totalorder %s19, 0
    %s22 = sadd.s32 %s21, 1
    %s23 = scalar_select %p20, %s21, %s22
    %p26 = pneg %p20
    %p27 = scmp.eq.s32.totalorder %s11, 1
    %p28 = por %p26, %p27
    %p29 = scmp.ne.s32.totalorder %s21, %s24
    %p30 = scmp.eq.s32.totalorder %s11, 0
    %p31 = por %p29, %p30
    %p32 = scmp.ne.s32.totalorder %s21, %s24
    %p33 = scmp.eq.s32.totalorder %s16, 1
    %p34 = por %p32, %p33
    %p35 = scmp.ne.s32.totalorder %s24, %s25
    %p36 = scmp.eq.s32.totalorder %s16, 0
    %p37 = por %p35, %p36
    %p38 = scmp.ne.s32.totalorder %s24, %s25
    %p39 = scmp.eq.s32.totalorder %s17, 1
    %p40 = por %p38, %p39
    %p42 = scmp.ne.s32.totalorder %s25, %s41
    %p43 = scmp.eq.s32.totalorder %s17, 0
    %p44 = por %p42, %p43
    %s46 = sadd.s32 %s45, 1
    %p49 = scmp.eq.s32.totalorder %s11, 1
    %p50 = scmp.ne.s32.totalorder %s45, %s47
    %p51 = scmp.eq.s32.totalorder %s11, 0
    %p52 = por %p50, %p51
    %p53 = scmp.ne.s32.totalorder %s45, %s47
    %p54 = scmp.eq.s32.totalorder %s16, 1
    %p55 = por %p53, %p54
    %p56 = scmp.ne.s32.totalorder %s47, %s48
    %p57 = scmp.eq.s32.totalorder %s16, 0
    %p58 = por %p56, %p57
    %p59 = scmp.ne.s32.totalorder %s47, %s48
    %p60 = scmp.eq.s32.totalorder %s17, 1
    %p61 = por %p59, %p60
    %p63 = scmp.ne.s32.totalorder %s48, %s62
    %p64 = scmp.eq.s32.totalorder %s17, 0
    %p65 = por %p63, %p64
    %s67 = sadd.s32 %s66, 1
    %p70 = scmp.eq.s32.totalorder %s11, 1
    %p71 = scmp.ne.s32.totalorder %s66, %s68
    %p72 = scmp.eq.s32.totalorder %s11, 0
    %p73 = por %p71, %p72
    %p74 = scmp.ne.s32.totalorder %s66, %s68
    %p75 = scmp.eq.s32.totalorder %s16, 1
    %p76 = por %p74, %p75
    %p77 = scmp.ne.s32.totalorder %s68, %s69
    %p78 = scmp.eq.s32.totalorder %s16, 0
    %p79 = por %p77, %p78
    %p80 = scmp.ne.s32.totalorder %s68, %s69
    %p81 = scmp.eq.s32.totalorder %s17, 1
    %p82 = por %p80, %p81
    %p84 = scmp.ne.s32.totalorder %s69, %s83
    %p85 = scmp.eq.s32.totalorder %s17, 0
    %p86 = por %p84, %p85
    %s87 = ssub.s32 %s11, %s18
    %p88 = scmp.eq.s32.totalorder %s87, 0
    %s90 = sadd.s32 %s89, 1
    %s91 = scalar_select %p88, %s89, %s90
    %p94 = pneg %p88
    %p95 = scmp.eq.s32.totalorder %s11, 1
    %p96 = por %p94, %p95
    %p97 = scmp.ne.s32.totalorder %s89, %s92
    %p98 = scmp.eq.s32.totalorder %s11, 0
    %p99 = por %p97, %p98
    %p100 = scmp.ne.s32.totalorder %s89, %s92
    %p101 = scmp.eq.s32.totalorder %s16, 1
    %p102 = por %p100, %p101
    %p103 = scmp.ne.s32.totalorder %s92, %s93
    %p104 = scmp.eq.s32.totalorder %s16, 0
    %p105 = por %p103, %p104
    %p106 = scmp.ne.s32.totalorder %s92, %s93
    %p107 = scmp.eq.s32.totalorder %s17, 1
    %p108 = por %p106, %p107
    %p110 = scmp.ne.s32.totalorder %s93, %s109
    %p111 = scmp.eq.s32.totalorder %s17, 0
    %p112 = por %p110, %p111
    %s113 = ssub.s32 %s11, %s18
    %p114 = scmp.eq.s32.totalorder %s113, 0
    %s116 = sadd.s32 %s115, 1
    %s117 = scalar_select %p114, %s115, %s116
    %p120 = pneg %p114
    %p121 = scmp.eq.s32.totalorder %s11, 1
    %p122 = por %p120, %p121
    %p123 = scmp.ne.s32.totalorder %s115, %s118
    %p124 = scmp.eq.s32.totalorder %s11, 0
    %p125 = por %p123, %p124
    %p126 = scmp.ne.s32.totalorder %s115, %s118
    %p127 = scmp.eq.s32.totalorder %s16, 1
    %p128 = por %p126, %p127
    %p129 = scmp.ne.s32.totalorder %s118, %s119
    %p130 = scmp.eq.s32.totalorder %s16, 0
    %p131 = por %p129, %p130
    %p132 = scmp.ne.s32.totalorder %s118, %s119
    %p133 = scmp.eq.s32.totalorder %s17, 1
    %p134 = por %p132, %p133
    %p136 = scmp.ne.s32.totalorder %s119, %s135
    %p137 = scmp.eq.s32.totalorder %s17, 0
    %p138 = por %p136, %p137
    %p139 = scmp.le.s32.totalorder 1, %s11
    %p140 = scmp.lt.s32.totalorder %s11, 3
    %p141 = pnand %p139, %p140
    %p142 = pneg %p141
    // Predicated region
    $region9: #{drugban_forward.9} parent=5 // pred_check
      _
    $region10: #{drugban_forward.9} parent=5 // pred_check_branch
      %144 = sbr.rel (%p141) target = $region12
    $region11: #{drugban_forward.9} parent=5 // pred_region
      %s145 = ssub.s32 %s11, 1
      // Predicated region
      $region13: #{drugban_forward.9} parent=11 // pred_check
        %p146 = pneg %p58
      $region14: #{drugban_forward.9} parent=11 // pred_check_branch
        %148 = sbr.rel (%p146) target = $region16
      $region15: #{drugban_forward.9} parent=11 // pred_region
        _
      $region16: #{drugban_forward.9} parent=11 // pred_fallthru
        _
      // Predicated region
      $region17: #{drugban_forward.9} parent=11 // pred_check
        %p149 = pneg %p79
      $region18: #{drugban_forward.9} parent=11 // pred_check_branch
        %151 = sbr.rel (%p149) target = $region20
      $region19: #{drugban_forward.9} parent=11 // pred_region
        _
      $region20: #{drugban_forward.9} parent=11 // pred_fallthru
        _
    $region12: #{drugban_forward.9} parent=5 // pred_fallthru
      _
    %p152 = scmp.lt.s32.totalorder %s11, 2
    // Predicated region
    $region21: #{drugban_forward.9} parent=5 // pred_check
      %p153 = pneg %p152
    $region22: #{drugban_forward.9} parent=5 // pred_check_branch
      %155 = sbr.rel (%p153) target = $region24
    $region23: #{drugban_forward.9} parent=5 // pred_region
      // Predicated region
      $region25: #{drugban_forward.9} parent=23 // pred_check
        %p156 = pneg %p31
      $region26: #{drugban_forward.9} parent=23 // pred_check_branch
        %158 = sbr.rel (%p156) target = $region28
      $region27: #{drugban_forward.9} parent=23 // pred_region
        %s159 = smul.u32 2, %s11
        %p160 = scmp.lt.s32.totalorder %s159, 3
        %s161 = scalar_select %p160, %s159, 3
        %s162 = smul.addr %s161, 4
        %s163 = scalar_lea.vmem %s0, %s162
        %s164 = smul.u32 2, %s11
      $region28: #{drugban_forward.9} parent=23 // pred_fallthru
        _
    $region24: #{drugban_forward.9} parent=5 // pred_fallthru
      _
    %p165 = scmp.le.s32.totalorder 1, %s11
    %p166 = scmp.lt.s32.totalorder %s11, 3
    %p167 = pnand %p165, %p166
    %p168 = pneg %p167
    // Predicated region
    $region29: #{drugban_forward.9} parent=5 // pred_check
      _
    $region30: #{drugban_forward.9} parent=5 // pred_check_branch
      %170 = sbr.rel (%p167) target = $region32
    $region31: #{drugban_forward.9} parent=5 // pred_region
      %s171 = ssub.s32 %s11, 1
      %s172 = smul.u32 2, %s16
      %p173 = scmp.lt.s32.totalorder %s172, 3
      %s174 = scalar_select %p173, %s172, 3
      %s175 = smul.addr %s174, 4
      %s176 = scalar_lea.vmem %s0, %s175
      %p177 = pneg %p37
      %p178 = pneg %p34
      %p179 = pneg %p58
      %p180 = pneg %p55
      %p181 = pneg %p79
      %p182 = pneg %p76
      %p183 = pneg %p105
      %p184 = pneg %p102
      %s185 = smul.u32 2, %s16
      %p186 = scmp.lt.s32.totalorder %s185, 3
      %s187 = scalar_select %p186, %s185, 3
      %s188 = smul.addr %s187, 4
      %s189 = scalar_lea.vmem %s3, %s188
      %p190 = pneg %p131
      %p191 = pneg %p128
      %p192 = scmp.lt.s32.totalorder %s16, 1
      %s193 = scalar_select %p192, %s16, 1
      %s194 = smul.addr %s193, 2
      %s195 = scalar_lea.vmem %s4, %s194
      %s196 = smul.u32 2, %s16
      %p197 = scmp.lt.s32.totalorder %s196, 3
      %s198 = scalar_select %p197, %s196, 3
      %s199 = smul.addr %s198, 4
      %s200 = scalar_lea.vmem %s0, %s199
      %s201 = smul.u32 2, %s16
      %s202 = smul.u32 2, %s16
      %p203 = scmp.lt.s32.totalorder %s202, 3
      %s204 = scalar_select %p203, %s202, 3
      %s205 = smul.addr %s204, 4
      %s206 = scalar_lea.vmem %s3, %s205
      %s207 = smul.u32 2, %s16
      %p208 = scmp.lt.s32.totalorder %s16, 1
      %s209 = scalar_select %p208, %s16, 1
      %s210 = smul.addr %s209, 2
      %s211 = scalar_lea.vmem %s4, %s210
      %v213 = vld [vmem:[%s200] sm:$0xf]
      %v214 = vld [vmem:[%s200 + $0x4] sm:$0xf]
      %v215 = vld [vmem:[%s1] sm:$0xff]
      %v216 = vld [vmem:[%s1 + $0x8] sm:$0xf]
      %v217 = vld [vmem:[%s1 + $0xc] sm:$0xff]
      %v218 = vld [vmem:[%s1 + $0x14] sm:$0xf]
      %v219 = vld [vmem:[%s1 + $0x18] sm:$0xff]
      %v220 = vld [vmem:[%s1 + $0x20] sm:$0xf]
      %v221 = vld [vmem:[%s1 + $0x24] sm:$0xff]
      %v222 = vld [vmem:[%s1 + $0x2c] sm:$0xf]
      %v223 = vld [vmem:[%s1 + $0x30] sm:$0xff]
      %v224 = vld [vmem:[%s1 + $0x38] sm:$0xf]
      %v225 = vld [vmem:[%s1 + $0x3c] sm:$0xff]
      %v226 = vld [vmem:[%s1 + $0x44] sm:$0xf]
      %v227 = vld [vmem:[%s1 + $0x48] sm:$0xff]
      %v228 = vld [vmem:[%s1 + $0x50] sm:$0xf]
      %v229 = vld [vmem:[%s1 + $0x54] sm:$0xff]
      %v230 = vld [vmem:[%s1 + $0x5c] sm:$0xf]
      %v231 = vld [vmem:[%s1 + $0x60] sm:$0xff]
      %v232 = vld [vmem:[%s1 + $0x68] sm:$0xf]
      %v233 = vld [vmem:[%s1 + $0x6c] sm:$0xff]
      %v234 = vld [vmem:[%s1 + $0x74] sm:$0xf]
      %v235 = vld [vmem:[%s1 + $0x78] sm:$0xff]
      %v236 = vld [vmem:[%s1 + $0x80] sm:$0xf]
      %v237 = vld [vmem:[%s1 + $0x84] sm:$0xff]
      %v238 = vld [vmem:[%s1 + $0x8c] sm:$0xf]
      %v239 = vld [vmem:[%s1 + $0x90] sm:$0xff]
      %v240 = vld [vmem:[%s1 + $0x98] sm:$0xf]
      %v241 = vld [vmem:[%s1 + $0x9c] sm:$0xff]
      %v242 = vld [vmem:[%s1 + $0xa4] sm:$0xf]
      %v243 = vld [vmem:[%s1 + $0xa8] sm:$0xff]
      %v244 = vld [vmem:[%s1 + $0xb0] sm:$0xf]
      %v245 = vld [vmem:[%s1 + $0xb4] sm:$0xff]
      %v246 = vld [vmem:[%s1 + $0xbc] sm:$0xf]
      %v249 = vunpack.c.l.b16 %v213
      %v250 = vunpack.c.l.b16 %v214
      %v251 = vpack.c.b16 %v250, %v249
      %v285 = vunpack.c.l.b16 %v215
      %v286 = vunpack.c.h.b16 %v215
      %v287 = vunpack.c.l.b16 %v216
      %v288 = vunpack.c.l.b16 %v217
      %v289 = vunpack.c.h.b16 %v217
      %v290 = vunpack.c.l.b16 %v218
      %v291 = vunpack.c.l.b16 %v219
      %v292 = vunpack.c.h.b16 %v219
      %v293 = vunpack.c.l.b16 %v220
      %v294 = vunpack.c.l.b16 %v221
      %v295 = vunpack.c.h.b16 %v221
      %v296 = vunpack.c.l.b16 %v222
      %v297 = vunpack.c.l.b16 %v223
      %v298 = vunpack.c.h.b16 %v223
      %v299 = vunpack.c.l.b16 %v224
      %v300 = vunpack.c.l.b16 %v225
      %v301 = vunpack.c.h.b16 %v225
      %v302 = vunpack.c.l.b16 %v226
      %v303 = vunpack.c.l.b16 %v227
      %v304 = vunpack.c.h.b16 %v227
      %v305 = vunpack.c.l.b16 %v228
      %v306 = vunpack.c.l.b16 %v229
      %v307 = vunpack.c.h.b16 %v229
      %v308 = vunpack.c.l.b16 %v230
      %v309 = vunpack.c.l.b16 %v231
      %v310 = vunpack.c.h.b16 %v231
      %v311 = vunpack.c.l.b16 %v232
      %v312 = vunpack.c.l.b16 %v233
      %v313 = vunpack.c.h.b16 %v233
      %v314 = vunpack.c.l.b16 %v234
      %v315 = vunpack.c.l.b16 %v235
      %v316 = vunpack.c.h.b16 %v235
      %v317 = vunpack.c.l.b16 %v236
      %v318 = vunpack.c.l.b16 %v237
      %v319 = vunpack.c.h.b16 %v237
      %v320 = vunpack.c.l.b16 %v238
      %v321 = vunpack.c.l.b16 %v239
      %v322 = vunpack.c.h.b16 %v239
      %v323 = vunpack.c.l.b16 %v240
      %v324 = vunpack.c.l.b16 %v241
      %v325 = vunpack.c.h.b16 %v241
      %v326 = vunpack.c.l.b16 %v242
      %v327 = vunpack.c.l.b16 %v243
      %v328 = vunpack.c.h.b16 %v243
      %v329 = vunpack.c.l.b16 %v244
      %v330 = vunpack.c.l.b16 %v245
      %v331 = vunpack.c.h.b16 %v245
      %v332 = vunpack.c.l.b16 %v246
      %v333 = vpack.c.b16 %v288, %v285
      %v334 = vpack.c.b16 %v289, %v286
      %v335 = vpack.c.b16 %v290, %v287
      %v336 = vpack.c.b16 %v294, %v291
      %v337 = vpack.c.b16 %v295, %v292
      %v338 = vpack.c.b16 %v296, %v293
      %v339 = vpack.c.b16 %v300, %v297
      %v340 = vpack.c.b16 %v301, %v298
      %v341 = vpack.c.b16 %v302, %v299
      %v342 = vpack.c.b16 %v306, %v303
      %v343 = vpack.c.b16 %v307, %v304
      %v344 = vpack.c.b16 %v308, %v305
      %v345 = vpack.c.b16 %v312, %v309
      %v346 = vpack.c.b16 %v313, %v310
      %v347 = vpack.c.b16 %v314, %v311
      %v348 = vpack.c.b16 %v318, %v315
      %v349 = vpack.c.b16 %v319, %v316
      %v350 = vpack.c.b16 %v320, %v317
      %v351 = vpack.c.b16 %v324, %v321
      %v352 = vpack.c.b16 %v325, %v322
      %v353 = vpack.c.b16 %v326, %v323
      %v354 = vpack.c.b16 %v330, %v327
      %v355 = vpack.c.b16 %v331, %v328
      %v356 = vpack.c.b16 %v332, %v329
      %381 = vmatprep.subr.bf16.mxu0 %v355
      %382 = vmatpush1.bf16.msra.mxu0 %v354
      %383 = vmatprep.subr.bf16.mxu0 %v352
      %384 = vmatpush1.bf16.msra.mxu0 %v351
      %385 = vmatprep.subr.bf16.mxu0 %v349
      %386 = vmatpush1.bf16.msra.mxu0 %v348
      %387 = vmatprep.subr.bf16.mxu0 %v346
      %388 = vmatpush1.bf16.msra.mxu0 %v345
      %389 = vmatprep.subr.bf16.mxu0 %v343
      %390 = vmatpush1.bf16.msra.mxu0 %v342
      %391 = vmatprep.subr.bf16.mxu0 %v340
      %392 = vmatpush1.bf16.msra.mxu0 %v339
      %393 = vmatprep.subr.bf16.mxu0 %v337
      %394 = vmatpush1.bf16.msra.mxu0 %v336
      %395 = vmatprep.subr.bf16.mxu0 %v334
      %396 = vmatpush1.bf16.msra.mxu0 %v333
      %397 = vmatprep.subr.bf16.mxu0 0
      %398 = vmatpush2.bf16.msra.mxu0 0
      %399 = vmatprep.subr.bf16.mxu0 0
      %400 = vmatpush2.bf16.msra.mxu0 0
      %401 = vmatprep.subr.bf16.mxu0 0
      %402 = vmatpush2.bf16.msra.mxu0 0
      %403 = vmatprep.subr.bf16.mxu0 0
      %404 = vmatpush2.bf16.msra.mxu0 0
      %405 = vmatprep.subr.bf16.mxu0 0
      %406 = vmatpush2.bf16.msra.mxu0 0
      %407 = vmatprep.subr.bf16.mxu0 0
      %408 = vmatpush2.bf16.msra.mxu0 0
      %409 = vmatprep.subr.bf16.mxu0 0
      %410 = vmatpush2.bf16.msra.mxu0 0
      %411 = vmatprep.subr.bf16.mxu0 0
      %412 = vmatpush2.bf16.msra.mxu0 0
      %413 = vmatprep.mubr.bf16.mxu0 0
      %414 = vmatmul.mubr.bf16.gmra.mxu0 %v251
      %v415 = vpop.f32.mrf.mxu0
      %v416 = vadd.f32 0.0, %v415
      %v417 = vpop.f32.mrf.mxu0
      %v418 = vadd.f32 0.0, %v417
      %v419 = vpop.f32.mrf.mxu0
      %v420 = vadd.f32 0.0, %v419
      %v421 = vpop.f32.mrf.mxu0
      %v422 = vadd.f32 0.0, %v421
      %423 = vdwg.mxu0
      %424 = vmatprep.subr.bf16.mxu0 0
      %425 = vmatpush1.bf16.msra.mxu0 %v356
      %426 = vmatprep.subr.bf16.mxu0 0
      %427 = vmatpush1.bf16.msra.mxu0 %v353
      %428 = vmatprep.subr.bf16.mxu0 0
      %429 = vmatpush1.bf16.msra.mxu0 %v350
      %430 = vmatprep.subr.bf16.mxu0 0
      %431 = vmatpush1.bf16.msra.mxu0 %v347
      %432 = vmatprep.subr.bf16.mxu0 0
      %433 = vmatpush1.bf16.msra.mxu0 %v344
      %434 = vmatprep.subr.bf16.mxu0 0
      %435 = vmatpush1.bf16.msra.mxu0 %v341
      %436 = vmatprep.subr.bf16.mxu0 0
      %437 = vmatpush1.bf16.msra.mxu0 %v338
      %438 = vmatprep.subr.bf16.mxu0 0
      %439 = vmatpush1.bf16.msra.mxu0 %v335
      %440 = vmatprep.subr.bf16.mxu0 0
      %441 = vmatpush2.bf16.msra.mxu0 0
      %442 = vmatprep.subr.bf16.mxu0 0
      %443 = vmatpush2.bf16.msra.mxu0 0
      %444 = vmatprep.subr.bf16.mxu0 0
      %445 = vmatpush2.bf16.msra.mxu0 0
      %446 = vmatprep.subr.bf16.mxu0 0
      %447 = vmatpush2.bf16.msra.mxu0 0
      %448 = vmatprep.subr.bf16.mxu0 0
      %449 = vmatpush2.bf16.msra.mxu0 0
      %450 = vmatprep.subr.bf16.mxu0 0
      %451 = vmatpush2.bf16.msra.mxu0 0
      %452 = vmatprep.subr.bf16.mxu0 0
      %453 = vmatpush2.bf16.msra.mxu0 0
      %454 = vmatprep.subr.bf16.mxu0 0
      %455 = vmatpush2.bf16.msra.mxu0 0
      %456 = vmatprep.mubr.bf16.mxu0 0
      %457 = vmatmul.mubr.bf16.gmra.mxu0 %v251
      %v458 = vpop.f32.mrf.mxu0
      %v459 = vadd.f32 0.0, %v458
      %v460 = vpop.f32.mrf.mxu0
      %v461 = vpop.f32.mrf.mxu0
      %v462 = vadd.f32 0.0, %v461
      %v463 = vpop.f32.mrf.mxu0
      %464 = vdwg.mxu0
      %vm467 = vcmask 1046528
      %v468 = vrot.slane %v418, 1
      %v469 = vrot.slane %v422, 1
      %v470 = vsel %vm467, %v468, %v469
      %v474 = vsel %vm467, %v469, %v468
      %v475 = vadd.f32 %v416, %v470
      %v476 = vadd.f32 %v420, %v474
      %vm479 = vcmask 1045504
      %v480 = vrot.slane %v459, 2
      %v481 = vrot.slane %v462, 2
      %v482 = vsel %vm479, %v480, %v481
      %v486 = vsel %vm479, %v481, %v480
      %v487 = vadd.f32 %v475, %v482
      %v488 = vadd.f32 %v476, %v486
      %v489 = vld [vmem:[%s2] sm:$0x1]
      %v491 = vlaneseq
      %v492 = vshrl.u32 %v491, 7
      %v493 = vsub.s32 0, %v492
      %v494 = vrot.slane %v489, %v493
      %v496 = vadd.f32 %v487, %v494
      %v497 = vadd.f32 %v488, %v494
      %v498 = vmax.f32 %v496, 0.0
      %v499 = vmax.f32 %v497, 0.0
      %v500 = vlaneseq
      %v501 = vshrl.u32 %v500, 7
      %v502 = vadd.s32 %v501, 8
      %vm503 = vcmp.lt.s32.totalorder %v501, 0
      %v504 = vsub.s32 0, %v501
      %v505 = vsel %vm503, %v504, %v501
      %v506 = vshrl.u32 %v505, 4
      %v507 = vand.u32 %v505, 15
      %v508 = vsub.s32 0, %v507
      %v509 = vsel %vm503, %v508, %v507
      %vm510 = vcmp.lt.s32.totalorder %v502, 0
      %v511 = vsub.s32 0, %v502
      %v512 = vsel %vm510, %v511, %v502
      %v513 = vshrl.u32 %v512, 4
      %v514 = vand.u32 %v512, 15
      %v515 = vsub.s32 0, %v514
      %v516 = vsel %vm510, %v515, %v514
      %vm517 = vcmp.ne.s32.totalorder %v509, 0
      %vm518 = vcmp.ne.s32.totalorder %v516, 0
      %vm519 = vcmp.lt.s32.totalorder %v509, 0
      %vm520 = vcmp.lt.s32.totalorder %v516, 0
      %vm521 = vmand %vm519, %vm517
      %vm522 = vmand %vm520, %vm518
      %v523 = vadd.s32 %v509, 16
      %v524 = vadd.s32 %v516, 16
      %v525 = vsel %vm521, %v523, %v509
      %v526 = vsel %vm522, %v524, %v516
      %vm527 = vcmp.lt.s32.totalorder %v525, 12
      %vm528 = vcmp.lt.s32.totalorder %v526, 12
      %v529 = vsel %vm527, 1, 0
      %v530 = vsel %vm528, 1, 0
      %vm531 = vcmp.eq.s32.totalorder %v529, 1
      %vm532 = vcmp.eq.s32.totalorder %v530, 1
      %v533 = vsel %vm531, %v498, 0.0
      %v534 = vsel %vm532, %v499, 0.0
      %v535 = vpack.c.bf16 %v534, %v533
      %v537 = vunpack.c.l.b16 %v535
      %v538 = vunpack.c.h.b16 %v535
      %v539 = vpack.c.b16 %v537, %v537
      %v540 = vpack.c.b16 %v538, %v538
      %543 = vst [vmem:[%s206] sm:$0xf] %v539
      %544 = vst [vmem:[%s206 + $0x4] sm:$0xf] %v540
      %vm545 = vcmask 130048
      %v547 = vsel %vm545, 1.0, 0
      %549 = vmatprep.subr.mxu0 0.0
      %550 = vmatpush1.msra.mxu0 0.0
      %551 = vmatprep.subr.mxu0 0.0
      %552 = vmatpush1.msra.mxu0 0.0
      %553 = vmatprep.subr.mxu0 0.0
      %554 = vmatpush1.msra.mxu0 0.0
      %555 = vmatprep.subr.mxu0 0.0
      %556 = vmatpush1.msra.mxu0 0.0
      %557 = vmatprep.subr.mxu0 0.0
      %558 = vmatpush1.msra.mxu0 0.0
      %559 = vmatprep.subr.mxu0 0.0
      %560 = vmatpush1.msra.mxu0 0.0
      %561 = vmatprep.subr.mxu0 0.0
      %562 = vmatpush1.msra.mxu0 0.0
      %563 = vmatprep.subr.mxu0 0.0
      %564 = vmatpush1.msra.mxu0 0.0
      %565 = vmatprep.subr.mxu0 0.0
      %566 = vmatpush1.msra.mxu0 0.0
      %567 = vmatprep.subr.mxu0 0.0
      %568 = vmatpush1.msra.mxu0 0.0
      %569 = vmatprep.subr.mxu0 0.0
      %570 = vmatpush1.msra.mxu0 0.0
      %571 = vmatprep.subr.mxu0 0.0
      %572 = vmatpush1.msra.mxu0 0.0
      %573 = vmatprep.subr.mxu0 0.0
      %574 = vmatpush1.msra.mxu0 0.0
      %575 = vmatprep.subr.mxu0 0.0
      %576 = vmatpush1.msra.mxu0 0.0
      %577 = vmatprep.subr.mxu0 0.0
      %578 = vmatpush1.msra.mxu0 %v534
      %579 = vmatprep.subr.mxu0 0.0
      %580 = vmatpush1.msra.mxu0 %v533
      %581 = vmatprep.subr.mxu0 0.0
      %582 = vmatpush2.msra.mxu0 0.0
      %583 = vmatprep.subr.mxu0 0.0
      %584 = vmatpush2.msra.mxu0 0.0
      %585 = vmatprep.subr.mxu0 0.0
      %586 = vmatpush2.msra.mxu0 0.0
      %587 = vmatprep.subr.mxu0 0.0
      %588 = vmatpush2.msra.mxu0 0.0
      %589 = vmatprep.subr.mxu0 0.0
      %590 = vmatpush2.msra.mxu0 0.0
      %591 = vmatprep.subr.mxu0 0.0
      %592 = vmatpush2.msra.mxu0 0.0
      %593 = vmatprep.subr.mxu0 0.0
      %594 = vmatpush2.msra.mxu0 0.0
      %595 = vmatprep.subr.mxu0 0.0
      %596 = vmatpush2.msra.mxu0 0.0
      %597 = vmatprep.subr.mxu0 0.0
      %598 = vmatpush2.msra.mxu0 0.0
      %599 = vmatprep.subr.mxu0 0.0
      %600 = vmatpush2.msra.mxu0 0.0
      %601 = vmatprep.subr.mxu0 0.0
      %602 = vmatpush2.msra.mxu0 0.0
      %603 = vmatprep.subr.mxu0 0.0
      %604 = vmatpush2.msra.mxu0 0.0
      %605 = vmatprep.subr.mxu0 0.0
      %606 = vmatpush2.msra.mxu0 0.0
      %607 = vmatprep.subr.mxu0 0.0
      %608 = vmatpush2.msra.mxu0 0.0
      %609 = vmatprep.subr.mxu0 0.0
      %610 = vmatpush2.msra.mxu0 0.0
      %611 = vmatprep.subr.mxu0 0.0
      %612 = vmatpush2.msra.mxu0 0.0
      %613 = vmatprep.mubr.f32.mxu0 0.0
      %614 = vmatmul.mubr.f32.gmra.mxu0 %v547
      %v615 = vpop.f32.mrf.mxu0
      %v616 = vadd.f32 0.0, %v615
      %v617 = vpop.f32.mrf.mxu0
      %618 = vdwg.mxu0
      %v619 = vmul.f32 %v533, %v533
      %v620 = vmul.f32 %v534, %v534
      %621 = vmatprep.subr.mxu0 0.0
      %622 = vmatpush1.msra.mxu0 0.0
      %623 = vmatprep.subr.mxu0 0.0
      %624 = vmatpush1.msra.mxu0 0.0
      %625 = vmatprep.subr.mxu0 0.0
      %626 = vmatpush1.msra.mxu0 0.0
      %627 = vmatprep.subr.mxu0 0.0
      %628 = vmatpush1.msra.mxu0 0.0
      %629 = vmatprep.subr.mxu0 0.0
      %630 = vmatpush1.msra.mxu0 0.0
      %631 = vmatprep.subr.mxu0 0.0
      %632 = vmatpush1.msra.mxu0 0.0
      %633 = vmatprep.subr.mxu0 0.0
      %634 = vmatpush1.msra.mxu0 0.0
      %635 = vmatprep.subr.mxu0 0.0
      %636 = vmatpush1.msra.mxu0 0.0
      %637 = vmatprep.subr.mxu0 0.0
      %638 = vmatpush1.msra.mxu0 0.0
      %639 = vmatprep.subr.mxu0 0.0
      %640 = vmatpush1.msra.mxu0 0.0
      %641 = vmatprep.subr.mxu0 0.0
      %642 = vmatpush1.msra.mxu0 0.0
      %643 = vmatprep.subr.mxu0 0.0
      %644 = vmatpush1.msra.mxu0 0.0
      %645 = vmatprep.subr.mxu0 0.0
      %646 = vmatpush1.msra.mxu0 0.0
      %647 = vmatprep.subr.mxu0 0.0
      %648 = vmatpush1.msra.mxu0 0.0
      %649 = vmatprep.subr.mxu0 0.0
      %650 = vmatpush1.msra.mxu0 %v620
      %651 = vmatprep.subr.mxu0 0.0
      %652 = vmatpush1.msra.mxu0 %v619
      %653 = vmatprep.subr.mxu0 0.0
      %654 = vmatpush2.msra.mxu0 0.0
      %655 = vmatprep.subr.mxu0 0.0
      %656 = vmatpush2.msra.mxu0 0.0
      %657 = vmatprep.subr.mxu0 0.0
      %658 = vmatpush2.msra.mxu0 0.0
      %659 = vmatprep.subr.mxu0 0.0
      %660 = vmatpush2.msra.mxu0 0.0
      %661 = vmatprep.subr.mxu0 0.0
      %662 = vmatpush2.msra.mxu0 0.0
      %663 = vmatprep.subr.mxu0 0.0
      %664 = vmatpush2.msra.mxu0 0.0
      %665 = vmatprep.subr.mxu0 0.0
      %666 = vmatpush2.msra.mxu0 0.0
      %667 = vmatprep.subr.mxu0 0.0
      %668 = vmatpush2.msra.mxu0 0.0
      %669 = vmatprep.subr.mxu0 0.0
      %670 = vmatpush2.msra.mxu0 0.0
      %671 = vmatprep.subr.mxu0 0.0
      %672 = vmatpush2.msra.mxu0 0.0
      %673 = vmatprep.subr.mxu0 0.0
      %674 = vmatpush2.msra.mxu0 0.0
      %675 = vmatprep.subr.mxu0 0.0
      %676 = vmatpush2.msra.mxu0 0.0
      %677 = vmatprep.subr.mxu0 0.0
      %678 = vmatpush2.msra.mxu0 0.0
      %679 = vmatprep.subr.mxu0 0.0
      %680 = vmatpush2.msra.mxu0 0.0
      %681 = vmatprep.subr.mxu0 0.0
      %682 = vmatpush2.msra.mxu0 0.0
      %683 = vmatprep.subr.mxu0 0.0
      %684 = vmatpush2.msra.mxu0 0.0
      %685 = vmatprep.mubr.f32.mxu0 0.0
      %686 = vmatmul.mubr.f32.gmra.mxu0 %v547
      %v687 = vpop.f32.mrf.mxu0
      %v688 = vadd.f32 0.0, %v687
      %v689 = vpop.f32.mrf.mxu0
      %690 = vdwg.mxu0
      %v692 = vrot.slane %v688, 7
      %vm694 = vcmask 1040384
      %v695 = vsel %vm694, %v616, %v692
      %696 = vst [vmem:[%s211] sm:$0x3] %v695
      %s697 = smul.u32 2, %s16
      %p698 = scmp.lt.s32.totalorder %s697, 3
      %s699 = scalar_select %p698, %s697, 3
      %s700 = smul.addr %s699, 4
      %s701 = scalar_lea.vmem %s3, %s700
      %p702 = scmp.lt.s32.totalorder %s16, 1
      %s703 = scalar_select %p702, %s16, 1
      %s704 = smul.addr %s703, 2
      %s705 = scalar_lea.vmem %s4, %s704
      // Predicated region
      $region33: #{drugban_forward.9} parent=31 // pred_check
        %p706 = pneg %p102
      $region34: #{drugban_forward.9} parent=31 // pred_check_branch
        %708 = sbr.rel (%p706) target = $region36
      $region35: #{drugban_forward.9} parent=31 // pred_region
        %s709 = smul.u32 2, %s16
      $region36: #{drugban_forward.9} parent=31 // pred_fallthru
        _
      // Predicated region
      $region37: #{drugban_forward.9} parent=31 // pred_check
        %p710 = pneg %p128
      $region38: #{drugban_forward.9} parent=31 // pred_check_branch
        %712 = sbr.rel (%p710) target = $region40
      $region39: #{drugban_forward.9} parent=31 // pred_region
        _
      $region40: #{drugban_forward.9} parent=31 // pred_fallthru
        _
    $region32: #{drugban_forward.9} parent=5 // pred_fallthru
      _
    %p713 = scmp.le.s32.totalorder 2, %s11
    // Predicated region
    $region41: #{drugban_forward.9} parent=5 // pred_check
      %p714 = pneg %p713
    $region42: #{drugban_forward.9} parent=5 // pred_check_branch
      %716 = sbr.rel (%p714) target = $region44
    $region43: #{drugban_forward.9} parent=5 // pred_region
      %s717 = ssub.s32 %s11, 2
      // Predicated region
      $region45: #{drugban_forward.9} parent=43 // pred_check
        %p718 = pneg %p108
      $region46: #{drugban_forward.9} parent=43 // pred_check_branch
        %720 = sbr.rel (%p718) target = $region48
      $region47: #{drugban_forward.9} parent=43 // pred_region
        %s721 = smul.u32 2, %s17
        %p722 = scmp.lt.s32.totalorder %s721, 3
        %s723 = scalar_select %p722, %s721, 3
        %s724 = smul.addr %s723, 4
        %s725 = scalar_lea.vmem %s3, %s724
      $region48: #{drugban_forward.9} parent=43 // pred_fallthru
        _
      // Predicated region
      $region49: #{drugban_forward.9} parent=43 // pred_check
        %p726 = pneg %p134
      $region50: #{drugban_forward.9} parent=43 // pred_check_branch
        %728 = sbr.rel (%p726) target = $region52
      $region51: #{drugban_forward.9} parent=43 // pred_region
        %p729 = scmp.lt.s32.totalorder %s17, 1
        %s730 = scalar_select %p729, %s17, 1
        %s731 = smul.addr %s730, 2
        %s732 = scalar_lea.vmem %s4, %s731
      $region52: #{drugban_forward.9} parent=43 // pred_fallthru
        _
    $region44: #{drugban_forward.9} parent=5 // pred_fallthru
      _
  $region6: #{drugban_forward.9} parent=0 // loop_footer
    %s15 = sadd.s32 1, %s11
  $region7: #{drugban_forward.9} parent=0 // loop_footer_branch
    %10 = sbr.rel target = $region3
  $region8: #{drugban_forward.9} parent=0 // loop_exit
    _

// kernel: drugban_forward.13
$region0: #{drugban_forward.13}
  #allocation0 [shape = 'u32[]', space=smem, size = 0x4, offset = 0x4, fixed_abs, tag = 'smem constant byte address 0x4 - core index']
  #allocation1 [shape = 'u32[144,128]{1,0:T(1,128)}', space=vmem, size = 0x12000, scoped, tag = 'internal scratch']
  %s0 = inlined_call_operand.vmem [shape: bf16[32,128], index: 0, kind: input, shape index: {}]
  %s1 = inlined_call_operand.vmem [shape: bf16[128,384], index: 1, kind: input, shape index: {}]
  %s2 = inlined_call_operand.vmem [shape: f32[1,128], index: 2, kind: input, shape index: {}]
  %s3 = inlined_call_operand.vmem [shape: bf16[32,128], index: 3, kind: output, shape index: {0}]
  %s4 = inlined_call_operand.vmem [shape: f32[2,2,128], index: 4, kind: output, shape index: {1}]
  %5 = xla_tuple %s3, %s4
  %s6 = sld [smem:[#allocation0]]
  $region53: #{drugban_forward.13} parent=0
    _
  %s8 = ssub.s32 1, %s6
  %s9 = scalar_select 0, %s8, %s6
  loop: start=0, step=1, limit=4
  $region2: #{drugban_forward.13} parent=0 // loop_pre_header
    _
  $region3: #{drugban_forward.13} parent=0 // loop_header
    %s11 = sphi 0, %s15
    %p12 = scmp.ge.s32.totalorder %s11, 4
    %s21 = sphi 0, %s23
    %s24 = sphi 0, %s21
    %s25 = sphi 0, %s24
    %s41 = sphi 0, %s25
    %s45 = sphi 0, %s45
    %s47 = sphi 0, %s45
    %s48 = sphi 0, %s47
    %s62 = sphi 0, %s48
    %s66 = sphi 0, %s66
    %s68 = sphi 0, %s66
    %s69 = sphi 0, %s68
    %s83 = sphi 0, %s69
    %s89 = sphi 0, %s91
    %s92 = sphi 0, %s89
    %s93 = sphi 0, %s92
    %s109 = sphi 0, %s93
    %s115 = sphi 0, %s117
    %s118 = sphi 0, %s115
    %s119 = sphi 0, %s118
    %s135 = sphi 0, %s119
  $region4: #{drugban_forward.13} parent=0 // loop_header_branch
    %14 = sbr.rel (%p12) target = $region8
  $region5: #{drugban_forward.13} parent=0 // loop_body
    %s16 = ssub.s32 %s11, 1
    %s17 = ssub.s32 %s11, 2
    %s18 = sadd.s32 %s11, 1
    %s19 = ssub.s32 %s11, %s18
    %p20 = scmp.eq.s32.totalorder %s19, 0
    %s22 = sadd.s32 %s21, 1
    %s23 = scalar_select %p20, %s21, %s22
    %p26 = pneg %p20
    %p27 = scmp.eq.s32.totalorder %s11, 1
    %p28 = por %p26, %p27
    %p29 = scmp.ne.s32.totalorder %s21, %s24
    %p30 = scmp.eq.s32.totalorder %s11, 0
    %p31 = por %p29, %p30
    %p32 = scmp.ne.s32.totalorder %s21, %s24
    %p33 = scmp.eq.s32.totalorder %s16, 1
    %p34 = por %p32, %p33
    %p35 = scmp.ne.s32.totalorder %s24, %s25
    %p36 = scmp.eq.s32.totalorder %s16, 0
    %p37 = por %p35, %p36
    %p38 = scmp.ne.s32.totalorder %s24, %s25
    %p39 = scmp.eq.s32.totalorder %s17, 1
    %p40 = por %p38, %p39
    %p42 = scmp.ne.s32.totalorder %s25, %s41
    %p43 = scmp.eq.s32.totalorder %s17, 0
    %p44 = por %p42, %p43
    %s46 = sadd.s32 %s45, 1
    %p49 = scmp.eq.s32.totalorder %s11, 1
    %p50 = scmp.ne.s32.totalorder %s45, %s47
    %p51 = scmp.eq.s32.totalorder %s11, 0
    %p52 = por %p50, %p51
    %p53 = scmp.ne.s32.totalorder %s45, %s47
    %p54 = scmp.eq.s32.totalorder %s16, 1
    %p55 = por %p53, %p54
    %p56 = scmp.ne.s32.totalorder %s47, %s48
    %p57 = scmp.eq.s32.totalorder %s16, 0
    %p58 = por %p56, %p57
    %p59 = scmp.ne.s32.totalorder %s47, %s48
    %p60 = scmp.eq.s32.totalorder %s17, 1
    %p61 = por %p59, %p60
    %p63 = scmp.ne.s32.totalorder %s48, %s62
    %p64 = scmp.eq.s32.totalorder %s17, 0
    %p65 = por %p63, %p64
    %s67 = sadd.s32 %s66, 1
    %p70 = scmp.eq.s32.totalorder %s11, 1
    %p71 = scmp.ne.s32.totalorder %s66, %s68
    %p72 = scmp.eq.s32.totalorder %s11, 0
    %p73 = por %p71, %p72
    %p74 = scmp.ne.s32.totalorder %s66, %s68
    %p75 = scmp.eq.s32.totalorder %s16, 1
    %p76 = por %p74, %p75
    %p77 = scmp.ne.s32.totalorder %s68, %s69
    %p78 = scmp.eq.s32.totalorder %s16, 0
    %p79 = por %p77, %p78
    %p80 = scmp.ne.s32.totalorder %s68, %s69
    %p81 = scmp.eq.s32.totalorder %s17, 1
    %p82 = por %p80, %p81
    %p84 = scmp.ne.s32.totalorder %s69, %s83
    %p85 = scmp.eq.s32.totalorder %s17, 0
    %p86 = por %p84, %p85
    %s87 = ssub.s32 %s11, %s18
    %p88 = scmp.eq.s32.totalorder %s87, 0
    %s90 = sadd.s32 %s89, 1
    %s91 = scalar_select %p88, %s89, %s90
    %p94 = pneg %p88
    %p95 = scmp.eq.s32.totalorder %s11, 1
    %p96 = por %p94, %p95
    %p97 = scmp.ne.s32.totalorder %s89, %s92
    %p98 = scmp.eq.s32.totalorder %s11, 0
    %p99 = por %p97, %p98
    %p100 = scmp.ne.s32.totalorder %s89, %s92
    %p101 = scmp.eq.s32.totalorder %s16, 1
    %p102 = por %p100, %p101
    %p103 = scmp.ne.s32.totalorder %s92, %s93
    %p104 = scmp.eq.s32.totalorder %s16, 0
    %p105 = por %p103, %p104
    %p106 = scmp.ne.s32.totalorder %s92, %s93
    %p107 = scmp.eq.s32.totalorder %s17, 1
    %p108 = por %p106, %p107
    %p110 = scmp.ne.s32.totalorder %s93, %s109
    %p111 = scmp.eq.s32.totalorder %s17, 0
    %p112 = por %p110, %p111
    %s113 = ssub.s32 %s11, %s18
    %p114 = scmp.eq.s32.totalorder %s113, 0
    %s116 = sadd.s32 %s115, 1
    %s117 = scalar_select %p114, %s115, %s116
    %p120 = pneg %p114
    %p121 = scmp.eq.s32.totalorder %s11, 1
    %p122 = por %p120, %p121
    %p123 = scmp.ne.s32.totalorder %s115, %s118
    %p124 = scmp.eq.s32.totalorder %s11, 0
    %p125 = por %p123, %p124
    %p126 = scmp.ne.s32.totalorder %s115, %s118
    %p127 = scmp.eq.s32.totalorder %s16, 1
    %p128 = por %p126, %p127
    %p129 = scmp.ne.s32.totalorder %s118, %s119
    %p130 = scmp.eq.s32.totalorder %s16, 0
    %p131 = por %p129, %p130
    %p132 = scmp.ne.s32.totalorder %s118, %s119
    %p133 = scmp.eq.s32.totalorder %s17, 1
    %p134 = por %p132, %p133
    %p136 = scmp.ne.s32.totalorder %s119, %s135
    %p137 = scmp.eq.s32.totalorder %s17, 0
    %p138 = por %p136, %p137
    %p139 = scmp.le.s32.totalorder 1, %s11
    %p140 = scmp.lt.s32.totalorder %s11, 3
    %p141 = pnand %p139, %p140
    %p142 = pneg %p141
    // Predicated region
    $region9: #{drugban_forward.13} parent=5 // pred_check
      _
    $region10: #{drugban_forward.13} parent=5 // pred_check_branch
      %144 = sbr.rel (%p141) target = $region12
    $region11: #{drugban_forward.13} parent=5 // pred_region
      %s145 = ssub.s32 %s11, 1
      // Predicated region
      $region13: #{drugban_forward.13} parent=11 // pred_check
        %p146 = pneg %p58
      $region14: #{drugban_forward.13} parent=11 // pred_check_branch
        %148 = sbr.rel (%p146) target = $region16
      $region15: #{drugban_forward.13} parent=11 // pred_region
        _
      $region16: #{drugban_forward.13} parent=11 // pred_fallthru
        _
      // Predicated region
      $region17: #{drugban_forward.13} parent=11 // pred_check
        %p149 = pneg %p79
      $region18: #{drugban_forward.13} parent=11 // pred_check_branch
        %151 = sbr.rel (%p149) target = $region20
      $region19: #{drugban_forward.13} parent=11 // pred_region
        _
      $region20: #{drugban_forward.13} parent=11 // pred_fallthru
        _
    $region12: #{drugban_forward.13} parent=5 // pred_fallthru
      _
    %p152 = scmp.lt.s32.totalorder %s11, 2
    // Predicated region
    $region21: #{drugban_forward.13} parent=5 // pred_check
      %p153 = pneg %p152
    $region22: #{drugban_forward.13} parent=5 // pred_check_branch
      %155 = sbr.rel (%p153) target = $region24
    $region23: #{drugban_forward.13} parent=5 // pred_region
      // Predicated region
      $region25: #{drugban_forward.13} parent=23 // pred_check
        %p156 = pneg %p31
      $region26: #{drugban_forward.13} parent=23 // pred_check_branch
        %158 = sbr.rel (%p156) target = $region28
      $region27: #{drugban_forward.13} parent=23 // pred_region
        %s159 = smul.u32 2, %s11
        %p160 = scmp.lt.s32.totalorder %s159, 3
        %s161 = scalar_select %p160, %s159, 3
        %s162 = smul.addr %s161, 4
        %s163 = scalar_lea.vmem %s0, %s162
        %s164 = smul.u32 2, %s11
      $region28: #{drugban_forward.13} parent=23 // pred_fallthru
        _
    $region24: #{drugban_forward.13} parent=5 // pred_fallthru
      _
    %p165 = scmp.le.s32.totalorder 1, %s11
    %p166 = scmp.lt.s32.totalorder %s11, 3
    %p167 = pnand %p165, %p166
    %p168 = pneg %p167
    // Predicated region
    $region29: #{drugban_forward.13} parent=5 // pred_check
      _
    $region30: #{drugban_forward.13} parent=5 // pred_check_branch
      %170 = sbr.rel (%p167) target = $region32
    $region31: #{drugban_forward.13} parent=5 // pred_region
      %s171 = ssub.s32 %s11, 1
      %s172 = smul.u32 2, %s16
      %p173 = scmp.lt.s32.totalorder %s172, 3
      %s174 = scalar_select %p173, %s172, 3
      %s175 = smul.addr %s174, 4
      %s176 = scalar_lea.vmem %s0, %s175
      %p177 = pneg %p37
      %p178 = pneg %p34
      %p179 = pneg %p58
      %p180 = pneg %p55
      %p181 = pneg %p79
      %p182 = pneg %p76
      %p183 = pneg %p105
      %p184 = pneg %p102
      %s185 = smul.u32 2, %s16
      %p186 = scmp.lt.s32.totalorder %s185, 3
      %s187 = scalar_select %p186, %s185, 3
      %s188 = smul.addr %s187, 4
      %s189 = scalar_lea.vmem %s3, %s188
      %p190 = pneg %p131
      %p191 = pneg %p128
      %p192 = scmp.lt.s32.totalorder %s16, 1
      %s193 = scalar_select %p192, %s16, 1
      %s194 = smul.addr %s193, 2
      %s195 = scalar_lea.vmem %s4, %s194
      %s196 = smul.u32 2, %s16
      %p197 = scmp.lt.s32.totalorder %s196, 3
      %s198 = scalar_select %p197, %s196, 3
      %s199 = smul.addr %s198, 4
      %s200 = scalar_lea.vmem %s0, %s199
      %s201 = smul.u32 2, %s16
      %s202 = smul.u32 2, %s16
      %p203 = scmp.lt.s32.totalorder %s202, 3
      %s204 = scalar_select %p203, %s202, 3
      %s205 = smul.addr %s204, 4
      %s206 = scalar_lea.vmem %s3, %s205
      %s207 = smul.u32 2, %s16
      %p208 = scmp.lt.s32.totalorder %s16, 1
      %s209 = scalar_select %p208, %s16, 1
      %s210 = smul.addr %s209, 2
      %s211 = scalar_lea.vmem %s4, %s210
      %v213 = vld [vmem:[%s200] sm:$0xf]
      %v214 = vld [vmem:[%s200 + $0x4] sm:$0xf]
      %v215 = vld [vmem:[%s1] sm:$0xff]
      %v216 = vld [vmem:[%s1 + $0x8] sm:$0xf]
      %v217 = vld [vmem:[%s1 + $0xc] sm:$0xff]
      %v218 = vld [vmem:[%s1 + $0x14] sm:$0xf]
      %v219 = vld [vmem:[%s1 + $0x18] sm:$0xff]
      %v220 = vld [vmem:[%s1 + $0x20] sm:$0xf]
      %v221 = vld [vmem:[%s1 + $0x24] sm:$0xff]
      %v222 = vld [vmem:[%s1 + $0x2c] sm:$0xf]
      %v223 = vld [vmem:[%s1 + $0x30] sm:$0xff]
      %v224 = vld [vmem:[%s1 + $0x38] sm:$0xf]
      %v225 = vld [vmem:[%s1 + $0x3c] sm:$0xff]
      %v226 = vld [vmem:[%s1 + $0x44] sm:$0xf]
      %v227 = vld [vmem:[%s1 + $0x48] sm:$0xff]
      %v228 = vld [vmem:[%s1 + $0x50] sm:$0xf]
      %v229 = vld [vmem:[%s1 + $0x54] sm:$0xff]
      %v230 = vld [vmem:[%s1 + $0x5c] sm:$0xf]
      %v231 = vld [vmem:[%s1 + $0x60] sm:$0xff]
      %v232 = vld [vmem:[%s1 + $0x68] sm:$0xf]
      %v233 = vld [vmem:[%s1 + $0x6c] sm:$0xff]
      %v234 = vld [vmem:[%s1 + $0x74] sm:$0xf]
      %v235 = vld [vmem:[%s1 + $0x78] sm:$0xff]
      %v236 = vld [vmem:[%s1 + $0x80] sm:$0xf]
      %v237 = vld [vmem:[%s1 + $0x84] sm:$0xff]
      %v238 = vld [vmem:[%s1 + $0x8c] sm:$0xf]
      %v239 = vld [vmem:[%s1 + $0x90] sm:$0xff]
      %v240 = vld [vmem:[%s1 + $0x98] sm:$0xf]
      %v241 = vld [vmem:[%s1 + $0x9c] sm:$0xff]
      %v242 = vld [vmem:[%s1 + $0xa4] sm:$0xf]
      %v243 = vld [vmem:[%s1 + $0xa8] sm:$0xff]
      %v244 = vld [vmem:[%s1 + $0xb0] sm:$0xf]
      %v245 = vld [vmem:[%s1 + $0xb4] sm:$0xff]
      %v246 = vld [vmem:[%s1 + $0xbc] sm:$0xf]
      %v249 = vunpack.c.l.b16 %v213
      %v250 = vunpack.c.l.b16 %v214
      %v251 = vpack.c.b16 %v250, %v249
      %v285 = vunpack.c.l.b16 %v215
      %v286 = vunpack.c.h.b16 %v215
      %v287 = vunpack.c.l.b16 %v216
      %v288 = vunpack.c.l.b16 %v217
      %v289 = vunpack.c.h.b16 %v217
      %v290 = vunpack.c.l.b16 %v218
      %v291 = vunpack.c.l.b16 %v219
      %v292 = vunpack.c.h.b16 %v219
      %v293 = vunpack.c.l.b16 %v220
      %v294 = vunpack.c.l.b16 %v221
      %v295 = vunpack.c.h.b16 %v221
      %v296 = vunpack.c.l.b16 %v222
      %v297 = vunpack.c.l.b16 %v223
      %v298 = vunpack.c.h.b16 %v223
      %v299 = vunpack.c.l.b16 %v224
      %v300 = vunpack.c.l.b16 %v225
      %v301 = vunpack.c.h.b16 %v225
      %v302 = vunpack.c.l.b16 %v226
      %v303 = vunpack.c.l.b16 %v227
      %v304 = vunpack.c.h.b16 %v227
      %v305 = vunpack.c.l.b16 %v228
      %v306 = vunpack.c.l.b16 %v229
      %v307 = vunpack.c.h.b16 %v229
      %v308 = vunpack.c.l.b16 %v230
      %v309 = vunpack.c.l.b16 %v231
      %v310 = vunpack.c.h.b16 %v231
      %v311 = vunpack.c.l.b16 %v232
      %v312 = vunpack.c.l.b16 %v233
      %v313 = vunpack.c.h.b16 %v233
      %v314 = vunpack.c.l.b16 %v234
      %v315 = vunpack.c.l.b16 %v235
      %v316 = vunpack.c.h.b16 %v235
      %v317 = vunpack.c.l.b16 %v236
      %v318 = vunpack.c.l.b16 %v237
      %v319 = vunpack.c.h.b16 %v237
      %v320 = vunpack.c.l.b16 %v238
      %v321 = vunpack.c.l.b16 %v239
      %v322 = vunpack.c.h.b16 %v239
      %v323 = vunpack.c.l.b16 %v240
      %v324 = vunpack.c.l.b16 %v241
      %v325 = vunpack.c.h.b16 %v241
      %v326 = vunpack.c.l.b16 %v242
      %v327 = vunpack.c.l.b16 %v243
      %v328 = vunpack.c.h.b16 %v243
      %v329 = vunpack.c.l.b16 %v244
      %v330 = vunpack.c.l.b16 %v245
      %v331 = vunpack.c.h.b16 %v245
      %v332 = vunpack.c.l.b16 %v246
      %v333 = vpack.c.b16 %v288, %v285
      %v334 = vpack.c.b16 %v289, %v286
      %v335 = vpack.c.b16 %v290, %v287
      %v336 = vpack.c.b16 %v294, %v291
      %v337 = vpack.c.b16 %v295, %v292
      %v338 = vpack.c.b16 %v296, %v293
      %v339 = vpack.c.b16 %v300, %v297
      %v340 = vpack.c.b16 %v301, %v298
      %v341 = vpack.c.b16 %v302, %v299
      %v342 = vpack.c.b16 %v306, %v303
      %v343 = vpack.c.b16 %v307, %v304
      %v344 = vpack.c.b16 %v308, %v305
      %v345 = vpack.c.b16 %v312, %v309
      %v346 = vpack.c.b16 %v313, %v310
      %v347 = vpack.c.b16 %v314, %v311
      %v348 = vpack.c.b16 %v318, %v315
      %v349 = vpack.c.b16 %v319, %v316
      %v350 = vpack.c.b16 %v320, %v317
      %v351 = vpack.c.b16 %v324, %v321
      %v352 = vpack.c.b16 %v325, %v322
      %v353 = vpack.c.b16 %v326, %v323
      %v354 = vpack.c.b16 %v330, %v327
      %v355 = vpack.c.b16 %v331, %v328
      %v356 = vpack.c.b16 %v332, %v329
      %381 = vmatprep.subr.bf16.mxu0 %v355
      %382 = vmatpush1.bf16.msra.mxu0 %v354
      %383 = vmatprep.subr.bf16.mxu0 %v352
      %384 = vmatpush1.bf16.msra.mxu0 %v351
      %385 = vmatprep.subr.bf16.mxu0 %v349
      %386 = vmatpush1.bf16.msra.mxu0 %v348
      %387 = vmatprep.subr.bf16.mxu0 %v346
      %388 = vmatpush1.bf16.msra.mxu0 %v345
      %389 = vmatprep.subr.bf16.mxu0 %v343
      %390 = vmatpush1.bf16.msra.mxu0 %v342
      %391 = vmatprep.subr.bf16.mxu0 %v340
      %392 = vmatpush1.bf16.msra.mxu0 %v339
      %393 = vmatprep.subr.bf16.mxu0 %v337
      %394 = vmatpush1.bf16.msra.mxu0 %v336
      %395 = vmatprep.subr.bf16.mxu0 %v334
      %396 = vmatpush1.bf16.msra.mxu0 %v333
      %397 = vmatprep.subr.bf16.mxu0 0
      %398 = vmatpush2.bf16.msra.mxu0 0
      %399 = vmatprep.subr.bf16.mxu0 0
      %400 = vmatpush2.bf16.msra.mxu0 0
      %401 = vmatprep.subr.bf16.mxu0 0
      %402 = vmatpush2.bf16.msra.mxu0 0
      %403 = vmatprep.subr.bf16.mxu0 0
      %404 = vmatpush2.bf16.msra.mxu0 0
      %405 = vmatprep.subr.bf16.mxu0 0
      %406 = vmatpush2.bf16.msra.mxu0 0
      %407 = vmatprep.subr.bf16.mxu0 0
      %408 = vmatpush2.bf16.msra.mxu0 0
      %409 = vmatprep.subr.bf16.mxu0 0
      %410 = vmatpush2.bf16.msra.mxu0 0
      %411 = vmatprep.subr.bf16.mxu0 0
      %412 = vmatpush2.bf16.msra.mxu0 0
      %413 = vmatprep.mubr.bf16.mxu0 0
      %414 = vmatmul.mubr.bf16.gmra.mxu0 %v251
      %v415 = vpop.f32.mrf.mxu0
      %v416 = vadd.f32 0.0, %v415
      %v417 = vpop.f32.mrf.mxu0
      %v418 = vadd.f32 0.0, %v417
      %v419 = vpop.f32.mrf.mxu0
      %v420 = vadd.f32 0.0, %v419
      %v421 = vpop.f32.mrf.mxu0
      %v422 = vadd.f32 0.0, %v421
      %423 = vdwg.mxu0
      %424 = vmatprep.subr.bf16.mxu0 0
      %425 = vmatpush1.bf16.msra.mxu0 %v356
      %426 = vmatprep.subr.bf16.mxu0 0
      %427 = vmatpush1.bf16.msra.mxu0 %v353
      %428 = vmatprep.subr.bf16.mxu0 0
      %429 = vmatpush1.bf16.msra.mxu0 %v350
      %430 = vmatprep.subr.bf16.mxu0 0
      %431 = vmatpush1.bf16.msra.mxu0 %v347
      %432 = vmatprep.subr.bf16.mxu0 0
      %433 = vmatpush1.bf16.msra.mxu0 %v344
      %434 = vmatprep.subr.bf16.mxu0 0
      %435 = vmatpush1.bf16.msra.mxu0 %v341
      %436 = vmatprep.subr.bf16.mxu0 0
      %437 = vmatpush1.bf16.msra.mxu0 %v338
      %438 = vmatprep.subr.bf16.mxu0 0
      %439 = vmatpush1.bf16.msra.mxu0 %v335
      %440 = vmatprep.subr.bf16.mxu0 0
      %441 = vmatpush2.bf16.msra.mxu0 0
      %442 = vmatprep.subr.bf16.mxu0 0
      %443 = vmatpush2.bf16.msra.mxu0 0
      %444 = vmatprep.subr.bf16.mxu0 0
      %445 = vmatpush2.bf16.msra.mxu0 0
      %446 = vmatprep.subr.bf16.mxu0 0
      %447 = vmatpush2.bf16.msra.mxu0 0
      %448 = vmatprep.subr.bf16.mxu0 0
      %449 = vmatpush2.bf16.msra.mxu0 0
      %450 = vmatprep.subr.bf16.mxu0 0
      %451 = vmatpush2.bf16.msra.mxu0 0
      %452 = vmatprep.subr.bf16.mxu0 0
      %453 = vmatpush2.bf16.msra.mxu0 0
      %454 = vmatprep.subr.bf16.mxu0 0
      %455 = vmatpush2.bf16.msra.mxu0 0
      %456 = vmatprep.mubr.bf16.mxu0 0
      %457 = vmatmul.mubr.bf16.gmra.mxu0 %v251
      %v458 = vpop.f32.mrf.mxu0
      %v459 = vadd.f32 0.0, %v458
      %v460 = vpop.f32.mrf.mxu0
      %v461 = vpop.f32.mrf.mxu0
      %v462 = vadd.f32 0.0, %v461
      %v463 = vpop.f32.mrf.mxu0
      %464 = vdwg.mxu0
      %vm467 = vcmask 1046528
      %v468 = vrot.slane %v418, 1
      %v469 = vrot.slane %v422, 1
      %v470 = vsel %vm467, %v468, %v469
      %v474 = vsel %vm467, %v469, %v468
      %v475 = vadd.f32 %v416, %v470
      %v476 = vadd.f32 %v420, %v474
      %vm479 = vcmask 1045504
      %v480 = vrot.slane %v459, 2
      %v481 = vrot.slane %v462, 2
      %v482 = vsel %vm479, %v480, %v481
      %v486 = vsel %vm479, %v481, %v480
      %v487 = vadd.f32 %v475, %v482
      %v488 = vadd.f32 %v476, %v486
      %v489 = vld [vmem:[%s2] sm:$0x1]
      %v491 = vlaneseq
      %v492 = vshrl.u32 %v491, 7
      %v493 = vsub.s32 0, %v492
      %v494 = vrot.slane %v489, %v493
      %v496 = vadd.f32 %v487, %v494
      %v497 = vadd.f32 %v488, %v494
      %v498 = vmax.f32 %v496, 0.0
      %v499 = vmax.f32 %v497, 0.0
      %v500 = vlaneseq
      %v501 = vshrl.u32 %v500, 7
      %v502 = vadd.s32 %v501, 8
      %vm503 = vcmp.lt.s32.totalorder %v501, 0
      %v504 = vsub.s32 0, %v501
      %v505 = vsel %vm503, %v504, %v501
      %v506 = vshrl.u32 %v505, 4
      %v507 = vand.u32 %v505, 15
      %v508 = vsub.s32 0, %v507
      %v509 = vsel %vm503, %v508, %v507
      %vm510 = vcmp.lt.s32.totalorder %v502, 0
      %v511 = vsub.s32 0, %v502
      %v512 = vsel %vm510, %v511, %v502
      %v513 = vshrl.u32 %v512, 4
      %v514 = vand.u32 %v512, 15
      %v515 = vsub.s32 0, %v514
      %v516 = vsel %vm510, %v515, %v514
      %vm517 = vcmp.ne.s32.totalorder %v509, 0
      %vm518 = vcmp.ne.s32.totalorder %v516, 0
      %vm519 = vcmp.lt.s32.totalorder %v509, 0
      %vm520 = vcmp.lt.s32.totalorder %v516, 0
      %vm521 = vmand %vm519, %vm517
      %vm522 = vmand %vm520, %vm518
      %v523 = vadd.s32 %v509, 16
      %v524 = vadd.s32 %v516, 16
      %v525 = vsel %vm521, %v523, %v509
      %v526 = vsel %vm522, %v524, %v516
      %vm527 = vcmp.lt.s32.totalorder %v525, 10
      %vm528 = vcmp.lt.s32.totalorder %v526, 10
      %v529 = vsel %vm527, 1, 0
      %v530 = vsel %vm528, 1, 0
      %vm531 = vcmp.eq.s32.totalorder %v529, 1
      %vm532 = vcmp.eq.s32.totalorder %v530, 1
      %v533 = vsel %vm531, %v498, 0.0
      %v534 = vsel %vm532, %v499, 0.0
      %v535 = vpack.c.bf16 %v534, %v533
      %v537 = vunpack.c.l.b16 %v535
      %v538 = vunpack.c.h.b16 %v535
      %v539 = vpack.c.b16 %v537, %v537
      %v540 = vpack.c.b16 %v538, %v538
      %543 = vst [vmem:[%s206] sm:$0xf] %v539
      %544 = vst [vmem:[%s206 + $0x4] sm:$0xf] %v540
      %vm545 = vcmask 130048
      %v547 = vsel %vm545, 1.0, 0
      %549 = vmatprep.subr.mxu0 0.0
      %550 = vmatpush1.msra.mxu0 0.0
      %551 = vmatprep.subr.mxu0 0.0
      %552 = vmatpush1.msra.mxu0 0.0
      %553 = vmatprep.subr.mxu0 0.0
      %554 = vmatpush1.msra.mxu0 0.0
      %555 = vmatprep.subr.mxu0 0.0
      %556 = vmatpush1.msra.mxu0 0.0
      %557 = vmatprep.subr.mxu0 0.0
      %558 = vmatpush1.msra.mxu0 0.0
      %559 = vmatprep.subr.mxu0 0.0
      %560 = vmatpush1.msra.mxu0 0.0
      %561 = vmatprep.subr.mxu0 0.0
      %562 = vmatpush1.msra.mxu0 0.0
      %563 = vmatprep.subr.mxu0 0.0
      %564 = vmatpush1.msra.mxu0 0.0
      %565 = vmatprep.subr.mxu0 0.0
      %566 = vmatpush1.msra.mxu0 0.0
      %567 = vmatprep.subr.mxu0 0.0
      %568 = vmatpush1.msra.mxu0 0.0
      %569 = vmatprep.subr.mxu0 0.0
      %570 = vmatpush1.msra.mxu0 0.0
      %571 = vmatprep.subr.mxu0 0.0
      %572 = vmatpush1.msra.mxu0 0.0
      %573 = vmatprep.subr.mxu0 0.0
      %574 = vmatpush1.msra.mxu0 0.0
      %575 = vmatprep.subr.mxu0 0.0
      %576 = vmatpush1.msra.mxu0 0.0
      %577 = vmatprep.subr.mxu0 0.0
      %578 = vmatpush1.msra.mxu0 %v534
      %579 = vmatprep.subr.mxu0 0.0
      %580 = vmatpush1.msra.mxu0 %v533
      %581 = vmatprep.subr.mxu0 0.0
      %582 = vmatpush2.msra.mxu0 0.0
      %583 = vmatprep.subr.mxu0 0.0
      %584 = vmatpush2.msra.mxu0 0.0
      %585 = vmatprep.subr.mxu0 0.0
      %586 = vmatpush2.msra.mxu0 0.0
      %587 = vmatprep.subr.mxu0 0.0
      %588 = vmatpush2.msra.mxu0 0.0
      %589 = vmatprep.subr.mxu0 0.0
      %590 = vmatpush2.msra.mxu0 0.0
      %591 = vmatprep.subr.mxu0 0.0
      %592 = vmatpush2.msra.mxu0 0.0
      %593 = vmatprep.subr.mxu0 0.0
      %594 = vmatpush2.msra.mxu0 0.0
      %595 = vmatprep.subr.mxu0 0.0
      %596 = vmatpush2.msra.mxu0 0.0
      %597 = vmatprep.subr.mxu0 0.0
      %598 = vmatpush2.msra.mxu0 0.0
      %599 = vmatprep.subr.mxu0 0.0
      %600 = vmatpush2.msra.mxu0 0.0
      %601 = vmatprep.subr.mxu0 0.0
      %602 = vmatpush2.msra.mxu0 0.0
      %603 = vmatprep.subr.mxu0 0.0
      %604 = vmatpush2.msra.mxu0 0.0
      %605 = vmatprep.subr.mxu0 0.0
      %606 = vmatpush2.msra.mxu0 0.0
      %607 = vmatprep.subr.mxu0 0.0
      %608 = vmatpush2.msra.mxu0 0.0
      %609 = vmatprep.subr.mxu0 0.0
      %610 = vmatpush2.msra.mxu0 0.0
      %611 = vmatprep.subr.mxu0 0.0
      %612 = vmatpush2.msra.mxu0 0.0
      %613 = vmatprep.mubr.f32.mxu0 0.0
      %614 = vmatmul.mubr.f32.gmra.mxu0 %v547
      %v615 = vpop.f32.mrf.mxu0
      %v616 = vadd.f32 0.0, %v615
      %v617 = vpop.f32.mrf.mxu0
      %618 = vdwg.mxu0
      %v619 = vmul.f32 %v533, %v533
      %v620 = vmul.f32 %v534, %v534
      %621 = vmatprep.subr.mxu0 0.0
      %622 = vmatpush1.msra.mxu0 0.0
      %623 = vmatprep.subr.mxu0 0.0
      %624 = vmatpush1.msra.mxu0 0.0
      %625 = vmatprep.subr.mxu0 0.0
      %626 = vmatpush1.msra.mxu0 0.0
      %627 = vmatprep.subr.mxu0 0.0
      %628 = vmatpush1.msra.mxu0 0.0
      %629 = vmatprep.subr.mxu0 0.0
      %630 = vmatpush1.msra.mxu0 0.0
      %631 = vmatprep.subr.mxu0 0.0
      %632 = vmatpush1.msra.mxu0 0.0
      %633 = vmatprep.subr.mxu0 0.0
      %634 = vmatpush1.msra.mxu0 0.0
      %635 = vmatprep.subr.mxu0 0.0
      %636 = vmatpush1.msra.mxu0 0.0
      %637 = vmatprep.subr.mxu0 0.0
      %638 = vmatpush1.msra.mxu0 0.0
      %639 = vmatprep.subr.mxu0 0.0
      %640 = vmatpush1.msra.mxu0 0.0
      %641 = vmatprep.subr.mxu0 0.0
      %642 = vmatpush1.msra.mxu0 0.0
      %643 = vmatprep.subr.mxu0 0.0
      %644 = vmatpush1.msra.mxu0 0.0
      %645 = vmatprep.subr.mxu0 0.0
      %646 = vmatpush1.msra.mxu0 0.0
      %647 = vmatprep.subr.mxu0 0.0
      %648 = vmatpush1.msra.mxu0 0.0
      %649 = vmatprep.subr.mxu0 0.0
      %650 = vmatpush1.msra.mxu0 %v620
      %651 = vmatprep.subr.mxu0 0.0
      %652 = vmatpush1.msra.mxu0 %v619
      %653 = vmatprep.subr.mxu0 0.0
      %654 = vmatpush2.msra.mxu0 0.0
      %655 = vmatprep.subr.mxu0 0.0
      %656 = vmatpush2.msra.mxu0 0.0
      %657 = vmatprep.subr.mxu0 0.0
      %658 = vmatpush2.msra.mxu0 0.0
      %659 = vmatprep.subr.mxu0 0.0
      %660 = vmatpush2.msra.mxu0 0.0
      %661 = vmatprep.subr.mxu0 0.0
      %662 = vmatpush2.msra.mxu0 0.0
      %663 = vmatprep.subr.mxu0 0.0
      %664 = vmatpush2.msra.mxu0 0.0
      %665 = vmatprep.subr.mxu0 0.0
      %666 = vmatpush2.msra.mxu0 0.0
      %667 = vmatprep.subr.mxu0 0.0
      %668 = vmatpush2.msra.mxu0 0.0
      %669 = vmatprep.subr.mxu0 0.0
      %670 = vmatpush2.msra.mxu0 0.0
      %671 = vmatprep.subr.mxu0 0.0
      %672 = vmatpush2.msra.mxu0 0.0
      %673 = vmatprep.subr.mxu0 0.0
      %674 = vmatpush2.msra.mxu0 0.0
      %675 = vmatprep.subr.mxu0 0.0
      %676 = vmatpush2.msra.mxu0 0.0
      %677 = vmatprep.subr.mxu0 0.0
      %678 = vmatpush2.msra.mxu0 0.0
      %679 = vmatprep.subr.mxu0 0.0
      %680 = vmatpush2.msra.mxu0 0.0
      %681 = vmatprep.subr.mxu0 0.0
      %682 = vmatpush2.msra.mxu0 0.0
      %683 = vmatprep.subr.mxu0 0.0
      %684 = vmatpush2.msra.mxu0 0.0
      %685 = vmatprep.mubr.f32.mxu0 0.0
      %686 = vmatmul.mubr.f32.gmra.mxu0 %v547
      %v687 = vpop.f32.mrf.mxu0
      %v688 = vadd.f32 0.0, %v687
      %v689 = vpop.f32.mrf.mxu0
      %690 = vdwg.mxu0
      %v692 = vrot.slane %v688, 7
      %vm694 = vcmask 1040384
      %v695 = vsel %vm694, %v616, %v692
      %696 = vst [vmem:[%s211] sm:$0x3] %v695
      %s697 = smul.u32 2, %s16
      %p698 = scmp.lt.s32.totalorder %s697, 3
      %s699 = scalar_select %p698, %s697, 3
      %s700 = smul.addr %s699, 4
      %s701 = scalar_lea.vmem %s3, %s700
      %p702 = scmp.lt.s32.totalorder %s16, 1
      %s703 = scalar_select %p702, %s16, 1
      %s704 = smul.addr %s703, 2
      %s705 = scalar_lea.vmem %s4, %s704
      // Predicated region
      $region33: #{drugban_forward.13} parent=31 // pred_check
        %p706 = pneg %p102
      $region34: #{drugban_forward.13} parent=31 // pred_check_branch
        %708 = sbr.rel (%p706) target = $region36
      $region35: #{drugban_forward.13} parent=31 // pred_region
        %s709 = smul.u32 2, %s16
      $region36: #{drugban_forward.13} parent=31 // pred_fallthru
        _
      // Predicated region
      $region37: #{drugban_forward.13} parent=31 // pred_check
        %p710 = pneg %p128
      $region38: #{drugban_forward.13} parent=31 // pred_check_branch
        %712 = sbr.rel (%p710) target = $region40
      $region39: #{drugban_forward.13} parent=31 // pred_region
        _
      $region40: #{drugban_forward.13} parent=31 // pred_fallthru
        _
    $region32: #{drugban_forward.13} parent=5 // pred_fallthru
      _
    %p713 = scmp.le.s32.totalorder 2, %s11
    // Predicated region
    $region41: #{drugban_forward.13} parent=5 // pred_check
      %p714 = pneg %p713
    $region42: #{drugban_forward.13} parent=5 // pred_check_branch
      %716 = sbr.rel (%p714) target = $region44
    $region43: #{drugban_forward.13} parent=5 // pred_region
      %s717 = ssub.s32 %s11, 2
      // Predicated region
      $region45: #{drugban_forward.13} parent=43 // pred_check
        %p718 = pneg %p108
      $region46: #{drugban_forward.13} parent=43 // pred_check_branch
        %720 = sbr.rel (%p718) target = $region48
      $region47: #{drugban_forward.13} parent=43 // pred_region
        %s721 = smul.u32 2, %s17
        %p722 = scmp.lt.s32.totalorder %s721, 3
        %s723 = scalar_select %p722, %s721, 3
        %s724 = smul.addr %s723, 4
        %s725 = scalar_lea.vmem %s3, %s724
      $region48: #{drugban_forward.13} parent=43 // pred_fallthru
        _
      // Predicated region
      $region49: #{drugban_forward.13} parent=43 // pred_check
        %p726 = pneg %p134
      $region50: #{drugban_forward.13} parent=43 // pred_check_branch
        %728 = sbr.rel (%p726) target = $region52
      $region51: #{drugban_forward.13} parent=43 // pred_region
        %p729 = scmp.lt.s32.totalorder %s17, 1
        %s730 = scalar_select %p729, %s17, 1
        %s731 = smul.addr %s730, 2
        %s732 = scalar_lea.vmem %s4, %s731
      $region52: #{drugban_forward.13} parent=43 // pred_fallthru
        _
    $region44: #{drugban_forward.13} parent=5 // pred_fallthru
      _
  $region6: #{drugban_forward.13} parent=0 // loop_footer
    %s15 = sadd.s32 1, %s11
  $region7: #{drugban_forward.13} parent=0 // loop_footer_branch
    %10 = sbr.rel target = $region3
  $region8: #{drugban_forward.13} parent=0 // loop_exit
    _

// kernel: drugban_forward.8
$region0: #{drugban_forward.8}
  #allocation0 [shape = 'u32[]', space=smem, size = 0x4, offset = 0x4, fixed_abs, tag = 'smem constant byte address 0x4 - core index']
  #allocation1 [shape = 'u32[144,128]{1,0:T(1,128)}', space=vmem, size = 0x12000, scoped, tag = 'internal scratch']
  %s0 = inlined_call_operand.vmem [shape: bf16[32,1280], index: 0, kind: input, shape index: {}]
  %s1 = inlined_call_operand.vmem [shape: bf16[1280,384], index: 1, kind: input, shape index: {}]
  %s2 = inlined_call_operand.vmem [shape: f32[1,128], index: 2, kind: input, shape index: {}]
  %s3 = inlined_call_operand.vmem [shape: bf16[32,128], index: 3, kind: output, shape index: {0}]
  %s4 = inlined_call_operand.vmem [shape: f32[2,2,128], index: 4, kind: output, shape index: {1}]
  %5 = xla_tuple %s3, %s4
  %s6 = sld [smem:[#allocation0]]
  $region53: #{drugban_forward.8} parent=0
    _
  %s8 = ssub.s32 1, %s6
  %s9 = scalar_select 0, %s8, %s6
  loop: start=0, step=1, limit=4
  $region2: #{drugban_forward.8} parent=0 // loop_pre_header
    _
  $region3: #{drugban_forward.8} parent=0 // loop_header
    %s11 = sphi 0, %s15
    %p12 = scmp.ge.s32.totalorder %s11, 4
    %s21 = sphi 0, %s23
    %s24 = sphi 0, %s21
    %s25 = sphi 0, %s24
    %s41 = sphi 0, %s25
    %s45 = sphi 0, %s45
    %s47 = sphi 0, %s45
    %s48 = sphi 0, %s47
    %s62 = sphi 0, %s48
    %s66 = sphi 0, %s66
    %s68 = sphi 0, %s66
    %s69 = sphi 0, %s68
    %s83 = sphi 0, %s69
    %s89 = sphi 0, %s91
    %s92 = sphi 0, %s89
    %s93 = sphi 0, %s92
    %s109 = sphi 0, %s93
    %s115 = sphi 0, %s117
    %s118 = sphi 0, %s115
    %s119 = sphi 0, %s118
    %s135 = sphi 0, %s119
  $region4: #{drugban_forward.8} parent=0 // loop_header_branch
    %14 = sbr.rel (%p12) target = $region8
  $region5: #{drugban_forward.8} parent=0 // loop_body
    %s16 = ssub.s32 %s11, 1
    %s17 = ssub.s32 %s11, 2
    %s18 = sadd.s32 %s11, 1
    %s19 = ssub.s32 %s11, %s18
    %p20 = scmp.eq.s32.totalorder %s19, 0
    %s22 = sadd.s32 %s21, 1
    %s23 = scalar_select %p20, %s21, %s22
    %p26 = pneg %p20
    %p27 = scmp.eq.s32.totalorder %s11, 1
    %p28 = por %p26, %p27
    %p29 = scmp.ne.s32.totalorder %s21, %s24
    %p30 = scmp.eq.s32.totalorder %s11, 0
    %p31 = por %p29, %p30
    %p32 = scmp.ne.s32.totalorder %s21, %s24
    %p33 = scmp.eq.s32.totalorder %s16, 1
    %p34 = por %p32, %p33
    %p35 = scmp.ne.s32.totalorder %s24, %s25
    %p36 = scmp.eq.s32.totalorder %s16, 0
    %p37 = por %p35, %p36
    %p38 = scmp.ne.s32.totalorder %s24, %s25
    %p39 = scmp.eq.s32.totalorder %s17, 1
    %p40 = por %p38, %p39
    %p42 = scmp.ne.s32.totalorder %s25, %s41
    %p43 = scmp.eq.s32.totalorder %s17, 0
    %p44 = por %p42, %p43
    %s46 = sadd.s32 %s45, 1
    %p49 = scmp.eq.s32.totalorder %s11, 1
    %p50 = scmp.ne.s32.totalorder %s45, %s47
    %p51 = scmp.eq.s32.totalorder %s11, 0
    %p52 = por %p50, %p51
    %p53 = scmp.ne.s32.totalorder %s45, %s47
    %p54 = scmp.eq.s32.totalorder %s16, 1
    %p55 = por %p53, %p54
    %p56 = scmp.ne.s32.totalorder %s47, %s48
    %p57 = scmp.eq.s32.totalorder %s16, 0
    %p58 = por %p56, %p57
    %p59 = scmp.ne.s32.totalorder %s47, %s48
    %p60 = scmp.eq.s32.totalorder %s17, 1
    %p61 = por %p59, %p60
    %p63 = scmp.ne.s32.totalorder %s48, %s62
    %p64 = scmp.eq.s32.totalorder %s17, 0
    %p65 = por %p63, %p64
    %s67 = sadd.s32 %s66, 1
    %p70 = scmp.eq.s32.totalorder %s11, 1
    %p71 = scmp.ne.s32.totalorder %s66, %s68
    %p72 = scmp.eq.s32.totalorder %s11, 0
    %p73 = por %p71, %p72
    %p74 = scmp.ne.s32.totalorder %s66, %s68
    %p75 = scmp.eq.s32.totalorder %s16, 1
    %p76 = por %p74, %p75
    %p77 = scmp.ne.s32.totalorder %s68, %s69
    %p78 = scmp.eq.s32.totalorder %s16, 0
    %p79 = por %p77, %p78
    %p80 = scmp.ne.s32.totalorder %s68, %s69
    %p81 = scmp.eq.s32.totalorder %s17, 1
    %p82 = por %p80, %p81
    %p84 = scmp.ne.s32.totalorder %s69, %s83
    %p85 = scmp.eq.s32.totalorder %s17, 0
    %p86 = por %p84, %p85
    %s87 = ssub.s32 %s11, %s18
    %p88 = scmp.eq.s32.totalorder %s87, 0
    %s90 = sadd.s32 %s89, 1
    %s91 = scalar_select %p88, %s89, %s90
    %p94 = pneg %p88
    %p95 = scmp.eq.s32.totalorder %s11, 1
    %p96 = por %p94, %p95
    %p97 = scmp.ne.s32.totalorder %s89, %s92
    %p98 = scmp.eq.s32.totalorder %s11, 0
    %p99 = por %p97, %p98
    %p100 = scmp.ne.s32.totalorder %s89, %s92
    %p101 = scmp.eq.s32.totalorder %s16, 1
    %p102 = por %p100, %p101
    %p103 = scmp.ne.s32.totalorder %s92, %s93
    %p104 = scmp.eq.s32.totalorder %s16, 0
    %p105 = por %p103, %p104
    %p106 = scmp.ne.s32.totalorder %s92, %s93
    %p107 = scmp.eq.s32.totalorder %s17, 1
    %p108 = por %p106, %p107
    %p110 = scmp.ne.s32.totalorder %s93, %s109
    %p111 = scmp.eq.s32.totalorder %s17, 0
    %p112 = por %p110, %p111
    %s113 = ssub.s32 %s11, %s18
    %p114 = scmp.eq.s32.totalorder %s113, 0
    %s116 = sadd.s32 %s115, 1
    %s117 = scalar_select %p114, %s115, %s116
    %p120 = pneg %p114
    %p121 = scmp.eq.s32.totalorder %s11, 1
    %p122 = por %p120, %p121
    %p123 = scmp.ne.s32.totalorder %s115, %s118
    %p124 = scmp.eq.s32.totalorder %s11, 0
    %p125 = por %p123, %p124
    %p126 = scmp.ne.s32.totalorder %s115, %s118
    %p127 = scmp.eq.s32.totalorder %s16, 1
    %p128 = por %p126, %p127
    %p129 = scmp.ne.s32.totalorder %s118, %s119
    %p130 = scmp.eq.s32.totalorder %s16, 0
    %p131 = por %p129, %p130
    %p132 = scmp.ne.s32.totalorder %s118, %s119
    %p133 = scmp.eq.s32.totalorder %s17, 1
    %p134 = por %p132, %p133
    %p136 = scmp.ne.s32.totalorder %s119, %s135
    %p137 = scmp.eq.s32.totalorder %s17, 0
    %p138 = por %p136, %p137
    %p139 = scmp.le.s32.totalorder 1, %s11
    %p140 = scmp.lt.s32.totalorder %s11, 3
    %p141 = pnand %p139, %p140
    %p142 = pneg %p141
    // Predicated region
    $region9: #{drugban_forward.8} parent=5 // pred_check
      _
    $region10: #{drugban_forward.8} parent=5 // pred_check_branch
      %144 = sbr.rel (%p141) target = $region12
    $region11: #{drugban_forward.8} parent=5 // pred_region
      %s145 = ssub.s32 %s11, 1
      // Predicated region
      $region13: #{drugban_forward.8} parent=11 // pred_check
        %p146 = pneg %p58
      $region14: #{drugban_forward.8} parent=11 // pred_check_branch
        %148 = sbr.rel (%p146) target = $region16
      $region15: #{drugban_forward.8} parent=11 // pred_region
        _
      $region16: #{drugban_forward.8} parent=11 // pred_fallthru
        _
      // Predicated region
      $region17: #{drugban_forward.8} parent=11 // pred_check
        %p149 = pneg %p79
      $region18: #{drugban_forward.8} parent=11 // pred_check_branch
        %151 = sbr.rel (%p149) target = $region20
      $region19: #{drugban_forward.8} parent=11 // pred_region
        _
      $region20: #{drugban_forward.8} parent=11 // pred_fallthru
        _
    $region12: #{drugban_forward.8} parent=5 // pred_fallthru
      _
    %p152 = scmp.lt.s32.totalorder %s11, 2
    // Predicated region
    $region21: #{drugban_forward.8} parent=5 // pred_check
      %p153 = pneg %p152
    $region22: #{drugban_forward.8} parent=5 // pred_check_branch
      %155 = sbr.rel (%p153) target = $region24
    $region23: #{drugban_forward.8} parent=5 // pred_region
      // Predicated region
      $region25: #{drugban_forward.8} parent=23 // pred_check
        %p156 = pneg %p31
      $region26: #{drugban_forward.8} parent=23 // pred_check_branch
        %158 = sbr.rel (%p156) target = $region28
      $region27: #{drugban_forward.8} parent=23 // pred_region
        %s159 = smul.u32 2, %s11
        %p160 = scmp.lt.s32.totalorder %s159, 3
        %s161 = scalar_select %p160, %s159, 3
        %s162 = smul.addr %s161, 10
        %s163 = smul.addr %s162, 4
        %s164 = scalar_lea.vmem %s0, %s163
        %s165 = smul.u32 2, %s11
      $region28: #{drugban_forward.8} parent=23 // pred_fallthru
        _
    $region24: #{drugban_forward.8} parent=5 // pred_fallthru
      _
    %p166 = scmp.le.s32.totalorder 1, %s11
    %p167 = scmp.lt.s32.totalorder %s11, 3
    %p168 = pnand %p166, %p167
    %p169 = pneg %p168
    // Predicated region
    $region29: #{drugban_forward.8} parent=5 // pred_check
      _
    $region30: #{drugban_forward.8} parent=5 // pred_check_branch
      %171 = sbr.rel (%p168) target = $region32
    $region31: #{drugban_forward.8} parent=5 // pred_region
      %s172 = ssub.s32 %s11, 1
      %s173 = smul.u32 2, %s16
      %p174 = scmp.lt.s32.totalorder %s173, 3
      %s175 = scalar_select %p174, %s173, 3
      %s176 = smul.addr %s175, 10
      %s177 = smul.addr %s176, 4
      %s178 = scalar_lea.vmem %s0, %s177
      %p179 = pneg %p37
      %p180 = pneg %p34
      %p181 = pneg %p58
      %p182 = pneg %p55
      %p183 = pneg %p79
      %p184 = pneg %p76
      %p185 = pneg %p105
      %p186 = pneg %p102
      %s187 = smul.u32 2, %s16
      %p188 = scmp.lt.s32.totalorder %s187, 3
      %s189 = scalar_select %p188, %s187, 3
      %s190 = smul.addr %s189, 4
      %s191 = scalar_lea.vmem %s3, %s190
      %p192 = pneg %p131
      %p193 = pneg %p128
      %p194 = scmp.lt.s32.totalorder %s16, 1
      %s195 = scalar_select %p194, %s16, 1
      %s196 = smul.addr %s195, 2
      %s197 = scalar_lea.vmem %s4, %s196
      %s198 = smul.u32 2, %s16
      %p199 = scmp.lt.s32.totalorder %s198, 3
      %s200 = scalar_select %p199, %s198, 3
      %s201 = smul.addr %s200, 10
      %s202 = smul.addr %s201, 4
      %s203 = scalar_lea.vmem %s0, %s202
      %s204 = smul.u32 2, %s16
      %s205 = smul.u32 2, %s16
      %p206 = scmp.lt.s32.totalorder %s205, 3
      %s207 = scalar_select %p206, %s205, 3
      %s208 = smul.addr %s207, 4
      %s209 = scalar_lea.vmem %s3, %s208
      %s210 = smul.u32 2, %s16
      %p211 = scmp.lt.s32.totalorder %s16, 1
      %s212 = scalar_select %p211, %s16, 1
      %s213 = smul.addr %s212, 2
      %s214 = scalar_lea.vmem %s4, %s213
      %v216 = vld [vmem:[%s203] sm:$0xff]
      %v217 = vld [vmem:[%s203 + $0x8] sm:$0xff]
      %v218 = vld [vmem:[%s203 + $0x10] sm:$0xff]
      %v219 = vld [vmem:[%s203 + $0x18] sm:$0xff]
      %v220 = vld [vmem:[%s203 + $0x20] sm:$0xff]
      %v221 = vld [vmem:[%s203 + $0x28] sm:$0xff]
      %v222 = vld [vmem:[%s203 + $0x30] sm:$0xff]
      %v223 = vld [vmem:[%s203 + $0x38] sm:$0xff]
      %v224 = vld [vmem:[%s203 + $0x40] sm:$0xff]
      %v225 = vld [vmem:[%s203 + $0x48] sm:$0xff]
      %v226 = vld [vmem:[%s1] sm:$0xff]
      %v227 = vld [vmem:[%s1 + $0x8] sm:$0xf]
      %v228 = vld [vmem:[%s1 + $0xc] sm:$0xff]
      %v229 = vld [vmem:[%s1 + $0x14] sm:$0xf]
      %v230 = vld [vmem:[%s1 + $0x18] sm:$0xff]
      %v231 = vld [vmem:[%s1 + $0x20] sm:$0xf]
      %v232 = vld [vmem:[%s1 + $0x24] sm:$0xff]
      %v233 = vld [vmem:[%s1 + $0x2c] sm:$0xf]
      %v234 = vld [vmem:[%s1 + $0x30] sm:$0xff]
      %v235 = vld [vmem:[%s1 + $0x38] sm:$0xf]
      %v236 = vld [vmem:[%s1 + $0x3c] sm:$0xff]
      %v237 = vld [vmem:[%s1 + $0x44] sm:$0xf]
      %v238 = vld [vmem:[%s1 + $0x48] sm:$0xff]
      %v239 = vld [vmem:[%s1 + $0x50] sm:$0xf]
      %v240 = vld [vmem:[%s1 + $0x54] sm:$0xff]
      %v241 = vld [vmem:[%s1 + $0x5c] sm:$0xf]
      %v242 = vld [vmem:[%s1 + $0x60] sm:$0xff]
      %v243 = vld [vmem:[%s1 + $0x68] sm:$0xf]
      %v244 = vld [vmem:[%s1 + $0x6c] sm:$0xff]
      %v245 = vld [vmem:[%s1 + $0x74] sm:$0xf]
      %v246 = vld [vmem:[%s1 + $0x78] sm:$0xff]
      %v247 = vld [vmem:[%s1 + $0x80] sm:$0xf]
      %v248 = vld [vmem:[%s1 + $0x84] sm:$0xff]
      %v249 = vld [vmem:[%s1 + $0x8c] sm:$0xf]
      %v250 = vld [vmem:[%s1 + $0x90] sm:$0xff]
      %v251 = vld [vmem:[%s1 + $0x98] sm:$0xf]
      %v252 = vld [vmem:[%s1 + $0x9c] sm:$0xff]
      %v253 = vld [vmem:[%s1 + $0xa4] sm:$0xf]
      %v254 = vld [vmem:[%s1 + $0xa8] sm:$0xff]
      %v255 = vld [vmem:[%s1 + $0xb0] sm:$0xf]
      %v256 = vld [vmem:[%s1 + $0xb4] sm:$0xff]
      %v257 = vld [vmem:[%s1 + $0xbc] sm:$0xf]
      %v258 = vld [vmem:[%s1 + $0xc0] sm:$0xff]
      %v259 = vld [vmem:[%s1 + $0xc8] sm:$0xf]
      %v260 = vld [vmem:[%s1 + $0xcc] sm:$0xff]
      %v261 = vld [vmem:[%s1 + $0xd4] sm:$0xf]
      %v262 = vld [vmem:[%s1 + $0xd8] sm:$0xff]
      %v263 = vld [vmem:[%s1 + $0xe0] sm:$0xf]
      %v264 = vld [vmem:[%s1 + $0xe4] sm:$0xff]
      %v265 = vld [vmem:[%s1 + $0xec] sm:$0xf]
      %v266 = vld [vmem:[%s1 + $0xf0] sm:$0xff]
      %v267 = vld [vmem:[%s1 + $0xf8] sm:$0xf]
      %v268 = vld [vmem:[%s1 + $0xfc] sm:$0xff]
      %v269 = vld [vmem:[%s1 + $0x104] sm:$0xf]
      %v270 = vld [vmem:[%s1 + $0x108] sm:$0xff]
      %v271 = vld [vmem:[%s1 + $0x110] sm:$0xf]
      %v272 = vld [vmem:[%s1 + $0x114] sm:$0xff]
      %v273 = vld [vmem:[%s1 + $0x11c] sm:$0xf]
      %v274 = vld [vmem:[%s1 + $0x120] sm:$0xff]
      %v275 = vld [vmem:[%s1 + $0x128] sm:$0xf]
      %v276 = vld [vmem:[%s1 + $0x12c] sm:$0xff]
      %v277 = vld [vmem:[%s1 + $0x134] sm:$0xf]
      %v278 = vld [vmem:[%s1 + $0x138] sm:$0xff]
      %v279 = vld [vmem:[%s1 + $0x140] sm:$0xf]
      %v280 = vld [vmem:[%s1 + $0x144] sm:$0xff]
      %v281 = vld [vmem:[%s1 + $0x14c] sm:$0xf]
      %v282 = vld [vmem:[%s1 + $0x150] sm:$0xff]
      %v283 = vld [vmem:[%s1 + $0x158] sm:$0xf]
      %v284 = vld [vmem:[%s1 + $0x15c] sm:$0xff]
      %v285 = vld [vmem:[%s1 + $0x164] sm:$0xf]
      %v286 = vld [vmem:[%s1 + $0x168] sm:$0xff]
      %v287 = vld [vmem:[%s1 + $0x170] sm:$0xf]
      %v288 = vld [vmem:[%s1 + $0x174] sm:$0xff]
      %v289 = vld [vmem:[%s1 + $0x17c] sm:$0xf]
      %v290 = vld [vmem:[%s1 + $0x180] sm:$0xff]
      %v291 = vld [vmem:[%s1 + $0x188] sm:$0xf]
      %v292 = vld [vmem:[%s1 + $0x18c] sm:$0xff]
      %v293 = vld [vmem:[%s1 + $0x194] sm:$0xf]
      %v294 = vld [vmem:[%s1 + $0x198] sm:$0xff]
      %v295 = vld [vmem:[%s1 + $0x1a0] sm:$0xf]
      %v296 = vld [vmem:[%s1 + $0x1a4] sm:$0xff]
      %v297 = vld [vmem:[%s1 + $0x1ac] sm:$0xf]
      %v298 = vld [vmem:[%s1 + $0x1b0] sm:$0xff]
      %v299 = vld [vmem:[%s1 + $0x1b8] sm:$0xf]
      %v300 = vld [vmem:[%s1 + $0x1bc] sm:$0xff]
      %v301 = vld [vmem:[%s1 + $0x1c4] sm:$0xf]
      %v302 = vld [vmem:[%s1 + $0x1c8] sm:$0xff]
      %v303 = vld [vmem:[%s1 + $0x1d0] sm:$0xf]
      %v304 = vld [vmem:[%s1 + $0x1d4] sm:$0xff]
      %v305 = vld [vmem:[%s1 + $0x1dc] sm:$0xf]
      %v306 = vld [vmem:[%s1 + $0x1e0] sm:$0xff]
      %v307 = vld [vmem:[%s1 + $0x1e8] sm:$0xf]
      %v308 = vld [vmem:[%s1 + $0x1ec] sm:$0xff]
      %v309 = vld [vmem:[%s1 + $0x1f4] sm:$0xf]
      %v310 = vld [vmem:[%s1 + $0x1f8] sm:$0xff]
      %v311 = vld [vmem:[%s1 + $0x200] sm:$0xf]
      %v312 = vld [vmem:[%s1 + $0x204] sm:$0xff]
      %v313 = vld [vmem:[%s1 + $0x20c] sm:$0xf]
      %v314 = vld [vmem:[%s1 + $0x210] sm:$0xff]
      %v315 = vld [vmem:[%s1 + $0x218] sm:$0xf]
      %v316 = vld [vmem:[%s1 + $0x21c] sm:$0xff]
      %v317 = vld [vmem:[%s1 + $0x224] sm:$0xf]
      %v318 = vld [vmem:[%s1 + $0x228] sm:$0xff]
      %v319 = vld [vmem:[%s1 + $0x230] sm:$0xf]
      %v320 = vld [vmem:[%s1 + $0x234] sm:$0xff]
      %v321 = vld [vmem:[%s1 + $0x23c] sm:$0xf]
      %v322 = vld [vmem:[%s1 + $0x240] sm:$0xff]
      %v323 = vld [vmem:[%s1 + $0x248] sm:$0xf]
      %v324 = vld [vmem:[%s1 + $0x24c] sm:$0xff]
      %v325 = vld [vmem:[%s1 + $0x254] sm:$0xf]
      %v326 = vld [vmem:[%s1 + $0x258] sm:$0xff]
      %v327 = vld [vmem:[%s1 + $0x260] sm:$0xf]
      %v328 = vld [vmem:[%s1 + $0x264] sm:$0xff]
      %v329 = vld [vmem:[%s1 + $0x26c] sm:$0xf]
      %v330 = vld [vmem:[%s1 + $0x270] sm:$0xff]
      %v331 = vld [vmem:[%s1 + $0x278] sm:$0xf]
      %v332 = vld [vmem:[%s1 + $0x27c] sm:$0xff]
      %v333 = vld [vmem:[%s1 + $0x284] sm:$0xf]
      %v334 = vld [vmem:[%s1 + $0x288] sm:$0xff]
      %v335 = vld [vmem:[%s1 + $0x290] sm:$0xf]
      %v336 = vld [vmem:[%s1 + $0x294] sm:$0xff]
      %v337 = vld [vmem:[%s1 + $0x29c] sm:$0xf]
      %v338 = vld [vmem:[%s1 + $0x2a0] sm:$0xff]
      %v339 = vld [vmem:[%s1 + $0x2a8] sm:$0xf]
      %v340 = vld [vmem:[%s1 + $0x2ac] sm:$0xff]
      %v341 = vld [vmem:[%s1 + $0x2b4] sm:$0xf]
      %v342 = vld [vmem:[%s1 + $0x2b8] sm:$0xff]
      %v343 = vld [vmem:[%s1 + $0x2c0] sm:$0xf]
      %v344 = vld [vmem:[%s1 + $0x2c4] sm:$0xff]
      %v345 = vld [vmem:[%s1 + $0x2cc] sm:$0xf]
      %v346 = vld [vmem:[%s1 + $0x2d0] sm:$0xff]
      %v347 = vld [vmem:[%s1 + $0x2d8] sm:$0xf]
      %v348 = vld [vmem:[%s1 + $0x2dc] sm:$0xff]
      %v349 = vld [vmem:[%s1 + $0x2e4] sm:$0xf]
      %v350 = vld [vmem:[%s1 + $0x2e8] sm:$0xff]
      %v351 = vld [vmem:[%s1 + $0x2f0] sm:$0xf]
      %v352 = vld [vmem:[%s1 + $0x2f4] sm:$0xff]
      %v353 = vld [vmem:[%s1 + $0x2fc] sm:$0xf]
      %v354 = vld [vmem:[%s1 + $0x300] sm:$0xff]
      %v355 = vld [vmem:[%s1 + $0x308] sm:$0xf]
      %v356 = vld [vmem:[%s1 + $0x30c] sm:$0xff]
      %v357 = vld [vmem:[%s1 + $0x314] sm:$0xf]
      %v358 = vld [vmem:[%s1 + $0x318] sm:$0xff]
      %v359 = vld [vmem:[%s1 + $0x320] sm:$0xf]
      %v360 = vld [vmem:[%s1 + $0x324] sm:$0xff]
      %v361 = vld [vmem:[%s1 + $0x32c] sm:$0xf]
      %v362 = vld [vmem:[%s1 + $0x330] sm:$0xff]
      %v363 = vld [vmem:[%s1 + $0x338] sm:$0xf]
      %v364 = vld [vmem:[%s1 + $0x33c] sm:$0xff]
      %v365 = vld [vmem:[%s1 + $0x344] sm:$0xf]
      %v366 = vld [vmem:[%s1 + $0x348] sm:$0xff]
      %v367 = vld [vmem:[%s1 + $0x350] sm:$0xf]
      %v368 = vld [vmem:[%s1 + $0x354] sm:$0xff]
      %v369 = vld [vmem:[%s1 + $0x35c] sm:$0xf]
      %v370 = vld [vmem:[%s1 + $0x360] sm:$0xff]
      %v371 = vld [vmem:[%s1 + $0x368] sm:$0xf]
      %v372 = vld [vmem:[%s1 + $0x36c] sm:$0xff]
      %v373 = vld [vmem:[%s1 + $0x374] sm:$0xf]
      %v374 = vld [vmem:[%s1 + $0x378] sm:$0xff]
      %v375 = vld [vmem:[%s1 + $0x380] sm:$0xf]
      %v376 = vld [vmem:[%s1 + $0x384] sm:$0xff]
      %v377 = vld [vmem:[%s1 + $0x38c] sm:$0xf]
      %v378 = vld [vmem:[%s1 + $0x390] sm:$0xff]
      %v379 = vld [vmem:[%s1 + $0x398] sm:$0xf]
      %v380 = vld [vmem:[%s1 + $0x39c] sm:$0xff]
      %v381 = vld [vmem:[%s1 + $0x3a4] sm:$0xf]
      %v382 = vld [vmem:[%s1 + $0x3a8] sm:$0xff]
      %v383 = vld [vmem:[%s1 + $0x3b0] sm:$0xf]
      %v384 = vld [vmem:[%s1 + $0x3b4] sm:$0xff]
      %v385 = vld [vmem:[%s1 + $0x3bc] sm:$0xf]
      %v386 = vld [vmem:[%s1 + $0x3c0] sm:$0xff]
      %v387 = vld [vmem:[%s1 + $0x3c8] sm:$0xf]
      %v388 = vld [vmem:[%s1 + $0x3cc] sm:$0xff]
      %v389 = vld [vmem:[%s1 + $0x3d4] sm:$0xf]
      %v390 = vld [vmem:[%s1 + $0x3d8] sm:$0xff]
      %v391 = vld [vmem:[%s1 + $0x3e0] sm:$0xf]
      %v392 = vld [vmem:[%s1 + $0x3e4] sm:$0xff]
      %v393 = vld [vmem:[%s1 + $0x3ec] sm:$0xf]
      %v394 = vld [vmem:[%s1 + $0x3f0] sm:$0xff]
      %v395 = vld [vmem:[%s1 + $0x3f8] sm:$0xf]
      %v396 = vld [vmem:[%s1 + $0x3fc] sm:$0xff]
      %v397 = vld [vmem:[%s1 + $0x404] sm:$0xf]
      %v398 = vld [vmem:[%s1 + $0x408] sm:$0xff]
      %v399 = vld [vmem:[%s1 + $0x410] sm:$0xf]
      %v400 = vld [vmem:[%s1 + $0x414] sm:$0xff]
      %v401 = vld [vmem:[%s1 + $0x41c] sm:$0xf]
      %v402 = vld [vmem:[%s1 + $0x420] sm:$0xff]
      %v403 = vld [vmem:[%s1 + $0x428] sm:$0xf]
      %v404 = vld [vmem:[%s1 + $0x42c] sm:$0xff]
      %v405 = vld [vmem:[%s1 + $0x434] sm:$0xf]
      %v406 = vld [vmem:[%s1 + $0x438] sm:$0xff]
      %v407 = vld [vmem:[%s1 + $0x440] sm:$0xf]
      %v408 = vld [vmem:[%s1 + $0x444] sm:$0xff]
      %v409 = vld [vmem:[%s1 + $0x44c] sm:$0xf]
      %v410 = vld [vmem:[%s1 + $0x450] sm:$0xff]
      %v411 = vld [vmem:[%s1 + $0x458] sm:$0xf]
      %v412 = vld [vmem:[%s1 + $0x45c] sm:$0xff]
      %v413 = vld [vmem:[%s1 + $0x464] sm:$0xf]
      %v414 = vld [vmem:[%s1 + $0x468] sm:$0xff]
      %v415 = vld [vmem:[%s1 + $0x470] sm:$0xf]
      %v416 = vld [vmem:[%s1 + $0x474] sm:$0xff]
      %v417 = vld [vmem:[%s1 + $0x47c] sm:$0xf]
      %v418 = vld [vmem:[%s1 + $0x480] sm:$0xff]
      %v419 = vld [vmem:[%s1 + $0x488] sm:$0xf]
      %v420 = vld [vmem:[%s1 + $0x48c] sm:$0xff]
      %v421 = vld [vmem:[%s1 + $0x494] sm:$0xf]
      %v422 = vld [vmem:[%s1 + $0x498] sm:$0xff]
      %v423 = vld [vmem:[%s1 + $0x4a0] sm:$0xf]
      %v424 = vld [vmem:[%s1 + $0x4a4] sm:$0xff]
      %v425 = vld [vmem:[%s1 + $0x4ac] sm:$0xf]
      %v426 = vld [vmem:[%s1 + $0x4b0] sm:$0xff]
      %v427 = vld [vmem:[%s1 + $0x4b8] sm:$0xf]
      %v428 = vld [vmem:[%s1 + $0x4bc] sm:$0xff]
      %v429 = vld [vmem:[%s1 + $0x4c4] sm:$0xf]
      %v430 = vld [vmem:[%s1 + $0x4c8] sm:$0xff]
      %v431 = vld [vmem:[%s1 + $0x4d0] sm:$0xf]
      %v432 = vld [vmem:[%s1 + $0x4d4] sm:$0xff]
      %v433 = vld [vmem:[%s1 + $0x4dc] sm:$0xf]
      %v434 = vld [vmem:[%s1 + $0x4e0] sm:$0xff]
      %v435 = vld [vmem:[%s1 + $0x4e8] sm:$0xf]
      %v436 = vld [vmem:[%s1 + $0x4ec] sm:$0xff]
      %v437 = vld [vmem:[%s1 + $0x4f4] sm:$0xf]
      %v438 = vld [vmem:[%s1 + $0x4f8] sm:$0xff]
      %v439 = vld [vmem:[%s1 + $0x500] sm:$0xf]
      %v440 = vld [vmem:[%s1 + $0x504] sm:$0xff]
      %v441 = vld [vmem:[%s1 + $0x50c] sm:$0xf]
      %v442 = vld [vmem:[%s1 + $0x510] sm:$0xff]
      %v443 = vld [vmem:[%s1 + $0x518] sm:$0xf]
      %v444 = vld [vmem:[%s1 + $0x51c] sm:$0xff]
      %v445 = vld [vmem:[%s1 + $0x524] sm:$0xf]
      %v446 = vld [vmem:[%s1 + $0x528] sm:$0xff]
      %v447 = vld [vmem:[%s1 + $0x530] sm:$0xf]
      %v448 = vld [vmem:[%s1 + $0x534] sm:$0xff]
      %v449 = vld [vmem:[%s1 + $0x53c] sm:$0xf]
      %v450 = vld [vmem:[%s1 + $0x540] sm:$0xff]
      %v451 = vld [vmem:[%s1 + $0x548] sm:$0xf]
      %v452 = vld [vmem:[%s1 + $0x54c] sm:$0xff]
      %v453 = vld [vmem:[%s1 + $0x554] sm:$0xf]
      %v454 = vld [vmem:[%s1 + $0x558] sm:$0xff]
      %v455 = vld [vmem:[%s1 + $0x560] sm:$0xf]
      %v456 = vld [vmem:[%s1 + $0x564] sm:$0xff]
      %v457 = vld [vmem:[%s1 + $0x56c] sm:$0xf]
      %v458 = vld [vmem:[%s1 + $0x570] sm:$0xff]
      %v459 = vld [vmem:[%s1 + $0x578] sm:$0xf]
      %v460 = vld [vmem:[%s1 + $0x57c] sm:$0xff]
      %v461 = vld [vmem:[%s1 + $0x584] sm:$0xf]
      %v462 = vld [vmem:[%s1 + $0x588] sm:$0xff]
      %v463 = vld [vmem:[%s1 + $0x590] sm:$0xf]
      %v464 = vld [vmem:[%s1 + $0x594] sm:$0xff]
      %v465 = vld [vmem:[%s1 + $0x59c] sm:$0xf]
      %v466 = vld [vmem:[%s1 + $0x5a0] sm:$0xff]
      %v467 = vld [vmem:[%s1 + $0x5a8] sm:$0xf]
      %v468 = vld [vmem:[%s1 + $0x5ac] sm:$0xff]
      %v469 = vld [vmem:[%s1 + $0x5b4] sm:$0xf]
      %v470 = vld [vmem:[%s1 + $0x5b8] sm:$0xff]
      %v471 = vld [vmem:[%s1 + $0x5c0] sm:$0xf]
      %v472 = vld [vmem:[%s1 + $0x5c4] sm:$0xff]
      %v473 = vld [vmem:[%s1 + $0x5cc] sm:$0xf]
      %v474 = vld [vmem:[%s1 + $0x5d0] sm:$0xff]
      %v475 = vld [vmem:[%s1 + $0x5d8] sm:$0xf]
      %v476 = vld [vmem:[%s1 + $0x5dc] sm:$0xff]
      %v477 = vld [vmem:[%s1 + $0x5e4] sm:$0xf]
      %v478 = vld [vmem:[%s1 + $0x5e8] sm:$0xff]
      %v479 = vld [vmem:[%s1 + $0x5f0] sm:$0xf]
      %v480 = vld [vmem:[%s1 + $0x5f4] sm:$0xff]
      %v481 = vld [vmem:[%s1 + $0x5fc] sm:$0xf]
      %v482 = vld [vmem:[%s1 + $0x600] sm:$0xff]
      %v483 = vld [vmem:[%s1 + $0x608] sm:$0xf]
      %v484 = vld [vmem:[%s1 + $0x60c] sm:$0xff]
      %v485 = vld [vmem:[%s1 + $0x614] sm:$0xf]
      %v486 = vld [vmem:[%s1 + $0x618] sm:$0xff]
      %v487 = vld [vmem:[%s1 + $0x620] sm:$0xf]
      %v488 = vld [vmem:[%s1 + $0x624] sm:$0xff]
      %v489 = vld [vmem:[%s1 + $0x62c] sm:$0xf]
      %v490 = vld [vmem:[%s1 + $0x630] sm:$0xff]
      %v491 = vld [vmem:[%s1 + $0x638] sm:$0xf]
      %v492 = vld [vmem:[%s1 + $0x63c] sm:$0xff]
      %v493 = vld [vmem:[%s1 + $0x644] sm:$0xf]
      %v494 = vld [vmem:[%s1 + $0x648] sm:$0xff]
      %v495 = vld [vmem:[%s1 + $0x650] sm:$0xf]
      %v496 = vld [vmem:[%s1 + $0x654] sm:$0xff]
      %v497 = vld [vmem:[%s1 + $0x65c] sm:$0xf]
      %v498 = vld [vmem:[%s1 + $0x660] sm:$0xff]
      %v499 = vld [vmem:[%s1 + $0x668] sm:$0xf]
      %v500 = vld [vmem:[%s1 + $0x66c] sm:$0xff]
      %v501 = vld [vmem:[%s1 + $0x674] sm:$0xf]
      %v502 = vld [vmem:[%s1 + $0x678] sm:$0xff]
      %v503 = vld [vmem:[%s1 + $0x680] sm:$0xf]
      %v504 = vld [vmem:[%s1 + $0x684] sm:$0xff]
      %v505 = vld [vmem:[%s1 + $0x68c] sm:$0xf]
      %v506 = vld [vmem:[%s1 + $0x690] sm:$0xff]
      %v507 = vld [vmem:[%s1 + $0x698] sm:$0xf]
      %v508 = vld [vmem:[%s1 + $0x69c] sm:$0xff]
      %v509 = vld [vmem:[%s1 + $0x6a4] sm:$0xf]
      %v510 = vld [vmem:[%s1 + $0x6a8] sm:$0xff]
      %v511 = vld [vmem:[%s1 + $0x6b0] sm:$0xf]
      %v512 = vld [vmem:[%s1 + $0x6b4] sm:$0xff]
      %v513 = vld [vmem:[%s1 + $0x6bc] sm:$0xf]
      %v514 = vld [vmem:[%s1 + $0x6c0] sm:$0xff]
      %v515 = vld [vmem:[%s1 + $0x6c8] sm:$0xf]
      %v516 = vld [vmem:[%s1 + $0x6cc] sm:$0xff]
      %v517 = vld [vmem:[%s1 + $0x6d4] sm:$0xf]
      %v518 = vld [vmem:[%s1 + $0x6d8] sm:$0xff]
      %v519 = vld [vmem:[%s1 + $0x6e0] sm:$0xf]
      %v520 = vld [vmem:[%s1 + $0x6e4] sm:$0xff]
      %v521 = vld [vmem:[%s1 + $0x6ec] sm:$0xf]
      %v522 = vld [vmem:[%s1 + $0x6f0] sm:$0xff]
      %v523 = vld [vmem:[%s1 + $0x6f8] sm:$0xf]
      %v524 = vld [vmem:[%s1 + $0x6fc] sm:$0xff]
      %v525 = vld [vmem:[%s1 + $0x704] sm:$0xf]
      %v526 = vld [vmem:[%s1 + $0x708] sm:$0xff]
      %v527 = vld [vmem:[%s1 + $0x710] sm:$0xf]
      %v528 = vld [vmem:[%s1 + $0x714] sm:$0xff]
      %v529 = vld [vmem:[%s1 + $0x71c] sm:$0xf]
      %v530 = vld [vmem:[%s1 + $0x720] sm:$0xff]
      %v531 = vld [vmem:[%s1 + $0x728] sm:$0xf]
      %v532 = vld [vmem:[%s1 + $0x72c] sm:$0xff]
      %v533 = vld [vmem:[%s1 + $0x734] sm:$0xf]
      %v534 = vld [vmem:[%s1 + $0x738] sm:$0xff]
      %v535 = vld [vmem:[%s1 + $0x740] sm:$0xf]
      %v536 = vld [vmem:[%s1 + $0x744] sm:$0xff]
      %v537 = vld [vmem:[%s1 + $0x74c] sm:$0xf]
      %v538 = vld [vmem:[%s1 + $0x750] sm:$0xff]
      %v539 = vld [vmem:[%s1 + $0x758] sm:$0xf]
      %v540 = vld [vmem:[%s1 + $0x75c] sm:$0xff]
      %v541 = vld [vmem:[%s1 + $0x764] sm:$0xf]
      %v542 = vld [vmem:[%s1 + $0x768] sm:$0xff]
      %v543 = vld [vmem:[%s1 + $0x770] sm:$0xf]
      %v544 = vld [vmem:[%s1 + $0x774] sm:$0xff]
      %v545 = vld [vmem:[%s1 + $0x77c] sm:$0xf]
      %v556 = vunpack.c.l.b16 %v216
      %v557 = vunpack.c.h.b16 %v216
      %v558 = vunpack.c.l.b16 %v217
      %v559 = vunpack.c.h.b16 %v217
      %v560 = vunpack.c.l.b16 %v218
      %v561 = vunpack.c.h.b16 %v218
      %v562 = vunpack.c.l.b16 %v219
      %v563 = vunpack.c.h.b16 %v219
      %v564 = vunpack.c.l.b16 %v220
      %v565 = vunpack.c.h.b16 %v220
      %v566 = vunpack.c.l.b16 %v221
      %v567 = vunpack.c.h.b16 %v221
      %v568 = vunpack.c.l.b16 %v222
      %v569 = vunpack.c.h.b16 %v222
      %v570 = vunpack.c.l.b16 %v223
      %v571 = vunpack.c.h.b16 %v223
      %v572 = vunpack.c.l.b16 %v224
      %v573 = vunpack.c.h.b16 %v224
      %v574 = vunpack.c.l.b16 %v225
      %v575 = vunpack.c.h.b16 %v225
      %v576 = vpack.c.b16 %v566, %v556
      %v577 = vpack.c.b16 %v567, %v557
      %v578 = vpack.c.b16 %v568, %v558
      %v579 = vpack.c.b16 %v569, %v559
      %v580 = vpack.c.b16 %v570, %v560
      %v581 = vpack.c.b16 %v571, %v561
      %v582 = vpack.c.b16 %v572, %v562
      %v583 = vpack.c.b16 %v573, %v563
      %v584 = vpack.c.b16 %v574, %v564
      %v585 = vpack.c.b16 %v575, %v565
      %v916 = vunpack.c.l.b16 %v226
      %v917 = vunpack.c.h.b16 %v226
      %v918 = vunpack.c.l.b16 %v227
      %v919 = vunpack.c.l.b16 %v228
      %v920 = vunpack.c.h.b16 %v228
      %v921 = vunpack.c.l.b16 %v229
      %v922 = vunpack.c.l.b16 %v230
      %v923 = vunpack.c.h.b16 %v230
      %v924 = vunpack.c.l.b16 %v231
      %v925 = vunpack.c.l.b16 %v232
      %v926 = vunpack.c.h.b16 %v232
      %v927 = vunpack.c.l.b16 %v233
      %v928 = vunpack.c.l.b16 %v234
      %v929 = vunpack.c.h.b16 %v234
      %v930 = vunpack.c.l.b16 %v235
      %v931 = vunpack.c.l.b16 %v236
      %v932 = vunpack.c.h.b16 %v236
      %v933 = vunpack.c.l.b16 %v237
      %v934 = vunpack.c.l.b16 %v238
      %v935 = vunpack.c.h.b16 %v238
      %v936 = vunpack.c.l.b16 %v239
      %v937 = vunpack.c.l.b16 %v240
      %v938 = vunpack.c.h.b16 %v240
      %v939 = vunpack.c.l.b16 %v241
      %v940 = vunpack.c.l.b16 %v242
      %v941 = vunpack.c.h.b16 %v242
      %v942 = vunpack.c.l.b16 %v243
      %v943 = vunpack.c.l.b16 %v244
      %v944 = vunpack.c.h.b16 %v244
      %v945 = vunpack.c.l.b16 %v245
      %v946 = vunpack.c.l.b16 %v246
      %v947 = vunpack.c.h.b16 %v246
      %v948 = vunpack.c.l.b16 %v247
      %v949 = vunpack.c.l.b16 %v248
      %v950 = vunpack.c.h.b16 %v248
      %v951 = vunpack.c.l.b16 %v249
      %v952 = vunpack.c.l.b16 %v250
      %v953 = vunpack.c.h.b16 %v250
      %v954 = vunpack.c.l.b16 %v251
      %v955 = vunpack.c.l.b16 %v252
      %v956 = vunpack.c.h.b16 %v252
      %v957 = vunpack.c.l.b16 %v253
      %v958 = vunpack.c.l.b16 %v254
      %v959 = vunpack.c.h.b16 %v254
      %v960 = vunpack.c.l.b16 %v255
      %v961 = vunpack.c.l.b16 %v256
      %v962 = vunpack.c.h.b16 %v256
      %v963 = vunpack.c.l.b16 %v257
      %v964 = vunpack.c.l.b16 %v258
      %v965 = vunpack.c.h.b16 %v258
      %v966 = vunpack.c.l.b16 %v259
      %v967 = vunpack.c.l.b16 %v260
      %v968 = vunpack.c.h.b16 %v260
      %v969 = vunpack.c.l.b16 %v261
      %v970 = vunpack.c.l.b16 %v262
      %v971 = vunpack.c.h.b16 %v262
      %v972 = vunpack.c.l.b16 %v263
      %v973 = vunpack.c.l.b16 %v264
      %v974 = vunpack.c.h.b16 %v264
      %v975 = vunpack.c.l.b16 %v265
      %v976 = vunpack.c.l.b16 %v266
      %v977 = vunpack.c.h.b16 %v266
      %v978 = vunpack.c.l.b16 %v267
      %v979 = vunpack.c.l.b16 %v268
      %v980 = vunpack.c.h.b16 %v268
      %v981 = vunpack.c.l.b16 %v269
      %v982 = vunpack.c.l.b16 %v270
      %v983 = vunpack.c.h.b16 %v270
      %v984 = vunpack.c.l.b16 %v271
      %v985 = vunpack.c.l.b16 %v272
      %v986 = vunpack.c.h.b16 %v272
      %v987 = vunpack.c.l.b16 %v273
      %v988 = vunpack.c.l.b16 %v274
      %v989 = vunpack.c.h.b16 %v274
      %v990 = vunpack.c.l.b16 %v275
      %v991 = vunpack.c.l.b16 %v276
      %v992 = vunpack.c.h.b16 %v276
      %v993 = vunpack.c.l.b16 %v277
      %v994 = vunpack.c.l.b16 %v278
      %v995 = vunpack.c.h.b16 %v278
      %v996 = vunpack.c.l.b16 %v279
      %v997 = vunpack.c.l.b16 %v280
      %v998 = vunpack.c.h.b16 %v280
      %v999 = vunpack.c.l.b16 %v281
      %v1000 = vunpack.c.l.b16 %v282
      %v1001 = vunpack.c.h.b16 %v282
      %v1002 = vunpack.c.l.b16 %v283
      %v1003 = vunpack.c.l.b16 %v284
      %v1004 = vunpack.c.h.b16 %v284
      %v1005 = vunpack.c.l.b16 %v285
      %v1006 = vunpack.c.l.b16 %v286
      %v1007 = vunpack.c.h.b16 %v286
      %v1008 = vunpack.c.l.b16 %v287
      %v1009 = vunpack.c.l.b16 %v288
      %v1010 = vunpack.c.h.b16 %v288
      %v1011 = vunpack.c.l.b16 %v289
      %v1012 = vunpack.c.l.b16 %v290
      %v1013 = vunpack.c.h.b16 %v290
      %v1014 = vunpack.c.l.b16 %v291
      %v1015 = vunpack.c.l.b16 %v292
      %v1016 = vunpack.c.h.b16 %v292
      %v1017 = vunpack.c.l.b16 %v293
      %v1018 = vunpack.c.l.b16 %v294
      %v1019 = vunpack.c.h.b16 %v294
      %v1020 = vunpack.c.l.b16 %v295
      %v1021 = vunpack.c.l.b16 %v296
      %v1022 = vunpack.c.h.b16 %v296
      %v1023 = vunpack.c.l.b16 %v297
      %v1024 = vunpack.c.l.b16 %v298
      %v1025 = vunpack.c.h.b16 %v298
      %v1026 = vunpack.c.l.b16 %v299
      %v1027 = vunpack.c.l.b16 %v300
      %v1028 = vunpack.c.h.b16 %v300
      %v1029 = vunpack.c.l.b16 %v301
      %v1030 = vunpack.c.l.b16 %v302
      %v1031 = vunpack.c.h.b16 %v302
      %v1032 = vunpack.c.l.b16 %v303
      %v1033 = vunpack.c.l.b16 %v304
      %v1034 = vunpack.c.h.b16 %v304
      %v1035 = vunpack.c.l.b16 %v305
      %v1036 = vunpack.c.l.b16 %v306
      %v1037 = vunpack.c.h.b16 %v306
      %v1038 = vunpack.c.l.b16 %v307
      %v1039 = vunpack.c.l.b16 %v308
      %v1040 = vunpack.c.h.b16 %v308
      %v1041 = vunpack.c.l.b16 %v309
      %v1042 = vunpack.c.l.b16 %v310
      %v1043 = vunpack.c.h.b16 %v310
      %v1044 = vunpack.c.l.b16 %v311
      %v1045 = vunpack.c.l.b16 %v312
      %v1046 = vunpack.c.h.b16 %v312
      %v1047 = vunpack.c.l.b16 %v313
      %v1048 = vunpack.c.l.b16 %v314
      %v1049 = vunpack.c.h.b16 %v314
      %v1050 = vunpack.c.l.b16 %v315
      %v1051 = vunpack.c.l.b16 %v316
      %v1052 = vunpack.c.h.b16 %v316
      %v1053 = vunpack.c.l.b16 %v317
      %v1054 = vunpack.c.l.b16 %v318
      %v1055 = vunpack.c.h.b16 %v318
      %v1056 = vunpack.c.l.b16 %v319
      %v1057 = vunpack.c.l.b16 %v320
      %v1058 = vunpack.c.h.b16 %v320
      %v1059 = vunpack.c.l.b16 %v321
      %v1060 = vunpack.c.l.b16 %v322
      %v1061 = vunpack.c.h.b16 %v322
      %v1062 = vunpack.c.l.b16 %v323
      %v1063 = vunpack.c.l.b16 %v324
      %v1064 = vunpack.c.h.b16 %v324
      %v1065 = vunpack.c.l.b16 %v325
      %v1066 = vunpack.c.l.b16 %v326
      %v1067 = vunpack.c.h.b16 %v326
      %v1068 = vunpack.c.l.b16 %v327
      %v1069 = vunpack.c.l.b16 %v328
      %v1070 = vunpack.c.h.b16 %v328
      %v1071 = vunpack.c.l.b16 %v329
      %v1072 = vunpack.c.l.b16 %v330
      %v1073 = vunpack.c.h.b16 %v330
      %v1074 = vunpack.c.l.b16 %v331
      %v1075 = vunpack.c.l.b16 %v332
      %v1076 = vunpack.c.h.b16 %v332
      %v1077 = vunpack.c.l.b16 %v333
      %v1078 = vunpack.c.l.b16 %v334
      %v1079 = vunpack.c.h.b16 %v334
      %v1080 = vunpack.c.l.b16 %v335
      %v1081 = vunpack.c.l.b16 %v336
      %v1082 = vunpack.c.h.b16 %v336
      %v1083 = vunpack.c.l.b16 %v337
      %v1084 = vunpack.c.l.b16 %v338
      %v1085 = vunpack.c.h.b16 %v338
      %v1086 = vunpack.c.l.b16 %v339
      %v1087 = vunpack.c.l.b16 %v340
      %v1088 = vunpack.c.h.b16 %v340
      %v1089 = vunpack.c.l.b16 %v341
      %v1090 = vunpack.c.l.b16 %v342
      %v1091 = vunpack.c.h.b16 %v342
      %v1092 = vunpack.c.l.b16 %v343
      %v1093 = vunpack.c.l.b16 %v344
      %v1094 = vunpack.c.h.b16 %v344
      %v1095 = vunpack.c.l.b16 %v345
      %v1096 = vunpack.c.l.b16 %v346
      %v1097 = vunpack.c.h.b16 %v346
      %v1098 = vunpack.c.l.b16 %v347
      %v1099 = vunpack.c.l.b16 %v348
      %v1100 = vunpack.c.h.b16 %v348
      %v1101 = vunpack.c.l.b16 %v349
      %v1102 = vunpack.c.l.b16 %v350
      %v1103 = vunpack.c.h.b16 %v350
      %v1104 = vunpack.c.l.b16 %v351
      %v1105 = vunpack.c.l.b16 %v352
      %v1106 = vunpack.c.h.b16 %v352
      %v1107 = vunpack.c.l.b16 %v353
      %v1108 = vunpack.c.l.b16 %v354
      %v1109 = vunpack.c.h.b16 %v354
      %v1110 = vunpack.c.l.b16 %v355
      %v1111 = vunpack.c.l.b16 %v356
      %v1112 = vunpack.c.h.b16 %v356
      %v1113 = vunpack.c.l.b16 %v357
      %v1114 = vunpack.c.l.b16 %v358
      %v1115 = vunpack.c.h.b16 %v358
      %v1116 = vunpack.c.l.b16 %v359
      %v1117 = vunpack.c.l.b16 %v360
      %v1118 = vunpack.c.h.b16 %v360
      %v1119 = vunpack.c.l.b16 %v361
      %v1120 = vunpack.c.l.b16 %v362
      %v1121 = vunpack.c.h.b16 %v362
      %v1122 = vunpack.c.l.b16 %v363
      %v1123 = vunpack.c.l.b16 %v364
      %v1124 = vunpack.c.h.b16 %v364
      %v1125 = vunpack.c.l.b16 %v365
      %v1126 = vunpack.c.l.b16 %v366
      %v1127 = vunpack.c.h.b16 %v366
      %v1128 = vunpack.c.l.b16 %v367
      %v1129 = vunpack.c.l.b16 %v368
      %v1130 = vunpack.c.h.b16 %v368
      %v1131 = vunpack.c.l.b16 %v369
      %v1132 = vunpack.c.l.b16 %v370
      %v1133 = vunpack.c.h.b16 %v370
      %v1134 = vunpack.c.l.b16 %v371
      %v1135 = vunpack.c.l.b16 %v372
      %v1136 = vunpack.c.h.b16 %v372
      %v1137 = vunpack.c.l.b16 %v373
      %v1138 = vunpack.c.l.b16 %v374
      %v1139 = vunpack.c.h.b16 %v374
      %v1140 = vunpack.c.l.b16 %v375
      %v1141 = vunpack.c.l.b16 %v376
      %v1142 = vunpack.c.h.b16 %v376
      %v1143 = vunpack.c.l.b16 %v377
      %v1144 = vunpack.c.l.b16 %v378
      %v1145 = vunpack.c.h.b16 %v378
      %v1146 = vunpack.c.l.b16 %v379
      %v1147 = vunpack.c.l.b16 %v380
      %v1148 = vunpack.c.h.b16 %v380
      %v1149 = vunpack.c.l.b16 %v381
      %v1150 = vunpack.c.l.b16 %v382
      %v1151 = vunpack.c.h.b16 %v382
      %v1152 = vunpack.c.l.b16 %v383
      %v1153 = vunpack.c.l.b16 %v384
      %v1154 = vunpack.c.h.b16 %v384
      %v1155 = vunpack.c.l.b16 %v385
      %v1156 = vunpack.c.l.b16 %v386
      %v1157 = vunpack.c.h.b16 %v386
      %v1158 = vunpack.c.l.b16 %v387
      %v1159 = vunpack.c.l.b16 %v388
      %v1160 = vunpack.c.h.b16 %v388
      %v1161 = vunpack.c.l.b16 %v389
      %v1162 = vunpack.c.l.b16 %v390
      %v1163 = vunpack.c.h.b16 %v390
      %v1164 = vunpack.c.l.b16 %v391
      %v1165 = vunpack.c.l.b16 %v392
      %v1166 = vunpack.c.h.b16 %v392
      %v1167 = vunpack.c.l.b16 %v393
      %v1168 = vunpack.c.l.b16 %v394
      %v1169 = vunpack.c.h.b16 %v394
      %v1170 = vunpack.c.l.b16 %v395
      %v1171 = vunpack.c.l.b16 %v396
      %v1172 = vunpack.c.h.b16 %v396
      %v1173 = vunpack.c.l.b16 %v397
      %v1174 = vunpack.c.l.b16 %v398
      %v1175 = vunpack.c.h.b16 %v398
      %v1176 = vunpack.c.l.b16 %v399
      %v1177 = vunpack.c.l.b16 %v400
      %v1178 = vunpack.c.h.b16 %v400
      %v1179 = vunpack.c.l.b16 %v401
      %v1180 = vunpack.c.l.b16 %v402
      %v1181 = vunpack.c.h.b16 %v402
      %v1182 = vunpack.c.l.b16 %v403
      %v1183 = vunpack.c.l.b16 %v404
      %v1184 = vunpack.c.h.b16 %v404
      %v1185 = vunpack.c.l.b16 %v405
      %v1186 = vunpack.c.l.b16 %v406
      %v1187 = vunpack.c.h.b16 %v406
      %v1188 = vunpack.c.l.b16 %v407
      %v1189 = vunpack.c.l.b16 %v408
      %v1190 = vunpack.c.h.b16 %v408
      %v1191 = vunpack.c.l.b16 %v409
      %v1192 = vunpack.c.l.b16 %v410
      %v1193 = vunpack.c.h.b16 %v410
      %v1194 = vunpack.c.l.b16 %v411
      %v1195 = vunpack.c.l.b16 %v412
      %v1196 = vunpack.c.h.b16 %v412
      %v1197 = vunpack.c.l.b16 %v413
      %v1198 = vunpack.c.l.b16 %v414
      %v1199 = vunpack.c.h.b16 %v414
      %v1200 = vunpack.c.l.b16 %v415
      %v1201 = vunpack.c.l.b16 %v416
      %v1202 = vunpack.c.h.b16 %v416
      %v1203 = vunpack.c.l.b16 %v417
      %v1204 = vunpack.c.l.b16 %v418
      %v1205 = vunpack.c.h.b16 %v418
      %v1206 = vunpack.c.l.b16 %v419
      %v1207 = vunpack.c.l.b16 %v420
      %v1208 = vunpack.c.h.b16 %v420
      %v1209 = vunpack.c.l.b16 %v421
      %v1210 = vunpack.c.l.b16 %v422
      %v1211 = vunpack.c.h.b16 %v422
      %v1212 = vunpack.c.l.b16 %v423
      %v1213 = vunpack.c.l.b16 %v424
      %v1214 = vunpack.c.h.b16 %v424
      %v1215 = vunpack.c.l.b16 %v425
      %v1216 = vunpack.c.l.b16 %v426
      %v1217 = vunpack.c.h.b16 %v426
      %v1218 = vunpack.c.l.b16 %v427
      %v1219 = vunpack.c.l.b16 %v428
      %v1220 = vunpack.c.h.b16 %v428
      %v1221 = vunpack.c.l.b16 %v429
      %v1222 = vunpack.c.l.b16 %v430
      %v1223 = vunpack.c.h.b16 %v430
      %v1224 = vunpack.c.l.b16 %v431
      %v1225 = vunpack.c.l.b16 %v432
      %v1226 = vunpack.c.h.b16 %v432
      %v1227 = vunpack.c.l.b16 %v433
      %v1228 = vunpack.c.l.b16 %v434
      %v1229 = vunpack.c.h.b16 %v434
      %v1230 = vunpack.c.l.b16 %v435
      %v1231 = vunpack.c.l.b16 %v436
      %v1232 = vunpack.c.h.b16 %v436
      %v1233 = vunpack.c.l.b16 %v437
      %v1234 = vunpack.c.l.b16 %v438
      %v1235 = vunpack.c.h.b16 %v438
      %v1236 = vunpack.c.l.b16 %v439
      %v1237 = vunpack.c.l.b16 %v440
      %v1238 = vunpack.c.h.b16 %v440
      %v1239 = vunpack.c.l.b16 %v441
      %v1240 = vunpack.c.l.b16 %v442
      %v1241 = vunpack.c.h.b16 %v442
      %v1242 = vunpack.c.l.b16 %v443
      %v1243 = vunpack.c.l.b16 %v444
      %v1244 = vunpack.c.h.b16 %v444
      %v1245 = vunpack.c.l.b16 %v445
      %v1246 = vunpack.c.l.b16 %v446
      %v1247 = vunpack.c.h.b16 %v446
      %v1248 = vunpack.c.l.b16 %v447
      %v1249 = vunpack.c.l.b16 %v448
      %v1250 = vunpack.c.h.b16 %v448
      %v1251 = vunpack.c.l.b16 %v449
      %v1252 = vunpack.c.l.b16 %v450
      %v1253 = vunpack.c.h.b16 %v450
      %v1254 = vunpack.c.l.b16 %v451
      %v1255 = vunpack.c.l.b16 %v452
      %v1256 = vunpack.c.h.b16 %v452
      %v1257 = vunpack.c.l.b16 %v453
      %v1258 = vunpack.c.l.b16 %v454
      %v1259 = vunpack.c.h.b16 %v454
      %v1260 = vunpack.c.l.b16 %v455
      %v1261 = vunpack.c.l.b16 %v456
      %v1262 = vunpack.c.h.b16 %v456
      %v1263 = vunpack.c.l.b16 %v457
      %v1264 = vunpack.c.l.b16 %v458
      %v1265 = vunpack.c.h.b16 %v458
      %v1266 = vunpack.c.l.b16 %v459
      %v1267 = vunpack.c.l.b16 %v460
      %v1268 = vunpack.c.h.b16 %v460
      %v1269 = vunpack.c.l.b16 %v461
      %v1270 = vunpack.c.l.b16 %v462
      %v1271 = vunpack.c.h.b16 %v462
      %v1272 = vunpack.c.l.b16 %v463
      %v1273 = vunpack.c.l.b16 %v464
      %v1274 = vunpack.c.h.b16 %v464
      %v1275 = vunpack.c.l.b16 %v465
      %v1276 = vunpack.c.l.b16 %v466
      %v1277 = vunpack.c.h.b16 %v466
      %v1278 = vunpack.c.l.b16 %v467
      %v1279 = vunpack.c.l.b16 %v468
      %v1280 = vunpack.c.h.b16 %v468
      %v1281 = vunpack.c.l.b16 %v469
      %v1282 = vunpack.c.l.b16 %v470
      %v1283 = vunpack.c.h.b16 %v470
      %v1284 = vunpack.c.l.b16 %v471
      %v1285 = vunpack.c.l.b16 %v472
      %v1286 = vunpack.c.h.b16 %v472
      %v1287 = vunpack.c.l.b16 %v473
      %v1288 = vunpack.c.l.b16 %v474
      %v1289 = vunpack.c.h.b16 %v474
      %v1290 = vunpack.c.l.b16 %v475
      %v1291 = vunpack.c.l.b16 %v476
      %v1292 = vunpack.c.h.b16 %v476
      %v1293 = vunpack.c.l.b16 %v477
      %v1294 = vunpack.c.l.b16 %v478
      %v1295 = vunpack.c.h.b16 %v478
      %v1296 = vunpack.c.l.b16 %v479
      %v1297 = vunpack.c.l.b16 %v480
      %v1298 = vunpack.c.h.b16 %v480
      %v1299 = vunpack.c.l.b16 %v481
      %v1300 = vunpack.c.l.b16 %v482
      %v1301 = vunpack.c.h.b16 %v482
      %v1302 = vunpack.c.l.b16 %v483
      %v1303 = vunpack.c.l.b16 %v484
      %v1304 = vunpack.c.h.b16 %v484
      %v1305 = vunpack.c.l.b16 %v485
      %v1306 = vunpack.c.l.b16 %v486
      %v1307 = vunpack.c.h.b16 %v486
      %v1308 = vunpack.c.l.b16 %v487
      %v1309 = vunpack.c.l.b16 %v488
      %v1310 = vunpack.c.h.b16 %v488
      %v1311 = vunpack.c.l.b16 %v489
      %v1312 = vunpack.c.l.b16 %v490
      %v1313 = vunpack.c.h.b16 %v490
      %v1314 = vunpack.c.l.b16 %v491
      %v1315 = vunpack.c.l.b16 %v492
      %v1316 = vunpack.c.h.b16 %v492
      %v1317 = vunpack.c.l.b16 %v493
      %v1318 = vunpack.c.l.b16 %v494
      %v1319 = vunpack.c.h.b16 %v494
      %v1320 = vunpack.c.l.b16 %v495
      %v1321 = vunpack.c.l.b16 %v496
      %v1322 = vunpack.c.h.b16 %v496
      %v1323 = vunpack.c.l.b16 %v497
      %v1324 = vunpack.c.l.b16 %v498
      %v1325 = vunpack.c.h.b16 %v498
      %v1326 = vunpack.c.l.b16 %v499
      %v1327 = vunpack.c.l.b16 %v500
      %v1328 = vunpack.c.h.b16 %v500
      %v1329 = vunpack.c.l.b16 %v501
      %v1330 = vunpack.c.l.b16 %v502
      %v1331 = vunpack.c.h.b16 %v502
      %v1332 = vunpack.c.l.b16 %v503
      %v1333 = vunpack.c.l.b16 %v504
      %v1334 = vunpack.c.h.b16 %v504
      %v1335 = vunpack.c.l.b16 %v505
      %v1336 = vunpack.c.l.b16 %v506
      %v1337 = vunpack.c.h.b16 %v506
      %v1338 = vunpack.c.l.b16 %v507
      %v1339 = vunpack.c.l.b16 %v508
      %v1340 = vunpack.c.h.b16 %v508
      %v1341 = vunpack.c.l.b16 %v509
      %v1342 = vunpack.c.l.b16 %v510
      %v1343 = vunpack.c.h.b16 %v510
      %v1344 = vunpack.c.l.b16 %v511
      %v1345 = vunpack.c.l.b16 %v512
      %v1346 = vunpack.c.h.b16 %v512
      %v1347 = vunpack.c.l.b16 %v513
      %v1348 = vunpack.c.l.b16 %v514
      %v1349 = vunpack.c.h.b16 %v514
      %v1350 = vunpack.c.l.b16 %v515
      %v1351 = vunpack.c.l.b16 %v516
      %v1352 = vunpack.c.h.b16 %v516
      %v1353 = vunpack.c.l.b16 %v517
      %v1354 = vunpack.c.l.b16 %v518
      %v1355 = vunpack.c.h.b16 %v518
      %v1356 = vunpack.c.l.b16 %v519
      %v1357 = vunpack.c.l.b16 %v520
      %v1358 = vunpack.c.h.b16 %v520
      %v1359 = vunpack.c.l.b16 %v521
      %v1360 = vunpack.c.l.b16 %v522
      %v1361 = vunpack.c.h.b16 %v522
      %v1362 = vunpack.c.l.b16 %v523
      %v1363 = vunpack.c.l.b16 %v524
      %v1364 = vunpack.c.h.b16 %v524
      %v1365 = vunpack.c.l.b16 %v525
      %v1366 = vunpack.c.l.b16 %v526
      %v1367 = vunpack.c.h.b16 %v526
      %v1368 = vunpack.c.l.b16 %v527
      %v1369 = vunpack.c.l.b16 %v528
      %v1370 = vunpack.c.h.b16 %v528
      %v1371 = vunpack.c.l.b16 %v529
      %v1372 = vunpack.c.l.b16 %v530
      %v1373 = vunpack.c.h.b16 %v530
      %v1374 = vunpack.c.l.b16 %v531
      %v1375 = vunpack.c.l.b16 %v532
      %v1376 = vunpack.c.h.b16 %v532
      %v1377 = vunpack.c.l.b16 %v533
      %v1378 = vunpack.c.l.b16 %v534
      %v1379 = vunpack.c.h.b16 %v534
      %v1380 = vunpack.c.l.b16 %v535
      %v1381 = vunpack.c.l.b16 %v536
      %v1382 = vunpack.c.h.b16 %v536
      %v1383 = vunpack.c.l.b16 %v537
      %v1384 = vunpack.c.l.b16 %v538
      %v1385 = vunpack.c.h.b16 %v538
      %v1386 = vunpack.c.l.b16 %v539
      %v1387 = vunpack.c.l.b16 %v540
      %v1388 = vunpack.c.h.b16 %v540
      %v1389 = vunpack.c.l.b16 %v541
      %v1390 = vunpack.c.l.b16 %v542
      %v1391 = vunpack.c.h.b16 %v542
      %v1392 = vunpack.c.l.b16 %v543
      %v1393 = vunpack.c.l.b16 %v544
      %v1394 = vunpack.c.h.b16 %v544
      %v1395 = vunpack.c.l.b16 %v545
      %v1396 = vpack.c.b16 %v919, %v916
      %v1397 = vpack.c.b16 %v920, %v917
      %v1398 = vpack.c.b16 %v921, %v918
      %v1399 = vpack.c.b16 %v925, %v922
      %v1400 = vpack.c.b16 %v926, %v923
      %v1401 = vpack.c.b16 %v927, %v924
      %v1402 = vpack.c.b16 %v931, %v928
      %v1403 = vpack.c.b16 %v932, %v929
      %v1404 = vpack.c.b16 %v933, %v930
      %v1405 = vpack.c.b16 %v937, %v934
      %v1406 = vpack.c.b16 %v938, %v935
      %v1407 = vpack.c.b16 %v939, %v936
      %v1408 = vpack.c.b16 %v943, %v940
      %v1409 = vpack.c.b16 %v944, %v941
      %v1410 = vpack.c.b16 %v945, %v942
      %v1411 = vpack.c.b16 %v949, %v946
      %v1412 = vpack.c.b16 %v950, %v947
      %v1413 = vpack.c.b16 %v951, %v948
      %v1414 = vpack.c.b16 %v955, %v952
      %v1415 = vpack.c.b16 %v956, %v953
      %v1416 = vpack.c.b16 %v957, %v954
      %v1417 = vpack.c.b16 %v961, %v958
      %v1418 = vpack.c.b16 %v962, %v959
      %v1419 = vpack.c.b16 %v963, %v960
      %v1420 = vpack.c.b16 %v967, %v964
      %v1421 = vpack.c.b16 %v968, %v965
      %v1422 = vpack.c.b16 %v969, %v966
      %v1423 = vpack.c.b16 %v973, %v970
      %v1424 = vpack.c.b16 %v974, %v971
      %v1425 = vpack.c.b16 %v975, %v972
      %v1426 = vpack.c.b16 %v979, %v976
      %v1427 = vpack.c.b16 %v980, %v977
      %v1428 = vpack.c.b16 %v981, %v978
      %v1429 = vpack.c.b16 %v985, %v982
      %v1430 = vpack.c.b16 %v986, %v983
      %v1431 = vpack.c.b16 %v987, %v984
      %v1432 = vpack.c.b16 %v991, %v988
      %v1433 = vpack.c.b16 %v992, %v989
      %v1434 = vpack.c.b16 %v993, %v990
      %v1435 = vpack.c.b16 %v997, %v994
      %v1436 = vpack.c.b16 %v998, %v995
      %v1437 = vpack.c.b16 %v999, %v996
      %v1438 = vpack.c.b16 %v1003, %v1000
      %v1439 = vpack.c.b16 %v1004, %v1001
      %v1440 = vpack.c.b16 %v1005, %v1002
      %v1441 = vpack.c.b16 %v1009, %v1006
      %v1442 = vpack.c.b16 %v1010, %v1007
      %v1443 = vpack.c.b16 %v1011, %v1008
      %v1444 = vpack.c.b16 %v1015, %v1012
      %v1445 = vpack.c.b16 %v1016, %v1013
      %v1446 = vpack.c.b16 %v1017, %v1014
      %v1447 = vpack.c.b16 %v1021, %v1018
      %v1448 = vpack.c.b16 %v1022, %v1019
      %v1449 = vpack.c.b16 %v1023, %v1020
      %v1450 = vpack.c.b16 %v1027, %v1024
      %v1451 = vpack.c.b16 %v1028, %v1025
      %v1452 = vpack.c.b16 %v1029, %v1026
      %v1453 = vpack.c.b16 %v1033, %v1030
      %v1454 = vpack.c.b16 %v1034, %v1031
      %v1455 = vpack.c.b16 %v1035, %v1032
      %v1456 = vpack.c.b16 %v1039, %v1036
      %v1457 = vpack.c.b16 %v1040, %v1037
      %v1458 = vpack.c.b16 %v1041, %v1038
      %v1459 = vpack.c.b16 %v1045, %v1042
      %v1460 = vpack.c.b16 %v1046, %v1043
      %v1461 = vpack.c.b16 %v1047, %v1044
      %v1462 = vpack.c.b16 %v1051, %v1048
      %v1463 = vpack.c.b16 %v1052, %v1049
      %v1464 = vpack.c.b16 %v1053, %v1050
      %v1465 = vpack.c.b16 %v1057, %v1054
      %v1466 = vpack.c.b16 %v1058, %v1055
      %v1467 = vpack.c.b16 %v1059, %v1056
      %v1468 = vpack.c.b16 %v1063, %v1060
      %v1469 = vpack.c.b16 %v1064, %v1061
      %v1470 = vpack.c.b16 %v1065, %v1062
      %v1471 = vpack.c.b16 %v1069, %v1066
      %v1472 = vpack.c.b16 %v1070, %v1067
      %v1473 = vpack.c.b16 %v1071, %v1068
      %v1474 = vpack.c.b16 %v1075, %v1072
      %v1475 = vpack.c.b16 %v1076, %v1073
      %v1476 = vpack.c.b16 %v1077, %v1074
      %v1477 = vpack.c.b16 %v1081, %v1078
      %v1478 = vpack.c.b16 %v1082, %v1079
      %v1479 = vpack.c.b16 %v1083, %v1080
      %v1480 = vpack.c.b16 %v1087, %v1084
      %v1481 = vpack.c.b16 %v1088, %v1085
      %v1482 = vpack.c.b16 %v1089, %v1086
      %v1483 = vpack.c.b16 %v1093, %v1090
      %v1484 = vpack.c.b16 %v1094, %v1091
      %v1485 = vpack.c.b16 %v1095, %v1092
      %v1486 = vpack.c.b16 %v1099, %v1096
      %v1487 = vpack.c.b16 %v1100, %v1097
      %v1488 = vpack.c.b16 %v1101, %v1098
      %v1489 = vpack.c.b16 %v1105, %v1102
      %v1490 = vpack.c.b16 %v1106, %v1103
      %v1491 = vpack.c.b16 %v1107, %v1104
      %v1492 = vpack.c.b16 %v1111, %v1108
      %v1493 = vpack.c.b16 %v1112, %v1109
      %v1494 = vpack.c.b16 %v1113, %v1110
      %v1495 = vpack.c.b16 %v1117, %v1114
      %v1496 = vpack.c.b16 %v1118, %v1115
      %v1497 = vpack.c.b16 %v1119, %v1116
      %v1498 = vpack.c.b16 %v1123, %v1120
      %v1499 = vpack.c.b16 %v1124, %v1121
      %v1500 = vpack.c.b16 %v1125, %v1122
      %v1501 = vpack.c.b16 %v1129, %v1126
      %v1502 = vpack.c.b16 %v1130, %v1127
      %v1503 = vpack.c.b16 %v1131, %v1128
      %v1504 = vpack.c.b16 %v1135, %v1132
      %v1505 = vpack.c.b16 %v1136, %v1133
      %v1506 = vpack.c.b16 %v1137, %v1134
      %v1507 = vpack.c.b16 %v1141, %v1138
      %v1508 = vpack.c.b16 %v1142, %v1139
      %v1509 = vpack.c.b16 %v1143, %v1140
      %v1510 = vpack.c.b16 %v1147, %v1144
      %v1511 = vpack.c.b16 %v1148, %v1145
      %v1512 = vpack.c.b16 %v1149, %v1146
      %v1513 = vpack.c.b16 %v1153, %v1150
      %v1514 = vpack.c.b16 %v1154, %v1151
      %v1515 = vpack.c.b16 %v1155, %v1152
      %v1516 = vpack.c.b16 %v1159, %v1156
      %v1517 = vpack.c.b16 %v1160, %v1157
      %v1518 = vpack.c.b16 %v1161, %v1158
      %v1519 = vpack.c.b16 %v1165, %v1162
      %v1520 = vpack.c.b16 %v1166, %v1163
      %v1521 = vpack.c.b16 %v1167, %v1164
      %v1522 = vpack.c.b16 %v1171, %v1168
      %v1523 = vpack.c.b16 %v1172, %v1169
      %v1524 = vpack.c.b16 %v1173, %v1170
      %v1525 = vpack.c.b16 %v1177, %v1174
      %v1526 = vpack.c.b16 %v1178, %v1175
      %v1527 = vpack.c.b16 %v1179, %v1176
      %v1528 = vpack.c.b16 %v1183, %v1180
      %v1529 = vpack.c.b16 %v1184, %v1181
      %v1530 = vpack.c.b16 %v1185, %v1182
      %v1531 = vpack.c.b16 %v1189, %v1186
      %v1532 = vpack.c.b16 %v1190, %v1187
      %v1533 = vpack.c.b16 %v1191, %v1188
      %v1534 = vpack.c.b16 %v1195, %v1192
      %v1535 = vpack.c.b16 %v1196, %v1193
      %v1536 = vpack.c.b16 %v1197, %v1194
      %v1537 = vpack.c.b16 %v1201, %v1198
      %v1538 = vpack.c.b16 %v1202, %v1199
      %v1539 = vpack.c.b16 %v1203, %v1200
      %v1540 = vpack.c.b16 %v1207, %v1204
      %v1541 = vpack.c.b16 %v1208, %v1205
      %v1542 = vpack.c.b16 %v1209, %v1206
      %v1543 = vpack.c.b16 %v1213, %v1210
      %v1544 = vpack.c.b16 %v1214, %v1211
      %v1545 = vpack.c.b16 %v1215, %v1212
      %v1546 = vpack.c.b16 %v1219, %v1216
      %v1547 = vpack.c.b16 %v1220, %v1217
      %v1548 = vpack.c.b16 %v1221, %v1218
      %v1549 = vpack.c.b16 %v1225, %v1222
      %v1550 = vpack.c.b16 %v1226, %v1223
      %v1551 = vpack.c.b16 %v1227, %v1224
      %v1552 = vpack.c.b16 %v1231, %v1228
      %v1553 = vpack.c.b16 %v1232, %v1229
      %v1554 = vpack.c.b16 %v1233, %v1230
      %v1555 = vpack.c.b16 %v1237, %v1234
      %v1556 = vpack.c.b16 %v1238, %v1235
      %v1557 = vpack.c.b16 %v1239, %v1236
      %v1558 = vpack.c.b16 %v1243, %v1240
      %v1559 = vpack.c.b16 %v1244, %v1241
      %v1560 = vpack.c.b16 %v1245, %v1242
      %v1561 = vpack.c.b16 %v1249, %v1246
      %v1562 = vpack.c.b16 %v1250, %v1247
      %v1563 = vpack.c.b16 %v1251, %v1248
      %v1564 = vpack.c.b16 %v1255, %v1252
      %v1565 = vpack.c.b16 %v1256, %v1253
      %v1566 = vpack.c.b16 %v1257, %v1254
      %v1567 = vpack.c.b16 %v1261, %v1258
      %v1568 = vpack.c.b16 %v1262, %v1259
      %v1569 = vpack.c.b16 %v1263, %v1260
      %v1570 = vpack.c.b16 %v1267, %v1264
      %v1571 = vpack.c.b16 %v1268, %v1265
      %v1572 = vpack.c.b16 %v1269, %v1266
      %v1573 = vpack.c.b16 %v1273, %v1270
      %v1574 = vpack.c.b16 %v1274, %v1271
      %v1575 = vpack.c.b16 %v1275, %v1272
      %v1576 = vpack.c.b16 %v1279, %v1276
      %v1577 = vpack.c.b16 %v1280, %v1277
      %v1578 = vpack.c.b16 %v1281, %v1278
      %v1579 = vpack.c.b16 %v1285, %v1282
      %v1580 = vpack.c.b16 %v1286, %v1283
      %v1581 = vpack.c.b16 %v1287, %v1284
      %v1582 = vpack.c.b16 %v1291, %v1288
      %v1583 = vpack.c.b16 %v1292, %v1289
      %v1584 = vpack.c.b16 %v1293, %v1290
      %v1585 = vpack.c.b16 %v1297, %v1294
      %v1586 = vpack.c.b16 %v1298, %v1295
      %v1587 = vpack.c.b16 %v1299, %v1296
      %v1588 = vpack.c.b16 %v1303, %v1300
      %v1589 = vpack.c.b16 %v1304, %v1301
      %v1590 = vpack.c.b16 %v1305, %v1302
      %v1591 = vpack.c.b16 %v1309, %v1306
      %v1592 = vpack.c.b16 %v1310, %v1307
      %v1593 = vpack.c.b16 %v1311, %v1308
      %v1594 = vpack.c.b16 %v1315, %v1312
      %v1595 = vpack.c.b16 %v1316, %v1313
      %v1596 = vpack.c.b16 %v1317, %v1314
      %v1597 = vpack.c.b16 %v1321, %v1318
      %v1598 = vpack.c.b16 %v1322, %v1319
      %v1599 = vpack.c.b16 %v1323, %v1320
      %v1600 = vpack.c.b16 %v1327, %v1324
      %v1601 = vpack.c.b16 %v1328, %v1325
      %v1602 = vpack.c.b16 %v1329, %v1326
      %v1603 = vpack.c.b16 %v1333, %v1330
      %v1604 = vpack.c.b16 %v1334, %v1331
      %v1605 = vpack.c.b16 %v1335, %v1332
      %v1606 = vpack.c.b16 %v1339, %v1336
      %v1607 = vpack.c.b16 %v1340, %v1337
      %v1608 = vpack.c.b16 %v1341, %v1338
      %v1609 = vpack.c.b16 %v1345, %v1342
      %v1610 = vpack.c.b16 %v1346, %v1343
      %v1611 = vpack.c.b16 %v1347, %v1344
      %v1612 = vpack.c.b16 %v1351, %v1348
      %v1613 = vpack.c.b16 %v1352, %v1349
      %v1614 = vpack.c.b16 %v1353, %v1350
      %v1615 = vpack.c.b16 %v1357, %v1354
      %v1616 = vpack.c.b16 %v1358, %v1355
      %v1617 = vpack.c.b16 %v1359, %v1356
      %v1618 = vpack.c.b16 %v1363, %v1360
      %v1619 = vpack.c.b16 %v1364, %v1361
      %v1620 = vpack.c.b16 %v1365, %v1362
      %v1621 = vpack.c.b16 %v1369, %v1366
      %v1622 = vpack.c.b16 %v1370, %v1367
      %v1623 = vpack.c.b16 %v1371, %v1368
      %v1624 = vpack.c.b16 %v1375, %v1372
      %v1625 = vpack.c.b16 %v1376, %v1373
      %v1626 = vpack.c.b16 %v1377, %v1374
      %v1627 = vpack.c.b16 %v1381, %v1378
      %v1628 = vpack.c.b16 %v1382, %v1379
      %v1629 = vpack.c.b16 %v1383, %v1380
      %v1630 = vpack.c.b16 %v1387, %v1384
      %v1631 = vpack.c.b16 %v1388, %v1385
      %v1632 = vpack.c.b16 %v1389, %v1386
      %v1633 = vpack.c.b16 %v1393, %v1390
      %v1634 = vpack.c.b16 %v1394, %v1391
      %v1635 = vpack.c.b16 %v1395, %v1392
      %1876 = vmatprep.subr.bf16.mxu0 %v1418
      %1877 = vmatpush1.bf16.msra.mxu0 %v1417
      %1878 = vmatprep.subr.bf16.mxu0 %v1415
      %1879 = vmatpush1.bf16.msra.mxu0 %v1414
      %1880 = vmatprep.subr.bf16.mxu0 %v1412
      %1881 = vmatpush1.bf16.msra.mxu0 %v1411
      %1882 = vmatprep.subr.bf16.mxu0 %v1409
      %1883 = vmatpush1.bf16.msra.mxu0 %v1408
      %1884 = vmatprep.subr.bf16.mxu0 %v1406
      %1885 = vmatpush1.bf16.msra.mxu0 %v1405
      %1886 = vmatprep.subr.bf16.mxu0 %v1403
      %1887 = vmatpush1.bf16.msra.mxu0 %v1402
      %1888 = vmatprep.subr.bf16.mxu0 %v1400
      %1889 = vmatpush1.bf16.msra.mxu0 %v1399
      %1890 = vmatprep.subr.bf16.mxu0 %v1397
      %1891 = vmatpush1.bf16.msra.mxu0 %v1396
      %1892 = vmatprep.subr.bf16.mxu0 %v1442
      %1893 = vmatpush2.bf16.msra.mxu0 %v1441
      %1894 = vmatprep.subr.bf16.mxu0 %v1439
      %1895 = vmatpush2.bf16.msra.mxu0 %v1438
      %1896 = vmatprep.subr.bf16.mxu0 %v1436
      %1897 = vmatpush2.bf16.msra.mxu0 %v1435
      %1898 = vmatprep.subr.bf16.mxu0 %v1433
      %1899 = vmatpush2.bf16.msra.mxu0 %v1432
      %1900 = vmatprep.subr.bf16.mxu0 %v1430
      %1901 = vmatpush2.bf16.msra.mxu0 %v1429
      %1902 = vmatprep.subr.bf16.mxu0 %v1427
      %1903 = vmatpush2.bf16.msra.mxu0 %v1426
      %1904 = vmatprep.subr.bf16.mxu0 %v1424
      %1905 = vmatpush2.bf16.msra.mxu0 %v1423
      %1906 = vmatprep.subr.bf16.mxu0 %v1421
      %1907 = vmatpush2.bf16.msra.mxu0 %v1420
      %1908 = vmatprep.mubr.bf16.mxu0 %v577
      %1909 = vmatmul.mubr.bf16.gmra.mxu0 %v576
      %v1910 = vpop.f32.mrf.mxu0
      %v1911 = vadd.f32 0.0, %v1910
      %v1912 = vpop.f32.mrf.mxu0
      %v1913 = vadd.f32 0.0, %v1912
      %v1914 = vpop.f32.mrf.mxu0
      %v1915 = vadd.f32 0.0, %v1914
      %v1916 = vpop.f32.mrf.mxu0
      %v1917 = vadd.f32 0.0, %v1916
      %1918 = vdwg.mxu0
      %1919 = vmatprep.subr.bf16.mxu0 %v1466
      %1920 = vmatpush1.bf16.msra.mxu0 %v1465
      %1921 = vmatprep.subr.bf16.mxu0 %v1463
      %1922 = vmatpush1.bf16.msra.mxu0 %v1462
      %1923 = vmatprep.subr.bf16.mxu0 %v1460
      %1924 = vmatpush1.bf16.msra.mxu0 %v1459
      %1925 = vmatprep.subr.bf16.mxu0 %v1457
      %1926 = vmatpush1.bf16.msra.mxu0 %v1456
      %1927 = vmatprep.subr.bf16.mxu0 %v1454
      %1928 = vmatpush1.bf16.msra.mxu0 %v1453
      %1929 = vmatprep.subr.bf16.mxu0 %v1451
      %1930 = vmatpush1.bf16.msra.mxu0 %v1450
      %1931 = vmatprep.subr.bf16.mxu0 %v1448
      %1932 = vmatpush1.bf16.msra.mxu0 %v1447
      %1933 = vmatprep.subr.bf16.mxu0 %v1445
      %1934 = vmatpush1.bf16.msra.mxu0 %v1444
      %1935 = vmatprep.subr.bf16.mxu0 %v1490
      %1936 = vmatpush2.bf16.msra.mxu0 %v1489
      %1937 = vmatprep.subr.bf16.mxu0 %v1487
      %1938 = vmatpush2.bf16.msra.mxu0 %v1486
      %1939 = vmatprep.subr.bf16.mxu0 %v1484
      %1940 = vmatpush2.bf16.msra.mxu0 %v1483
      %1941 = vmatprep.subr.bf16.mxu0 %v1481
      %1942 = vmatpush2.bf16.msra.mxu0 %v1480
      %1943 = vmatprep.subr.bf16.mxu0 %v1478
      %1944 = vmatpush2.bf16.msra.mxu0 %v1477
      %1945 = vmatprep.subr.bf16.mxu0 %v1475
      %1946 = vmatpush2.bf16.msra.mxu0 %v1474
      %1947 = vmatprep.subr.bf16.mxu0 %v1472
      %1948 = vmatpush2.bf16.msra.mxu0 %v1471
      %1949 = vmatprep.subr.bf16.mxu0 %v1469
      %1950 = vmatpush2.bf16.msra.mxu0 %v1468
      %1951 = vmatprep.mubr.bf16.mxu0 %v579
      %1952 = vmatmul.mubr.bf16.gmra.mxu0 %v578
      %v1953 = vpop.f32.mrf.mxu0
      %v1954 = vadd.f32 %v1911, %v1953
      %v1955 = vpop.f32.mrf.mxu0
      %v1956 = vadd.f32 %v1913, %v1955
      %v1957 = vpop.f32.mrf.mxu0
      %v1958 = vadd.f32 %v1915, %v1957
      %v1959 = vpop.f32.mrf.mxu0
      %v1960 = vadd.f32 %v1917, %v1959
      %1961 = vdwg.mxu0
      %1962 = vmatprep.subr.bf16.mxu0 %v1514
      %1963 = vmatpush1.bf16.msra.mxu0 %v1513
      %1964 = vmatprep.subr.bf16.mxu0 %v1511
      %1965 = vmatpush1.bf16.msra.mxu0 %v1510
      %1966 = vmatprep.subr.bf16.mxu0 %v1508
      %1967 = vmatpush1.bf16.msra.mxu0 %v1507
      %1968 = vmatprep.subr.bf16.mxu0 %v1505
      %1969 = vmatpush1.bf16.msra.mxu0 %v1504
      %1970 = vmatprep.subr.bf16.mxu0 %v1502
      %1971 = vmatpush1.bf16.msra.mxu0 %v1501
      %1972 = vmatprep.subr.bf16.mxu0 %v1499
      %1973 = vmatpush1.bf16.msra.mxu0 %v1498
      %1974 = vmatprep.subr.bf16.mxu0 %v1496
      %1975 = vmatpush1.bf16.msra.mxu0 %v1495
      %1976 = vmatprep.subr.bf16.mxu0 %v1493
      %1977 = vmatpush1.bf16.msra.mxu0 %v1492
      %1978 = vmatprep.subr.bf16.mxu0 %v1538
      %1979 = vmatpush2.bf16.msra.mxu0 %v1537
      %1980 = vmatprep.subr.bf16.mxu0 %v1535
      %1981 = vmatpush2.bf16.msra.mxu0 %v1534
      %1982 = vmatprep.subr.bf16.mxu0 %v1532
      %1983 = vmatpush2.bf16.msra.mxu0 %v1531
      %1984 = vmatprep.subr.bf16.mxu0 %v1529
      %1985 = vmatpush2.bf16.msra.mxu0 %v1528
      %1986 = vmatprep.subr.bf16.mxu0 %v1526
      %1987 = vmatpush2.bf16.msra.mxu0 %v1525
      %1988 = vmatprep.subr.bf16.mxu0 %v1523
      %1989 = vmatpush2.bf16.msra.mxu0 %v1522
      %1990 = vmatprep.subr.bf16.mxu0 %v1520
      %1991 = vmatpush2.bf16.msra.mxu0 %v1519
      %1992 = vmatprep.subr.bf16.mxu0 %v1517
      %1993 = vmatpush2.bf16.msra.mxu0 %v1516
      %1994 = vmatprep.mubr.bf16.mxu0 %v581
      %1995 = vmatmul.mubr.bf16.gmra.mxu0 %v580
      %v1996 = vpop.f32.mrf.mxu0
      %v1997 = vadd.f32 %v1954, %v1996
      %v1998 = vpop.f32.mrf.mxu0
      %v1999 = vadd.f32 %v1956, %v1998
      %v2000 = vpop.f32.mrf.mxu0
      %v2001 = vadd.f32 %v1958, %v2000
      %v2002 = vpop.f32.mrf.mxu0
      %v2003 = vadd.f32 %v1960, %v2002
      %2004 = vdwg.mxu0
      %2005 = vmatprep.subr.bf16.mxu0 %v1562
      %2006 = vmatpush1.bf16.msra.mxu0 %v1561
      %2007 = vmatprep.subr.bf16.mxu0 %v1559
      %2008 = vmatpush1.bf16.msra.mxu0 %v1558
      %2009 = vmatprep.subr.bf16.mxu0 %v1556
      %2010 = vmatpush1.bf16.msra.mxu0 %v1555
      %2011 = vmatprep.subr.bf16.mxu0 %v1553
      %2012 = vmatpush1.bf16.msra.mxu0 %v1552
      %2013 = vmatprep.subr.bf16.mxu0 %v1550
      %2014 = vmatpush1.bf16.msra.mxu0 %v1549
      %2015 = vmatprep.subr.bf16.mxu0 %v1547
      %2016 = vmatpush1.bf16.msra.mxu0 %v1546
      %2017 = vmatprep.subr.bf16.mxu0 %v1544
      %2018 = vmatpush1.bf16.msra.mxu0 %v1543
      %2019 = vmatprep.subr.bf16.mxu0 %v1541
      %2020 = vmatpush1.bf16.msra.mxu0 %v1540
      %2021 = vmatprep.subr.bf16.mxu0 %v1586
      %2022 = vmatpush2.bf16.msra.mxu0 %v1585
      %2023 = vmatprep.subr.bf16.mxu0 %v1583
      %2024 = vmatpush2.bf16.msra.mxu0 %v1582
      %2025 = vmatprep.subr.bf16.mxu0 %v1580
      %2026 = vmatpush2.bf16.msra.mxu0 %v1579
      %2027 = vmatprep.subr.bf16.mxu0 %v1577
      %2028 = vmatpush2.bf16.msra.mxu0 %v1576
      %2029 = vmatprep.subr.bf16.mxu0 %v1574
      %2030 = vmatpush2.bf16.msra.mxu0 %v1573
      %2031 = vmatprep.subr.bf16.mxu0 %v1571
      %2032 = vmatpush2.bf16.msra.mxu0 %v1570
      %2033 = vmatprep.subr.bf16.mxu0 %v1568
      %2034 = vmatpush2.bf16.msra.mxu0 %v1567
      %2035 = vmatprep.subr.bf16.mxu0 %v1565
      %2036 = vmatpush2.bf16.msra.mxu0 %v1564
      %2037 = vmatprep.mubr.bf16.mxu0 %v583
      %2038 = vmatmul.mubr.bf16.gmra.mxu0 %v582
      %v2039 = vpop.f32.mrf.mxu0
      %v2040 = vadd.f32 %v1997, %v2039
      %v2041 = vpop.f32.mrf.mxu0
      %v2042 = vadd.f32 %v1999, %v2041
      %v2043 = vpop.f32.mrf.mxu0
      %v2044 = vadd.f32 %v2001, %v2043
      %v2045 = vpop.f32.mrf.mxu0
      %v2046 = vadd.f32 %v2003, %v2045
      %2047 = vdwg.mxu0
      %2048 = vmatprep.subr.bf16.mxu0 %v1610
      %2049 = vmatpush1.bf16.msra.mxu0 %v1609
      %2050 = vmatprep.subr.bf16.mxu0 %v1607
      %2051 = vmatpush1.bf16.msra.mxu0 %v1606
      %2052 = vmatprep.subr.bf16.mxu0 %v1604
      %2053 = vmatpush1.bf16.msra.mxu0 %v1603
      %2054 = vmatprep.subr.bf16.mxu0 %v1601
      %2055 = vmatpush1.bf16.msra.mxu0 %v1600
      %2056 = vmatprep.subr.bf16.mxu0 %v1598
      %2057 = vmatpush1.bf16.msra.mxu0 %v1597
      %2058 = vmatprep.subr.bf16.mxu0 %v1595
      %2059 = vmatpush1.bf16.msra.mxu0 %v1594
      %2060 = vmatprep.subr.bf16.mxu0 %v1592
      %2061 = vmatpush1.bf16.msra.mxu0 %v1591
      %2062 = vmatprep.subr.bf16.mxu0 %v1589
      %2063 = vmatpush1.bf16.msra.mxu0 %v1588
      %2064 = vmatprep.subr.bf16.mxu0 %v1634
      %2065 = vmatpush2.bf16.msra.mxu0 %v1633
      %2066 = vmatprep.subr.bf16.mxu0 %v1631
      %2067 = vmatpush2.bf16.msra.mxu0 %v1630
      %2068 = vmatprep.subr.bf16.mxu0 %v1628
      %2069 = vmatpush2.bf16.msra.mxu0 %v1627
      %2070 = vmatprep.subr.bf16.mxu0 %v1625
      %2071 = vmatpush2.bf16.msra.mxu0 %v1624
      %2072 = vmatprep.subr.bf16.mxu0 %v1622
      %2073 = vmatpush2.bf16.msra.mxu0 %v1621
      %2074 = vmatprep.subr.bf16.mxu0 %v1619
      %2075 = vmatpush2.bf16.msra.mxu0 %v1618
      %2076 = vmatprep.subr.bf16.mxu0 %v1616
      %2077 = vmatpush2.bf16.msra.mxu0 %v1615
      %2078 = vmatprep.subr.bf16.mxu0 %v1613
      %2079 = vmatpush2.bf16.msra.mxu0 %v1612
      %2080 = vmatprep.mubr.bf16.mxu0 %v585
      %2081 = vmatmul.mubr.bf16.gmra.mxu0 %v584
      %v2082 = vpop.f32.mrf.mxu0
      %v2083 = vadd.f32 %v2040, %v2082
      %v2084 = vpop.f32.mrf.mxu0
      %v2085 = vadd.f32 %v2042, %v2084
      %v2086 = vpop.f32.mrf.mxu0
      %v2087 = vadd.f32 %v2044, %v2086
      %v2088 = vpop.f32.mrf.mxu0
      %v2089 = vadd.f32 %v2046, %v2088
      %2090 = vdwg.mxu0
      %2091 = vmatprep.subr.bf16.mxu0 0
      %2092 = vmatpush1.bf16.msra.mxu0 %v1419
      %2093 = vmatprep.subr.bf16.mxu0 0
      %2094 = vmatpush1.bf16.msra.mxu0 %v1416
      %2095 = vmatprep.subr.bf16.mxu0 0
      %2096 = vmatpush1.bf16.msra.mxu0 %v1413
      %2097 = vmatprep.subr.bf16.mxu0 0
      %2098 = vmatpush1.bf16.msra.mxu0 %v1410
      %2099 = vmatprep.subr.bf16.mxu0 0
      %2100 = vmatpush1.bf16.msra.mxu0 %v1407
      %2101 = vmatprep.subr.bf16.mxu0 0
      %2102 = vmatpush1.bf16.msra.mxu0 %v1404
      %2103 = vmatprep.subr.bf16.mxu0 0
      %2104 = vmatpush1.bf16.msra.mxu0 %v1401
      %2105 = vmatprep.subr.bf16.mxu0 0
      %2106 = vmatpush1.bf16.msra.mxu0 %v1398
      %2107 = vmatprep.subr.bf16.mxu0 0
      %2108 = vmatpush2.bf16.msra.mxu0 %v1443
      %2109 = vmatprep.subr.bf16.mxu0 0
      %2110 = vmatpush2.bf16.msra.mxu0 %v1440
      %2111 = vmatprep.subr.bf16.mxu0 0
      %2112 = vmatpush2.bf16.msra.mxu0 %v1437
      %2113 = vmatprep.subr.bf16.mxu0 0
      %2114 = vmatpush2.bf16.msra.mxu0 %v1434
      %2115 = vmatprep.subr.bf16.mxu0 0
      %2116 = vmatpush2.bf16.msra.mxu0 %v1431
      %2117 = vmatprep.subr.bf16.mxu0 0
      %2118 = vmatpush2.bf16.msra.mxu0 %v1428
      %2119 = vmatprep.subr.bf16.mxu0 0
      %2120 = vmatpush2.bf16.msra.mxu0 %v1425
      %2121 = vmatprep.subr.bf16.mxu0 0
      %2122 = vmatpush2.bf16.msra.mxu0 %v1422
      %2123 = vmatprep.mubr.bf16.mxu0 %v577
      %2124 = vmatmul.mubr.bf16.gmra.mxu0 %v576
      %v2125 = vpop.f32.mrf.mxu0
      %v2126 = vadd.f32 0.0, %v2125
      %v2127 = vpop.f32.mrf.mxu0
      %v2128 = vpop.f32.mrf.mxu0
      %v2129 = vadd.f32 0.0, %v2128
      %v2130 = vpop.f32.mrf.mxu0
      %2131 = vdwg.mxu0
      %2132 = vmatprep.subr.bf16.mxu0 0
      %2133 = vmatpush1.bf16.msra.mxu0 %v1467
      %2134 = vmatprep.subr.bf16.mxu0 0
      %2135 = vmatpush1.bf16.msra.mxu0 %v1464
      %2136 = vmatprep.subr.bf16.mxu0 0
      %2137 = vmatpush1.bf16.msra.mxu0 %v1461
      %2138 = vmatprep.subr.bf16.mxu0 0
      %2139 = vmatpush1.bf16.msra.mxu0 %v1458
      %2140 = vmatprep.subr.bf16.mxu0 0
      %2141 = vmatpush1.bf16.msra.mxu0 %v1455
      %2142 = vmatprep.subr.bf16.mxu0 0
      %2143 = vmatpush1.bf16.msra.mxu0 %v1452
      %2144 = vmatprep.subr.bf16.mxu0 0
      %2145 = vmatpush1.bf16.msra.mxu0 %v1449
      %2146 = vmatprep.subr.bf16.mxu0 0
      %2147 = vmatpush1.bf16.msra.mxu0 %v1446
      %2148 = vmatprep.subr.bf16.mxu0 0
      %2149 = vmatpush2.bf16.msra.mxu0 %v1491
      %2150 = vmatprep.subr.bf16.mxu0 0
      %2151 = vmatpush2.bf16.msra.mxu0 %v1488
      %2152 = vmatprep.subr.bf16.mxu0 0
      %2153 = vmatpush2.bf16.msra.mxu0 %v1485
      %2154 = vmatprep.subr.bf16.mxu0 0
      %2155 = vmatpush2.bf16.msra.mxu0 %v1482
      %2156 = vmatprep.subr.bf16.mxu0 0
      %2157 = vmatpush2.bf16.msra.mxu0 %v1479
      %2158 = vmatprep.subr.bf16.mxu0 0
      %2159 = vmatpush2.bf16.msra.mxu0 %v1476
      %2160 = vmatprep.subr.bf16.mxu0 0
      %2161 = vmatpush2.bf16.msra.mxu0 %v1473
      %2162 = vmatprep.subr.bf16.mxu0 0
      %2163 = vmatpush2.bf16.msra.mxu0 %v1470
      %2164 = vmatprep.mubr.bf16.mxu0 %v579
      %2165 = vmatmul.mubr.bf16.gmra.mxu0 %v578
      %v2166 = vpop.f32.mrf.mxu0
      %v2167 = vadd.f32 %v2126, %v2166
      %v2168 = vpop.f32.mrf.mxu0
      %v2169 = vpop.f32.mrf.mxu0
      %v2170 = vadd.f32 %v2129, %v2169
      %v2171 = vpop.f32.mrf.mxu0
      %2172 = vdwg.mxu0
      %2173 = vmatprep.subr.bf16.mxu0 0
      %2174 = vmatpush1.bf16.msra.mxu0 %v1515
      %2175 = vmatprep.subr.bf16.mxu0 0
      %2176 = vmatpush1.bf16.msra.mxu0 %v1512
      %2177 = vmatprep.subr.bf16.mxu0 0
      %2178 = vmatpush1.bf16.msra.mxu0 %v1509
      %2179 = vmatprep.subr.bf16.mxu0 0
      %2180 = vmatpush1.bf16.msra.mxu0 %v1506
      %2181 = vmatprep.subr.bf16.mxu0 0
      %2182 = vmatpush1.bf16.msra.mxu0 %v1503
      %2183 = vmatprep.subr.bf16.mxu0 0
      %2184 = vmatpush1.bf16.msra.mxu0 %v1500
      %2185 = vmatprep.subr.bf16.mxu0 0
      %2186 = vmatpush1.bf16.msra.mxu0 %v1497
      %2187 = vmatprep.subr.bf16.mxu0 0
      %2188 = vmatpush1.bf16.msra.mxu0 %v1494
      %2189 = vmatprep.subr.bf16.mxu0 0
      %2190 = vmatpush2.bf16.msra.mxu0 %v1539
      %2191 = vmatprep.subr.bf16.mxu0 0
      %2192 = vmatpush2.bf16.msra.mxu0 %v1536
      %2193 = vmatprep.subr.bf16.mxu0 0
      %2194 = vmatpush2.bf16.msra.mxu0 %v1533
      %2195 = vmatprep.subr.bf16.mxu0 0
      %2196 = vmatpush2.bf16.msra.mxu0 %v1530
      %2197 = vmatprep.subr.bf16.mxu0 0
      %2198 = vmatpush2.bf16.msra.mxu0 %v1527
      %2199 = vmatprep.subr.bf16.mxu0 0
      %2200 = vmatpush2.bf16.msra.mxu0 %v1524
      %2201 = vmatprep.subr.bf16.mxu0 0
      %2202 = vmatpush2.bf16.msra.mxu0 %v1521
      %2203 = vmatprep.subr.bf16.mxu0 0
      %2204 = vmatpush2.bf16.msra.mxu0 %v1518
      %2205 = vmatprep.mubr.bf16.mxu0 %v581
      %2206 = vmatmul.mubr.bf16.gmra.mxu0 %v580
      %v2207 = vpop.f32.mrf.mxu0
      %v2208 = vadd.f32 %v2167, %v2207
      %v2209 = vpop.f32.mrf.mxu0
      %v2210 = vpop.f32.mrf.mxu0
      %v2211 = vadd.f32 %v2170, %v2210
      %v2212 = vpop.f32.mrf.mxu0
      %2213 = vdwg.mxu0
      %2214 = vmatprep.subr.bf16.mxu0 0
      %2215 = vmatpush1.bf16.msra.mxu0 %v1563
      %2216 = vmatprep.subr.bf16.mxu0 0
      %2217 = vmatpush1.bf16.msra.mxu0 %v1560
      %2218 = vmatprep.subr.bf16.mxu0 0
      %2219 = vmatpush1.bf16.msra.mxu0 %v1557
      %2220 = vmatprep.subr.bf16.mxu0 0
      %2221 = vmatpush1.bf16.msra.mxu0 %v1554
      %2222 = vmatprep.subr.bf16.mxu0 0
      %2223 = vmatpush1.bf16.msra.mxu0 %v1551
      %2224 = vmatprep.subr.bf16.mxu0 0
      %2225 = vmatpush1.bf16.msra.mxu0 %v1548
      %2226 = vmatprep.subr.bf16.mxu0 0
      %2227 = vmatpush1.bf16.msra.mxu0 %v1545
      %2228 = vmatprep.subr.bf16.mxu0 0
      %2229 = vmatpush1.bf16.msra.mxu0 %v1542
      %2230 = vmatprep.subr.bf16.mxu0 0
      %2231 = vmatpush2.bf16.msra.mxu0 %v1587
      %2232 = vmatprep.subr.bf16.mxu0 0
      %2233 = vmatpush2.bf16.msra.mxu0 %v1584
      %2234 = vmatprep.subr.bf16.mxu0 0
      %2235 = vmatpush2.bf16.msra.mxu0 %v1581
      %2236 = vmatprep.subr.bf16.mxu0 0
      %2237 = vmatpush2.bf16.msra.mxu0 %v1578
      %2238 = vmatprep.subr.bf16.mxu0 0
      %2239 = vmatpush2.bf16.msra.mxu0 %v1575
      %2240 = vmatprep.subr.bf16.mxu0 0
      %2241 = vmatpush2.bf16.msra.mxu0 %v1572
      %2242 = vmatprep.subr.bf16.mxu0 0
      %2243 = vmatpush2.bf16.msra.mxu0 %v1569
      %2244 = vmatprep.subr.bf16.mxu0 0
      %2245 = vmatpush2.bf16.msra.mxu0 %v1566
      %2246 = vmatprep.mubr.bf16.mxu0 %v583
      %2247 = vmatmul.mubr.bf16.gmra.mxu0 %v582
      %v2248 = vpop.f32.mrf.mxu0
      %v2249 = vadd.f32 %v2208, %v2248
      %v2250 = vpop.f32.mrf.mxu0
      %v2251 = vpop.f32.mrf.mxu0
      %v2252 = vadd.f32 %v2211, %v2251
      %v2253 = vpop.f32.mrf.mxu0
      %2254 = vdwg.mxu0
      %2255 = vmatprep.subr.bf16.mxu0 0
      %2256 = vmatpush1.bf16.msra.mxu0 %v1611
      %2257 = vmatprep.subr.bf16.mxu0 0
      %2258 = vmatpush1.bf16.msra.mxu0 %v1608
      %2259 = vmatprep.subr.bf16.mxu0 0
      %2260 = vmatpush1.bf16.msra.mxu0 %v1605
      %2261 = vmatprep.subr.bf16.mxu0 0
      %2262 = vmatpush1.bf16.msra.mxu0 %v1602
      %2263 = vmatprep.subr.bf16.mxu0 0
      %2264 = vmatpush1.bf16.msra.mxu0 %v1599
      %2265 = vmatprep.subr.bf16.mxu0 0
      %2266 = vmatpush1.bf16.msra.mxu0 %v1596
      %2267 = vmatprep.subr.bf16.mxu0 0
      %2268 = vmatpush1.bf16.msra.mxu0 %v1593
      %2269 = vmatprep.subr.bf16.mxu0 0
      %2270 = vmatpush1.bf16.msra.mxu0 %v1590
      %2271 = vmatprep.subr.bf16.mxu0 0
      %2272 = vmatpush2.bf16.msra.mxu0 %v1635
      %2273 = vmatprep.subr.bf16.mxu0 0
      %2274 = vmatpush2.bf16.msra.mxu0 %v1632
      %2275 = vmatprep.subr.bf16.mxu0 0
      %2276 = vmatpush2.bf16.msra.mxu0 %v1629
      %2277 = vmatprep.subr.bf16.mxu0 0
      %2278 = vmatpush2.bf16.msra.mxu0 %v1626
      %2279 = vmatprep.subr.bf16.mxu0 0
      %2280 = vmatpush2.bf16.msra.mxu0 %v1623
      %2281 = vmatprep.subr.bf16.mxu0 0
      %2282 = vmatpush2.bf16.msra.mxu0 %v1620
      %2283 = vmatprep.subr.bf16.mxu0 0
      %2284 = vmatpush2.bf16.msra.mxu0 %v1617
      %2285 = vmatprep.subr.bf16.mxu0 0
      %2286 = vmatpush2.bf16.msra.mxu0 %v1614
      %2287 = vmatprep.mubr.bf16.mxu0 %v585
      %2288 = vmatmul.mubr.bf16.gmra.mxu0 %v584
      %v2289 = vpop.f32.mrf.mxu0
      %v2290 = vadd.f32 %v2249, %v2289
      %v2291 = vpop.f32.mrf.mxu0
      %v2292 = vpop.f32.mrf.mxu0
      %v2293 = vadd.f32 %v2252, %v2292
      %v2294 = vpop.f32.mrf.mxu0
      %2295 = vdwg.mxu0
      %vm2298 = vcmask 1046528
      %v2299 = vrot.slane %v2085, 1
      %v2300 = vrot.slane %v2089, 1
      %v2301 = vsel %vm2298, %v2299, %v2300
      %v2305 = vsel %vm2298, %v2300, %v2299
      %v2306 = vadd.f32 %v2083, %v2301
      %v2307 = vadd.f32 %v2087, %v2305
      %vm2310 = vcmask 1045504
      %v2311 = vrot.slane %v2290, 2
      %v2312 = vrot.slane %v2293, 2
      %v2313 = vsel %vm2310, %v2311, %v2312
      %v2317 = vsel %vm2310, %v2312, %v2311
      %v2318 = vadd.f32 %v2306, %v2313
      %v2319 = vadd.f32 %v2307, %v2317
      %v2320 = vld [vmem:[%s2] sm:$0x1]
      %v2322 = vlaneseq
      %v2323 = vshrl.u32 %v2322, 7
      %v2324 = vsub.s32 0, %v2323
      %v2325 = vrot.slane %v2320, %v2324
      %v2327 = vadd.f32 %v2318, %v2325
      %v2328 = vadd.f32 %v2319, %v2325
      %v2329 = vmax.f32 %v2327, 0.0
      %v2330 = vmax.f32 %v2328, 0.0
      %v2331 = vlaneseq
      %v2332 = vshrl.u32 %v2331, 7
      %v2333 = vadd.s32 %v2332, 8
      %vm2334 = vcmp.lt.s32.totalorder %v2332, 0
      %v2335 = vsub.s32 0, %v2332
      %v2336 = vsel %vm2334, %v2335, %v2332
      %v2337 = vshrl.u32 %v2336, 4
      %v2338 = vand.u32 %v2336, 15
      %v2339 = vsub.s32 0, %v2338
      %v2340 = vsel %vm2334, %v2339, %v2338
      %vm2341 = vcmp.lt.s32.totalorder %v2333, 0
      %v2342 = vsub.s32 0, %v2333
      %v2343 = vsel %vm2341, %v2342, %v2333
      %v2344 = vshrl.u32 %v2343, 4
      %v2345 = vand.u32 %v2343, 15
      %v2346 = vsub.s32 0, %v2345
      %v2347 = vsel %vm2341, %v2346, %v2345
      %vm2348 = vcmp.ne.s32.totalorder %v2340, 0
      %vm2349 = vcmp.ne.s32.totalorder %v2347, 0
      %vm2350 = vcmp.lt.s32.totalorder %v2340, 0
      %vm2351 = vcmp.lt.s32.totalorder %v2347, 0
      %vm2352 = vmand %vm2350, %vm2348
      %vm2353 = vmand %vm2351, %vm2349
      %v2354 = vadd.s32 %v2340, 16
      %v2355 = vadd.s32 %v2347, 16
      %v2356 = vsel %vm2352, %v2354, %v2340
      %v2357 = vsel %vm2353, %v2355, %v2347
      %vm2358 = vcmp.lt.s32.totalorder %v2356, 14
      %vm2359 = vcmp.lt.s32.totalorder %v2357, 14
      %v2360 = vsel %vm2358, 1, 0
      %v2361 = vsel %vm2359, 1, 0
      %vm2362 = vcmp.eq.s32.totalorder %v2360, 1
      %vm2363 = vcmp.eq.s32.totalorder %v2361, 1
      %v2364 = vsel %vm2362, %v2329, 0.0
      %v2365 = vsel %vm2363, %v2330, 0.0
      %v2366 = vpack.c.bf16 %v2365, %v2364
      %v2368 = vunpack.c.l.b16 %v2366
      %v2369 = vunpack.c.h.b16 %v2366
      %v2370 = vpack.c.b16 %v2368, %v2368
      %v2371 = vpack.c.b16 %v2369, %v2369
      %2374 = vst [vmem:[%s209] sm:$0xf] %v2370
      %2375 = vst [vmem:[%s209 + $0x4] sm:$0xf] %v2371
      %vm2376 = vcmask 130048
      %v2378 = vsel %vm2376, 1.0, 0
      %2380 = vmatprep.subr.mxu0 0.0
      %2381 = vmatpush1.msra.mxu0 0.0
      %2382 = vmatprep.subr.mxu0 0.0
      %2383 = vmatpush1.msra.mxu0 0.0
      %2384 = vmatprep.subr.mxu0 0.0
      %2385 = vmatpush1.msra.mxu0 0.0
      %2386 = vmatprep.subr.mxu0 0.0
      %2387 = vmatpush1.msra.mxu0 0.0
      %2388 = vmatprep.subr.mxu0 0.0
      %2389 = vmatpush1.msra.mxu0 0.0
      %2390 = vmatprep.subr.mxu0 0.0
      %2391 = vmatpush1.msra.mxu0 0.0
      %2392 = vmatprep.subr.mxu0 0.0
      %2393 = vmatpush1.msra.mxu0 0.0
      %2394 = vmatprep.subr.mxu0 0.0
      %2395 = vmatpush1.msra.mxu0 0.0
      %2396 = vmatprep.subr.mxu0 0.0
      %2397 = vmatpush1.msra.mxu0 0.0
      %2398 = vmatprep.subr.mxu0 0.0
      %2399 = vmatpush1.msra.mxu0 0.0
      %2400 = vmatprep.subr.mxu0 0.0
      %2401 = vmatpush1.msra.mxu0 0.0
      %2402 = vmatprep.subr.mxu0 0.0
      %2403 = vmatpush1.msra.mxu0 0.0
      %2404 = vmatprep.subr.mxu0 0.0
      %2405 = vmatpush1.msra.mxu0 0.0
      %2406 = vmatprep.subr.mxu0 0.0
      %2407 = vmatpush1.msra.mxu0 0.0
      %2408 = vmatprep.subr.mxu0 0.0
      %2409 = vmatpush1.msra.mxu0 %v2365
      %2410 = vmatprep.subr.mxu0 0.0
      %2411 = vmatpush1.msra.mxu0 %v2364
      %2412 = vmatprep.subr.mxu0 0.0
      %2413 = vmatpush2.msra.mxu0 0.0
      %2414 = vmatprep.subr.mxu0 0.0
      %2415 = vmatpush2.msra.mxu0 0.0
      %2416 = vmatprep.subr.mxu0 0.0
      %2417 = vmatpush2.msra.mxu0 0.0
      %2418 = vmatprep.subr.mxu0 0.0
      %2419 = vmatpush2.msra.mxu0 0.0
      %2420 = vmatprep.subr.mxu0 0.0
      %2421 = vmatpush2.msra.mxu0 0.0
      %2422 = vmatprep.subr.mxu0 0.0
      %2423 = vmatpush2.msra.mxu0 0.0
      %2424 = vmatprep.subr.mxu0 0.0
      %2425 = vmatpush2.msra.mxu0 0.0
      %2426 = vmatprep.subr.mxu0 0.0
      %2427 = vmatpush2.msra.mxu0 0.0
      %2428 = vmatprep.subr.mxu0 0.0
      %2429 = vmatpush2.msra.mxu0 0.0
      %2430 = vmatprep.subr.mxu0 0.0
      %2431 = vmatpush2.msra.mxu0 0.0
      %2432 = vmatprep.subr.mxu0 0.0
      %2433 = vmatpush2.msra.mxu0 0.0
      %2434 = vmatprep.subr.mxu0 0.0
      %2435 = vmatpush2.msra.mxu0 0.0
      %2436 = vmatprep.subr.mxu0 0.0
      %2437 = vmatpush2.msra.mxu0 0.0
      %2438 = vmatprep.subr.mxu0 0.0
      %2439 = vmatpush2.msra.mxu0 0.0
      %2440 = vmatprep.subr.mxu0 0.0
      %2441 = vmatpush2.msra.mxu0 0.0
      %2442 = vmatprep.subr.mxu0 0.0
      %2443 = vmatpush2.msra.mxu0 0.0
      %2444 = vmatprep.mubr.f32.mxu0 0.0
      %2445 = vmatmul.mubr.f32.gmra.mxu0 %v2378
      %v2446 = vpop.f32.mrf.mxu0
      %v2447 = vadd.f32 0.0, %v2446
      %v2448 = vpop.f32.mrf.mxu0
      %2449 = vdwg.mxu0
      %v2450 = vmul.f32 %v2364, %v2364
      %v2451 = vmul.f32 %v2365, %v2365
      %2452 = vmatprep.subr.mxu0 0.0
      %2453 = vmatpush1.msra.mxu0 0.0
      %2454 = vmatprep.subr.mxu0 0.0
      %2455 = vmatpush1.msra.mxu0 0.0
      %2456 = vmatprep.subr.mxu0 0.0
      %2457 = vmatpush1.msra.mxu0 0.0
      %2458 = vmatprep.subr.mxu0 0.0
      %2459 = vmatpush1.msra.mxu0 0.0
      %2460 = vmatprep.subr.mxu0 0.0
      %2461 = vmatpush1.msra.mxu0 0.0
      %2462 = vmatprep.subr.mxu0 0.0
      %2463 = vmatpush1.msra.mxu0 0.0
      %2464 = vmatprep.subr.mxu0 0.0
      %2465 = vmatpush1.msra.mxu0 0.0
      %2466 = vmatprep.subr.mxu0 0.0
      %2467 = vmatpush1.msra.mxu0 0.0
      %2468 = vmatprep.subr.mxu0 0.0
      %2469 = vmatpush1.msra.mxu0 0.0
      %2470 = vmatprep.subr.mxu0 0.0
      %2471 = vmatpush1.msra.mxu0 0.0
      %2472 = vmatprep.subr.mxu0 0.0
      %2473 = vmatpush1.msra.mxu0 0.0
      %2474 = vmatprep.subr.mxu0 0.0
      %2475 = vmatpush1.msra.mxu0 0.0
      %2476 = vmatprep.subr.mxu0 0.0
      %2477 = vmatpush1.msra.mxu0 0.0
      %2478 = vmatprep.subr.mxu0 0.0
      %2479 = vmatpush1.msra.mxu0 0.0
      %2480 = vmatprep.subr.mxu0 0.0
      %2481 = vmatpush1.msra.mxu0 %v2451
      %2482 = vmatprep.subr.mxu0 0.0
      %2483 = vmatpush1.msra.mxu0 %v2450
      %2484 = vmatprep.subr.mxu0 0.0
      %2485 = vmatpush2.msra.mxu0 0.0
      %2486 = vmatprep.subr.mxu0 0.0
      %2487 = vmatpush2.msra.mxu0 0.0
      %2488 = vmatprep.subr.mxu0 0.0
      %2489 = vmatpush2.msra.mxu0 0.0
      %2490 = vmatprep.subr.mxu0 0.0
      %2491 = vmatpush2.msra.mxu0 0.0
      %2492 = vmatprep.subr.mxu0 0.0
      %2493 = vmatpush2.msra.mxu0 0.0
      %2494 = vmatprep.subr.mxu0 0.0
      %2495 = vmatpush2.msra.mxu0 0.0
      %2496 = vmatprep.subr.mxu0 0.0
      %2497 = vmatpush2.msra.mxu0 0.0
      %2498 = vmatprep.subr.mxu0 0.0
      %2499 = vmatpush2.msra.mxu0 0.0
      %2500 = vmatprep.subr.mxu0 0.0
      %2501 = vmatpush2.msra.mxu0 0.0
      %2502 = vmatprep.subr.mxu0 0.0
      %2503 = vmatpush2.msra.mxu0 0.0
      %2504 = vmatprep.subr.mxu0 0.0
      %2505 = vmatpush2.msra.mxu0 0.0
      %2506 = vmatprep.subr.mxu0 0.0
      %2507 = vmatpush2.msra.mxu0 0.0
      %2508 = vmatprep.subr.mxu0 0.0
      %2509 = vmatpush2.msra.mxu0 0.0
      %2510 = vmatprep.subr.mxu0 0.0
      %2511 = vmatpush2.msra.mxu0 0.0
      %2512 = vmatprep.subr.mxu0 0.0
      %2513 = vmatpush2.msra.mxu0 0.0
      %2514 = vmatprep.subr.mxu0 0.0
      %2515 = vmatpush2.msra.mxu0 0.0
      %2516 = vmatprep.mubr.f32.mxu0 0.0
      %2517 = vmatmul.mubr.f32.gmra.mxu0 %v2378
      %v2518 = vpop.f32.mrf.mxu0
      %v2519 = vadd.f32 0.0, %v2518
      %v2520 = vpop.f32.mrf.mxu0
      %2521 = vdwg.mxu0
      %v2523 = vrot.slane %v2519, 7
      %vm2525 = vcmask 1040384
      %v2526 = vsel %vm2525, %v2447, %v2523
      %2527 = vst [vmem:[%s214] sm:$0x3] %v2526
      %s2528 = smul.u32 2, %s16
      %p2529 = scmp.lt.s32.totalorder %s2528, 3
      %s2530 = scalar_select %p2529, %s2528, 3
      %s2531 = smul.addr %s2530, 4
      %s2532 = scalar_lea.vmem %s3, %s2531
      %p2533 = scmp.lt.s32.totalorder %s16, 1
      %s2534 = scalar_select %p2533, %s16, 1
      %s2535 = smul.addr %s2534, 2
      %s2536 = scalar_lea.vmem %s4, %s2535
      // Predicated region
      $region33: #{drugban_forward.8} parent=31 // pred_check
        %p2537 = pneg %p102
      $region34: #{drugban_forward.8} parent=31 // pred_check_branch
        %2539 = sbr.rel (%p2537) target = $region36
      $region35: #{drugban_forward.8} parent=31 // pred_region
        %s2540 = smul.u32 2, %s16
      $region36: #{drugban_forward.8} parent=31 // pred_fallthru
        _
      // Predicated region
      $region37: #{drugban_forward.8} parent=31 // pred_check
        %p2541 = pneg %p128
      $region38: #{drugban_forward.8} parent=31 // pred_check_branch
        %2543 = sbr.rel (%p2541) target = $region40
      $region39: #{drugban_forward.8} parent=31 // pred_region
        _
      $region40: #{drugban_forward.8} parent=31 // pred_fallthru
        _
    $region32: #{drugban_forward.8} parent=5 // pred_fallthru
      _
    %p2544 = scmp.le.s32.totalorder 2, %s11
    // Predicated region
    $region41: #{drugban_forward.8} parent=5 // pred_check
      %p2545 = pneg %p2544
    $region42: #{drugban_forward.8} parent=5 // pred_check_branch
      %2547 = sbr.rel (%p2545) target = $region44
    $region43: #{drugban_forward.8} parent=5 // pred_region
      %s2548 = ssub.s32 %s11, 2
      // Predicated region
      $region45: #{drugban_forward.8} parent=43 // pred_check
        %p2549 = pneg %p108
      $region46: #{drugban_forward.8} parent=43 // pred_check_branch
        %2551 = sbr.rel (%p2549) target = $region48
      $region47: #{drugban_forward.8} parent=43 // pred_region
        %s2552 = smul.u32 2, %s17
        %p2553 = scmp.lt.s32.totalorder %s2552, 3
        %s2554 = scalar_select %p2553, %s2552, 3
        %s2555 = smul.addr %s2554, 4
        %s2556 = scalar_lea.vmem %s3, %s2555
      $region48: #{drugban_forward.8} parent=43 // pred_fallthru
        _
      // Predicated region
      $region49: #{drugban_forward.8} parent=43 // pred_check
        %p2557 = pneg %p134
      $region50: #{drugban_forward.8} parent=43 // pred_check_branch
        %2559 = sbr.rel (%p2557) target = $region52
      $region51: #{drugban_forward.8} parent=43 // pred_region
        %p2560 = scmp.lt.s32.totalorder %s17, 1
        %s2561 = scalar_select %p2560, %s17, 1
        %s2562 = smul.addr %s2561, 2
        %s2563 = scalar_lea.vmem %s4, %s2562
      $region52: #{drugban_forward.8} parent=43 // pred_fallthru
        _
    $region44: #{drugban_forward.8} parent=5 // pred_fallthru
      _
  $region6: #{drugban_forward.8} parent=0 // loop_footer
    %s15 = sadd.s32 1, %s11
  $region7: #{drugban_forward.8} parent=0 // loop_footer_branch
    %10 = sbr.rel target = $region3
  $region8: #{drugban_forward.8} parent=0 // loop_exit
    _

// kernel: drugban_forward.14
$region0: #{drugban_forward.14}
  #allocation0 [shape = 'u32[]', space=smem, size = 0x4, offset = 0x4, fixed_abs, tag = 'smem constant byte address 0x4 - core index']
  #allocation1 [shape = 'u32[144,128]{1,0:T(1,128)}', space=vmem, size = 0x12000, scoped, tag = 'internal scratch']
  %s0 = inlined_call_operand.vmem [shape: bf16[32,128], index: 0, kind: input, shape index: {}]
  %s1 = inlined_call_operand.vmem [shape: bf16[256,128], index: 1, kind: input, shape index: {}]
  %s2 = inlined_call_operand.vmem [shape: bf16[128,768], index: 2, kind: input, shape index: {}]
  %s3 = inlined_call_operand.vmem [shape: f32[1,768], index: 3, kind: input, shape index: {}]
  %s4 = inlined_call_operand.vmem [shape: bf16[128,768], index: 4, kind: input, shape index: {}]
  %s5 = inlined_call_operand.vmem [shape: f32[1,768], index: 5, kind: input, shape index: {}]
  %s6 = inlined_call_operand.vmem [shape: f32[2,768], index: 6, kind: input, shape index: {}]
  %s7 = inlined_call_operand.vmem [shape: f32[32,1], index: 7, kind: input, shape index: {}]
  %s8 = inlined_call_operand.vmem [shape: f32[768,256], index: 8, kind: input, shape index: {}]
  %s9 = inlined_call_operand.vmem [shape: bf16[2,32,128], index: 9, kind: output, shape index: {0}]
  %s10 = inlined_call_operand.vmem [shape: f32[2,1,256], index: 10, kind: output, shape index: {1}]
  %11 = xla_tuple %s9, %s10
  %s12 = sld [smem:[#allocation0]]
  $region77: #{drugban_forward.14} parent=0
    _
  %s14 = ssub.s32 1, %s12
  %s15 = scalar_select 0, %s14, %s12
  loop: start=0, step=1, limit=4
  $region2: #{drugban_forward.14} parent=0 // loop_pre_header
    _
  $region3: #{drugban_forward.14} parent=0 // loop_header
    %s17 = sphi 0, %s21
    %p18 = scmp.ge.s32.totalorder %s17, 4
    %s27 = sphi 0, %s29
    %s30 = sphi 0, %s27
    %s31 = sphi 0, %s30
    %s47 = sphi 0, %s31
    %s53 = sphi 0, %s55
    %s56 = sphi 0, %s53
    %s57 = sphi 0, %s56
    %s73 = sphi 0, %s57
    %s77 = sphi 0, %s77
    %s79 = sphi 0, %s77
    %s80 = sphi 0, %s79
    %s94 = sphi 0, %s80
    %s98 = sphi 0, %s98
    %s100 = sphi 0, %s98
    %s101 = sphi 0, %s100
    %s115 = sphi 0, %s101
    %s119 = sphi 0, %s119
    %s121 = sphi 0, %s119
    %s122 = sphi 0, %s121
    %s136 = sphi 0, %s122
    %s140 = sphi 0, %s140
    %s142 = sphi 0, %s140
    %s143 = sphi 0, %s142
    %s157 = sphi 0, %s143
    %s161 = sphi 0, %s161
    %s163 = sphi 0, %s161
    %s164 = sphi 0, %s163
    %s178 = sphi 0, %s164
    %s182 = sphi 0, %s182
    %s184 = sphi 0, %s182
    %s185 = sphi 0, %s184
    %s199 = sphi 0, %s185
    %s203 = sphi 0, %s203
    %s205 = sphi 0, %s203
    %s206 = sphi 0, %s205
    %s220 = sphi 0, %s206
    %s226 = sphi 0, %s228
    %s229 = sphi 0, %s226
    %s230 = sphi 0, %s229
    %s246 = sphi 0, %s230
    %s252 = sphi 0, %s254
    %s255 = sphi 0, %s252
    %s256 = sphi 0, %s255
    %s272 = sphi 0, %s256
  $region4: #{drugban_forward.14} parent=0 // loop_header_branch
    %20 = sbr.rel (%p18) target = $region8
  $region5: #{drugban_forward.14} parent=0 // loop_body
    %s22 = ssub.s32 %s17, 1
    %s23 = ssub.s32 %s17, 2
    %s24 = sadd.s32 %s17, 1
    %s25 = ssub.s32 %s17, %s24
    %p26 = scmp.eq.s32.totalorder %s25, 0
    %s28 = sadd.s32 %s27, 1
    %s29 = scalar_select %p26, %s27, %s28
    %p32 = pneg %p26
    %p33 = scmp.eq.s32.totalorder %s17, 1
    %p34 = por %p32, %p33
    %p35 = scmp.ne.s32.totalorder %s27, %s30
    %p36 = scmp.eq.s32.totalorder %s17, 0
    %p37 = por %p35, %p36
    %p38 = scmp.ne.s32.totalorder %s27, %s30
    %p39 = scmp.eq.s32.totalorder %s22, 1
    %p40 = por %p38, %p39
    %p41 = scmp.ne.s32.totalorder %s30, %s31
    %p42 = scmp.eq.s32.totalorder %s22, 0
    %p43 = por %p41, %p42
    %p44 = scmp.ne.s32.totalorder %s30, %s31
    %p45 = scmp.eq.s32.totalorder %s23, 1
    %p46 = por %p44, %p45
    %p48 = scmp.ne.s32.totalorder %s31, %s47
    %p49 = scmp.eq.s32.totalorder %s23, 0
    %p50 = por %p48, %p49
    %s51 = ssub.s32 %s17, %s24
    %p52 = scmp.eq.s32.totalorder %s51, 0
    %s54 = sadd.s32 %s53, 1
    %s55 = scalar_select %p52, %s53, %s54
    %p58 = pneg %p52
    %p59 = scmp.eq.s32.totalorder %s17, 1
    %p60 = por %p58, %p59
    %p61 = scmp.ne.s32.totalorder %s53, %s56
    %p62 = scmp.eq.s32.totalorder %s17, 0
    %p63 = por %p61, %p62
    %p64 = scmp.ne.s32.totalorder %s53, %s56
    %p65 = scmp.eq.s32.totalorder %s22, 1
    %p66 = por %p64, %p65
    %p67 = scmp.ne.s32.totalorder %s56, %s57
    %p68 = scmp.eq.s32.totalorder %s22, 0
    %p69 = por %p67, %p68
    %p70 = scmp.ne.s32.totalorder %s56, %s57
    %p71 = scmp.eq.s32.totalorder %s23, 1
    %p72 = por %p70, %p71
    %p74 = scmp.ne.s32.totalorder %s57, %s73
    %p75 = scmp.eq.s32.totalorder %s23, 0
    %p76 = por %p74, %p75
    %s78 = sadd.s32 %s77, 1
    %p81 = scmp.eq.s32.totalorder %s17, 1
    %p82 = scmp.ne.s32.totalorder %s77, %s79
    %p83 = scmp.eq.s32.totalorder %s17, 0
    %p84 = por %p82, %p83
    %p85 = scmp.ne.s32.totalorder %s77, %s79
    %p86 = scmp.eq.s32.totalorder %s22, 1
    %p87 = por %p85, %p86
    %p88 = scmp.ne.s32.totalorder %s79, %s80
    %p89 = scmp.eq.s32.totalorder %s22, 0
    %p90 = por %p88, %p89
    %p91 = scmp.ne.s32.totalorder %s79, %s80
    %p92 = scmp.eq.s32.totalorder %s23, 1
    %p93 = por %p91, %p92
    %p95 = scmp.ne.s32.totalorder %s80, %s94
    %p96 = scmp.eq.s32.totalorder %s23, 0
    %p97 = por %p95, %p96
    %s99 = sadd.s32 %s98, 1
    %p102 = scmp.eq.s32.totalorder %s17, 1
    %p103 = scmp.ne.s32.totalorder %s98, %s100
    %p104 = scmp.eq.s32.totalorder %s17, 0
    %p105 = por %p103, %p104
    %p106 = scmp.ne.s32.totalorder %s98, %s100
    %p107 = scmp.eq.s32.totalorder %s22, 1
    %p108 = por %p106, %p107
    %p109 = scmp.ne.s32.totalorder %s100, %s101
    %p110 = scmp.eq.s32.totalorder %s22, 0
    %p111 = por %p109, %p110
    %p112 = scmp.ne.s32.totalorder %s100, %s101
    %p113 = scmp.eq.s32.totalorder %s23, 1
    %p114 = por %p112, %p113
    %p116 = scmp.ne.s32.totalorder %s101, %s115
    %p117 = scmp.eq.s32.totalorder %s23, 0
    %p118 = por %p116, %p117
    %s120 = sadd.s32 %s119, 1
    %p123 = scmp.eq.s32.totalorder %s17, 1
    %p124 = scmp.ne.s32.totalorder %s119, %s121
    %p125 = scmp.eq.s32.totalorder %s17, 0
    %p126 = por %p124, %p125
    %p127 = scmp.ne.s32.totalorder %s119, %s121
    %p128 = scmp.eq.s32.totalorder %s22, 1
    %p129 = por %p127, %p128
    %p130 = scmp.ne.s32.totalorder %s121, %s122
    %p131 = scmp.eq.s32.totalorder %s22, 0
    %p132 = por %p130, %p131
    %p133 = scmp.ne.s32.totalorder %s121, %s122
    %p134 = scmp.eq.s32.totalorder %s23, 1
    %p135 = por %p133, %p134
    %p137 = scmp.ne.s32.totalorder %s122, %s136
    %p138 = scmp.eq.s32.totalorder %s23, 0
    %p139 = por %p137, %p138
    %s141 = sadd.s32 %s140, 1
    %p144 = scmp.eq.s32.totalorder %s17, 1
    %p145 = scmp.ne.s32.totalorder %s140, %s142
    %p146 = scmp.eq.s32.totalorder %s17, 0
    %p147 = por %p145, %p146
    %p148 = scmp.ne.s32.totalorder %s140, %s142
    %p149 = scmp.eq.s32.totalorder %s22, 1
    %p150 = por %p148, %p149
    %p151 = scmp.ne.s32.totalorder %s142, %s143
    %p152 = scmp.eq.s32.totalorder %s22, 0
    %p153 = por %p151, %p152
    %p154 = scmp.ne.s32.totalorder %s142, %s143
    %p155 = scmp.eq.s32.totalorder %s23, 1
    %p156 = por %p154, %p155
    %p158 = scmp.ne.s32.totalorder %s143, %s157
    %p159 = scmp.eq.s32.totalorder %s23, 0
    %p160 = por %p158, %p159
    %s162 = sadd.s32 %s161, 1
    %p165 = scmp.eq.s32.totalorder %s17, 1
    %p166 = scmp.ne.s32.totalorder %s161, %s163
    %p167 = scmp.eq.s32.totalorder %s17, 0
    %p168 = por %p166, %p167
    %p169 = scmp.ne.s32.totalorder %s161, %s163
    %p170 = scmp.eq.s32.totalorder %s22, 1
    %p171 = por %p169, %p170
    %p172 = scmp.ne.s32.totalorder %s163, %s164
    %p173 = scmp.eq.s32.totalorder %s22, 0
    %p174 = por %p172, %p173
    %p175 = scmp.ne.s32.totalorder %s163, %s164
    %p176 = scmp.eq.s32.totalorder %s23, 1
    %p177 = por %p175, %p176
    %p179 = scmp.ne.s32.totalorder %s164, %s178
    %p180 = scmp.eq.s32.totalorder %s23, 0
    %p181 = por %p179, %p180
    %s183 = sadd.s32 %s182, 1
    %p186 = scmp.eq.s32.totalorder %s17, 1
    %p187 = scmp.ne.s32.totalorder %s182, %s184
    %p188 = scmp.eq.s32.totalorder %s17, 0
    %p189 = por %p187, %p188
    %p190 = scmp.ne.s32.totalorder %s182, %s184
    %p191 = scmp.eq.s32.totalorder %s22, 1
    %p192 = por %p190, %p191
    %p193 = scmp.ne.s32.totalorder %s184, %s185
    %p194 = scmp.eq.s32.totalorder %s22, 0
    %p195 = por %p193, %p194
    %p196 = scmp.ne.s32.totalorder %s184, %s185
    %p197 = scmp.eq.s32.totalorder %s23, 1
    %p198 = por %p196, %p197
    %p200 = scmp.ne.s32.totalorder %s185, %s199
    %p201 = scmp.eq.s32.totalorder %s23, 0
    %p202 = por %p200, %p201
    %s204 = sadd.s32 %s203, 1
    %p207 = scmp.eq.s32.totalorder %s17, 1
    %p208 = scmp.ne.s32.totalorder %s203, %s205
    %p209 = scmp.eq.s32.totalorder %s17, 0
    %p210 = por %p208, %p209
    %p211 = scmp.ne.s32.totalorder %s203, %s205
    %p212 = scmp.eq.s32.totalorder %s22, 1
    %p213 = por %p211, %p212
    %p214 = scmp.ne.s32.totalorder %s205, %s206
    %p215 = scmp.eq.s32.totalorder %s22, 0
    %p216 = por %p214, %p215
    %p217 = scmp.ne.s32.totalorder %s205, %s206
    %p218 = scmp.eq.s32.totalorder %s23, 1
    %p219 = por %p217, %p218
    %p221 = scmp.ne.s32.totalorder %s206, %s220
    %p222 = scmp.eq.s32.totalorder %s23, 0
    %p223 = por %p221, %p222
    %s224 = ssub.s32 %s17, %s24
    %p225 = scmp.eq.s32.totalorder %s224, 0
    %s227 = sadd.s32 %s226, 1
    %s228 = scalar_select %p225, %s226, %s227
    %p231 = pneg %p225
    %p232 = scmp.eq.s32.totalorder %s17, 1
    %p233 = por %p231, %p232
    %p234 = scmp.ne.s32.totalorder %s226, %s229
    %p235 = scmp.eq.s32.totalorder %s17, 0
    %p236 = por %p234, %p235
    %p237 = scmp.ne.s32.totalorder %s226, %s229
    %p238 = scmp.eq.s32.totalorder %s22, 1
    %p239 = por %p237, %p238
    %p240 = scmp.ne.s32.totalorder %s229, %s230
    %p241 = scmp.eq.s32.totalorder %s22, 0
    %p242 = por %p240, %p241
    %p243 = scmp.ne.s32.totalorder %s229, %s230
    %p244 = scmp.eq.s32.totalorder %s23, 1
    %p245 = por %p243, %p244
    %p247 = scmp.ne.s32.totalorder %s230, %s246
    %p248 = scmp.eq.s32.totalorder %s23, 0
    %p249 = por %p247, %p248
    %s250 = ssub.s32 %s17, %s24
    %p251 = scmp.eq.s32.totalorder %s250, 0
    %s253 = sadd.s32 %s252, 1
    %s254 = scalar_select %p251, %s252, %s253
    %p257 = pneg %p251
    %p258 = scmp.eq.s32.totalorder %s17, 1
    %p259 = por %p257, %p258
    %p260 = scmp.ne.s32.totalorder %s252, %s255
    %p261 = scmp.eq.s32.totalorder %s17, 0
    %p262 = por %p260, %p261
    %p263 = scmp.ne.s32.totalorder %s252, %s255
    %p264 = scmp.eq.s32.totalorder %s22, 1
    %p265 = por %p263, %p264
    %p266 = scmp.ne.s32.totalorder %s255, %s256
    %p267 = scmp.eq.s32.totalorder %s22, 0
    %p268 = por %p266, %p267
    %p269 = scmp.ne.s32.totalorder %s255, %s256
    %p270 = scmp.eq.s32.totalorder %s23, 1
    %p271 = por %p269, %p270
    %p273 = scmp.ne.s32.totalorder %s256, %s272
    %p274 = scmp.eq.s32.totalorder %s23, 0
    %p275 = por %p273, %p274
    %p276 = scmp.le.s32.totalorder 1, %s17
    %p277 = scmp.lt.s32.totalorder %s17, 3
    %p278 = pnand %p276, %p277
    %p279 = pneg %p278
    // Predicated region
    $region9: #{drugban_forward.14} parent=5 // pred_check
      _
    $region10: #{drugban_forward.14} parent=5 // pred_check_branch
      %281 = sbr.rel (%p278) target = $region12
    $region11: #{drugban_forward.14} parent=5 // pred_region
      %s282 = ssub.s32 %s17, 1
      // Predicated region
      $region13: #{drugban_forward.14} parent=11 // pred_check
        %p283 = pneg %p90
      $region14: #{drugban_forward.14} parent=11 // pred_check_branch
        %285 = sbr.rel (%p283) target = $region16
      $region15: #{drugban_forward.14} parent=11 // pred_region
        _
      $region16: #{drugban_forward.14} parent=11 // pred_fallthru
        _
      // Predicated region
      $region17: #{drugban_forward.14} parent=11 // pred_check
        %p286 = pneg %p111
      $region18: #{drugban_forward.14} parent=11 // pred_check_branch
        %288 = sbr.rel (%p286) target = $region20
      $region19: #{drugban_forward.14} parent=11 // pred_region
        _
      $region20: #{drugban_forward.14} parent=11 // pred_fallthru
        _
      // Predicated region
      $region21: #{drugban_forward.14} parent=11 // pred_check
        %p289 = pneg %p132
      $region22: #{drugban_forward.14} parent=11 // pred_check_branch
        %291 = sbr.rel (%p289) target = $region24
      $region23: #{drugban_forward.14} parent=11 // pred_region
        _
      $region24: #{drugban_forward.14} parent=11 // pred_fallthru
        _
      // Predicated region
      $region25: #{drugban_forward.14} parent=11 // pred_check
        %p292 = pneg %p153
      $region26: #{drugban_forward.14} parent=11 // pred_check_branch
        %294 = sbr.rel (%p292) target = $region28
      $region27: #{drugban_forward.14} parent=11 // pred_region
        _
      $region28: #{drugban_forward.14} parent=11 // pred_fallthru
        _
      // Predicated region
      $region29: #{drugban_forward.14} parent=11 // pred_check
        %p295 = pneg %p174
      $region30: #{drugban_forward.14} parent=11 // pred_check_branch
        %297 = sbr.rel (%p295) target = $region32
      $region31: #{drugban_forward.14} parent=11 // pred_region
        _
      $region32: #{drugban_forward.14} parent=11 // pred_fallthru
        _
      // Predicated region
      $region33: #{drugban_forward.14} parent=11 // pred_check
        %p298 = pneg %p195
      $region34: #{drugban_forward.14} parent=11 // pred_check_branch
        %300 = sbr.rel (%p298) target = $region36
      $region35: #{drugban_forward.14} parent=11 // pred_region
        _
      $region36: #{drugban_forward.14} parent=11 // pred_fallthru
        _
      // Predicated region
      $region37: #{drugban_forward.14} parent=11 // pred_check
        %p301 = pneg %p216
      $region38: #{drugban_forward.14} parent=11 // pred_check_branch
        %303 = sbr.rel (%p301) target = $region40
      $region39: #{drugban_forward.14} parent=11 // pred_region
        _
      $region40: #{drugban_forward.14} parent=11 // pred_fallthru
        _
    $region12: #{drugban_forward.14} parent=5 // pred_fallthru
      _
    %p304 = scmp.lt.s32.totalorder %s17, 2
    // Predicated region
    $region41: #{drugban_forward.14} parent=5 // pred_check
      %p305 = pneg %p304
    $region42: #{drugban_forward.14} parent=5 // pred_check_branch
      %307 = sbr.rel (%p305) target = $region44
    $region43: #{drugban_forward.14} parent=5 // pred_region
      // Predicated region
      $region45: #{drugban_forward.14} parent=43 // pred_check
        %p308 = pneg %p37
      $region46: #{drugban_forward.14} parent=43 // pred_check_branch
        %310 = sbr.rel (%p308) target = $region48
      $region47: #{drugban_forward.14} parent=43 // pred_region
        %s311 = smul.u32 2, %s17
        %p312 = scmp.lt.s32.totalorder %s311, 3
        %s313 = scalar_select %p312, %s311, 3
        %s314 = smul.addr %s313, 4
        %s315 = scalar_lea.vmem %s0, %s314
        %s316 = smul.u32 2, %s17
      $region48: #{drugban_forward.14} parent=43 // pred_fallthru
        _
      // Predicated region
      $region49: #{drugban_forward.14} parent=43 // pred_check
        %p317 = pneg %p63
      $region50: #{drugban_forward.14} parent=43 // pred_check_branch
        %319 = sbr.rel (%p317) target = $region52
      $region51: #{drugban_forward.14} parent=43 // pred_region
        %s320 = smul.u32 16, %s17
        %p321 = scmp.lt.s32.totalorder %s320, 31
        %s322 = scalar_select %p321, %s320, 31
        %s323 = smul.addr %s322, 4
        %s324 = scalar_lea.vmem %s1, %s323
        %s325 = smul.u32 16, %s17
      $region52: #{drugban_forward.14} parent=43 // pred_fallthru
        _
    $region44: #{drugban_forward.14} parent=5 // pred_fallthru
      _
    %p326 = scmp.le.s32.totalorder 1, %s17
    %p327 = scmp.lt.s32.totalorder %s17, 3
    %p328 = pnand %p326, %p327
    %p329 = pneg %p328
    // Predicated region
    $region53: #{drugban_forward.14} parent=5 // pred_check
      _
    $region54: #{drugban_forward.14} parent=5 // pred_check_branch
      %331 = sbr.rel (%p328) target = $region56
    $region55: #{drugban_forward.14} parent=5 // pred_region
      %s332 = ssub.s32 %s17, 1
      %s333 = smul.u32 2, %s22
      %p334 = scmp.lt.s32.totalorder %s333, 3
      %s335 = scalar_select %p334, %s333, 3
      %s336 = smul.addr %s335, 4
      %s337 = scalar_lea.vmem %s0, %s336
      %p338 = pneg %p43
      %p339 = pneg %p40
      %s340 = smul.u32 16, %s22
      %p341 = scmp.lt.s32.totalorder %s340, 31
      %s342 = scalar_select %p341, %s340, 31
      %s343 = smul.addr %s342, 4
      %s344 = scalar_lea.vmem %s1, %s343
      %p345 = pneg %p69
      %p346 = pneg %p66
      %p347 = pneg %p90
      %p348 = pneg %p87
      %p349 = pneg %p111
      %p350 = pneg %p108
      %p351 = pneg %p132
      %p352 = pneg %p129
      %p353 = pneg %p153
      %p354 = pneg %p150
      %p355 = pneg %p174
      %p356 = pneg %p171
      %p357 = pneg %p195
      %p358 = pneg %p192
      %p359 = pneg %p216
      %p360 = pneg %p213
      %p361 = pneg %p242
      %p362 = pneg %p239
      %p363 = scmp.lt.s32.totalorder %s22, 1
      %s364 = scalar_select %p363, %s22, 1
      %s365 = smul.addr %s364, 4
      %s366 = smul.addr %s365, 4
      %s367 = scalar_lea.vmem %s9, %s366
      %p368 = pneg %p268
      %p369 = pneg %p265
      %p370 = scmp.lt.s32.totalorder %s22, 1
      %s371 = scalar_select %p370, %s22, 1
      %s372 = smul.addr %s371, 2
      %s373 = scalar_lea.vmem %s10, %s372
      %s374 = smul.u32 2, %s22
      %p375 = scmp.lt.s32.totalorder %s374, 3
      %s376 = scalar_select %p375, %s374, 3
      %s377 = smul.addr %s376, 4
      %s378 = scalar_lea.vmem %s0, %s377
      %s379 = smul.u32 2, %s22
      %s380 = smul.u32 16, %s22
      %p381 = scmp.lt.s32.totalorder %s380, 31
      %s382 = scalar_select %p381, %s380, 31
      %s383 = smul.addr %s382, 4
      %s384 = scalar_lea.vmem %s1, %s383
      %s385 = smul.u32 16, %s22
      %p386 = scmp.lt.s32.totalorder %s22, 1
      %s387 = scalar_select %p386, %s22, 1
      %s388 = smul.addr %s387, 4
      %s389 = smul.addr %s388, 4
      %s390 = scalar_lea.vmem %s9, %s389
      %p391 = scmp.lt.s32.totalorder %s22, 1
      %s392 = scalar_select %p391, %s22, 1
      %s393 = smul.addr %s392, 2
      %s394 = scalar_lea.vmem %s10, %s393
      %v396 = vld [vmem:[%s378] sm:$0xf]
      %v397 = vld [vmem:[%s378 + $0x4] sm:$0xf]
      %v398 = vld [vmem:[%s2] sm:$0xff]
      %v399 = vld [vmem:[%s2 + $0x8] sm:$0xff]
      %v400 = vld [vmem:[%s2 + $0x10] sm:$0xff]
      %v401 = vld [vmem:[%s2 + $0x18] sm:$0xff]
      %v402 = vld [vmem:[%s2 + $0x20] sm:$0xff]
      %v403 = vld [vmem:[%s2 + $0x28] sm:$0xff]
      %v404 = vld [vmem:[%s2 + $0x30] sm:$0xff]
      %v405 = vld [vmem:[%s2 + $0x38] sm:$0xff]
      %v406 = vld [vmem:[%s2 + $0x40] sm:$0xff]
      %v407 = vld [vmem:[%s2 + $0x48] sm:$0xff]
      %v408 = vld [vmem:[%s2 + $0x50] sm:$0xff]
      %v409 = vld [vmem:[%s2 + $0x58] sm:$0xff]
      %v410 = vld [vmem:[%s2 + $0x60] sm:$0xff]
      %v411 = vld [vmem:[%s2 + $0x68] sm:$0xff]
      %v412 = vld [vmem:[%s2 + $0x70] sm:$0xff]
      %v413 = vld [vmem:[%s2 + $0x78] sm:$0xff]
      %v414 = vld [vmem:[%s2 + $0x80] sm:$0xff]
      %v415 = vld [vmem:[%s2 + $0x88] sm:$0xff]
      %v416 = vld [vmem:[%s2 + $0x90] sm:$0xff]
      %v417 = vld [vmem:[%s2 + $0x98] sm:$0xff]
      %v418 = vld [vmem:[%s2 + $0xa0] sm:$0xff]
      %v419 = vld [vmem:[%s2 + $0xa8] sm:$0xff]
      %v420 = vld [vmem:[%s2 + $0xb0] sm:$0xff]
      %v421 = vld [vmem:[%s2 + $0xb8] sm:$0xff]
      %v422 = vld [vmem:[%s2 + $0xc0] sm:$0xff]
      %v423 = vld [vmem:[%s2 + $0xc8] sm:$0xff]
      %v424 = vld [vmem:[%s2 + $0xd0] sm:$0xff]
      %v425 = vld [vmem:[%s2 + $0xd8] sm:$0xff]
      %v426 = vld [vmem:[%s2 + $0xe0] sm:$0xff]
      %v427 = vld [vmem:[%s2 + $0xe8] sm:$0xff]
      %v428 = vld [vmem:[%s2 + $0xf0] sm:$0xff]
      %v429 = vld [vmem:[%s2 + $0xf8] sm:$0xff]
      %v430 = vld [vmem:[%s2 + $0x100] sm:$0xff]
      %v431 = vld [vmem:[%s2 + $0x108] sm:$0xff]
      %v432 = vld [vmem:[%s2 + $0x110] sm:$0xff]
      %v433 = vld [vmem:[%s2 + $0x118] sm:$0xff]
      %v434 = vld [vmem:[%s2 + $0x120] sm:$0xff]
      %v435 = vld [vmem:[%s2 + $0x128] sm:$0xff]
      %v436 = vld [vmem:[%s2 + $0x130] sm:$0xff]
      %v437 = vld [vmem:[%s2 + $0x138] sm:$0xff]
      %v438 = vld [vmem:[%s2 + $0x140] sm:$0xff]
      %v439 = vld [vmem:[%s2 + $0x148] sm:$0xff]
      %v440 = vld [vmem:[%s2 + $0x150] sm:$0xff]
      %v441 = vld [vmem:[%s2 + $0x158] sm:$0xff]
      %v442 = vld [vmem:[%s2 + $0x160] sm:$0xff]
      %v443 = vld [vmem:[%s2 + $0x168] sm:$0xff]
      %v444 = vld [vmem:[%s2 + $0x170] sm:$0xff]
      %v445 = vld [vmem:[%s2 + $0x178] sm:$0xff]
      %v446 = vld [vmem:[%s3] sm:$0x3f]
      %v448 = vlaneseq
      %v449 = vshrl.u32 %v448, 7
      %v450 = vsub.s32 0, %v449
      %v451 = vrot.slane %v446, %v450
      %v452 = vlaneseq
      %v453 = vshrl.u32 %v452, 7
      %v454 = vsub.s32 1, %v453
      %v455 = vrot.slane %v446, %v454
      %v456 = vlaneseq
      %v457 = vshrl.u32 %v456, 7
      %v458 = vsub.s32 2, %v457
      %v459 = vrot.slane %v446, %v458
      %v460 = vlaneseq
      %v461 = vshrl.u32 %v460, 7
      %v462 = vsub.s32 3, %v461
      %v463 = vrot.slane %v446, %v462
      %v464 = vlaneseq
      %v465 = vshrl.u32 %v464, 7
      %v466 = vsub.s32 4, %v465
      %v467 = vrot.slane %v446, %v466
      %v468 = vlaneseq
      %v469 = vshrl.u32 %v468, 7
      %v470 = vsub.s32 5, %v469
      %v471 = vrot.slane %v446, %v470
      %v480 = vunpack.c.l.b16 %v396
      %v481 = vunpack.c.l.b16 %v397
      %v482 = vpack.c.b16 %v481, %v480
      %v532 = vunpack.c.l.b16 %v398
      %v533 = vunpack.c.h.b16 %v398
      %v534 = vunpack.c.l.b16 %v399
      %v535 = vunpack.c.h.b16 %v399
      %v536 = vunpack.c.l.b16 %v400
      %v537 = vunpack.c.h.b16 %v400
      %v538 = vunpack.c.l.b16 %v401
      %v539 = vunpack.c.h.b16 %v401
      %v540 = vunpack.c.l.b16 %v402
      %v541 = vunpack.c.h.b16 %v402
      %v542 = vunpack.c.l.b16 %v403
      %v543 = vunpack.c.h.b16 %v403
      %v544 = vunpack.c.l.b16 %v404
      %v545 = vunpack.c.h.b16 %v404
      %v546 = vunpack.c.l.b16 %v405
      %v547 = vunpack.c.h.b16 %v405
      %v548 = vunpack.c.l.b16 %v406
      %v549 = vunpack.c.h.b16 %v406
      %v550 = vunpack.c.l.b16 %v407
      %v551 = vunpack.c.h.b16 %v407
      %v552 = vunpack.c.l.b16 %v408
      %v553 = vunpack.c.h.b16 %v408
      %v554 = vunpack.c.l.b16 %v409
      %v555 = vunpack.c.h.b16 %v409
      %v556 = vunpack.c.l.b16 %v410
      %v557 = vunpack.c.h.b16 %v410
      %v558 = vunpack.c.l.b16 %v411
      %v559 = vunpack.c.h.b16 %v411
      %v560 = vunpack.c.l.b16 %v412
      %v561 = vunpack.c.h.b16 %v412
      %v562 = vunpack.c.l.b16 %v413
      %v563 = vunpack.c.h.b16 %v413
      %v564 = vunpack.c.l.b16 %v414
      %v565 = vunpack.c.h.b16 %v414
      %v566 = vunpack.c.l.b16 %v415
      %v567 = vunpack.c.h.b16 %v415
      %v568 = vunpack.c.l.b16 %v416
      %v569 = vunpack.c.h.b16 %v416
      %v570 = vunpack.c.l.b16 %v417
      %v571 = vunpack.c.h.b16 %v417
      %v572 = vunpack.c.l.b16 %v418
      %v573 = vunpack.c.h.b16 %v418
      %v574 = vunpack.c.l.b16 %v419
      %v575 = vunpack.c.h.b16 %v419
      %v576 = vunpack.c.l.b16 %v420
      %v577 = vunpack.c.h.b16 %v420
      %v578 = vunpack.c.l.b16 %v421
      %v579 = vunpack.c.h.b16 %v421
      %v580 = vunpack.c.l.b16 %v422
      %v581 = vunpack.c.h.b16 %v422
      %v582 = vunpack.c.l.b16 %v423
      %v583 = vunpack.c.h.b16 %v423
      %v584 = vunpack.c.l.b16 %v424
      %v585 = vunpack.c.h.b16 %v424
      %v586 = vunpack.c.l.b16 %v425
      %v587 = vunpack.c.h.b16 %v425
      %v588 = vunpack.c.l.b16 %v426
      %v589 = vunpack.c.h.b16 %v426
      %v590 = vunpack.c.l.b16 %v427
      %v591 = vunpack.c.h.b16 %v427
      %v592 = vunpack.c.l.b16 %v428
      %v593 = vunpack.c.h.b16 %v428
      %v594 = vunpack.c.l.b16 %v429
      %v595 = vunpack.c.h.b16 %v429
      %v596 = vunpack.c.l.b16 %v430
      %v597 = vunpack.c.h.b16 %v430
      %v598 = vunpack.c.l.b16 %v431
      %v599 = vunpack.c.h.b16 %v431
      %v600 = vunpack.c.l.b16 %v432
      %v601 = vunpack.c.h.b16 %v432
      %v602 = vunpack.c.l.b16 %v433
      %v603 = vunpack.c.h.b16 %v433
      %v604 = vunpack.c.l.b16 %v434
      %v605 = vunpack.c.h.b16 %v434
      %v606 = vunpack.c.l.b16 %v435
      %v607 = vunpack.c.h.b16 %v435
      %v608 = vunpack.c.l.b16 %v436
      %v609 = vunpack.c.h.b16 %v436
      %v610 = vunpack.c.l.b16 %v437
      %v611 = vunpack.c.h.b16 %v437
      %v612 = vunpack.c.l.b16 %v438
      %v613 = vunpack.c.h.b16 %v438
      %v614 = vunpack.c.l.b16 %v439
      %v615 = vunpack.c.h.b16 %v439
      %v616 = vunpack.c.l.b16 %v440
      %v617 = vunpack.c.h.b16 %v440
      %v618 = vunpack.c.l.b16 %v441
      %v619 = vunpack.c.h.b16 %v441
      %v620 = vunpack.c.l.b16 %v442
      %v621 = vunpack.c.h.b16 %v442
      %v622 = vunpack.c.l.b16 %v443
      %v623 = vunpack.c.h.b16 %v443
      %v624 = vunpack.c.l.b16 %v444
      %v625 = vunpack.c.h.b16 %v444
      %v626 = vunpack.c.l.b16 %v445
      %v627 = vunpack.c.h.b16 %v445
      %v628 = vpack.c.b16 %v538, %v532
      %v629 = vpack.c.b16 %v539, %v533
      %v630 = vpack.c.b16 %v540, %v534
      %v631 = vpack.c.b16 %v541, %v535
      %v632 = vpack.c.b16 %v542, %v536
      %v633 = vpack.c.b16 %v543, %v537
      %v634 = vpack.c.b16 %v550, %v544
      %v635 = vpack.c.b16 %v551, %v545
      %v636 = vpack.c.b16 %v552, %v546
      %v637 = vpack.c.b16 %v553, %v547
      %v638 = vpack.c.b16 %v554, %v548
      %v639 = vpack.c.b16 %v555, %v549
      %v640 = vpack.c.b16 %v562, %v556
      %v641 = vpack.c.b16 %v563, %v557
      %v642 = vpack.c.b16 %v564, %v558
      %v643 = vpack.c.b16 %v565, %v559
      %v644 = vpack.c.b16 %v566, %v560
      %v645 = vpack.c.b16 %v567, %v561
      %v646 = vpack.c.b16 %v574, %v568
      %v647 = vpack.c.b16 %v575, %v569
      %v648 = vpack.c.b16 %v576, %v570
      %v649 = vpack.c.b16 %v577, %v571
      %v650 = vpack.c.b16 %v578, %v572
      %v651 = vpack.c.b16 %v579, %v573
      %v652 = vpack.c.b16 %v586, %v580
      %v653 = vpack.c.b16 %v587, %v581
      %v654 = vpack.c.b16 %v588, %v582
      %v655 = vpack.c.b16 %v589, %v583
      %v656 = vpack.c.b16 %v590, %v584
      %v657 = vpack.c.b16 %v591, %v585
      %v658 = vpack.c.b16 %v598, %v592
      %v659 = vpack.c.b16 %v599, %v593
      %v660 = vpack.c.b16 %v600, %v594
      %v661 = vpack.c.b16 %v601, %v595
      %v662 = vpack.c.b16 %v602, %v596
      %v663 = vpack.c.b16 %v603, %v597
      %v664 = vpack.c.b16 %v610, %v604
      %v665 = vpack.c.b16 %v611, %v605
      %v666 = vpack.c.b16 %v612, %v606
      %v667 = vpack.c.b16 %v613, %v607
      %v668 = vpack.c.b16 %v614, %v608
      %v669 = vpack.c.b16 %v615, %v609
      %v670 = vpack.c.b16 %v622, %v616
      %v671 = vpack.c.b16 %v623, %v617
      %v672 = vpack.c.b16 %v624, %v618
      %v673 = vpack.c.b16 %v625, %v619
      %v674 = vpack.c.b16 %v626, %v620
      %v675 = vpack.c.b16 %v627, %v621
      %724 = vmatprep.subr.bf16.mxu0 %v671
      %725 = vmatpush1.bf16.msra.mxu0 %v670
      %726 = vmatprep.subr.bf16.mxu0 %v665
      %727 = vmatpush1.bf16.msra.mxu0 %v664
      %728 = vmatprep.subr.bf16.mxu0 %v659
      %729 = vmatpush1.bf16.msra.mxu0 %v658
      %730 = vmatprep.subr.bf16.mxu0 %v653
      %731 = vmatpush1.bf16.msra.mxu0 %v652
      %732 = vmatprep.subr.bf16.mxu0 %v647
      %733 = vmatpush1.bf16.msra.mxu0 %v646
      %734 = vmatprep.subr.bf16.mxu0 %v641
      %735 = vmatpush1.bf16.msra.mxu0 %v640
      %736 = vmatprep.subr.bf16.mxu0 %v635
      %737 = vmatpush1.bf16.msra.mxu0 %v634
      %738 = vmatprep.subr.bf16.mxu0 %v629
      %739 = vmatpush1.bf16.msra.mxu0 %v628
      %740 = vmatprep.subr.bf16.mxu0 0
      %741 = vmatpush2.bf16.msra.mxu0 0
      %742 = vmatprep.subr.bf16.mxu0 0
      %743 = vmatpush2.bf16.msra.mxu0 0
      %744 = vmatprep.subr.bf16.mxu0 0
      %745 = vmatpush2.bf16.msra.mxu0 0
      %746 = vmatprep.subr.bf16.mxu0 0
      %747 = vmatpush2.bf16.msra.mxu0 0
      %748 = vmatprep.subr.bf16.mxu0 0
      %749 = vmatpush2.bf16.msra.mxu0 0
      %750 = vmatprep.subr.bf16.mxu0 0
      %751 = vmatpush2.bf16.msra.mxu0 0
      %752 = vmatprep.subr.bf16.mxu0 0
      %753 = vmatpush2.bf16.msra.mxu0 0
      %754 = vmatprep.subr.bf16.mxu0 0
      %755 = vmatpush2.bf16.msra.mxu0 0
      %756 = vmatprep.mubr.bf16.mxu0 0
      %757 = vmatmul.mubr.bf16.gmra.mxu0 %v482
      %v758 = vpop.f32.mrf.mxu0
      %v759 = vadd.f32 %v451, %v758
      %v760 = vpop.f32.mrf.mxu0
      %v761 = vadd.f32 %v455, %v760
      %v762 = vpop.f32.mrf.mxu0
      %v763 = vadd.f32 %v451, %v762
      %v764 = vpop.f32.mrf.mxu0
      %v765 = vadd.f32 %v455, %v764
      %766 = vdwg.mxu0
      %767 = vmatprep.subr.bf16.mxu0 %v673
      %768 = vmatpush1.bf16.msra.mxu0 %v672
      %769 = vmatprep.subr.bf16.mxu0 %v667
      %770 = vmatpush1.bf16.msra.mxu0 %v666
      %771 = vmatprep.subr.bf16.mxu0 %v661
      %772 = vmatpush1.bf16.msra.mxu0 %v660
      %773 = vmatprep.subr.bf16.mxu0 %v655
      %774 = vmatpush1.bf16.msra.mxu0 %v654
      %775 = vmatprep.subr.bf16.mxu0 %v649
      %776 = vmatpush1.bf16.msra.mxu0 %v648
      %777 = vmatprep.subr.bf16.mxu0 %v643
      %778 = vmatpush1.bf16.msra.mxu0 %v642
      %779 = vmatprep.subr.bf16.mxu0 %v637
      %780 = vmatpush1.bf16.msra.mxu0 %v636
      %781 = vmatprep.subr.bf16.mxu0 %v631
      %782 = vmatpush1.bf16.msra.mxu0 %v630
      %783 = vmatprep.subr.bf16.mxu0 0
      %784 = vmatpush2.bf16.msra.mxu0 0
      %785 = vmatprep.subr.bf16.mxu0 0
      %786 = vmatpush2.bf16.msra.mxu0 0
      %787 = vmatprep.subr.bf16.mxu0 0
      %788 = vmatpush2.bf16.msra.mxu0 0
      %789 = vmatprep.subr.bf16.mxu0 0
      %790 = vmatpush2.bf16.msra.mxu0 0
      %791 = vmatprep.subr.bf16.mxu0 0
      %792 = vmatpush2.bf16.msra.mxu0 0
      %793 = vmatprep.subr.bf16.mxu0 0
      %794 = vmatpush2.bf16.msra.mxu0 0
      %795 = vmatprep.subr.bf16.mxu0 0
      %796 = vmatpush2.bf16.msra.mxu0 0
      %797 = vmatprep.subr.bf16.mxu0 0
      %798 = vmatpush2.bf16.msra.mxu0 0
      %799 = vmatprep.mubr.bf16.mxu0 0
      %800 = vmatmul.mubr.bf16.gmra.mxu0 %v482
      %v801 = vpop.f32.mrf.mxu0
      %v802 = vadd.f32 %v459, %v801
      %v803 = vpop.f32.mrf.mxu0
      %v804 = vadd.f32 %v463, %v803
      %v805 = vpop.f32.mrf.mxu0
      %v806 = vadd.f32 %v459, %v805
      %v807 = vpop.f32.mrf.mxu0
      %v808 = vadd.f32 %v463, %v807
      %809 = vdwg.mxu0
      %810 = vmatprep.subr.bf16.mxu0 %v675
      %811 = vmatpush1.bf16.msra.mxu0 %v674
      %812 = vmatprep.subr.bf16.mxu0 %v669
      %813 = vmatpush1.bf16.msra.mxu0 %v668
      %814 = vmatprep.subr.bf16.mxu0 %v663
      %815 = vmatpush1.bf16.msra.mxu0 %v662
      %816 = vmatprep.subr.bf16.mxu0 %v657
      %817 = vmatpush1.bf16.msra.mxu0 %v656
      %818 = vmatprep.subr.bf16.mxu0 %v651
      %819 = vmatpush1.bf16.msra.mxu0 %v650
      %820 = vmatprep.subr.bf16.mxu0 %v645
      %821 = vmatpush1.bf16.msra.mxu0 %v644
      %822 = vmatprep.subr.bf16.mxu0 %v639
      %823 = vmatpush1.bf16.msra.mxu0 %v638
      %824 = vmatprep.subr.bf16.mxu0 %v633
      %825 = vmatpush1.bf16.msra.mxu0 %v632
      %826 = vmatprep.subr.bf16.mxu0 0
      %827 = vmatpush2.bf16.msra.mxu0 0
      %828 = vmatprep.subr.bf16.mxu0 0
      %829 = vmatpush2.bf16.msra.mxu0 0
      %830 = vmatprep.subr.bf16.mxu0 0
      %831 = vmatpush2.bf16.msra.mxu0 0
      %832 = vmatprep.subr.bf16.mxu0 0
      %833 = vmatpush2.bf16.msra.mxu0 0
      %834 = vmatprep.subr.bf16.mxu0 0
      %835 = vmatpush2.bf16.msra.mxu0 0
      %836 = vmatprep.subr.bf16.mxu0 0
      %837 = vmatpush2.bf16.msra.mxu0 0
      %838 = vmatprep.subr.bf16.mxu0 0
      %839 = vmatpush2.bf16.msra.mxu0 0
      %840 = vmatprep.subr.bf16.mxu0 0
      %841 = vmatpush2.bf16.msra.mxu0 0
      %842 = vmatprep.mubr.bf16.mxu0 0
      %843 = vmatmul.mubr.bf16.gmra.mxu0 %v482
      %v844 = vpop.f32.mrf.mxu0
      %v845 = vadd.f32 %v467, %v844
      %v846 = vpop.f32.mrf.mxu0
      %v847 = vadd.f32 %v471, %v846
      %v848 = vpop.f32.mrf.mxu0
      %v849 = vadd.f32 %v467, %v848
      %v850 = vpop.f32.mrf.mxu0
      %v851 = vadd.f32 %v471, %v850
      %852 = vdwg.mxu0
      %v853 = vmax.f32 %v759, 0.0
      %v854 = vmax.f32 %v761, 0.0
      %v855 = vmax.f32 %v802, 0.0
      %v856 = vmax.f32 %v804, 0.0
      %v857 = vmax.f32 %v845, 0.0
      %v858 = vmax.f32 %v847, 0.0
      %v859 = vmax.f32 %v763, 0.0
      %v860 = vmax.f32 %v765, 0.0
      %v861 = vmax.f32 %v806, 0.0
      %v862 = vmax.f32 %v808, 0.0
      %v863 = vmax.f32 %v849, 0.0
      %v864 = vmax.f32 %v851, 0.0
      %v865 = vld [vmem:[%s384] sm:$0xf]
      %v866 = vld [vmem:[%s384 + $0x4] sm:$0xf]
      %v867 = vld [vmem:[%s384 + $0x8] sm:$0xf]
      %v868 = vld [vmem:[%s384 + $0xc] sm:$0xf]
      %v869 = vld [vmem:[%s384 + $0x10] sm:$0xf]
      %v870 = vld [vmem:[%s384 + $0x14] sm:$0xf]
      %v871 = vld [vmem:[%s384 + $0x18] sm:$0xf]
      %v872 = vld [vmem:[%s384 + $0x1c] sm:$0xf]
      %v873 = vld [vmem:[%s384 + $0x20] sm:$0xf]
      %v874 = vld [vmem:[%s384 + $0x24] sm:$0xf]
      %v875 = vld [vmem:[%s384 + $0x28] sm:$0xf]
      %v876 = vld [vmem:[%s384 + $0x2c] sm:$0xf]
      %v877 = vld [vmem:[%s384 + $0x30] sm:$0xf]
      %v878 = vld [vmem:[%s384 + $0x34] sm:$0xf]
      %v879 = vld [vmem:[%s384 + $0x38] sm:$0xf]
      %v880 = vld [vmem:[%s384 + $0x3c] sm:$0xf]
      %v881 = vld [vmem:[%s4] sm:$0xff]
      %v882 = vld [vmem:[%s4 + $0x8] sm:$0xff]
      %v883 = vld [vmem:[%s4 + $0x10] sm:$0xff]
      %v884 = vld [vmem:[%s4 + $0x18] sm:$0xff]
      %v885 = vld [vmem:[%s4 + $0x20] sm:$0xff]
      %v886 = vld [vmem:[%s4 + $0x28] sm:$0xff]
      %v887 = vld [vmem:[%s4 + $0x30] sm:$0xff]
      %v888 = vld [vmem:[%s4 + $0x38] sm:$0xff]
      %v889 = vld [vmem:[%s4 + $0x40] sm:$0xff]
      %v890 = vld [vmem:[%s4 + $0x48] sm:$0xff]
      %v891 = vld [vmem:[%s4 + $0x50] sm:$0xff]
      %v892 = vld [vmem:[%s4 + $0x58] sm:$0xff]
      %v893 = vld [vmem:[%s4 + $0x60] sm:$0xff]
      %v894 = vld [vmem:[%s4 + $0x68] sm:$0xff]
      %v895 = vld [vmem:[%s4 + $0x70] sm:$0xff]
      %v896 = vld [vmem:[%s4 + $0x78] sm:$0xff]
      %v897 = vld [vmem:[%s4 + $0x80] sm:$0xff]
      %v898 = vld [vmem:[%s4 + $0x88] sm:$0xff]
      %v899 = vld [vmem:[%s4 + $0x90] sm:$0xff]
      %v900 = vld [vmem:[%s4 + $0x98] sm:$0xff]
      %v901 = vld [vmem:[%s4 + $0xa0] sm:$0xff]
      %v902 = vld [vmem:[%s4 + $0xa8] sm:$0xff]
      %v903 = vld [vmem:[%s4 + $0xb0] sm:$0xff]
      %v904 = vld [vmem:[%s4 + $0xb8] sm:$0xff]
      %v905 = vld [vmem:[%s4 + $0xc0] sm:$0xff]
      %v906 = vld [vmem:[%s4 + $0xc8] sm:$0xff]
      %v907 = vld [vmem:[%s4 + $0xd0] sm:$0xff]
      %v908 = vld [vmem:[%s4 + $0xd8] sm:$0xff]
      %v909 = vld [vmem:[%s4 + $0xe0] sm:$0xff]
      %v910 = vld [vmem:[%s4 + $0xe8] sm:$0xff]
      %v911 = vld [vmem:[%s4 + $0xf0] sm:$0xff]
      %v912 = vld [vmem:[%s4 + $0xf8] sm:$0xff]
      %v913 = vld [vmem:[%s4 + $0x100] sm:$0xff]
      %v914 = vld [vmem:[%s4 + $0x108] sm:$0xff]
      %v915 = vld [vmem:[%s4 + $0x110] sm:$0xff]
      %v916 = vld [vmem:[%s4 + $0x118] sm:$0xff]
      %v917 = vld [vmem:[%s4 + $0x120] sm:$0xff]
      %v918 = vld [vmem:[%s4 + $0x128] sm:$0xff]
      %v919 = vld [vmem:[%s4 + $0x130] sm:$0xff]
      %v920 = vld [vmem:[%s4 + $0x138] sm:$0xff]
      %v921 = vld [vmem:[%s4 + $0x140] sm:$0xff]
      %v922 = vld [vmem:[%s4 + $0x148] sm:$0xff]
      %v923 = vld [vmem:[%s4 + $0x150] sm:$0xff]
      %v924 = vld [vmem:[%s4 + $0x158] sm:$0xff]
      %v925 = vld [vmem:[%s4 + $0x160] sm:$0xff]
      %v926 = vld [vmem:[%s4 + $0x168] sm:$0xff]
      %v927 = vld [vmem:[%s4 + $0x170] sm:$0xff]
      %v928 = vld [vmem:[%s4 + $0x178] sm:$0xff]
      %v929 = vld [vmem:[%s5] sm:$0x3f]
      %v931 = vlaneseq
      %v932 = vshrl.u32 %v931, 7
      %v933 = vsub.s32 0, %v932
      %v934 = vrot.slane %v929, %v933
      %v935 = vlaneseq
      %v936 = vshrl.u32 %v935, 7
      %v937 = vsub.s32 1, %v936
      %v938 = vrot.slane %v929, %v937
      %v939 = vlaneseq
      %v940 = vshrl.u32 %v939, 7
      %v941 = vsub.s32 2, %v940
      %v942 = vrot.slane %v929, %v941
      %v943 = vlaneseq
      %v944 = vshrl.u32 %v943, 7
      %v945 = vsub.s32 3, %v944
      %v946 = vrot.slane %v929, %v945
      %v947 = vlaneseq
      %v948 = vshrl.u32 %v947, 7
      %v949 = vsub.s32 4, %v948
      %v950 = vrot.slane %v929, %v949
      %v951 = vlaneseq
      %v952 = vshrl.u32 %v951, 7
      %v953 = vsub.s32 5, %v952
      %v954 = vrot.slane %v929, %v953
      %v977 = vunpack.c.l.b16 %v865
      %v978 = vunpack.c.l.b16 %v866
      %v979 = vunpack.c.l.b16 %v867
      %v980 = vunpack.c.l.b16 %v868
      %v981 = vunpack.c.l.b16 %v869
      %v982 = vunpack.c.l.b16 %v870
      %v983 = vunpack.c.l.b16 %v871
      %v984 = vunpack.c.l.b16 %v872
      %v985 = vunpack.c.l.b16 %v873
      %v986 = vunpack.c.l.b16 %v874
      %v987 = vunpack.c.l.b16 %v875
      %v988 = vunpack.c.l.b16 %v876
      %v989 = vunpack.c.l.b16 %v877
      %v990 = vunpack.c.l.b16 %v878
      %v991 = vunpack.c.l.b16 %v879
      %v992 = vunpack.c.l.b16 %v880
      %v993 = vpack.c.b16 %v978, %v977
      %v994 = vpack.c.b16 %v980, %v979
      %v995 = vpack.c.b16 %v982, %v981
      %v996 = vpack.c.b16 %v984, %v983
      %v997 = vpack.c.b16 %v986, %v985
      %v998 = vpack.c.b16 %v988, %v987
      %v999 = vpack.c.b16 %v990, %v989
      %v1000 = vpack.c.b16 %v992, %v991
      %v1057 = vunpack.c.l.b16 %v881
      %v1058 = vunpack.c.h.b16 %v881
      %v1059 = vunpack.c.l.b16 %v882
      %v1060 = vunpack.c.h.b16 %v882
      %v1061 = vunpack.c.l.b16 %v883
      %v1062 = vunpack.c.h.b16 %v883
      %v1063 = vunpack.c.l.b16 %v884
      %v1064 = vunpack.c.h.b16 %v884
      %v1065 = vunpack.c.l.b16 %v885
      %v1066 = vunpack.c.h.b16 %v885
      %v1067 = vunpack.c.l.b16 %v886
      %v1068 = vunpack.c.h.b16 %v886
      %v1069 = vunpack.c.l.b16 %v887
      %v1070 = vunpack.c.h.b16 %v887
      %v1071 = vunpack.c.l.b16 %v888
      %v1072 = vunpack.c.h.b16 %v888
      %v1073 = vunpack.c.l.b16 %v889
      %v1074 = vunpack.c.h.b16 %v889
      %v1075 = vunpack.c.l.b16 %v890
      %v1076 = vunpack.c.h.b16 %v890
      %v1077 = vunpack.c.l.b16 %v891
      %v1078 = vunpack.c.h.b16 %v891
      %v1079 = vunpack.c.l.b16 %v892
      %v1080 = vunpack.c.h.b16 %v892
      %v1081 = vunpack.c.l.b16 %v893
      %v1082 = vunpack.c.h.b16 %v893
      %v1083 = vunpack.c.l.b16 %v894
      %v1084 = vunpack.c.h.b16 %v894
      %v1085 = vunpack.c.l.b16 %v895
      %v1086 = vunpack.c.h.b16 %v895
      %v1087 = vunpack.c.l.b16 %v896
      %v1088 = vunpack.c.h.b16 %v896
      %v1089 = vunpack.c.l.b16 %v897
      %v1090 = vunpack.c.h.b16 %v897
      %v1091 = vunpack.c.l.b16 %v898
      %v1092 = vunpack.c.h.b16 %v898
      %v1093 = vunpack.c.l.b16 %v899
      %v1094 = vunpack.c.h.b16 %v899
      %v1095 = vunpack.c.l.b16 %v900
      %v1096 = vunpack.c.h.b16 %v900
      %v1097 = vunpack.c.l.b16 %v901
      %v1098 = vunpack.c.h.b16 %v901
      %v1099 = vunpack.c.l.b16 %v902
      %v1100 = vunpack.c.h.b16 %v902
      %v1101 = vunpack.c.l.b16 %v903
      %v1102 = vunpack.c.h.b16 %v903
      %v1103 = vunpack.c.l.b16 %v904
      %v1104 = vunpack.c.h.b16 %v904
      %v1105 = vunpack.c.l.b16 %v905
      %v1106 = vunpack.c.h.b16 %v905
      %v1107 = vunpack.c.l.b16 %v906
      %v1108 = vunpack.c.h.b16 %v906
      %v1109 = vunpack.c.l.b16 %v907
      %v1110 = vunpack.c.h.b16 %v907
      %v1111 = vunpack.c.l.b16 %v908
      %v1112 = vunpack.c.h.b16 %v908
      %v1113 = vunpack.c.l.b16 %v909
      %v1114 = vunpack.c.h.b16 %v909
      %v1115 = vunpack.c.l.b16 %v910
      %v1116 = vunpack.c.h.b16 %v910
      %v1117 = vunpack.c.l.b16 %v911
      %v1118 = vunpack.c.h.b16 %v911
      %v1119 = vunpack.c.l.b16 %v912
      %v1120 = vunpack.c.h.b16 %v912
      %v1121 = vunpack.c.l.b16 %v913
      %v1122 = vunpack.c.h.b16 %v913
      %v1123 = vunpack.c.l.b16 %v914
      %v1124 = vunpack.c.h.b16 %v914
      %v1125 = vunpack.c.l.b16 %v915
      %v1126 = vunpack.c.h.b16 %v915
      %v1127 = vunpack.c.l.b16 %v916
      %v1128 = vunpack.c.h.b16 %v916
      %v1129 = vunpack.c.l.b16 %v917
      %v1130 = vunpack.c.h.b16 %v917
      %v1131 = vunpack.c.l.b16 %v918
      %v1132 = vunpack.c.h.b16 %v918
      %v1133 = vunpack.c.l.b16 %v919
      %v1134 = vunpack.c.h.b16 %v919
      %v1135 = vunpack.c.l.b16 %v920
      %v1136 = vunpack.c.h.b16 %v920
      %v1137 = vunpack.c.l.b16 %v921
      %v1138 = vunpack.c.h.b16 %v921
      %v1139 = vunpack.c.l.b16 %v922
      %v1140 = vunpack.c.h.b16 %v922
      %v1141 = vunpack.c.l.b16 %v923
      %v1142 = vunpack.c.h.b16 %v923
      %v1143 = vunpack.c.l.b16 %v924
      %v1144 = vunpack.c.h.b16 %v924
      %v1145 = vunpack.c.l.b16 %v925
      %v1146 = vunpack.c.h.b16 %v925
      %v1147 = vunpack.c.l.b16 %v926
      %v1148 = vunpack.c.h.b16 %v926
      %v1149 = vunpack.c.l.b16 %v927
      %v1150 = vunpack.c.h.b16 %v927
      %v1151 = vunpack.c.l.b16 %v928
      %v1152 = vunpack.c.h.b16 %v928
      %v1153 = vpack.c.b16 %v1063, %v1057
      %v1154 = vpack.c.b16 %v1064, %v1058
      %v1155 = vpack.c.b16 %v1065, %v1059
      %v1156 = vpack.c.b16 %v1066, %v1060
      %v1157 = vpack.c.b16 %v1067, %v1061
      %v1158 = vpack.c.b16 %v1068, %v1062
      %v1159 = vpack.c.b16 %v1075, %v1069
      %v1160 = vpack.c.b16 %v1076, %v1070
      %v1161 = vpack.c.b16 %v1077, %v1071
      %v1162 = vpack.c.b16 %v1078, %v1072
      %v1163 = vpack.c.b16 %v1079, %v1073
      %v1164 = vpack.c.b16 %v1080, %v1074
      %v1165 = vpack.c.b16 %v1087, %v1081
      %v1166 = vpack.c.b16 %v1088, %v1082
      %v1167 = vpack.c.b16 %v1089, %v1083
      %v1168 = vpack.c.b16 %v1090, %v1084
      %v1169 = vpack.c.b16 %v1091, %v1085
      %v1170 = vpack.c.b16 %v1092, %v1086
      %v1171 = vpack.c.b16 %v1099, %v1093
      %v1172 = vpack.c.b16 %v1100, %v1094
      %v1173 = vpack.c.b16 %v1101, %v1095
      %v1174 = vpack.c.b16 %v1102, %v1096
      %v1175 = vpack.c.b16 %v1103, %v1097
      %v1176 = vpack.c.b16 %v1104, %v1098
      %v1177 = vpack.c.b16 %v1111, %v1105
      %v1178 = vpack.c.b16 %v1112, %v1106
      %v1179 = vpack.c.b16 %v1113, %v1107
      %v1180 = vpack.c.b16 %v1114, %v1108
      %v1181 = vpack.c.b16 %v1115, %v1109
      %v1182 = vpack.c.b16 %v1116, %v1110
      %v1183 = vpack.c.b16 %v1123, %v1117
      %v1184 = vpack.c.b16 %v1124, %v1118
      %v1185 = vpack.c.b16 %v1125, %v1119
      %v1186 = vpack.c.b16 %v1126, %v1120
      %v1187 = vpack.c.b16 %v1127, %v1121
      %v1188 = vpack.c.b16 %v1128, %v1122
      %v1189 = vpack.c.b16 %v1135, %v1129
      %v1190 = vpack.c.b16 %v1136, %v1130
      %v1191 = vpack.c.b16 %v1137, %v1131
      %v1192 = vpack.c.b16 %v1138, %v1132
      %v1193 = vpack.c.b16 %v1139, %v1133
      %v1194 = vpack.c.b16 %v1140, %v1134
      %v1195 = vpack.c.b16 %v1147, %v1141
      %v1196 = vpack.c.b16 %v1148, %v1142
      %v1197 = vpack.c.b16 %v1149, %v1143
      %v1198 = vpack.c.b16 %v1150, %v1144
      %v1199 = vpack.c.b16 %v1151, %v1145
      %v1200 = vpack.c.b16 %v1152, %v1146
      %1249 = vmatprep.subr.bf16.mxu0 %v1196
      %1250 = vmatpush1.bf16.msra.mxu0 %v1195
      %1251 = vmatprep.subr.bf16.mxu0 %v1190
      %1252 = vmatpush1.bf16.msra.mxu0 %v1189
      %1253 = vmatprep.subr.bf16.mxu0 %v1184
      %1254 = vmatpush1.bf16.msra.mxu0 %v1183
      %1255 = vmatprep.subr.bf16.mxu0 %v1178
      %1256 = vmatpush1.bf16.msra.mxu0 %v1177
      %1257 = vmatprep.subr.bf16.mxu0 %v1172
      %1258 = vmatpush1.bf16.msra.mxu0 %v1171
      %1259 = vmatprep.subr.bf16.mxu0 %v1166
      %1260 = vmatpush1.bf16.msra.mxu0 %v1165
      %1261 = vmatprep.subr.bf16.mxu0 %v1160
      %1262 = vmatpush1.bf16.msra.mxu0 %v1159
      %1263 = vmatprep.subr.bf16.mxu0 %v1154
      %1264 = vmatpush1.bf16.msra.mxu0 %v1153
      %1265 = vmatprep.subr.bf16.mxu0 0
      %1266 = vmatpush2.bf16.msra.mxu0 0
      %1267 = vmatprep.subr.bf16.mxu0 0
      %1268 = vmatpush2.bf16.msra.mxu0 0
      %1269 = vmatprep.subr.bf16.mxu0 0
      %1270 = vmatpush2.bf16.msra.mxu0 0
      %1271 = vmatprep.subr.bf16.mxu0 0
      %1272 = vmatpush2.bf16.msra.mxu0 0
      %1273 = vmatprep.subr.bf16.mxu0 0
      %1274 = vmatpush2.bf16.msra.mxu0 0
      %1275 = vmatprep.subr.bf16.mxu0 0
      %1276 = vmatpush2.bf16.msra.mxu0 0
      %1277 = vmatprep.subr.bf16.mxu0 0
      %1278 = vmatpush2.bf16.msra.mxu0 0
      %1279 = vmatprep.subr.bf16.mxu0 0
      %1280 = vmatpush2.bf16.msra.mxu0 0
      %1281 = vmatprep.mubr.bf16.mxu0 0
      %1282 = vmatmul.mubr.bf16.gmra.mxu0 %v993
      %v1283 = vpop.f32.mrf.mxu0
      %v1284 = vadd.f32 %v934, %v1283
      %v1285 = vpop.f32.mrf.mxu0
      %v1286 = vadd.f32 %v938, %v1285
      %v1287 = vpop.f32.mrf.mxu0
      %v1288 = vadd.f32 %v934, %v1287
      %v1289 = vpop.f32.mrf.mxu0
      %v1290 = vadd.f32 %v938, %v1289
      %1291 = vmatprep.mubr.bf16.mxu0 0
      %1292 = vmatmul.mubr.bf16.gmra.mxu0 %v994
      %v1293 = vpop.f32.mrf.mxu0
      %v1294 = vadd.f32 %v934, %v1293
      %v1295 = vpop.f32.mrf.mxu0
      %v1296 = vadd.f32 %v938, %v1295
      %v1297 = vpop.f32.mrf.mxu0
      %v1298 = vadd.f32 %v934, %v1297
      %v1299 = vpop.f32.mrf.mxu0
      %v1300 = vadd.f32 %v938, %v1299
      %1301 = vmatprep.mubr.bf16.mxu0 0
      %1302 = vmatmul.mubr.bf16.gmra.mxu0 %v995
      %v1303 = vpop.f32.mrf.mxu0
      %v1304 = vadd.f32 %v934, %v1303
      %v1305 = vpop.f32.mrf.mxu0
      %v1306 = vadd.f32 %v938, %v1305
      %v1307 = vpop.f32.mrf.mxu0
      %v1308 = vadd.f32 %v934, %v1307
      %v1309 = vpop.f32.mrf.mxu0
      %v1310 = vadd.f32 %v938, %v1309
      %1311 = vmatprep.mubr.bf16.mxu0 0
      %1312 = vmatmul.mubr.bf16.gmra.mxu0 %v996
      %v1313 = vpop.f32.mrf.mxu0
      %v1314 = vadd.f32 %v934, %v1313
      %v1315 = vpop.f32.mrf.mxu0
      %v1316 = vadd.f32 %v938, %v1315
      %v1317 = vpop.f32.mrf.mxu0
      %v1318 = vadd.f32 %v934, %v1317
      %v1319 = vpop.f32.mrf.mxu0
      %v1320 = vadd.f32 %v938, %v1319
      %1321 = vmatprep.mubr.bf16.mxu0 0
      %1322 = vmatmul.mubr.bf16.gmra.mxu0 %v997
      %v1323 = vpop.f32.mrf.mxu0
      %v1324 = vadd.f32 %v934, %v1323
      %v1325 = vpop.f32.mrf.mxu0
      %v1326 = vadd.f32 %v938, %v1325
      %v1327 = vpop.f32.mrf.mxu0
      %v1328 = vadd.f32 %v934, %v1327
      %v1329 = vpop.f32.mrf.mxu0
      %v1330 = vadd.f32 %v938, %v1329
      %1331 = vmatprep.mubr.bf16.mxu0 0
      %1332 = vmatmul.mubr.bf16.gmra.mxu0 %v998
      %v1333 = vpop.f32.mrf.mxu0
      %v1334 = vadd.f32 %v934, %v1333
      %v1335 = vpop.f32.mrf.mxu0
      %v1336 = vadd.f32 %v938, %v1335
      %v1337 = vpop.f32.mrf.mxu0
      %v1338 = vadd.f32 %v934, %v1337
      %v1339 = vpop.f32.mrf.mxu0
      %v1340 = vadd.f32 %v938, %v1339
      %1341 = vmatprep.mubr.bf16.mxu0 0
      %1342 = vmatmul.mubr.bf16.gmra.mxu0 %v999
      %v1343 = vpop.f32.mrf.mxu0
      %v1344 = vadd.f32 %v934, %v1343
      %v1345 = vpop.f32.mrf.mxu0
      %v1346 = vadd.f32 %v938, %v1345
      %v1347 = vpop.f32.mrf.mxu0
      %v1348 = vadd.f32 %v934, %v1347
      %v1349 = vpop.f32.mrf.mxu0
      %v1350 = vadd.f32 %v938, %v1349
      %1351 = vmatprep.mubr.bf16.mxu0 0
      %1352 = vmatmul.mubr.bf16.gmra.mxu0 %v1000
      %v1353 = vpop.f32.mrf.mxu0
      %v1354 = vadd.f32 %v934, %v1353
      %v1355 = vpop.f32.mrf.mxu0
      %v1356 = vadd.f32 %v938, %v1355
      %v1357 = vpop.f32.mrf.mxu0
      %v1358 = vadd.f32 %v934, %v1357
      %v1359 = vpop.f32.mrf.mxu0
      %v1360 = vadd.f32 %v938, %v1359
      %1361 = vdwg.mxu0
      %1362 = vmatprep.subr.bf16.mxu0 %v1198
      %1363 = vmatpush1.bf16.msra.mxu0 %v1197
      %1364 = vmatprep.subr.bf16.mxu0 %v1192
      %1365 = vmatpush1.bf16.msra.mxu0 %v1191
      %1366 = vmatprep.subr.bf16.mxu0 %v1186
      %1367 = vmatpush1.bf16.msra.mxu0 %v1185
      %1368 = vmatprep.subr.bf16.mxu0 %v1180
      %1369 = vmatpush1.bf16.msra.mxu0 %v1179
      %1370 = vmatprep.subr.bf16.mxu0 %v1174
      %1371 = vmatpush1.bf16.msra.mxu0 %v1173
      %1372 = vmatprep.subr.bf16.mxu0 %v1168
      %1373 = vmatpush1.bf16.msra.mxu0 %v1167
      %1374 = vmatprep.subr.bf16.mxu0 %v1162
      %1375 = vmatpush1.bf16.msra.mxu0 %v1161
      %1376 = vmatprep.subr.bf16.mxu0 %v1156
      %1377 = vmatpush1.bf16.msra.mxu0 %v1155
      %1378 = vmatprep.subr.bf16.mxu0 0
      %1379 = vmatpush2.bf16.msra.mxu0 0
      %1380 = vmatprep.subr.bf16.mxu0 0
      %1381 = vmatpush2.bf16.msra.mxu0 0
      %1382 = vmatprep.subr.bf16.mxu0 0
      %1383 = vmatpush2.bf16.msra.mxu0 0
      %1384 = vmatprep.subr.bf16.mxu0 0
      %1385 = vmatpush2.bf16.msra.mxu0 0
      %1386 = vmatprep.subr.bf16.mxu0 0
      %1387 = vmatpush2.bf16.msra.mxu0 0
      %1388 = vmatprep.subr.bf16.mxu0 0
      %1389 = vmatpush2.bf16.msra.mxu0 0
      %1390 = vmatprep.subr.bf16.mxu0 0
      %1391 = vmatpush2.bf16.msra.mxu0 0
      %1392 = vmatprep.subr.bf16.mxu0 0
      %1393 = vmatpush2.bf16.msra.mxu0 0
      %1394 = vmatprep.mubr.bf16.mxu0 0
      %1395 = vmatmul.mubr.bf16.gmra.mxu0 %v993
      %v1396 = vpop.f32.mrf.mxu0
      %v1397 = vadd.f32 %v942, %v1396
      %v1398 = vpop.f32.mrf.mxu0
      %v1399 = vadd.f32 %v946, %v1398
      %v1400 = vpop.f32.mrf.mxu0
      %v1401 = vadd.f32 %v942, %v1400
      %v1402 = vpop.f32.mrf.mxu0
      %v1403 = vadd.f32 %v946, %v1402
      %1404 = vmatprep.mubr.bf16.mxu0 0
      %1405 = vmatmul.mubr.bf16.gmra.mxu0 %v994
      %v1406 = vpop.f32.mrf.mxu0
      %v1407 = vadd.f32 %v942, %v1406
      %v1408 = vpop.f32.mrf.mxu0
      %v1409 = vadd.f32 %v946, %v1408
      %v1410 = vpop.f32.mrf.mxu0
      %v1411 = vadd.f32 %v942, %v1410
      %v1412 = vpop.f32.mrf.mxu0
      %v1413 = vadd.f32 %v946, %v1412
      %1414 = vmatprep.mubr.bf16.mxu0 0
      %1415 = vmatmul.mubr.bf16.gmra.mxu0 %v995
      %v1416 = vpop.f32.mrf.mxu0
      %v1417 = vadd.f32 %v942, %v1416
      %v1418 = vpop.f32.mrf.mxu0
      %v1419 = vadd.f32 %v946, %v1418
      %v1420 = vpop.f32.mrf.mxu0
      %v1421 = vadd.f32 %v942, %v1420
      %v1422 = vpop.f32.mrf.mxu0
      %v1423 = vadd.f32 %v946, %v1422
      %1424 = vmatprep.mubr.bf16.mxu0 0
      %1425 = vmatmul.mubr.bf16.gmra.mxu0 %v996
      %v1426 = vpop.f32.mrf.mxu0
      %v1427 = vadd.f32 %v942, %v1426
      %v1428 = vpop.f32.mrf.mxu0
      %v1429 = vadd.f32 %v946, %v1428
      %v1430 = vpop.f32.mrf.mxu0
      %v1431 = vadd.f32 %v942, %v1430
      %v1432 = vpop.f32.mrf.mxu0
      %v1433 = vadd.f32 %v946, %v1432
      %1434 = vmatprep.mubr.bf16.mxu0 0
      %1435 = vmatmul.mubr.bf16.gmra.mxu0 %v997
      %v1436 = vpop.f32.mrf.mxu0
      %v1437 = vadd.f32 %v942, %v1436
      %v1438 = vpop.f32.mrf.mxu0
      %v1439 = vadd.f32 %v946, %v1438
      %v1440 = vpop.f32.mrf.mxu0
      %v1441 = vadd.f32 %v942, %v1440
      %v1442 = vpop.f32.mrf.mxu0
      %v1443 = vadd.f32 %v946, %v1442
      %1444 = vmatprep.mubr.bf16.mxu0 0
      %1445 = vmatmul.mubr.bf16.gmra.mxu0 %v998
      %v1446 = vpop.f32.mrf.mxu0
      %v1447 = vadd.f32 %v942, %v1446
      %v1448 = vpop.f32.mrf.mxu0
      %v1449 = vadd.f32 %v946, %v1448
      %v1450 = vpop.f32.mrf.mxu0
      %v1451 = vadd.f32 %v942, %v1450
      %v1452 = vpop.f32.mrf.mxu0
      %v1453 = vadd.f32 %v946, %v1452
      %1454 = vmatprep.mubr.bf16.mxu0 0
      %1455 = vmatmul.mubr.bf16.gmra.mxu0 %v999
      %v1456 = vpop.f32.mrf.mxu0
      %v1457 = vadd.f32 %v942, %v1456
      %v1458 = vpop.f32.mrf.mxu0
      %v1459 = vadd.f32 %v946, %v1458
      %v1460 = vpop.f32.mrf.mxu0
      %v1461 = vadd.f32 %v942, %v1460
      %v1462 = vpop.f32.mrf.mxu0
      %v1463 = vadd.f32 %v946, %v1462
      %1464 = vmatprep.mubr.bf16.mxu0 0
      %1465 = vmatmul.mubr.bf16.gmra.mxu0 %v1000
      %v1466 = vpop.f32.mrf.mxu0
      %v1467 = vadd.f32 %v942, %v1466
      %v1468 = vpop.f32.mrf.mxu0
      %v1469 = vadd.f32 %v946, %v1468
      %v1470 = vpop.f32.mrf.mxu0
      %v1471 = vadd.f32 %v942, %v1470
      %v1472 = vpop.f32.mrf.mxu0
      %v1473 = vadd.f32 %v946, %v1472
      %1474 = vdwg.mxu0
      %1475 = vmatprep.subr.bf16.mxu0 %v1200
      %1476 = vmatpush1.bf16.msra.mxu0 %v1199
      %1477 = vmatprep.subr.bf16.mxu0 %v1194
      %1478 = vmatpush1.bf16.msra.mxu0 %v1193
      %1479 = vmatprep.subr.bf16.mxu0 %v1188
      %1480 = vmatpush1.bf16.msra.mxu0 %v1187
      %1481 = vmatprep.subr.bf16.mxu0 %v1182
      %1482 = vmatpush1.bf16.msra.mxu0 %v1181
      %1483 = vmatprep.subr.bf16.mxu0 %v1176
      %1484 = vmatpush1.bf16.msra.mxu0 %v1175
      %1485 = vmatprep.subr.bf16.mxu0 %v1170
      %1486 = vmatpush1.bf16.msra.mxu0 %v1169
      %1487 = vmatprep.subr.bf16.mxu0 %v1164
      %1488 = vmatpush1.bf16.msra.mxu0 %v1163
      %1489 = vmatprep.subr.bf16.mxu0 %v1158
      %1490 = vmatpush1.bf16.msra.mxu0 %v1157
      %1491 = vmatprep.subr.bf16.mxu0 0
      %1492 = vmatpush2.bf16.msra.mxu0 0
      %1493 = vmatprep.subr.bf16.mxu0 0
      %1494 = vmatpush2.bf16.msra.mxu0 0
      %1495 = vmatprep.subr.bf16.mxu0 0
      %1496 = vmatpush2.bf16.msra.mxu0 0
      %1497 = vmatprep.subr.bf16.mxu0 0
      %1498 = vmatpush2.bf16.msra.mxu0 0
      %1499 = vmatprep.subr.bf16.mxu0 0
      %1500 = vmatpush2.bf16.msra.mxu0 0
      %1501 = vmatprep.subr.bf16.mxu0 0
      %1502 = vmatpush2.bf16.msra.mxu0 0
      %1503 = vmatprep.subr.bf16.mxu0 0
      %1504 = vmatpush2.bf16.msra.mxu0 0
      %1505 = vmatprep.subr.bf16.mxu0 0
      %1506 = vmatpush2.bf16.msra.mxu0 0
      %1507 = vmatprep.mubr.bf16.mxu0 0
      %1508 = vmatmul.mubr.bf16.gmra.mxu0 %v993
      %v1509 = vpop.f32.mrf.mxu0
      %v1510 = vadd.f32 %v950, %v1509
      %v1511 = vpop.f32.mrf.mxu0
      %v1512 = vadd.f32 %v954, %v1511
      %v1513 = vpop.f32.mrf.mxu0
      %v1514 = vadd.f32 %v950, %v1513
      %v1515 = vpop.f32.mrf.mxu0
      %v1516 = vadd.f32 %v954, %v1515
      %1517 = vmatprep.mubr.bf16.mxu0 0
      %1518 = vmatmul.mubr.bf16.gmra.mxu0 %v994
      %v1519 = vpop.f32.mrf.mxu0
      %v1520 = vadd.f32 %v950, %v1519
      %v1521 = vpop.f32.mrf.mxu0
      %v1522 = vadd.f32 %v954, %v1521
      %v1523 = vpop.f32.mrf.mxu0
      %v1524 = vadd.f32 %v950, %v1523
      %v1525 = vpop.f32.mrf.mxu0
      %v1526 = vadd.f32 %v954, %v1525
      %1527 = vmatprep.mubr.bf16.mxu0 0
      %1528 = vmatmul.mubr.bf16.gmra.mxu0 %v995
      %v1529 = vpop.f32.mrf.mxu0
      %v1530 = vadd.f32 %v950, %v1529
      %v1531 = vpop.f32.mrf.mxu0
      %v1532 = vadd.f32 %v954, %v1531
      %v1533 = vpop.f32.mrf.mxu0
      %v1534 = vadd.f32 %v950, %v1533
      %v1535 = vpop.f32.mrf.mxu0
      %v1536 = vadd.f32 %v954, %v1535
      %1537 = vmatprep.mubr.bf16.mxu0 0
      %1538 = vmatmul.mubr.bf16.gmra.mxu0 %v996
      %v1539 = vpop.f32.mrf.mxu0
      %v1540 = vadd.f32 %v950, %v1539
      %v1541 = vpop.f32.mrf.mxu0
      %v1542 = vadd.f32 %v954, %v1541
      %v1543 = vpop.f32.mrf.mxu0
      %v1544 = vadd.f32 %v950, %v1543
      %v1545 = vpop.f32.mrf.mxu0
      %v1546 = vadd.f32 %v954, %v1545
      %1547 = vmatprep.mubr.bf16.mxu0 0
      %1548 = vmatmul.mubr.bf16.gmra.mxu0 %v997
      %v1549 = vpop.f32.mrf.mxu0
      %v1550 = vadd.f32 %v950, %v1549
      %v1551 = vpop.f32.mrf.mxu0
      %v1552 = vadd.f32 %v954, %v1551
      %v1553 = vpop.f32.mrf.mxu0
      %v1554 = vadd.f32 %v950, %v1553
      %v1555 = vpop.f32.mrf.mxu0
      %v1556 = vadd.f32 %v954, %v1555
      %1557 = vmatprep.mubr.bf16.mxu0 0
      %1558 = vmatmul.mubr.bf16.gmra.mxu0 %v998
      %v1559 = vpop.f32.mrf.mxu0
      %v1560 = vadd.f32 %v950, %v1559
      %v1561 = vpop.f32.mrf.mxu0
      %v1562 = vadd.f32 %v954, %v1561
      %v1563 = vpop.f32.mrf.mxu0
      %v1564 = vadd.f32 %v950, %v1563
      %v1565 = vpop.f32.mrf.mxu0
      %v1566 = vadd.f32 %v954, %v1565
      %1567 = vmatprep.mubr.bf16.mxu0 0
      %1568 = vmatmul.mubr.bf16.gmra.mxu0 %v999
      %v1569 = vpop.f32.mrf.mxu0
      %v1570 = vadd.f32 %v950, %v1569
      %v1571 = vpop.f32.mrf.mxu0
      %v1572 = vadd.f32 %v954, %v1571
      %v1573 = vpop.f32.mrf.mxu0
      %v1574 = vadd.f32 %v950, %v1573
      %v1575 = vpop.f32.mrf.mxu0
      %v1576 = vadd.f32 %v954, %v1575
      %1577 = vmatprep.mubr.bf16.mxu0 0
      %1578 = vmatmul.mubr.bf16.gmra.mxu0 %v1000
      %v1579 = vpop.f32.mrf.mxu0
      %v1580 = vadd.f32 %v950, %v1579
      %v1581 = vpop.f32.mrf.mxu0
      %v1582 = vadd.f32 %v954, %v1581
      %v1583 = vpop.f32.mrf.mxu0
      %v1584 = vadd.f32 %v950, %v1583
      %v1585 = vpop.f32.mrf.mxu0
      %v1586 = vadd.f32 %v954, %v1585
      %1587 = vdwg.mxu0
      %v1588 = vmax.f32 %v1284, 0.0
      %v1589 = vmax.f32 %v1286, 0.0
      %v1590 = vmax.f32 %v1397, 0.0
      %v1591 = vmax.f32 %v1399, 0.0
      %v1592 = vmax.f32 %v1510, 0.0
      %v1593 = vmax.f32 %v1512, 0.0
      %v1594 = vmax.f32 %v1288, 0.0
      %v1595 = vmax.f32 %v1290, 0.0
      %v1596 = vmax.f32 %v1401, 0.0
      %v1597 = vmax.f32 %v1403, 0.0
      %v1598 = vmax.f32 %v1514, 0.0
      %v1599 = vmax.f32 %v1516, 0.0
      %v1600 = vmax.f32 %v1294, 0.0
      %v1601 = vmax.f32 %v1296, 0.0
      %v1602 = vmax.f32 %v1407, 0.0
      %v1603 = vmax.f32 %v1409, 0.0
      %v1604 = vmax.f32 %v1520, 0.0
      %v1605 = vmax.f32 %v1522, 0.0
      %v1606 = vmax.f32 %v1298, 0.0
      %v1607 = vmax.f32 %v1300, 0.0
      %v1608 = vmax.f32 %v1411, 0.0
      %v1609 = vmax.f32 %v1413, 0.0
      %v1610 = vmax.f32 %v1524, 0.0
      %v1611 = vmax.f32 %v1526, 0.0
      %v1612 = vmax.f32 %v1304, 0.0
      %v1613 = vmax.f32 %v1306, 0.0
      %v1614 = vmax.f32 %v1417, 0.0
      %v1615 = vmax.f32 %v1419, 0.0
      %v1616 = vmax.f32 %v1530, 0.0
      %v1617 = vmax.f32 %v1532, 0.0
      %v1618 = vmax.f32 %v1308, 0.0
      %v1619 = vmax.f32 %v1310, 0.0
      %v1620 = vmax.f32 %v1421, 0.0
      %v1621 = vmax.f32 %v1423, 0.0
      %v1622 = vmax.f32 %v1534, 0.0
      %v1623 = vmax.f32 %v1536, 0.0
      %v1624 = vmax.f32 %v1314, 0.0
      %v1625 = vmax.f32 %v1316, 0.0
      %v1626 = vmax.f32 %v1427, 0.0
      %v1627 = vmax.f32 %v1429, 0.0
      %v1628 = vmax.f32 %v1540, 0.0
      %v1629 = vmax.f32 %v1542, 0.0
      %v1630 = vmax.f32 %v1318, 0.0
      %v1631 = vmax.f32 %v1320, 0.0
      %v1632 = vmax.f32 %v1431, 0.0
      %v1633 = vmax.f32 %v1433, 0.0
      %v1634 = vmax.f32 %v1544, 0.0
      %v1635 = vmax.f32 %v1546, 0.0
      %v1636 = vmax.f32 %v1324, 0.0
      %v1637 = vmax.f32 %v1326, 0.0
      %v1638 = vmax.f32 %v1437, 0.0
      %v1639 = vmax.f32 %v1439, 0.0
      %v1640 = vmax.f32 %v1550, 0.0
      %v1641 = vmax.f32 %v1552, 0.0
      %v1642 = vmax.f32 %v1328, 0.0
      %v1643 = vmax.f32 %v1330, 0.0
      %v1644 = vmax.f32 %v1441, 0.0
      %v1645 = vmax.f32 %v1443, 0.0
      %v1646 = vmax.f32 %v1554, 0.0
      %v1647 = vmax.f32 %v1556, 0.0
      %v1648 = vmax.f32 %v1334, 0.0
      %v1649 = vmax.f32 %v1336, 0.0
      %v1650 = vmax.f32 %v1447, 0.0
      %v1651 = vmax.f32 %v1449, 0.0
      %v1652 = vmax.f32 %v1560, 0.0
      %v1653 = vmax.f32 %v1562, 0.0
      %v1654 = vmax.f32 %v1338, 0.0
      %v1655 = vmax.f32 %v1340, 0.0
      %v1656 = vmax.f32 %v1451, 0.0
      %v1657 = vmax.f32 %v1453, 0.0
      %v1658 = vmax.f32 %v1564, 0.0
      %v1659 = vmax.f32 %v1566, 0.0
      %v1660 = vmax.f32 %v1344, 0.0
      %v1661 = vmax.f32 %v1346, 0.0
      %v1662 = vmax.f32 %v1457, 0.0
      %v1663 = vmax.f32 %v1459, 0.0
      %v1664 = vmax.f32 %v1570, 0.0
      %v1665 = vmax.f32 %v1572, 0.0
      %v1666 = vmax.f32 %v1348, 0.0
      %v1667 = vmax.f32 %v1350, 0.0
      %v1668 = vmax.f32 %v1461, 0.0
      %v1669 = vmax.f32 %v1463, 0.0
      %v1670 = vmax.f32 %v1574, 0.0
      %v1671 = vmax.f32 %v1576, 0.0
      %v1672 = vmax.f32 %v1354, 0.0
      %v1673 = vmax.f32 %v1356, 0.0
      %v1674 = vmax.f32 %v1467, 0.0
      %v1675 = vmax.f32 %v1469, 0.0
      %v1676 = vmax.f32 %v1580, 0.0
      %v1677 = vmax.f32 %v1582, 0.0
      %v1678 = vmax.f32 %v1358, 0.0
      %v1679 = vmax.f32 %v1360, 0.0
      %v1680 = vmax.f32 %v1471, 0.0
      %v1681 = vmax.f32 %v1473, 0.0
      %v1682 = vmax.f32 %v1584, 0.0
      %v1683 = vmax.f32 %v1586, 0.0
      %v1684 = vlaneseq
      %v1685 = vshrl.u32 %v1684, 7
      %v1686 = vadd.s32 %v1685, 8
      %v1687 = vadd.s32 %v1685, 16
      %v1688 = vadd.s32 %v1685, 24
      %v1689 = vadd.s32 %v1685, 32
      %v1690 = vadd.s32 %v1685, 40
      %v1691 = vadd.s32 %v1685, 48
      %v1692 = vadd.s32 %v1685, 56
      %v1693 = vadd.s32 %v1685, 64
      %v1694 = vadd.s32 %v1685, 72
      %v1695 = vadd.s32 %v1685, 80
      %v1696 = vadd.s32 %v1685, 88
      %v1697 = vadd.s32 %v1685, 96
      %v1698 = vadd.s32 %v1685, 104
      %v1699 = vadd.s32 %v1685, 112
      %v1700 = vadd.s32 %v1685, 120
      %vm1701 = vcmp.lt.s32.totalorder %v1685, 0
      %v1702 = vsub.s32 0, %v1685
      %v1703 = vsel %vm1701, %v1702, %v1685
      %v1704 = vshrl.u32 %v1703, 4
      %v1705 = vand.u32 %v1703, 15
      %v1706 = vsub.s32 0, %v1705
      %v1707 = vsel %vm1701, %v1706, %v1705
      %vm1708 = vcmp.lt.s32.totalorder %v1686, 0
      %v1709 = vsub.s32 0, %v1686
      %v1710 = vsel %vm1708, %v1709, %v1686
      %v1711 = vshrl.u32 %v1710, 4
      %v1712 = vand.u32 %v1710, 15
      %v1713 = vsub.s32 0, %v1712
      %v1714 = vsel %vm1708, %v1713, %v1712
      %vm1715 = vcmp.ne.s32.totalorder %v1707, 0
      %vm1716 = vcmp.ne.s32.totalorder %v1714, 0
      %vm1717 = vcmp.lt.s32.totalorder %v1707, 0
      %vm1718 = vcmp.lt.s32.totalorder %v1714, 0
      %vm1719 = vmand %vm1717, %vm1715
      %vm1720 = vmand %vm1718, %vm1716
      %v1721 = vadd.s32 %v1707, 16
      %v1722 = vadd.s32 %v1714, 16
      %v1723 = vsel %vm1719, %v1721, %v1707
      %v1724 = vsel %vm1720, %v1722, %v1714
      %vm1725 = vcmp.lt.s32.totalorder %v1723, 10
      %vm1726 = vcmp.lt.s32.totalorder %v1724, 10
      %v1727 = vsel %vm1725, 1, 0
      %v1728 = vsel %vm1726, 1, 0
      %vm1729 = vcmp.eq.s32.totalorder %v1727, 1
      %vm1730 = vcmp.eq.s32.totalorder %v1728, 1
      %v1731 = vsel %vm1729, %v853, 0.0
      %v1732 = vsel %vm1729, %v854, 0.0
      %v1733 = vsel %vm1729, %v855, 0.0
      %v1734 = vsel %vm1729, %v856, 0.0
      %v1735 = vsel %vm1729, %v857, 0.0
      %v1736 = vsel %vm1729, %v858, 0.0
      %v1737 = vsel %vm1730, %v859, 0.0
      %v1738 = vsel %vm1730, %v860, 0.0
      %v1739 = vsel %vm1730, %v861, 0.0
      %v1740 = vsel %vm1730, %v862, 0.0
      %v1741 = vsel %vm1730, %v863, 0.0
      %v1742 = vsel %vm1730, %v864, 0.0
      %vm1743 = vcmp.lt.s32.totalorder %v1685, 0
      %v1744 = vsub.s32 0, %v1685
      %v1745 = vsel %vm1743, %v1744, %v1685
      %v1746 = vshrl.u32 %v1745, 7
      %v1747 = vand.u32 %v1745, 127
      %v1748 = vsub.s32 0, %v1747
      %v1749 = vsel %vm1743, %v1748, %v1747
      %vm1750 = vcmp.lt.s32.totalorder %v1686, 0
      %v1751 = vsub.s32 0, %v1686
      %v1752 = vsel %vm1750, %v1751, %v1686
      %v1753 = vshrl.u32 %v1752, 7
      %v1754 = vand.u32 %v1752, 127
      %v1755 = vsub.s32 0, %v1754
      %v1756 = vsel %vm1750, %v1755, %v1754
      %vm1757 = vcmp.lt.s32.totalorder %v1687, 0
      %v1758 = vsub.s32 0, %v1687
      %v1759 = vsel %vm1757, %v1758, %v1687
      %v1760 = vshrl.u32 %v1759, 7
      %v1761 = vand.u32 %v1759, 127
      %v1762 = vsub.s32 0, %v1761
      %v1763 = vsel %vm1757, %v1762, %v1761
      %vm1764 = vcmp.lt.s32.totalorder %v1688, 0
      %v1765 = vsub.s32 0, %v1688
      %v1766 = vsel %vm1764, %v1765, %v1688
      %v1767 = vshrl.u32 %v1766, 7
      %v1768 = vand.u32 %v1766, 127
      %v1769 = vsub.s32 0, %v1768
      %v1770 = vsel %vm1764, %v1769, %v1768
      %vm1771 = vcmp.lt.s32.totalorder %v1689, 0
      %v1772 = vsub.s32 0, %v1689
      %v1773 = vsel %vm1771, %v1772, %v1689
      %v1774 = vshrl.u32 %v1773, 7
      %v1775 = vand.u32 %v1773, 127
      %v1776 = vsub.s32 0, %v1775
      %v1777 = vsel %vm1771, %v1776, %v1775
      %vm1778 = vcmp.lt.s32.totalorder %v1690, 0
      %v1779 = vsub.s32 0, %v1690
      %v1780 = vsel %vm1778, %v1779, %v1690
      %v1781 = vshrl.u32 %v1780, 7
      %v1782 = vand.u32 %v1780, 127
      %v1783 = vsub.s32 0, %v1782
      %v1784 = vsel %vm1778, %v1783, %v1782
      %vm1785 = vcmp.lt.s32.totalorder %v1691, 0
      %v1786 = vsub.s32 0, %v1691
      %v1787 = vsel %vm1785, %v1786, %v1691
      %v1788 = vshrl.u32 %v1787, 7
      %v1789 = vand.u32 %v1787, 127
      %v1790 = vsub.s32 0, %v1789
      %v1791 = vsel %vm1785, %v1790, %v1789
      %vm1792 = vcmp.lt.s32.totalorder %v1692, 0
      %v1793 = vsub.s32 0, %v1692
      %v1794 = vsel %vm1792, %v1793, %v1692
      %v1795 = vshrl.u32 %v1794, 7
      %v1796 = vand.u32 %v1794, 127
      %v1797 = vsub.s32 0, %v1796
      %v1798 = vsel %vm1792, %v1797, %v1796
      %vm1799 = vcmp.lt.s32.totalorder %v1693, 0
      %v1800 = vsub.s32 0, %v1693
      %v1801 = vsel %vm1799, %v1800, %v1693
      %v1802 = vshrl.u32 %v1801, 7
      %v1803 = vand.u32 %v1801, 127
      %v1804 = vsub.s32 0, %v1803
      %v1805 = vsel %vm1799, %v1804, %v1803
      %vm1806 = vcmp.lt.s32.totalorder %v1694, 0
      %v1807 = vsub.s32 0, %v1694
      %v1808 = vsel %vm1806, %v1807, %v1694
      %v1809 = vshrl.u32 %v1808, 7
      %v1810 = vand.u32 %v1808, 127
      %v1811 = vsub.s32 0, %v1810
      %v1812 = vsel %vm1806, %v1811, %v1810
      %vm1813 = vcmp.lt.s32.totalorder %v1695, 0
      %v1814 = vsub.s32 0, %v1695
      %v1815 = vsel %vm1813, %v1814, %v1695
      %v1816 = vshrl.u32 %v1815, 7
      %v1817 = vand.u32 %v1815, 127
      %v1818 = vsub.s32 0, %v1817
      %v1819 = vsel %vm1813, %v1818, %v1817
      %vm1820 = vcmp.lt.s32.totalorder %v1696, 0
      %v1821 = vsub.s32 0, %v1696
      %v1822 = vsel %vm1820, %v1821, %v1696
      %v1823 = vshrl.u32 %v1822, 7
      %v1824 = vand.u32 %v1822, 127
      %v1825 = vsub.s32 0, %v1824
      %v1826 = vsel %vm1820, %v1825, %v1824
      %vm1827 = vcmp.lt.s32.totalorder %v1697, 0
      %v1828 = vsub.s32 0, %v1697
      %v1829 = vsel %vm1827, %v1828, %v1697
      %v1830 = vshrl.u32 %v1829, 7
      %v1831 = vand.u32 %v1829, 127
      %v1832 = vsub.s32 0, %v1831
      %v1833 = vsel %vm1827, %v1832, %v1831
      %vm1834 = vcmp.lt.s32.totalorder %v1698, 0
      %v1835 = vsub.s32 0, %v1698
      %v1836 = vsel %vm1834, %v1835, %v1698
      %v1837 = vshrl.u32 %v1836, 7
      %v1838 = vand.u32 %v1836, 127
      %v1839 = vsub.s32 0, %v1838
      %v1840 = vsel %vm1834, %v1839, %v1838
      %vm1841 = vcmp.lt.s32.totalorder %v1699, 0
      %v1842 = vsub.s32 0, %v1699
      %v1843 = vsel %vm1841, %v1842, %v1699
      %v1844 = vshrl.u32 %v1843, 7
      %v1845 = vand.u32 %v1843, 127
      %v1846 = vsub.s32 0, %v1845
      %v1847 = vsel %vm1841, %v1846, %v1845
      %vm1848 = vcmp.lt.s32.totalorder %v1700, 0
      %v1849 = vsub.s32 0, %v1700
      %v1850 = vsel %vm1848, %v1849, %v1700
      %v1851 = vshrl.u32 %v1850, 7
      %v1852 = vand.u32 %v1850, 127
      %v1853 = vsub.s32 0, %v1852
      %v1854 = vsel %vm1848, %v1853, %v1852
      %vm1855 = vcmp.ne.s32.totalorder %v1749, 0
      %vm1856 = vcmp.ne.s32.totalorder %v1756, 0
      %vm1857 = vcmp.ne.s32.totalorder %v1763, 0
      %vm1858 = vcmp.ne.s32.totalorder %v1770, 0
      %vm1859 = vcmp.ne.s32.totalorder %v1777, 0
      %vm1860 = vcmp.ne.s32.totalorder %v1784, 0
      %vm1861 = vcmp.ne.s32.totalorder %v1791, 0
      %vm1862 = vcmp.ne.s32.totalorder %v1798, 0
      %vm1863 = vcmp.ne.s32.totalorder %v1805, 0
      %vm1864 = vcmp.ne.s32.totalorder %v1812, 0
      %vm1865 = vcmp.ne.s32.totalorder %v1819, 0
      %vm1866 = vcmp.ne.s32.totalorder %v1826, 0
      %vm1867 = vcmp.ne.s32.totalorder %v1833, 0
      %vm1868 = vcmp.ne.s32.totalorder %v1840, 0
      %vm1869 = vcmp.ne.s32.totalorder %v1847, 0
      %vm1870 = vcmp.ne.s32.totalorder %v1854, 0
      %vm1871 = vcmp.lt.s32.totalorder %v1749, 0
      %vm1872 = vcmp.lt.s32.totalorder %v1756, 0
      %vm1873 = vcmp.lt.s32.totalorder %v1763, 0
      %vm1874 = vcmp.lt.s32.totalorder %v1770, 0
      %vm1875 = vcmp.lt.s32.totalorder %v1777, 0
      %vm1876 = vcmp.lt.s32.totalorder %v1784, 0
      %vm1877 = vcmp.lt.s32.totalorder %v1791, 0
      %vm1878 = vcmp.lt.s32.totalorder %v1798, 0
      %vm1879 = vcmp.lt.s32.totalorder %v1805, 0
      %vm1880 = vcmp.lt.s32.totalorder %v1812, 0
      %vm1881 = vcmp.lt.s32.totalorder %v1819, 0
      %vm1882 = vcmp.lt.s32.totalorder %v1826, 0
      %vm1883 = vcmp.lt.s32.totalorder %v1833, 0
      %vm1884 = vcmp.lt.s32.totalorder %v1840, 0
      %vm1885 = vcmp.lt.s32.totalorder %v1847, 0
      %vm1886 = vcmp.lt.s32.totalorder %v1854, 0
      %vm1887 = vmand %vm1871, %vm1855
      %vm1888 = vmand %vm1872, %vm1856
      %vm1889 = vmand %vm1873, %vm1857
      %vm1890 = vmand %vm1874, %vm1858
      %vm1891 = vmand %vm1875, %vm1859
      %vm1892 = vmand %vm1876, %vm1860
      %vm1893 = vmand %vm1877, %vm1861
      %vm1894 = vmand %vm1878, %vm1862
      %vm1895 = vmand %vm1879, %vm1863
      %vm1896 = vmand %vm1880, %vm1864
      %vm1897 = vmand %vm1881, %vm1865
      %vm1898 = vmand %vm1882, %vm1866
      %vm1899 = vmand %vm1883, %vm1867
      %vm1900 = vmand %vm1884, %vm1868
      %vm1901 = vmand %vm1885, %vm1869
      %vm1902 = vmand %vm1886, %vm1870
      %v1903 = vadd.s32 %v1749, 128
      %v1904 = vadd.s32 %v1756, 128
      %v1905 = vadd.s32 %v1763, 128
      %v1906 = vadd.s32 %v1770, 128
      %v1907 = vadd.s32 %v1777, 128
      %v1908 = vadd.s32 %v1784, 128
      %v1909 = vadd.s32 %v1791, 128
      %v1910 = vadd.s32 %v1798, 128
      %v1911 = vadd.s32 %v1805, 128
      %v1912 = vadd.s32 %v1812, 128
      %v1913 = vadd.s32 %v1819, 128
      %v1914 = vadd.s32 %v1826, 128
      %v1915 = vadd.s32 %v1833, 128
      %v1916 = vadd.s32 %v1840, 128
      %v1917 = vadd.s32 %v1847, 128
      %v1918 = vadd.s32 %v1854, 128
      %v1919 = vsel %vm1887, %v1903, %v1749
      %v1920 = vsel %vm1888, %v1904, %v1756
      %v1921 = vsel %vm1889, %v1905, %v1763
      %v1922 = vsel %vm1890, %v1906, %v1770
      %v1923 = vsel %vm1891, %v1907, %v1777
      %v1924 = vsel %vm1892, %v1908, %v1784
      %v1925 = vsel %vm1893, %v1909, %v1791
      %v1926 = vsel %vm1894, %v1910, %v1798
      %v1927 = vsel %vm1895, %v1911, %v1805
      %v1928 = vsel %vm1896, %v1912, %v1812
      %v1929 = vsel %vm1897, %v1913, %v1819
      %v1930 = vsel %vm1898, %v1914, %v1826
      %v1931 = vsel %vm1899, %v1915, %v1833
      %v1932 = vsel %vm1900, %v1916, %v1840
      %v1933 = vsel %vm1901, %v1917, %v1847
      %v1934 = vsel %vm1902, %v1918, %v1854
      %vm1935 = vcmp.lt.s32.totalorder %v1919, 10
      %vm1936 = vcmp.lt.s32.totalorder %v1920, 10
      %vm1937 = vcmp.lt.s32.totalorder %v1921, 10
      %vm1938 = vcmp.lt.s32.totalorder %v1922, 10
      %vm1939 = vcmp.lt.s32.totalorder %v1923, 10
      %vm1940 = vcmp.lt.s32.totalorder %v1924, 10
      %vm1941 = vcmp.lt.s32.totalorder %v1925, 10
      %vm1942 = vcmp.lt.s32.totalorder %v1926, 10
      %vm1943 = vcmp.lt.s32.totalorder %v1927, 10
      %vm1944 = vcmp.lt.s32.totalorder %v1928, 10
      %vm1945 = vcmp.lt.s32.totalorder %v1929, 10
      %vm1946 = vcmp.lt.s32.totalorder %v1930, 10
      %vm1947 = vcmp.lt.s32.totalorder %v1931, 10
      %vm1948 = vcmp.lt.s32.totalorder %v1932, 10
      %vm1949 = vcmp.lt.s32.totalorder %v1933, 10
      %vm1950 = vcmp.lt.s32.totalorder %v1934, 10
      %v1951 = vsel %vm1935, 1, 0
      %v1952 = vsel %vm1936, 1, 0
      %v1953 = vsel %vm1937, 1, 0
      %v1954 = vsel %vm1938, 1, 0
      %v1955 = vsel %vm1939, 1, 0
      %v1956 = vsel %vm1940, 1, 0
      %v1957 = vsel %vm1941, 1, 0
      %v1958 = vsel %vm1942, 1, 0
      %v1959 = vsel %vm1943, 1, 0
      %v1960 = vsel %vm1944, 1, 0
      %v1961 = vsel %vm1945, 1, 0
      %v1962 = vsel %vm1946, 1, 0
      %v1963 = vsel %vm1947, 1, 0
      %v1964 = vsel %vm1948, 1, 0
      %v1965 = vsel %vm1949, 1, 0
      %v1966 = vsel %vm1950, 1, 0
      %vm1967 = vcmp.eq.s32.totalorder %v1951, 1
      %vm1968 = vcmp.eq.s32.totalorder %v1952, 1
      %vm1969 = vcmp.eq.s32.totalorder %v1953, 1
      %vm1970 = vcmp.eq.s32.totalorder %v1954, 1
      %vm1971 = vcmp.eq.s32.totalorder %v1955, 1
      %vm1972 = vcmp.eq.s32.totalorder %v1956, 1
      %vm1973 = vcmp.eq.s32.totalorder %v1957, 1
      %vm1974 = vcmp.eq.s32.totalorder %v1958, 1
      %vm1975 = vcmp.eq.s32.totalorder %v1959, 1
      %vm1976 = vcmp.eq.s32.totalorder %v1960, 1
      %vm1977 = vcmp.eq.s32.totalorder %v1961, 1
      %vm1978 = vcmp.eq.s32.totalorder %v1962, 1
      %vm1979 = vcmp.eq.s32.totalorder %v1963, 1
      %vm1980 = vcmp.eq.s32.totalorder %v1964, 1
      %vm1981 = vcmp.eq.s32.totalorder %v1965, 1
      %vm1982 = vcmp.eq.s32.totalorder %v1966, 1
      %v1983 = vsel %vm1967, %v1588, 0.0
      %v1984 = vsel %vm1967, %v1589, 0.0
      %v1985 = vsel %vm1967, %v1590, 0.0
      %v1986 = vsel %vm1967, %v1591, 0.0
      %v1987 = vsel %vm1967, %v1592, 0.0
      %v1988 = vsel %vm1967, %v1593, 0.0
      %v1989 = vsel %vm1968, %v1594, 0.0
      %v1990 = vsel %vm1968, %v1595, 0.0
      %v1991 = vsel %vm1968, %v1596, 0.0
      %v1992 = vsel %vm1968, %v1597, 0.0
      %v1993 = vsel %vm1968, %v1598, 0.0
      %v1994 = vsel %vm1968, %v1599, 0.0
      %v1995 = vsel %vm1969, %v1600, 0.0
      %v1996 = vsel %vm1969, %v1601, 0.0
      %v1997 = vsel %vm1969, %v1602, 0.0
      %v1998 = vsel %vm1969, %v1603, 0.0
      %v1999 = vsel %vm1969, %v1604, 0.0
      %v2000 = vsel %vm1969, %v1605, 0.0
      %v2001 = vsel %vm1970, %v1606, 0.0
      %v2002 = vsel %vm1970, %v1607, 0.0
      %v2003 = vsel %vm1970, %v1608, 0.0
      %v2004 = vsel %vm1970, %v1609, 0.0
      %v2005 = vsel %vm1970, %v1610, 0.0
      %v2006 = vsel %vm1970, %v1611, 0.0
      %v2007 = vsel %vm1971, %v1612, 0.0
      %v2008 = vsel %vm1971, %v1613, 0.0
      %v2009 = vsel %vm1971, %v1614, 0.0
      %v2010 = vsel %vm1971, %v1615, 0.0
      %v2011 = vsel %vm1971, %v1616, 0.0
      %v2012 = vsel %vm1971, %v1617, 0.0
      %v2013 = vsel %vm1972, %v1618, 0.0
      %v2014 = vsel %vm1972, %v1619, 0.0
      %v2015 = vsel %vm1972, %v1620, 0.0
      %v2016 = vsel %vm1972, %v1621, 0.0
      %v2017 = vsel %vm1972, %v1622, 0.0
      %v2018 = vsel %vm1972, %v1623, 0.0
      %v2019 = vsel %vm1973, %v1624, 0.0
      %v2020 = vsel %vm1973, %v1625, 0.0
      %v2021 = vsel %vm1973, %v1626, 0.0
      %v2022 = vsel %vm1973, %v1627, 0.0
      %v2023 = vsel %vm1973, %v1628, 0.0
      %v2024 = vsel %vm1973, %v1629, 0.0
      %v2025 = vsel %vm1974, %v1630, 0.0
      %v2026 = vsel %vm1974, %v1631, 0.0
      %v2027 = vsel %vm1974, %v1632, 0.0
      %v2028 = vsel %vm1974, %v1633, 0.0
      %v2029 = vsel %vm1974, %v1634, 0.0
      %v2030 = vsel %vm1974, %v1635, 0.0
      %v2031 = vsel %vm1975, %v1636, 0.0
      %v2032 = vsel %vm1975, %v1637, 0.0
      %v2033 = vsel %vm1975, %v1638, 0.0
      %v2034 = vsel %vm1975, %v1639, 0.0
      %v2035 = vsel %vm1975, %v1640, 0.0
      %v2036 = vsel %vm1975, %v1641, 0.0
      %v2037 = vsel %vm1976, %v1642, 0.0
      %v2038 = vsel %vm1976, %v1643, 0.0
      %v2039 = vsel %vm1976, %v1644, 0.0
      %v2040 = vsel %vm1976, %v1645, 0.0
      %v2041 = vsel %vm1976, %v1646, 0.0
      %v2042 = vsel %vm1976, %v1647, 0.0
      %v2043 = vsel %vm1977, %v1648, 0.0
      %v2044 = vsel %vm1977, %v1649, 0.0
      %v2045 = vsel %vm1977, %v1650, 0.0
      %v2046 = vsel %vm1977, %v1651, 0.0
      %v2047 = vsel %vm1977, %v1652, 0.0
      %v2048 = vsel %vm1977, %v1653, 0.0
      %v2049 = vsel %vm1978, %v1654, 0.0
      %v2050 = vsel %vm1978, %v1655, 0.0
      %v2051 = vsel %vm1978, %v1656, 0.0
      %v2052 = vsel %vm1978, %v1657, 0.0
      %v2053 = vsel %vm1978, %v1658, 0.0
      %v2054 = vsel %vm1978, %v1659, 0.0
      %v2055 = vsel %vm1979, %v1660, 0.0
      %v2056 = vsel %vm1979, %v1661, 0.0
      %v2057 = vsel %vm1979, %v1662, 0.0
      %v2058 = vsel %vm1979, %v1663, 0.0
      %v2059 = vsel %vm1979, %v1664, 0.0
      %v2060 = vsel %vm1979, %v1665, 0.0
      %v2061 = vsel %vm1980, %v1666, 0.0
      %v2062 = vsel %vm1980, %v1667, 0.0
      %v2063 = vsel %vm1980, %v1668, 0.0
      %v2064 = vsel %vm1980, %v1669, 0.0
      %v2065 = vsel %vm1980, %v1670, 0.0
      %v2066 = vsel %vm1980, %v1671, 0.0
      %v2067 = vsel %vm1981, %v1672, 0.0
      %v2068 = vsel %vm1981, %v1673, 0.0
      %v2069 = vsel %vm1981, %v1674, 0.0
      %v2070 = vsel %vm1981, %v1675, 0.0
      %v2071 = vsel %vm1981, %v1676, 0.0
      %v2072 = vsel %vm1981, %v1677, 0.0
      %v2073 = vsel %vm1982, %v1678, 0.0
      %v2074 = vsel %vm1982, %v1679, 0.0
      %v2075 = vsel %vm1982, %v1680, 0.0
      %v2076 = vsel %vm1982, %v1681, 0.0
      %v2077 = vsel %vm1982, %v1682, 0.0
      %v2078 = vsel %vm1982, %v1683, 0.0
      %v2079 = vpack.c.bf16 %v1989, %v1983
      %v2080 = vpack.c.bf16 %v1990, %v1984
      %v2081 = vpack.c.bf16 %v1991, %v1985
      %v2082 = vpack.c.bf16 %v1992, %v1986
      %v2083 = vpack.c.bf16 %v1993, %v1987
      %v2084 = vpack.c.bf16 %v1994, %v1988
      %v2085 = vpack.c.bf16 %v2001, %v1995
      %v2086 = vpack.c.bf16 %v2002, %v1996
      %v2087 = vpack.c.bf16 %v2003, %v1997
      %v2088 = vpack.c.bf16 %v2004, %v1998
      %v2089 = vpack.c.bf16 %v2005, %v1999
      %v2090 = vpack.c.bf16 %v2006, %v2000
      %v2091 = vpack.c.bf16 %v2013, %v2007
      %v2092 = vpack.c.bf16 %v2014, %v2008
      %v2093 = vpack.c.bf16 %v2015, %v2009
      %v2094 = vpack.c.bf16 %v2016, %v2010
      %v2095 = vpack.c.bf16 %v2017, %v2011
      %v2096 = vpack.c.bf16 %v2018, %v2012
      %v2097 = vpack.c.bf16 %v2025, %v2019
      %v2098 = vpack.c.bf16 %v2026, %v2020
      %v2099 = vpack.c.bf16 %v2027, %v2021
      %v2100 = vpack.c.bf16 %v2028, %v2022
      %v2101 = vpack.c.bf16 %v2029, %v2023
      %v2102 = vpack.c.bf16 %v2030, %v2024
      %v2103 = vpack.c.bf16 %v2037, %v2031
      %v2104 = vpack.c.bf16 %v2038, %v2032
      %v2105 = vpack.c.bf16 %v2039, %v2033
      %v2106 = vpack.c.bf16 %v2040, %v2034
      %v2107 = vpack.c.bf16 %v2041, %v2035
      %v2108 = vpack.c.bf16 %v2042, %v2036
      %v2109 = vpack.c.bf16 %v2049, %v2043
      %v2110 = vpack.c.bf16 %v2050, %v2044
      %v2111 = vpack.c.bf16 %v2051, %v2045
      %v2112 = vpack.c.bf16 %v2052, %v2046
      %v2113 = vpack.c.bf16 %v2053, %v2047
      %v2114 = vpack.c.bf16 %v2054, %v2048
      %v2115 = vpack.c.bf16 %v2061, %v2055
      %v2116 = vpack.c.bf16 %v2062, %v2056
      %v2117 = vpack.c.bf16 %v2063, %v2057
      %v2118 = vpack.c.bf16 %v2064, %v2058
      %v2119 = vpack.c.bf16 %v2065, %v2059
      %v2120 = vpack.c.bf16 %v2066, %v2060
      %v2121 = vpack.c.bf16 %v2073, %v2067
      %v2122 = vpack.c.bf16 %v2074, %v2068
      %v2123 = vpack.c.bf16 %v2075, %v2069
      %v2124 = vpack.c.bf16 %v2076, %v2070
      %v2125 = vpack.c.bf16 %v2077, %v2071
      %v2126 = vpack.c.bf16 %v2078, %v2072
      %v2127 = vld [vmem:[%s6] sm:$0xff]
      %v2128 = vld [vmem:[%s6 + $0x8] sm:$0xf]
      %v2131 = vlaneseq
      %v2132 = vshrl.u32 %v2131, 7
      %v2133 = vsub.s32 0, %v2132
      %v2134 = vrot.slane %v2127, %v2133
      %v2135 = vlaneseq
      %v2136 = vshrl.u32 %v2135, 7
      %v2137 = vsub.s32 2, %v2136
      %v2138 = vrot.slane %v2127, %v2137
      %v2139 = vlaneseq
      %v2140 = vshrl.u32 %v2139, 7
      %v2141 = vsub.s32 4, %v2140
      %v2142 = vrot.slane %v2127, %v2141
      %v2143 = vlaneseq
      %v2144 = vshrl.u32 %v2143, 7
      %v2145 = vsub.s32 6, %v2144
      %v2146 = vrot.slane %v2127, %v2145
      %v2147 = vlaneseq
      %v2148 = vshrl.u32 %v2147, 7
      %v2149 = vsub.s32 0, %v2148
      %v2150 = vrot.slane %v2128, %v2149
      %v2151 = vlaneseq
      %v2152 = vshrl.u32 %v2151, 7
      %v2153 = vsub.s32 2, %v2152
      %v2154 = vrot.slane %v2128, %v2153
      %v2161 = vlaneseq
      %v2162 = vshrl.u32 %v2161, 7
      %v2163 = vsub.s32 0, %v2162
      %v2164 = vrot.slane %v2134, %v2163
      %v2165 = vlaneseq
      %v2166 = vshrl.u32 %v2165, 7
      %v2167 = vsub.s32 0, %v2166
      %v2168 = vrot.slane %v2138, %v2167
      %v2169 = vlaneseq
      %v2170 = vshrl.u32 %v2169, 7
      %v2171 = vsub.s32 0, %v2170
      %v2172 = vrot.slane %v2142, %v2171
      %v2173 = vlaneseq
      %v2174 = vshrl.u32 %v2173, 7
      %v2175 = vsub.s32 0, %v2174
      %v2176 = vrot.slane %v2146, %v2175
      %v2177 = vlaneseq
      %v2178 = vshrl.u32 %v2177, 7
      %v2179 = vsub.s32 0, %v2178
      %v2180 = vrot.slane %v2150, %v2179
      %v2181 = vlaneseq
      %v2182 = vshrl.u32 %v2181, 7
      %v2183 = vsub.s32 0, %v2182
      %v2184 = vrot.slane %v2154, %v2183
      %v2185 = vmul.f32 %v1731, %v2164
      %v2186 = vmul.f32 %v1732, %v2168
      %v2187 = vmul.f32 %v1733, %v2172
      %v2188 = vmul.f32 %v1734, %v2176
      %v2189 = vmul.f32 %v1735, %v2180
      %v2190 = vmul.f32 %v1736, %v2184
      %v2191 = vmul.f32 %v1737, %v2164
      %v2192 = vmul.f32 %v1738, %v2168
      %v2193 = vmul.f32 %v1739, %v2172
      %v2194 = vmul.f32 %v1740, %v2176
      %v2195 = vmul.f32 %v1741, %v2180
      %v2196 = vmul.f32 %v1742, %v2184
      %v2197 = vpack.c.bf16 %v2191, %v2185
      %v2198 = vpack.c.bf16 %v2192, %v2186
      %v2199 = vpack.c.bf16 %v2193, %v2187
      %v2200 = vpack.c.bf16 %v2194, %v2188
      %v2201 = vpack.c.bf16 %v2195, %v2189
      %v2202 = vpack.c.bf16 %v2196, %v2190
      %v2203 = vlaneseq
      %v2204 = vshrl.u32 %v2203, 7
      %v2205 = vsub.s32 1, %v2204
      %v2206 = vrot.slane %v2127, %v2205
      %v2207 = vlaneseq
      %v2208 = vshrl.u32 %v2207, 7
      %v2209 = vsub.s32 3, %v2208
      %v2210 = vrot.slane %v2127, %v2209
      %v2211 = vlaneseq
      %v2212 = vshrl.u32 %v2211, 7
      %v2213 = vsub.s32 5, %v2212
      %v2214 = vrot.slane %v2127, %v2213
      %v2215 = vlaneseq
      %v2216 = vshrl.u32 %v2215, 7
      %v2217 = vsub.s32 7, %v2216
      %v2218 = vrot.slane %v2127, %v2217
      %v2219 = vlaneseq
      %v2220 = vshrl.u32 %v2219, 7
      %v2221 = vsub.s32 1, %v2220
      %v2222 = vrot.slane %v2128, %v2221
      %v2223 = vlaneseq
      %v2224 = vshrl.u32 %v2223, 7
      %v2225 = vsub.s32 3, %v2224
      %v2226 = vrot.slane %v2128, %v2225
      %v2233 = vlaneseq
      %v2234 = vshrl.u32 %v2233, 7
      %v2235 = vsub.s32 1, %v2234
      %v2236 = vrot.slane %v2206, %v2235
      %v2237 = vlaneseq
      %v2238 = vshrl.u32 %v2237, 7
      %v2239 = vsub.s32 1, %v2238
      %v2240 = vrot.slane %v2210, %v2239
      %v2241 = vlaneseq
      %v2242 = vshrl.u32 %v2241, 7
      %v2243 = vsub.s32 1, %v2242
      %v2244 = vrot.slane %v2214, %v2243
      %v2245 = vlaneseq
      %v2246 = vshrl.u32 %v2245, 7
      %v2247 = vsub.s32 1, %v2246
      %v2248 = vrot.slane %v2218, %v2247
      %v2249 = vlaneseq
      %v2250 = vshrl.u32 %v2249, 7
      %v2251 = vsub.s32 1, %v2250
      %v2252 = vrot.slane %v2222, %v2251
      %v2253 = vlaneseq
      %v2254 = vshrl.u32 %v2253, 7
      %v2255 = vsub.s32 1, %v2254
      %v2256 = vrot.slane %v2226, %v2255
      %v2257 = vmul.f32 %v1731, %v2236
      %v2258 = vmul.f32 %v1732, %v2240
      %v2259 = vmul.f32 %v1733, %v2244
      %v2260 = vmul.f32 %v1734, %v2248
      %v2261 = vmul.f32 %v1735, %v2252
      %v2262 = vmul.f32 %v1736, %v2256
      %v2263 = vmul.f32 %v1737, %v2236
      %v2264 = vmul.f32 %v1738, %v2240
      %v2265 = vmul.f32 %v1739, %v2244
      %v2266 = vmul.f32 %v1740, %v2248
      %v2267 = vmul.f32 %v1741, %v2252
      %v2268 = vmul.f32 %v1742, %v2256
      %v2269 = vpack.c.bf16 %v2263, %v2257
      %v2270 = vpack.c.bf16 %v2264, %v2258
      %v2271 = vpack.c.bf16 %v2265, %v2259
      %v2272 = vpack.c.bf16 %v2266, %v2260
      %v2273 = vpack.c.bf16 %v2267, %v2261
      %v2274 = vpack.c.bf16 %v2268, %v2262
      %v2275 = vld [vmem:[%s7] sm:$0xff]
      %v2276 = vld [vmem:[%s7 + $0x8] sm:$0xff]
      %v2277 = vld [vmem:[%s7 + $0x10] sm:$0xff]
      %v2278 = vld [vmem:[%s7 + $0x18] sm:$0xff]
      %2280 = vset.pattern.permute.xlu0 0
      %2281 = vperm.xlu0 %2280, %v2275
      %v2282 = vpop.permute.xlu0 %2281
      %2285 = vset.pattern.permute.xlu0 0
      %2286 = vperm.xlu0 %2285, %v2276
      %v2287 = vpop.permute.xlu0 %2286
      %2290 = vset.pattern.permute.xlu0 0
      %2291 = vperm.xlu0 %2290, %v2277
      %v2292 = vpop.permute.xlu0 %2291
      %2295 = vset.pattern.permute.xlu0 0
      %2296 = vperm.xlu0 %2295, %v2278
      %v2297 = vpop.permute.xlu0 %2296
      %2299 = vmatprep.subr.bf16.mxu0 %v2122
      %2300 = vmatpush1.bf16.xpose.msra.mxu0 %v2121
      %2301 = vmatprep.subr.bf16.mxu0 %v2116
      %2302 = vmatpush1.bf16.xpose.msra.mxu0 %v2115
      %2303 = vmatprep.subr.bf16.mxu0 %v2110
      %2304 = vmatpush1.bf16.xpose.msra.mxu0 %v2109
      %2305 = vmatprep.subr.bf16.mxu0 %v2104
      %2306 = vmatpush1.bf16.xpose.msra.mxu0 %v2103
      %2307 = vmatprep.subr.bf16.mxu0 %v2098
      %2308 = vmatpush1.bf16.xpose.msra.mxu0 %v2097
      %2309 = vmatprep.subr.bf16.mxu0 %v2092
      %2310 = vmatpush1.bf16.xpose.msra.mxu0 %v2091
      %2311 = vmatprep.subr.bf16.mxu0 %v2086
      %2312 = vmatpush1.bf16.xpose.msra.mxu0 %v2085
      %2313 = vmatprep.subr.bf16.mxu0 %v2080
      %2314 = vmatpush1.bf16.xpose.msra.mxu0 %v2079
      %2315 = vmatprep.subr.bf16.mxu0 0
      %2316 = vmatpush2.bf16.xpose.msra.mxu0 0
      %2317 = vmatprep.subr.bf16.mxu0 0
      %2318 = vmatpush2.bf16.xpose.msra.mxu0 0
      %2319 = vmatprep.subr.bf16.mxu0 0
      %2320 = vmatpush2.bf16.xpose.msra.mxu0 0
      %2321 = vmatprep.subr.bf16.mxu0 0
      %2322 = vmatpush2.bf16.xpose.msra.mxu0 0
      %2323 = vmatprep.subr.bf16.mxu0 0
      %2324 = vmatpush2.bf16.xpose.msra.mxu0 0
      %2325 = vmatprep.subr.bf16.mxu0 0
      %2326 = vmatpush2.bf16.xpose.msra.mxu0 0
      %2327 = vmatprep.subr.bf16.mxu0 0
      %2328 = vmatpush2.bf16.xpose.msra.mxu0 0
      %2329 = vmatprep.subr.bf16.mxu0 0
      %2330 = vmatpush2.bf16.xpose.msra.mxu0 0
      %2331 = vmatprep.mubr.bf16.mxu0 %v2198
      %2332 = vmatmul.mubr.bf16.gmra.mxu0 %v2197
      %v2333 = vpop.f32.mrf.mxu0
      %v2334 = vadd.f32 %v2282, %v2333
      %v2335 = vpop.f32.mrf.mxu0
      %v2336 = vpop.f32.mrf.mxu0
      %v2337 = vadd.f32 %v2287, %v2336
      %v2338 = vpop.f32.mrf.mxu0
      %2339 = vmatprep.mubr.bf16.mxu0 %v2270
      %2340 = vmatmul.mubr.bf16.gmra.mxu0 %v2269
      %v2341 = vpop.f32.mrf.mxu0
      %v2342 = vadd.f32 %v2292, %v2341
      %v2343 = vpop.f32.mrf.mxu0
      %v2344 = vpop.f32.mrf.mxu0
      %v2345 = vadd.f32 %v2297, %v2344
      %v2346 = vpop.f32.mrf.mxu0
      %2347 = vdwg.mxu0
      %2348 = vmatprep.subr.bf16.mxu0 %v2124
      %2349 = vmatpush1.bf16.xpose.msra.mxu0 %v2123
      %2350 = vmatprep.subr.bf16.mxu0 %v2118
      %2351 = vmatpush1.bf16.xpose.msra.mxu0 %v2117
      %2352 = vmatprep.subr.bf16.mxu0 %v2112
      %2353 = vmatpush1.bf16.xpose.msra.mxu0 %v2111
      %2354 = vmatprep.subr.bf16.mxu0 %v2106
      %2355 = vmatpush1.bf16.xpose.msra.mxu0 %v2105
      %2356 = vmatprep.subr.bf16.mxu0 %v2100
      %2357 = vmatpush1.bf16.xpose.msra.mxu0 %v2099
      %2358 = vmatprep.subr.bf16.mxu0 %v2094
      %2359 = vmatpush1.bf16.xpose.msra.mxu0 %v2093
      %2360 = vmatprep.subr.bf16.mxu0 %v2088
      %2361 = vmatpush1.bf16.xpose.msra.mxu0 %v2087
      %2362 = vmatprep.subr.bf16.mxu0 %v2082
      %2363 = vmatpush1.bf16.xpose.msra.mxu0 %v2081
      %2364 = vmatprep.subr.bf16.mxu0 0
      %2365 = vmatpush2.bf16.xpose.msra.mxu0 0
      %2366 = vmatprep.subr.bf16.mxu0 0
      %2367 = vmatpush2.bf16.xpose.msra.mxu0 0
      %2368 = vmatprep.subr.bf16.mxu0 0
      %2369 = vmatpush2.bf16.xpose.msra.mxu0 0
      %2370 = vmatprep.subr.bf16.mxu0 0
      %2371 = vmatpush2.bf16.xpose.msra.mxu0 0
      %2372 = vmatprep.subr.bf16.mxu0 0
      %2373 = vmatpush2.bf16.xpose.msra.mxu0 0
      %2374 = vmatprep.subr.bf16.mxu0 0
      %2375 = vmatpush2.bf16.xpose.msra.mxu0 0
      %2376 = vmatprep.subr.bf16.mxu0 0
      %2377 = vmatpush2.bf16.xpose.msra.mxu0 0
      %2378 = vmatprep.subr.bf16.mxu0 0
      %2379 = vmatpush2.bf16.xpose.msra.mxu0 0
      %2380 = vmatprep.mubr.bf16.mxu0 %v2200
      %2381 = vmatmul.mubr.bf16.gmra.mxu0 %v2199
      %v2382 = vpop.f32.mrf.mxu0
      %v2383 = vadd.f32 %v2334, %v2382
      %v2384 = vpop.f32.mrf.mxu0
      %v2385 = vpop.f32.mrf.mxu0
      %v2386 = vadd.f32 %v2337, %v2385
      %v2387 = vpop.f32.mrf.mxu0
      %2388 = vmatprep.mubr.bf16.mxu0 %v2272
      %2389 = vmatmul.mubr.bf16.gmra.mxu0 %v2271
      %v2390 = vpop.f32.mrf.mxu0
      %v2391 = vadd.f32 %v2342, %v2390
      %v2392 = vpop.f32.mrf.mxu0
      %v2393 = vpop.f32.mrf.mxu0
      %v2394 = vadd.f32 %v2345, %v2393
      %v2395 = vpop.f32.mrf.mxu0
      %2396 = vdwg.mxu0
      %2397 = vmatprep.subr.bf16.mxu0 %v2126
      %2398 = vmatpush1.bf16.xpose.msra.mxu0 %v2125
      %2399 = vmatprep.subr.bf16.mxu0 %v2120
      %2400 = vmatpush1.bf16.xpose.msra.mxu0 %v2119
      %2401 = vmatprep.subr.bf16.mxu0 %v2114
      %2402 = vmatpush1.bf16.xpose.msra.mxu0 %v2113
      %2403 = vmatprep.subr.bf16.mxu0 %v2108
      %2404 = vmatpush1.bf16.xpose.msra.mxu0 %v2107
      %2405 = vmatprep.subr.bf16.mxu0 %v2102
      %2406 = vmatpush1.bf16.xpose.msra.mxu0 %v2101
      %2407 = vmatprep.subr.bf16.mxu0 %v2096
      %2408 = vmatpush1.bf16.xpose.msra.mxu0 %v2095
      %2409 = vmatprep.subr.bf16.mxu0 %v2090
      %2410 = vmatpush1.bf16.xpose.msra.mxu0 %v2089
      %2411 = vmatprep.subr.bf16.mxu0 %v2084
      %2412 = vmatpush1.bf16.xpose.msra.mxu0 %v2083
      %2413 = vmatprep.subr.bf16.mxu0 0
      %2414 = vmatpush2.bf16.xpose.msra.mxu0 0
      %2415 = vmatprep.subr.bf16.mxu0 0
      %2416 = vmatpush2.bf16.xpose.msra.mxu0 0
      %2417 = vmatprep.subr.bf16.mxu0 0
      %2418 = vmatpush2.bf16.xpose.msra.mxu0 0
      %2419 = vmatprep.subr.bf16.mxu0 0
      %2420 = vmatpush2.bf16.xpose.msra.mxu0 0
      %2421 = vmatprep.subr.bf16.mxu0 0
      %2422 = vmatpush2.bf16.xpose.msra.mxu0 0
      %2423 = vmatprep.subr.bf16.mxu0 0
      %2424 = vmatpush2.bf16.xpose.msra.mxu0 0
      %2425 = vmatprep.subr.bf16.mxu0 0
      %2426 = vmatpush2.bf16.xpose.msra.mxu0 0
      %2427 = vmatprep.subr.bf16.mxu0 0
      %2428 = vmatpush2.bf16.xpose.msra.mxu0 0
      %2429 = vmatprep.mubr.bf16.mxu0 %v2202
      %2430 = vmatmul.mubr.bf16.gmra.mxu0 %v2201
      %v2431 = vpop.f32.mrf.mxu0
      %v2432 = vadd.f32 %v2383, %v2431
      %v2433 = vpop.f32.mrf.mxu0
      %v2434 = vpop.f32.mrf.mxu0
      %v2435 = vadd.f32 %v2386, %v2434
      %v2436 = vpop.f32.mrf.mxu0
      %2437 = vmatprep.mubr.bf16.mxu0 %v2274
      %2438 = vmatmul.mubr.bf16.gmra.mxu0 %v2273
      %v2439 = vpop.f32.mrf.mxu0
      %v2440 = vadd.f32 %v2391, %v2439
      %v2441 = vpop.f32.mrf.mxu0
      %v2442 = vpop.f32.mrf.mxu0
      %v2443 = vadd.f32 %v2394, %v2442
      %v2444 = vpop.f32.mrf.mxu0
      %2445 = vdwg.mxu0
      %v2446 = vpack.c.bf16 %v2435, %v2432
      %v2447 = vpack.c.bf16 %v2443, %v2440
      %v2450 = vunpack.c.l.b16 %v2446
      %v2451 = vunpack.c.h.b16 %v2446
      %v2452 = vunpack.c.l.b16 %v2447
      %v2453 = vunpack.c.h.b16 %v2447
      %v2454 = vpack.c.b16 %v2450, %v2450
      %v2455 = vpack.c.b16 %v2451, %v2451
      %v2456 = vpack.c.b16 %v2452, %v2452
      %v2457 = vpack.c.b16 %v2453, %v2453
      %2462 = vst [vmem:[%s390] sm:$0xf] %v2454
      %2463 = vst [vmem:[%s390 + $0x4] sm:$0xf] %v2455
      %2464 = vst [vmem:[%s390 + $0x8] sm:$0xf] %v2456
      %2465 = vst [vmem:[%s390 + $0xc] sm:$0xf] %v2457
      %v2466 = vadd.f32 %v2432, %v2440
      %v2467 = vadd.f32 %v2435, %v2443
      %v2468 = vpack.c.bf16 %v2467, %v2466
      %2469 = vmatprep.subr.bf16.mxu0 %v2122
      %2470 = vmatpush1.bf16.msra.mxu0 %v2121
      %2471 = vmatprep.subr.bf16.mxu0 %v2116
      %2472 = vmatpush1.bf16.msra.mxu0 %v2115
      %2473 = vmatprep.subr.bf16.mxu0 %v2110
      %2474 = vmatpush1.bf16.msra.mxu0 %v2109
      %2475 = vmatprep.subr.bf16.mxu0 %v2104
      %2476 = vmatpush1.bf16.msra.mxu0 %v2103
      %2477 = vmatprep.subr.bf16.mxu0 %v2098
      %2478 = vmatpush1.bf16.msra.mxu0 %v2097
      %2479 = vmatprep.subr.bf16.mxu0 %v2092
      %2480 = vmatpush1.bf16.msra.mxu0 %v2091
      %2481 = vmatprep.subr.bf16.mxu0 %v2086
      %2482 = vmatpush1.bf16.msra.mxu0 %v2085
      %2483 = vmatprep.subr.bf16.mxu0 %v2080
      %2484 = vmatpush1.bf16.msra.mxu0 %v2079
      %2485 = vmatprep.subr.bf16.mxu0 0
      %2486 = vmatpush2.bf16.msra.mxu0 0
      %2487 = vmatprep.subr.bf16.mxu0 0
      %2488 = vmatpush2.bf16.msra.mxu0 0
      %2489 = vmatprep.subr.bf16.mxu0 0
      %2490 = vmatpush2.bf16.msra.mxu0 0
      %2491 = vmatprep.subr.bf16.mxu0 0
      %2492 = vmatpush2.bf16.msra.mxu0 0
      %2493 = vmatprep.subr.bf16.mxu0 0
      %2494 = vmatpush2.bf16.msra.mxu0 0
      %2495 = vmatprep.subr.bf16.mxu0 0
      %2496 = vmatpush2.bf16.msra.mxu0 0
      %2497 = vmatprep.subr.bf16.mxu0 0
      %2498 = vmatpush2.bf16.msra.mxu0 0
      %2499 = vmatprep.subr.bf16.mxu0 0
      %2500 = vmatpush2.bf16.msra.mxu0 0
      %2501 = vmatprep.mubr.bf16.mxu0 0
      %2502 = vmatmul.mubr.bf16.gmra.mxu0 %v2468
      %v2503 = vpop.f32.mrf.mxu0
      %v2504 = vadd.f32 0.0, %v2503
      %v2505 = vpop.f32.mrf.mxu0
      %v2506 = vadd.f32 0.0, %v2505
      %v2507 = vpop.f32.mrf.mxu0
      %v2508 = vadd.f32 0.0, %v2507
      %v2509 = vpop.f32.mrf.mxu0
      %v2510 = vadd.f32 0.0, %v2509
      %2511 = vdwg.mxu0
      %2512 = vmatprep.subr.bf16.mxu0 %v2124
      %2513 = vmatpush1.bf16.msra.mxu0 %v2123
      %2514 = vmatprep.subr.bf16.mxu0 %v2118
      %2515 = vmatpush1.bf16.msra.mxu0 %v2117
      %2516 = vmatprep.subr.bf16.mxu0 %v2112
      %2517 = vmatpush1.bf16.msra.mxu0 %v2111
      %2518 = vmatprep.subr.bf16.mxu0 %v2106
      %2519 = vmatpush1.bf16.msra.mxu0 %v2105
      %2520 = vmatprep.subr.bf16.mxu0 %v2100
      %2521 = vmatpush1.bf16.msra.mxu0 %v2099
      %2522 = vmatprep.subr.bf16.mxu0 %v2094
      %2523 = vmatpush1.bf16.msra.mxu0 %v2093
      %2524 = vmatprep.subr.bf16.mxu0 %v2088
      %2525 = vmatpush1.bf16.msra.mxu0 %v2087
      %2526 = vmatprep.subr.bf16.mxu0 %v2082
      %2527 = vmatpush1.bf16.msra.mxu0 %v2081
      %2528 = vmatprep.subr.bf16.mxu0 0
      %2529 = vmatpush2.bf16.msra.mxu0 0
      %2530 = vmatprep.subr.bf16.mxu0 0
      %2531 = vmatpush2.bf16.msra.mxu0 0
      %2532 = vmatprep.subr.bf16.mxu0 0
      %2533 = vmatpush2.bf16.msra.mxu0 0
      %2534 = vmatprep.subr.bf16.mxu0 0
      %2535 = vmatpush2.bf16.msra.mxu0 0
      %2536 = vmatprep.subr.bf16.mxu0 0
      %2537 = vmatpush2.bf16.msra.mxu0 0
      %2538 = vmatprep.subr.bf16.mxu0 0
      %2539 = vmatpush2.bf16.msra.mxu0 0
      %2540 = vmatprep.subr.bf16.mxu0 0
      %2541 = vmatpush2.bf16.msra.mxu0 0
      %2542 = vmatprep.subr.bf16.mxu0 0
      %2543 = vmatpush2.bf16.msra.mxu0 0
      %2544 = vmatprep.mubr.bf16.mxu0 0
      %2545 = vmatmul.mubr.bf16.gmra.mxu0 %v2468
      %v2546 = vpop.f32.mrf.mxu0
      %v2547 = vadd.f32 0.0, %v2546
      %v2548 = vpop.f32.mrf.mxu0
      %v2549 = vadd.f32 0.0, %v2548
      %v2550 = vpop.f32.mrf.mxu0
      %v2551 = vadd.f32 0.0, %v2550
      %v2552 = vpop.f32.mrf.mxu0
      %v2553 = vadd.f32 0.0, %v2552
      %2554 = vdwg.mxu0
      %2555 = vmatprep.subr.bf16.mxu0 %v2126
      %2556 = vmatpush1.bf16.msra.mxu0 %v2125
      %2557 = vmatprep.subr.bf16.mxu0 %v2120
      %2558 = vmatpush1.bf16.msra.mxu0 %v2119
      %2559 = vmatprep.subr.bf16.mxu0 %v2114
      %2560 = vmatpush1.bf16.msra.mxu0 %v2113
      %2561 = vmatprep.subr.bf16.mxu0 %v2108
      %2562 = vmatpush1.bf16.msra.mxu0 %v2107
      %2563 = vmatprep.subr.bf16.mxu0 %v2102
      %2564 = vmatpush1.bf16.msra.mxu0 %v2101
      %2565 = vmatprep.subr.bf16.mxu0 %v2096
      %2566 = vmatpush1.bf16.msra.mxu0 %v2095
      %2567 = vmatprep.subr.bf16.mxu0 %v2090
      %2568 = vmatpush1.bf16.msra.mxu0 %v2089
      %2569 = vmatprep.subr.bf16.mxu0 %v2084
      %2570 = vmatpush1.bf16.msra.mxu0 %v2083
      %2571 = vmatprep.subr.bf16.mxu0 0
      %2572 = vmatpush2.bf16.msra.mxu0 0
      %2573 = vmatprep.subr.bf16.mxu0 0
      %2574 = vmatpush2.bf16.msra.mxu0 0
      %2575 = vmatprep.subr.bf16.mxu0 0
      %2576 = vmatpush2.bf16.msra.mxu0 0
      %2577 = vmatprep.subr.bf16.mxu0 0
      %2578 = vmatpush2.bf16.msra.mxu0 0
      %2579 = vmatprep.subr.bf16.mxu0 0
      %2580 = vmatpush2.bf16.msra.mxu0 0
      %2581 = vmatprep.subr.bf16.mxu0 0
      %2582 = vmatpush2.bf16.msra.mxu0 0
      %2583 = vmatprep.subr.bf16.mxu0 0
      %2584 = vmatpush2.bf16.msra.mxu0 0
      %2585 = vmatprep.subr.bf16.mxu0 0
      %2586 = vmatpush2.bf16.msra.mxu0 0
      %2587 = vmatprep.mubr.bf16.mxu0 0
      %2588 = vmatmul.mubr.bf16.gmra.mxu0 %v2468
      %v2589 = vpop.f32.mrf.mxu0
      %v2590 = vadd.f32 0.0, %v2589
      %v2591 = vpop.f32.mrf.mxu0
      %v2592 = vadd.f32 0.0, %v2591
      %v2593 = vpop.f32.mrf.mxu0
      %v2594 = vadd.f32 0.0, %v2593
      %v2595 = vpop.f32.mrf.mxu0
      %v2596 = vadd.f32 0.0, %v2595
      %2597 = vdwg.mxu0
      %v2598 = vmul.f32 %v1731, %v2504
      %v2599 = vmul.f32 %v1732, %v2506
      %v2600 = vmul.f32 %v1733, %v2547
      %v2601 = vmul.f32 %v1734, %v2549
      %v2602 = vmul.f32 %v1735, %v2590
      %v2603 = vmul.f32 %v1736, %v2592
      %v2604 = vmul.f32 %v1737, %v2508
      %v2605 = vmul.f32 %v1738, %v2510
      %v2606 = vmul.f32 %v1739, %v2551
      %v2607 = vmul.f32 %v1740, %v2553
      %v2608 = vmul.f32 %v1741, %v2594
      %v2609 = vmul.f32 %v1742, %v2596
      %v2610 = vadd.f32 %v2598, %v2604
      %v2611 = vrot.slane %v2610, 4
      %v2612 = vadd.f32 %v2610, %v2611
      %v2613 = vrot.slane %v2612, 2
      %v2614 = vadd.f32 %v2612, %v2613
      %v2615 = vrot.slane %v2614, 1
      %v2616 = vadd.f32 %v2614, %v2615
      %v2617 = vadd.f32 %v2599, %v2605
      %v2618 = vrot.slane %v2617, 4
      %v2619 = vadd.f32 %v2617, %v2618
      %v2620 = vrot.slane %v2619, 2
      %v2621 = vadd.f32 %v2619, %v2620
      %v2622 = vrot.slane %v2621, 1
      %v2623 = vadd.f32 %v2621, %v2622
      %v2624 = vadd.f32 %v2600, %v2606
      %v2625 = vrot.slane %v2624, 4
      %v2626 = vadd.f32 %v2624, %v2625
      %v2627 = vrot.slane %v2626, 2
      %v2628 = vadd.f32 %v2626, %v2627
      %v2629 = vrot.slane %v2628, 1
      %v2630 = vadd.f32 %v2628, %v2629
      %v2631 = vadd.f32 %v2601, %v2607
      %v2632 = vrot.slane %v2631, 4
      %v2633 = vadd.f32 %v2631, %v2632
      %v2634 = vrot.slane %v2633, 2
      %v2635 = vadd.f32 %v2633, %v2634
      %v2636 = vrot.slane %v2635, 1
      %v2637 = vadd.f32 %v2635, %v2636
      %v2638 = vadd.f32 %v2602, %v2608
      %v2639 = vrot.slane %v2638, 4
      %v2640 = vadd.f32 %v2638, %v2639
      %v2641 = vrot.slane %v2640, 2
      %v2642 = vadd.f32 %v2640, %v2641
      %v2643 = vrot.slane %v2642, 1
      %v2644 = vadd.f32 %v2642, %v2643
      %v2645 = vadd.f32 %v2603, %v2609
      %v2646 = vrot.slane %v2645, 4
      %v2647 = vadd.f32 %v2645, %v2646
      %v2648 = vrot.slane %v2647, 2
      %v2649 = vadd.f32 %v2647, %v2648
      %v2650 = vrot.slane %v2649, 1
      %v2651 = vadd.f32 %v2649, %v2650
      %v2652 = vld [vmem:[%s8] sm:$0xff]
      %v2653 = vld [vmem:[%s8 + $0x8] sm:$0xff]
      %v2654 = vld [vmem:[%s8 + $0x10] sm:$0xff]
      %v2655 = vld [vmem:[%s8 + $0x18] sm:$0xff]
      %v2656 = vld [vmem:[%s8 + $0x20] sm:$0xff]
      %v2657 = vld [vmem:[%s8 + $0x28] sm:$0xff]
      %v2658 = vld [vmem:[%s8 + $0x30] sm:$0xff]
      %v2659 = vld [vmem:[%s8 + $0x38] sm:$0xff]
      %v2660 = vld [vmem:[%s8 + $0x40] sm:$0xff]
      %v2661 = vld [vmem:[%s8 + $0x48] sm:$0xff]
      %v2662 = vld [vmem:[%s8 + $0x50] sm:$0xff]
      %v2663 = vld [vmem:[%s8 + $0x58] sm:$0xff]
      %v2664 = vld [vmem:[%s8 + $0x60] sm:$0xff]
      %v2665 = vld [vmem:[%s8 + $0x68] sm:$0xff]
      %v2666 = vld [vmem:[%s8 + $0x70] sm:$0xff]
      %v2667 = vld [vmem:[%s8 + $0x78] sm:$0xff]
      %v2668 = vld [vmem:[%s8 + $0x80] sm:$0xff]
      %v2669 = vld [vmem:[%s8 + $0x88] sm:$0xff]
      %v2670 = vld [vmem:[%s8 + $0x90] sm:$0xff]
      %v2671 = vld [vmem:[%s8 + $0x98] sm:$0xff]
      %v2672 = vld [vmem:[%s8 + $0xa0] sm:$0xff]
      %v2673 = vld [vmem:[%s8 + $0xa8] sm:$0xff]
      %v2674 = vld [vmem:[%s8 + $0xb0] sm:$0xff]
      %v2675 = vld [vmem:[%s8 + $0xb8] sm:$0xff]
      %v2676 = vld [vmem:[%s8 + $0xc0] sm:$0xff]
      %v2677 = vld [vmem:[%s8 + $0xc8] sm:$0xff]
      %v2678 = vld [vmem:[%s8 + $0xd0] sm:$0xff]
      %v2679 = vld [vmem:[%s8 + $0xd8] sm:$0xff]
      %v2680 = vld [vmem:[%s8 + $0xe0] sm:$0xff]
      %v2681 = vld [vmem:[%s8 + $0xe8] sm:$0xff]
      %v2682 = vld [vmem:[%s8 + $0xf0] sm:$0xff]
      %v2683 = vld [vmem:[%s8 + $0xf8] sm:$0xff]
      %v2684 = vld [vmem:[%s8 + $0x100] sm:$0xff]
      %v2685 = vld [vmem:[%s8 + $0x108] sm:$0xff]
      %v2686 = vld [vmem:[%s8 + $0x110] sm:$0xff]
      %v2687 = vld [vmem:[%s8 + $0x118] sm:$0xff]
      %v2688 = vld [vmem:[%s8 + $0x120] sm:$0xff]
      %v2689 = vld [vmem:[%s8 + $0x128] sm:$0xff]
      %v2690 = vld [vmem:[%s8 + $0x130] sm:$0xff]
      %v2691 = vld [vmem:[%s8 + $0x138] sm:$0xff]
      %v2692 = vld [vmem:[%s8 + $0x140] sm:$0xff]
      %v2693 = vld [vmem:[%s8 + $0x148] sm:$0xff]
      %v2694 = vld [vmem:[%s8 + $0x150] sm:$0xff]
      %v2695 = vld [vmem:[%s8 + $0x158] sm:$0xff]
      %v2696 = vld [vmem:[%s8 + $0x160] sm:$0xff]
      %v2697 = vld [vmem:[%s8 + $0x168] sm:$0xff]
      %v2698 = vld [vmem:[%s8 + $0x170] sm:$0xff]
      %v2699 = vld [vmem:[%s8 + $0x178] sm:$0xff]
      %v2700 = vld [vmem:[%s8 + $0x180] sm:$0xff]
      %v2701 = vld [vmem:[%s8 + $0x188] sm:$0xff]
      %v2702 = vld [vmem:[%s8 + $0x190] sm:$0xff]
      %v2703 = vld [vmem:[%s8 + $0x198] sm:$0xff]
      %v2704 = vld [vmem:[%s8 + $0x1a0] sm:$0xff]
      %v2705 = vld [vmem:[%s8 + $0x1a8] sm:$0xff]
      %v2706 = vld [vmem:[%s8 + $0x1b0] sm:$0xff]
      %v2707 = vld [vmem:[%s8 + $0x1b8] sm:$0xff]
      %v2708 = vld [vmem:[%s8 + $0x1c0] sm:$0xff]
      %v2709 = vld [vmem:[%s8 + $0x1c8] sm:$0xff]
      %v2710 = vld [vmem:[%s8 + $0x1d0] sm:$0xff]
      %v2711 = vld [vmem:[%s8 + $0x1d8] sm:$0xff]
      %v2712 = vld [vmem:[%s8 + $0x1e0] sm:$0xff]
      %v2713 = vld [vmem:[%s8 + $0x1e8] sm:$0xff]
      %v2714 = vld [vmem:[%s8 + $0x1f0] sm:$0xff]
      %v2715 = vld [vmem:[%s8 + $0x1f8] sm:$0xff]
      %v2716 = vld [vmem:[%s8 + $0x200] sm:$0xff]
      %v2717 = vld [vmem:[%s8 + $0x208] sm:$0xff]
      %v2718 = vld [vmem:[%s8 + $0x210] sm:$0xff]
      %v2719 = vld [vmem:[%s8 + $0x218] sm:$0xff]
      %v2720 = vld [vmem:[%s8 + $0x220] sm:$0xff]
      %v2721 = vld [vmem:[%s8 + $0x228] sm:$0xff]
      %v2722 = vld [vmem:[%s8 + $0x230] sm:$0xff]
      %v2723 = vld [vmem:[%s8 + $0x238] sm:$0xff]
      %v2724 = vld [vmem:[%s8 + $0x240] sm:$0xff]
      %v2725 = vld [vmem:[%s8 + $0x248] sm:$0xff]
      %v2726 = vld [vmem:[%s8 + $0x250] sm:$0xff]
      %v2727 = vld [vmem:[%s8 + $0x258] sm:$0xff]
      %v2728 = vld [vmem:[%s8 + $0x260] sm:$0xff]
      %v2729 = vld [vmem:[%s8 + $0x268] sm:$0xff]
      %v2730 = vld [vmem:[%s8 + $0x270] sm:$0xff]
      %v2731 = vld [vmem:[%s8 + $0x278] sm:$0xff]
      %v2732 = vld [vmem:[%s8 + $0x280] sm:$0xff]
      %v2733 = vld [vmem:[%s8 + $0x288] sm:$0xff]
      %v2734 = vld [vmem:[%s8 + $0x290] sm:$0xff]
      %v2735 = vld [vmem:[%s8 + $0x298] sm:$0xff]
      %v2736 = vld [vmem:[%s8 + $0x2a0] sm:$0xff]
      %v2737 = vld [vmem:[%s8 + $0x2a8] sm:$0xff]
      %v2738 = vld [vmem:[%s8 + $0x2b0] sm:$0xff]
      %v2739 = vld [vmem:[%s8 + $0x2b8] sm:$0xff]
      %v2740 = vld [vmem:[%s8 + $0x2c0] sm:$0xff]
      %v2741 = vld [vmem:[%s8 + $0x2c8] sm:$0xff]
      %v2742 = vld [vmem:[%s8 + $0x2d0] sm:$0xff]
      %v2743 = vld [vmem:[%s8 + $0x2d8] sm:$0xff]
      %v2744 = vld [vmem:[%s8 + $0x2e0] sm:$0xff]
      %v2745 = vld [vmem:[%s8 + $0x2e8] sm:$0xff]
      %v2746 = vld [vmem:[%s8 + $0x2f0] sm:$0xff]
      %v2747 = vld [vmem:[%s8 + $0x2f8] sm:$0xff]
      %v2748 = vld [vmem:[%s8 + $0x300] sm:$0xff]
      %v2749 = vld [vmem:[%s8 + $0x308] sm:$0xff]
      %v2750 = vld [vmem:[%s8 + $0x310] sm:$0xff]
      %v2751 = vld [vmem:[%s8 + $0x318] sm:$0xff]
      %v2752 = vld [vmem:[%s8 + $0x320] sm:$0xff]
      %v2753 = vld [vmem:[%s8 + $0x328] sm:$0xff]
      %v2754 = vld [vmem:[%s8 + $0x330] sm:$0xff]
      %v2755 = vld [vmem:[%s8 + $0x338] sm:$0xff]
      %v2756 = vld [vmem:[%s8 + $0x340] sm:$0xff]
      %v2757 = vld [vmem:[%s8 + $0x348] sm:$0xff]
      %v2758 = vld [vmem:[%s8 + $0x350] sm:$0xff]
      %v2759 = vld [vmem:[%s8 + $0x358] sm:$0xff]
      %v2760 = vld [vmem:[%s8 + $0x360] sm:$0xff]
      %v2761 = vld [vmem:[%s8 + $0x368] sm:$0xff]
      %v2762 = vld [vmem:[%s8 + $0x370] sm:$0xff]
      %v2763 = vld [vmem:[%s8 + $0x378] sm:$0xff]
      %v2764 = vld [vmem:[%s8 + $0x380] sm:$0xff]
      %v2765 = vld [vmem:[%s8 + $0x388] sm:$0xff]
      %v2766 = vld [vmem:[%s8 + $0x390] sm:$0xff]
      %v2767 = vld [vmem:[%s8 + $0x398] sm:$0xff]
      %v2768 = vld [vmem:[%s8 + $0x3a0] sm:$0xff]
      %v2769 = vld [vmem:[%s8 + $0x3a8] sm:$0xff]
      %v2770 = vld [vmem:[%s8 + $0x3b0] sm:$0xff]
      %v2771 = vld [vmem:[%s8 + $0x3b8] sm:$0xff]
      %v2772 = vld [vmem:[%s8 + $0x3c0] sm:$0xff]
      %v2773 = vld [vmem:[%s8 + $0x3c8] sm:$0xff]
      %v2774 = vld [vmem:[%s8 + $0x3d0] sm:$0xff]
      %v2775 = vld [vmem:[%s8 + $0x3d8] sm:$0xff]
      %v2776 = vld [vmem:[%s8 + $0x3e0] sm:$0xff]
      %v2777 = vld [vmem:[%s8 + $0x3e8] sm:$0xff]
      %v2778 = vld [vmem:[%s8 + $0x3f0] sm:$0xff]
      %v2779 = vld [vmem:[%s8 + $0x3f8] sm:$0xff]
      %v2780 = vld [vmem:[%s8 + $0x400] sm:$0xff]
      %v2781 = vld [vmem:[%s8 + $0x408] sm:$0xff]
      %v2782 = vld [vmem:[%s8 + $0x410] sm:$0xff]
      %v2783 = vld [vmem:[%s8 + $0x418] sm:$0xff]
      %v2784 = vld [vmem:[%s8 + $0x420] sm:$0xff]
      %v2785 = vld [vmem:[%s8 + $0x428] sm:$0xff]
      %v2786 = vld [vmem:[%s8 + $0x430] sm:$0xff]
      %v2787 = vld [vmem:[%s8 + $0x438] sm:$0xff]
      %v2788 = vld [vmem:[%s8 + $0x440] sm:$0xff]
      %v2789 = vld [vmem:[%s8 + $0x448] sm:$0xff]
      %v2790 = vld [vmem:[%s8 + $0x450] sm:$0xff]
      %v2791 = vld [vmem:[%s8 + $0x458] sm:$0xff]
      %v2792 = vld [vmem:[%s8 + $0x460] sm:$0xff]
      %v2793 = vld [vmem:[%s8 + $0x468] sm:$0xff]
      %v2794 = vld [vmem:[%s8 + $0x470] sm:$0xff]
      %v2795 = vld [vmem:[%s8 + $0x478] sm:$0xff]
      %v2796 = vld [vmem:[%s8 + $0x480] sm:$0xff]
      %v2797 = vld [vmem:[%s8 + $0x488] sm:$0xff]
      %v2798 = vld [vmem:[%s8 + $0x490] sm:$0xff]
      %v2799 = vld [vmem:[%s8 + $0x498] sm:$0xff]
      %v2800 = vld [vmem:[%s8 + $0x4a0] sm:$0xff]
      %v2801 = vld [vmem:[%s8 + $0x4a8] sm:$0xff]
      %v2802 = vld [vmem:[%s8 + $0x4b0] sm:$0xff]
      %v2803 = vld [vmem:[%s8 + $0x4b8] sm:$0xff]
      %v2804 = vld [vmem:[%s8 + $0x4c0] sm:$0xff]
      %v2805 = vld [vmem:[%s8 + $0x4c8] sm:$0xff]
      %v2806 = vld [vmem:[%s8 + $0x4d0] sm:$0xff]
      %v2807 = vld [vmem:[%s8 + $0x4d8] sm:$0xff]
      %v2808 = vld [vmem:[%s8 + $0x4e0] sm:$0xff]
      %v2809 = vld [vmem:[%s8 + $0x4e8] sm:$0xff]
      %v2810 = vld [vmem:[%s8 + $0x4f0] sm:$0xff]
      %v2811 = vld [vmem:[%s8 + $0x4f8] sm:$0xff]
      %v2812 = vld [vmem:[%s8 + $0x500] sm:$0xff]
      %v2813 = vld [vmem:[%s8 + $0x508] sm:$0xff]
      %v2814 = vld [vmem:[%s8 + $0x510] sm:$0xff]
      %v2815 = vld [vmem:[%s8 + $0x518] sm:$0xff]
      %v2816 = vld [vmem:[%s8 + $0x520] sm:$0xff]
      %v2817 = vld [vmem:[%s8 + $0x528] sm:$0xff]
      %v2818 = vld [vmem:[%s8 + $0x530] sm:$0xff]
      %v2819 = vld [vmem:[%s8 + $0x538] sm:$0xff]
      %v2820 = vld [vmem:[%s8 + $0x540] sm:$0xff]
      %v2821 = vld [vmem:[%s8 + $0x548] sm:$0xff]
      %v2822 = vld [vmem:[%s8 + $0x550] sm:$0xff]
      %v2823 = vld [vmem:[%s8 + $0x558] sm:$0xff]
      %v2824 = vld [vmem:[%s8 + $0x560] sm:$0xff]
      %v2825 = vld [vmem:[%s8 + $0x568] sm:$0xff]
      %v2826 = vld [vmem:[%s8 + $0x570] sm:$0xff]
      %v2827 = vld [vmem:[%s8 + $0x578] sm:$0xff]
      %v2828 = vld [vmem:[%s8 + $0x580] sm:$0xff]
      %v2829 = vld [vmem:[%s8 + $0x588] sm:$0xff]
      %v2830 = vld [vmem:[%s8 + $0x590] sm:$0xff]
      %v2831 = vld [vmem:[%s8 + $0x598] sm:$0xff]
      %v2832 = vld [vmem:[%s8 + $0x5a0] sm:$0xff]
      %v2833 = vld [vmem:[%s8 + $0x5a8] sm:$0xff]
      %v2834 = vld [vmem:[%s8 + $0x5b0] sm:$0xff]
      %v2835 = vld [vmem:[%s8 + $0x5b8] sm:$0xff]
      %v2836 = vld [vmem:[%s8 + $0x5c0] sm:$0xff]
      %v2837 = vld [vmem:[%s8 + $0x5c8] sm:$0xff]
      %v2838 = vld [vmem:[%s8 + $0x5d0] sm:$0xff]
      %v2839 = vld [vmem:[%s8 + $0x5d8] sm:$0xff]
      %v2840 = vld [vmem:[%s8 + $0x5e0] sm:$0xff]
      %v2841 = vld [vmem:[%s8 + $0x5e8] sm:$0xff]
      %v2842 = vld [vmem:[%s8 + $0x5f0] sm:$0xff]
      %v2843 = vld [vmem:[%s8 + $0x5f8] sm:$0xff]
      %2844 = vmatprep.subr.mxu0 %v2683
      %2845 = vmatpush1.msra.mxu0 %v2682
      %2846 = vmatprep.subr.mxu0 %v2681
      %2847 = vmatpush1.msra.mxu0 %v2680
      %2848 = vmatprep.subr.mxu0 %v2679
      %2849 = vmatpush1.msra.mxu0 %v2678
      %2850 = vmatprep.subr.mxu0 %v2677
      %2851 = vmatpush1.msra.mxu0 %v2676
      %2852 = vmatprep.subr.mxu0 %v2675
      %2853 = vmatpush1.msra.mxu0 %v2674
      %2854 = vmatprep.subr.mxu0 %v2673
      %2855 = vmatpush1.msra.mxu0 %v2672
      %2856 = vmatprep.subr.mxu0 %v2671
      %2857 = vmatpush1.msra.mxu0 %v2670
      %2858 = vmatprep.subr.mxu0 %v2669
      %2859 = vmatpush1.msra.mxu0 %v2668
      %2860 = vmatprep.subr.mxu0 %v2667
      %2861 = vmatpush1.msra.mxu0 %v2666
      %2862 = vmatprep.subr.mxu0 %v2665
      %2863 = vmatpush1.msra.mxu0 %v2664
      %2864 = vmatprep.subr.mxu0 %v2663
      %2865 = vmatpush1.msra.mxu0 %v2662
      %2866 = vmatprep.subr.mxu0 %v2661
      %2867 = vmatpush1.msra.mxu0 %v2660
      %2868 = vmatprep.subr.mxu0 %v2659
      %2869 = vmatpush1.msra.mxu0 %v2658
      %2870 = vmatprep.subr.mxu0 %v2657
      %2871 = vmatpush1.msra.mxu0 %v2656
      %2872 = vmatprep.subr.mxu0 %v2655
      %2873 = vmatpush1.msra.mxu0 %v2654
      %2874 = vmatprep.subr.mxu0 %v2653
      %2875 = vmatpush1.msra.mxu0 %v2652
      %2876 = vmatprep.subr.mxu0 %v2715
      %2877 = vmatpush2.msra.mxu0 %v2714
      %2878 = vmatprep.subr.mxu0 %v2713
      %2879 = vmatpush2.msra.mxu0 %v2712
      %2880 = vmatprep.subr.mxu0 %v2711
      %2881 = vmatpush2.msra.mxu0 %v2710
      %2882 = vmatprep.subr.mxu0 %v2709
      %2883 = vmatpush2.msra.mxu0 %v2708
      %2884 = vmatprep.subr.mxu0 %v2707
      %2885 = vmatpush2.msra.mxu0 %v2706
      %2886 = vmatprep.subr.mxu0 %v2705
      %2887 = vmatpush2.msra.mxu0 %v2704
      %2888 = vmatprep.subr.mxu0 %v2703
      %2889 = vmatpush2.msra.mxu0 %v2702
      %2890 = vmatprep.subr.mxu0 %v2701
      %2891 = vmatpush2.msra.mxu0 %v2700
      %2892 = vmatprep.subr.mxu0 %v2699
      %2893 = vmatpush2.msra.mxu0 %v2698
      %2894 = vmatprep.subr.mxu0 %v2697
      %2895 = vmatpush2.msra.mxu0 %v2696
      %2896 = vmatprep.subr.mxu0 %v2695
      %2897 = vmatpush2.msra.mxu0 %v2694
      %2898 = vmatprep.subr.mxu0 %v2693
      %2899 = vmatpush2.msra.mxu0 %v2692
      %2900 = vmatprep.subr.mxu0 %v2691
      %2901 = vmatpush2.msra.mxu0 %v2690
      %2902 = vmatprep.subr.mxu0 %v2689
      %2903 = vmatpush2.msra.mxu0 %v2688
      %2904 = vmatprep.subr.mxu0 %v2687
      %2905 = vmatpush2.msra.mxu0 %v2686
      %2906 = vmatprep.subr.mxu0 %v2685
      %2907 = vmatpush2.msra.mxu0 %v2684
      %2908 = vmatprep.mubr.f32.mxu0 %v2623
      %2909 = vmatmul.mubr.f32.gmra.mxu0 %v2616
      %v2910 = vpop.f32.mrf.mxu0
      %v2911 = vadd.f32 0.0, %v2910
      %v2912 = vpop.f32.mrf.mxu0
      %v2913 = vadd.f32 0.0, %v2912
      %2914 = vdwg.mxu0
      %2915 = vmatprep.subr.mxu0 %v2747
      %2916 = vmatpush1.msra.mxu0 %v2746
      %2917 = vmatprep.subr.mxu0 %v2745
      %2918 = vmatpush1.msra.mxu0 %v2744
      %2919 = vmatprep.subr.mxu0 %v2743
      %2920 = vmatpush1.msra.mxu0 %v2742
      %2921 = vmatprep.subr.mxu0 %v2741
      %2922 = vmatpush1.msra.mxu0 %v2740
      %2923 = vmatprep.subr.mxu0 %v2739
      %2924 = vmatpush1.msra.mxu0 %v2738
      %2925 = vmatprep.subr.mxu0 %v2737
      %2926 = vmatpush1.msra.mxu0 %v2736
      %2927 = vmatprep.subr.mxu0 %v2735
      %2928 = vmatpush1.msra.mxu0 %v2734
      %2929 = vmatprep.subr.mxu0 %v2733
      %2930 = vmatpush1.msra.mxu0 %v2732
      %2931 = vmatprep.subr.mxu0 %v2731
      %2932 = vmatpush1.msra.mxu0 %v2730
      %2933 = vmatprep.subr.mxu0 %v2729
      %2934 = vmatpush1.msra.mxu0 %v2728
      %2935 = vmatprep.subr.mxu0 %v2727
      %2936 = vmatpush1.msra.mxu0 %v2726
      %2937 = vmatprep.subr.mxu0 %v2725
      %2938 = vmatpush1.msra.mxu0 %v2724
      %2939 = vmatprep.subr.mxu0 %v2723
      %2940 = vmatpush1.msra.mxu0 %v2722
      %2941 = vmatprep.subr.mxu0 %v2721
      %2942 = vmatpush1.msra.mxu0 %v2720
      %2943 = vmatprep.subr.mxu0 %v2719
      %2944 = vmatpush1.msra.mxu0 %v2718
      %2945 = vmatprep.subr.mxu0 %v2717
      %2946 = vmatpush1.msra.mxu0 %v2716
      %2947 = vmatprep.subr.mxu0 %v2779
      %2948 = vmatpush2.msra.mxu0 %v2778
      %2949 = vmatprep.subr.mxu0 %v2777
      %2950 = vmatpush2.msra.mxu0 %v2776
      %2951 = vmatprep.subr.mxu0 %v2775
      %2952 = vmatpush2.msra.mxu0 %v2774
      %2953 = vmatprep.subr.mxu0 %v2773
      %2954 = vmatpush2.msra.mxu0 %v2772
      %2955 = vmatprep.subr.mxu0 %v2771
      %2956 = vmatpush2.msra.mxu0 %v2770
      %2957 = vmatprep.subr.mxu0 %v2769
      %2958 = vmatpush2.msra.mxu0 %v2768
      %2959 = vmatprep.subr.mxu0 %v2767
      %2960 = vmatpush2.msra.mxu0 %v2766
      %2961 = vmatprep.subr.mxu0 %v2765
      %2962 = vmatpush2.msra.mxu0 %v2764
      %2963 = vmatprep.subr.mxu0 %v2763
      %2964 = vmatpush2.msra.mxu0 %v2762
      %2965 = vmatprep.subr.mxu0 %v2761
      %2966 = vmatpush2.msra.mxu0 %v2760
      %2967 = vmatprep.subr.mxu0 %v2759
      %2968 = vmatpush2.msra.mxu0 %v2758
      %2969 = vmatprep.subr.mxu0 %v2757
      %2970 = vmatpush2.msra.mxu0 %v2756
      %2971 = vmatprep.subr.mxu0 %v2755
      %2972 = vmatpush2.msra.mxu0 %v2754
      %2973 = vmatprep.subr.mxu0 %v2753
      %2974 = vmatpush2.msra.mxu0 %v2752
      %2975 = vmatprep.subr.mxu0 %v2751
      %2976 = vmatpush2.msra.mxu0 %v2750
      %2977 = vmatprep.subr.mxu0 %v2749
      %2978 = vmatpush2.msra.mxu0 %v2748
      %2979 = vmatprep.mubr.f32.mxu0 %v2637
      %2980 = vmatmul.mubr.f32.gmra.mxu0 %v2630
      %v2981 = vpop.f32.mrf.mxu0
      %v2982 = vadd.f32 %v2911, %v2981
      %v2983 = vpop.f32.mrf.mxu0
      %v2984 = vadd.f32 %v2913, %v2983
      %2985 = vdwg.mxu0
      %2986 = vmatprep.subr.mxu0 %v2811
      %2987 = vmatpush1.msra.mxu0 %v2810
      %2988 = vmatprep.subr.mxu0 %v2809
      %2989 = vmatpush1.msra.mxu0 %v2808
      %2990 = vmatprep.subr.mxu0 %v2807
      %2991 = vmatpush1.msra.mxu0 %v2806
      %2992 = vmatprep.subr.mxu0 %v2805
      %2993 = vmatpush1.msra.mxu0 %v2804
      %2994 = vmatprep.subr.mxu0 %v2803
      %2995 = vmatpush1.msra.mxu0 %v2802
      %2996 = vmatprep.subr.mxu0 %v2801
      %2997 = vmatpush1.msra.mxu0 %v2800
      %2998 = vmatprep.subr.mxu0 %v2799
      %2999 = vmatpush1.msra.mxu0 %v2798
      %3000 = vmatprep.subr.mxu0 %v2797
      %3001 = vmatpush1.msra.mxu0 %v2796
      %3002 = vmatprep.subr.mxu0 %v2795
      %3003 = vmatpush1.msra.mxu0 %v2794
      %3004 = vmatprep.subr.mxu0 %v2793
      %3005 = vmatpush1.msra.mxu0 %v2792
      %3006 = vmatprep.subr.mxu0 %v2791
      %3007 = vmatpush1.msra.mxu0 %v2790
      %3008 = vmatprep.subr.mxu0 %v2789
      %3009 = vmatpush1.msra.mxu0 %v2788
      %3010 = vmatprep.subr.mxu0 %v2787
      %3011 = vmatpush1.msra.mxu0 %v2786
      %3012 = vmatprep.subr.mxu0 %v2785
      %3013 = vmatpush1.msra.mxu0 %v2784
      %3014 = vmatprep.subr.mxu0 %v2783
      %3015 = vmatpush1.msra.mxu0 %v2782
      %3016 = vmatprep.subr.mxu0 %v2781
      %3017 = vmatpush1.msra.mxu0 %v2780
      %3018 = vmatprep.subr.mxu0 %v2843
      %3019 = vmatpush2.msra.mxu0 %v2842
      %3020 = vmatprep.subr.mxu0 %v2841
      %3021 = vmatpush2.msra.mxu0 %v2840
      %3022 = vmatprep.subr.mxu0 %v2839
      %3023 = vmatpush2.msra.mxu0 %v2838
      %3024 = vmatprep.subr.mxu0 %v2837
      %3025 = vmatpush2.msra.mxu0 %v2836
      %3026 = vmatprep.subr.mxu0 %v2835
      %3027 = vmatpush2.msra.mxu0 %v2834
      %3028 = vmatprep.subr.mxu0 %v2833
      %3029 = vmatpush2.msra.mxu0 %v2832
      %3030 = vmatprep.subr.mxu0 %v2831
      %3031 = vmatpush2.msra.mxu0 %v2830
      %3032 = vmatprep.subr.mxu0 %v2829
      %3033 = vmatpush2.msra.mxu0 %v2828
      %3034 = vmatprep.subr.mxu0 %v2827
      %3035 = vmatpush2.msra.mxu0 %v2826
      %3036 = vmatprep.subr.mxu0 %v2825
      %3037 = vmatpush2.msra.mxu0 %v2824
      %3038 = vmatprep.subr.mxu0 %v2823
      %3039 = vmatpush2.msra.mxu0 %v2822
      %3040 = vmatprep.subr.mxu0 %v2821
      %3041 = vmatpush2.msra.mxu0 %v2820
      %3042 = vmatprep.subr.mxu0 %v2819
      %3043 = vmatpush2.msra.mxu0 %v2818
      %3044 = vmatprep.subr.mxu0 %v2817
      %3045 = vmatpush2.msra.mxu0 %v2816
      %3046 = vmatprep.subr.mxu0 %v2815
      %3047 = vmatpush2.msra.mxu0 %v2814
      %3048 = vmatprep.subr.mxu0 %v2813
      %3049 = vmatpush2.msra.mxu0 %v2812
      %3050 = vmatprep.mubr.f32.mxu0 %v2651
      %3051 = vmatmul.mubr.f32.gmra.mxu0 %v2644
      %v3052 = vpop.f32.mrf.mxu0
      %v3053 = vadd.f32 %v2982, %v3052
      %v3054 = vpop.f32.mrf.mxu0
      %v3055 = vadd.f32 %v2984, %v3054
      %3056 = vdwg.mxu0
      %v3059 = vcombine.low %v3053, %v3055
      %v3061 = vunpack.c.l.s4 1966171168
      %v3062 = vunpack.c.0.s8 %v3061
      %v3063 = vlaneseq
      %v3064 = vshrl.u32 %v3063, 7
      %v3065 = vsub.s32 %v3062, %v3064
      %v3066 = vrot.slane %v3059, %v3065
      %v3068 = vunpack.c.l.s4 1966171168
      %v3069 = vunpack.c.0.s8 %v3068
      %v3070 = vlaneseq
      %v3071 = vshrl.u32 %v3070, 7
      %v3072 = vsub.s32 %v3069, %v3071
      %v3073 = vrot.slane %v3066, %v3072
      %v3075 = vlaneseq
      %vm3076 = vcmp.ge.s32.totalorder %v3075, 0
      %vm3077 = vcmp.lt.s32.totalorder %v3075, 256
      %vm3078 = vmand %vm3076, %vm3077
      %3079 = vst.msk [vmem:[%s394] sm:$0x3] %vm3078, %v3073
      %p3080 = scmp.lt.s32.totalorder %s22, 1
      %s3081 = scalar_select %p3080, %s22, 1
      %s3082 = smul.addr %s3081, 4
      %s3083 = smul.addr %s3082, 4
      %s3084 = scalar_lea.vmem %s9, %s3083
      %p3085 = scmp.lt.s32.totalorder %s22, 1
      %s3086 = scalar_select %p3085, %s22, 1
      %s3087 = smul.addr %s3086, 2
      %s3088 = scalar_lea.vmem %s10, %s3087
      // Predicated region
      $region57: #{drugban_forward.14} parent=55 // pred_check
        %p3089 = pneg %p239
      $region58: #{drugban_forward.14} parent=55 // pred_check_branch
        %3091 = sbr.rel (%p3089) target = $region60
      $region59: #{drugban_forward.14} parent=55 // pred_region
        _
      $region60: #{drugban_forward.14} parent=55 // pred_fallthru
        _
      // Predicated region
      $region61: #{drugban_forward.14} parent=55 // pred_check
        %p3092 = pneg %p265
      $region62: #{drugban_forward.14} parent=55 // pred_check_branch
        %3094 = sbr.rel (%p3092) target = $region64
      $region63: #{drugban_forward.14} parent=55 // pred_region
        _
      $region64: #{drugban_forward.14} parent=55 // pred_fallthru
        _
    $region56: #{drugban_forward.14} parent=5 // pred_fallthru
      _
    %p3095 = scmp.le.s32.totalorder 2, %s17
    // Predicated region
    $region65: #{drugban_forward.14} parent=5 // pred_check
      %p3096 = pneg %p3095
    $region66: #{drugban_forward.14} parent=5 // pred_check_branch
      %3098 = sbr.rel (%p3096) target = $region68
    $region67: #{drugban_forward.14} parent=5 // pred_region
      %s3099 = ssub.s32 %s17, 2
      // Predicated region
      $region69: #{drugban_forward.14} parent=67 // pred_check
        %p3100 = pneg %p245
      $region70: #{drugban_forward.14} parent=67 // pred_check_branch
        %3102 = sbr.rel (%p3100) target = $region72
      $region71: #{drugban_forward.14} parent=67 // pred_region
        %p3103 = scmp.lt.s32.totalorder %s23, 1
        %s3104 = scalar_select %p3103, %s23, 1
        %s3105 = smul.addr %s3104, 4
        %s3106 = smul.addr %s3105, 4
        %s3107 = scalar_lea.vmem %s9, %s3106
      $region72: #{drugban_forward.14} parent=67 // pred_fallthru
        _
      // Predicated region
      $region73: #{drugban_forward.14} parent=67 // pred_check
        %p3108 = pneg %p271
      $region74: #{drugban_forward.14} parent=67 // pred_check_branch
        %3110 = sbr.rel (%p3108) target = $region76
      $region75: #{drugban_forward.14} parent=67 // pred_region
        %p3111 = scmp.lt.s32.totalorder %s23, 1
        %s3112 = scalar_select %p3111, %s23, 1
        %s3113 = smul.addr %s3112, 2
        %s3114 = scalar_lea.vmem %s10, %s3113
      $region76: #{drugban_forward.14} parent=67 // pred_fallthru
        _
    $region68: #{drugban_forward.14} parent=5 // pred_fallthru
      _
  $region6: #{drugban_forward.14} parent=0 // loop_footer
    %s21 = sadd.s32 1, %s17
  $region7: #{drugban_forward.14} parent=0 // loop_footer_branch
    %16 = sbr.rel target = $region3
  $region8: #{drugban_forward.14} parent=0 // loop_exit
    _

// kernel: drugban_forward.15
$region0: #{drugban_forward.15}
  #allocation0 [shape = 'u32[]', space=smem, size = 0x4, offset = 0x4, fixed_abs, tag = 'smem constant byte address 0x4 - core index']
  #allocation1 [shape = 'u32[144,128]{1,0:T(1,128)}', space=vmem, size = 0x12000, scoped, tag = 'internal scratch']
  %s0 = inlined_call_operand.vmem [shape: f32[2,256], index: 0, kind: input, shape index: {}]
  %s1 = inlined_call_operand.vmem [shape: bf16[256,512], index: 1, kind: input, shape index: {}]
  %s2 = inlined_call_operand.vmem [shape: f32[1,512], index: 2, kind: input, shape index: {}]
  %s3 = inlined_call_operand.vmem [shape: bf16[512,512], index: 3, kind: input, shape index: {}]
  %s4 = inlined_call_operand.vmem [shape: f32[1,512], index: 4, kind: input, shape index: {}]
  %s5 = inlined_call_operand.vmem [shape: bf16[512,128], index: 5, kind: input, shape index: {}]
  %s6 = inlined_call_operand.vmem [shape: f32[1,128], index: 6, kind: input, shape index: {}]
  %s7 = inlined_call_operand.vmem [shape: bf16[128,128], index: 7, kind: input, shape index: {}]
  %s8 = inlined_call_operand.vmem [shape: f32[1,128], index: 8, kind: input, shape index: {}]
  %s9 = inlined_call_operand.hbm [shape: f32[2,128], index: 9, kind: output, shape index: {}]
  %s10 = sld [smem:[#allocation0]]
  $region46: #{drugban_forward.15} parent=0
    _
  %s12 = ssub.s32 1, %s10
  %s13 = scalar_select 0, %s12, %s10
  $region1: #{drugban_forward.15} parent=0
    #allocation2 [shape = 'u8[1024]{0}', space=vmem, size = 0x400, scoped, tag = 'output window, operand 0, single buffered']
    #allocation3 [shape = 's32[1]{0}', space=sflag, size = 0x4, scoped, tag = 'scoped memory for drugban_forward.15']
    %14 = vsyncpa [#allocation3], 0
    // Predicated region
    $region2: #{drugban_forward.15} parent=1 // pred_check
      _
    $region3: #{drugban_forward.15} parent=1 // pred_check_branch
      %16 = sbr.rel (0) target = $region5
    $region4: #{drugban_forward.15} parent=1 // pred_region
      _
    $region5: #{drugban_forward.15} parent=1 // pred_fallthru
      _
    // Predicated region
    $region6: #{drugban_forward.15} parent=1 // pred_check
      _
    $region7: #{drugban_forward.15} parent=1 // pred_check_branch
      %18 = sbr.rel (0) target = $region9
    $region8: #{drugban_forward.15} parent=1 // pred_region
      _
    $region9: #{drugban_forward.15} parent=1 // pred_fallthru
      _
    // Predicated region
    $region10: #{drugban_forward.15} parent=1 // pred_check
      _
    $region11: #{drugban_forward.15} parent=1 // pred_check_branch
      %20 = sbr.rel (0) target = $region13
    $region12: #{drugban_forward.15} parent=1 // pred_region
      _
    $region13: #{drugban_forward.15} parent=1 // pred_fallthru
      _
    // Predicated region
    $region14: #{drugban_forward.15} parent=1 // pred_check
      _
    $region15: #{drugban_forward.15} parent=1 // pred_check_branch
      %22 = sbr.rel (0) target = $region17
    $region16: #{drugban_forward.15} parent=1 // pred_region
      _
    $region17: #{drugban_forward.15} parent=1 // pred_fallthru
      _
    // Predicated region
    $region18: #{drugban_forward.15} parent=1 // pred_check
      _
    $region19: #{drugban_forward.15} parent=1 // pred_check_branch
      %24 = sbr.rel (0) target = $region21
    $region20: #{drugban_forward.15} parent=1 // pred_region
      _
    $region21: #{drugban_forward.15} parent=1 // pred_fallthru
      _
    // Predicated region
    $region22: #{drugban_forward.15} parent=1 // pred_check
      _
    $region23: #{drugban_forward.15} parent=1 // pred_check_branch
      %26 = sbr.rel (0) target = $region25
    $region24: #{drugban_forward.15} parent=1 // pred_region
      _
    $region25: #{drugban_forward.15} parent=1 // pred_fallthru
      _
    // Predicated region
    $region26: #{drugban_forward.15} parent=1 // pred_check
      _
    $region27: #{drugban_forward.15} parent=1 // pred_check_branch
      %28 = sbr.rel (0) target = $region29
    $region28: #{drugban_forward.15} parent=1 // pred_region
      _
    $region29: #{drugban_forward.15} parent=1 // pred_fallthru
      _
    // Predicated region
    $region30: #{drugban_forward.15} parent=1 // pred_check
      _
    $region31: #{drugban_forward.15} parent=1 // pred_check_branch
      %30 = sbr.rel (0) target = $region33
    $region32: #{drugban_forward.15} parent=1 // pred_region
      _
    $region33: #{drugban_forward.15} parent=1 // pred_fallthru
      _
    // Predicated region
    $region34: #{drugban_forward.15} parent=1 // pred_check
      _
    $region35: #{drugban_forward.15} parent=1 // pred_check_branch
      %32 = sbr.rel (0) target = $region37
    $region36: #{drugban_forward.15} parent=1 // pred_region
      _
    $region37: #{drugban_forward.15} parent=1 // pred_fallthru
      _
    %v34 = vld [vmem:[%s0] sm:$0xf]
    %v37 = vunpack.c.l.s4 1983009808
    %v38 = vunpack.c.0.s8 %v37
    %v39 = vlaneseq
    %v40 = vshrl.u32 %v39, 7
    %v41 = vsub.s32 %v38, %v40
    %v42 = vrot.slane %v34, %v41
    %v43 = vcombine.high %v42, %v42
    %vm44 = vcmask 15360
    %v46 = vsel %vm44, 1.0, 0
    %vm48 = vcmask 1041408
    %v49 = vsel %vm48, %v42, 0
    %v51 = vsel %vm48, %v43, 0
    %53 = vmatprep.subr.mxu0 0.0
    %54 = vmatpush1.msra.mxu0 0.0
    %55 = vmatprep.subr.mxu0 0.0
    %56 = vmatpush1.msra.mxu0 0.0
    %57 = vmatprep.subr.mxu0 0.0
    %58 = vmatpush1.msra.mxu0 0.0
    %59 = vmatprep.subr.mxu0 0.0
    %60 = vmatpush1.msra.mxu0 0.0
    %61 = vmatprep.subr.mxu0 0.0
    %62 = vmatpush1.msra.mxu0 0.0
    %63 = vmatprep.subr.mxu0 0.0
    %64 = vmatpush1.msra.mxu0 0.0
    %65 = vmatprep.subr.mxu0 0.0
    %66 = vmatpush1.msra.mxu0 0.0
    %67 = vmatprep.subr.mxu0 0.0
    %68 = vmatpush1.msra.mxu0 0.0
    %69 = vmatprep.subr.mxu0 0.0
    %70 = vmatpush1.msra.mxu0 0.0
    %71 = vmatprep.subr.mxu0 0.0
    %72 = vmatpush1.msra.mxu0 0.0
    %73 = vmatprep.subr.mxu0 0.0
    %74 = vmatpush1.msra.mxu0 0.0
    %75 = vmatprep.subr.mxu0 0.0
    %76 = vmatpush1.msra.mxu0 0.0
    %77 = vmatprep.subr.mxu0 0.0
    %78 = vmatpush1.msra.mxu0 0.0
    %79 = vmatprep.subr.mxu0 0.0
    %80 = vmatpush1.msra.mxu0 0.0
    %81 = vmatprep.subr.mxu0 0.0
    %82 = vmatpush1.msra.mxu0 0.0
    %83 = vmatprep.subr.mxu0 %v51
    %84 = vmatpush1.msra.mxu0 %v49
    %85 = vmatprep.subr.mxu0 0.0
    %86 = vmatpush2.msra.mxu0 0.0
    %87 = vmatprep.subr.mxu0 0.0
    %88 = vmatpush2.msra.mxu0 0.0
    %89 = vmatprep.subr.mxu0 0.0
    %90 = vmatpush2.msra.mxu0 0.0
    %91 = vmatprep.subr.mxu0 0.0
    %92 = vmatpush2.msra.mxu0 0.0
    %93 = vmatprep.subr.mxu0 0.0
    %94 = vmatpush2.msra.mxu0 0.0
    %95 = vmatprep.subr.mxu0 0.0
    %96 = vmatpush2.msra.mxu0 0.0
    %97 = vmatprep.subr.mxu0 0.0
    %98 = vmatpush2.msra.mxu0 0.0
    %99 = vmatprep.subr.mxu0 0.0
    %100 = vmatpush2.msra.mxu0 0.0
    %101 = vmatprep.subr.mxu0 0.0
    %102 = vmatpush2.msra.mxu0 0.0
    %103 = vmatprep.subr.mxu0 0.0
    %104 = vmatpush2.msra.mxu0 0.0
    %105 = vmatprep.subr.mxu0 0.0
    %106 = vmatpush2.msra.mxu0 0.0
    %107 = vmatprep.subr.mxu0 0.0
    %108 = vmatpush2.msra.mxu0 0.0
    %109 = vmatprep.subr.mxu0 0.0
    %110 = vmatpush2.msra.mxu0 0.0
    %111 = vmatprep.subr.mxu0 0.0
    %112 = vmatpush2.msra.mxu0 0.0
    %113 = vmatprep.subr.mxu0 0.0
    %114 = vmatpush2.msra.mxu0 0.0
    %115 = vmatprep.subr.mxu0 0.0
    %116 = vmatpush2.msra.mxu0 0.0
    %117 = vmatprep.mubr.f32.mxu0 0.0
    %118 = vmatmul.mubr.f32.gmra.mxu0 %v46
    %v119 = vpop.f32.mrf.mxu0
    %v120 = vadd.f32 0.0, %v119
    %v121 = vpop.f32.mrf.mxu0
    %v122 = vadd.f32 0.0, %v121
    %123 = vdwg.mxu0
    %v124 = vmul.f32 %v120, 0.5
    %v125 = vmul.f32 %v122, 0.5
    %v126 = vmul.f32 %v34, %v34
    %v129 = vunpack.c.l.s4 1983009808
    %v130 = vunpack.c.0.s8 %v129
    %v131 = vlaneseq
    %v132 = vshrl.u32 %v131, 7
    %v133 = vsub.s32 %v130, %v132
    %v134 = vrot.slane %v126, %v133
    %v135 = vcombine.high %v134, %v134
    %v136 = vsel %vm48, %v134, 0
    %v138 = vsel %vm48, %v135, 0
    %140 = vmatprep.subr.mxu0 0.0
    %141 = vmatpush1.msra.mxu0 0.0
    %142 = vmatprep.subr.mxu0 0.0
    %143 = vmatpush1.msra.mxu0 0.0
    %144 = vmatprep.subr.mxu0 0.0
    %145 = vmatpush1.msra.mxu0 0.0
    %146 = vmatprep.subr.mxu0 0.0
    %147 = vmatpush1.msra.mxu0 0.0
    %148 = vmatprep.subr.mxu0 0.0
    %149 = vmatpush1.msra.mxu0 0.0
    %150 = vmatprep.subr.mxu0 0.0
    %151 = vmatpush1.msra.mxu0 0.0
    %152 = vmatprep.subr.mxu0 0.0
    %153 = vmatpush1.msra.mxu0 0.0
    %154 = vmatprep.subr.mxu0 0.0
    %155 = vmatpush1.msra.mxu0 0.0
    %156 = vmatprep.subr.mxu0 0.0
    %157 = vmatpush1.msra.mxu0 0.0
    %158 = vmatprep.subr.mxu0 0.0
    %159 = vmatpush1.msra.mxu0 0.0
    %160 = vmatprep.subr.mxu0 0.0
    %161 = vmatpush1.msra.mxu0 0.0
    %162 = vmatprep.subr.mxu0 0.0
    %163 = vmatpush1.msra.mxu0 0.0
    %164 = vmatprep.subr.mxu0 0.0
    %165 = vmatpush1.msra.mxu0 0.0
    %166 = vmatprep.subr.mxu0 0.0
    %167 = vmatpush1.msra.mxu0 0.0
    %168 = vmatprep.subr.mxu0 0.0
    %169 = vmatpush1.msra.mxu0 0.0
    %170 = vmatprep.subr.mxu0 %v138
    %171 = vmatpush1.msra.mxu0 %v136
    %172 = vmatprep.subr.mxu0 0.0
    %173 = vmatpush2.msra.mxu0 0.0
    %174 = vmatprep.subr.mxu0 0.0
    %175 = vmatpush2.msra.mxu0 0.0
    %176 = vmatprep.subr.mxu0 0.0
    %177 = vmatpush2.msra.mxu0 0.0
    %178 = vmatprep.subr.mxu0 0.0
    %179 = vmatpush2.msra.mxu0 0.0
    %180 = vmatprep.subr.mxu0 0.0
    %181 = vmatpush2.msra.mxu0 0.0
    %182 = vmatprep.subr.mxu0 0.0
    %183 = vmatpush2.msra.mxu0 0.0
    %184 = vmatprep.subr.mxu0 0.0
    %185 = vmatpush2.msra.mxu0 0.0
    %186 = vmatprep.subr.mxu0 0.0
    %187 = vmatpush2.msra.mxu0 0.0
    %188 = vmatprep.subr.mxu0 0.0
    %189 = vmatpush2.msra.mxu0 0.0
    %190 = vmatprep.subr.mxu0 0.0
    %191 = vmatpush2.msra.mxu0 0.0
    %192 = vmatprep.subr.mxu0 0.0
    %193 = vmatpush2.msra.mxu0 0.0
    %194 = vmatprep.subr.mxu0 0.0
    %195 = vmatpush2.msra.mxu0 0.0
    %196 = vmatprep.subr.mxu0 0.0
    %197 = vmatpush2.msra.mxu0 0.0
    %198 = vmatprep.subr.mxu0 0.0
    %199 = vmatpush2.msra.mxu0 0.0
    %200 = vmatprep.subr.mxu0 0.0
    %201 = vmatpush2.msra.mxu0 0.0
    %202 = vmatprep.subr.mxu0 0.0
    %203 = vmatpush2.msra.mxu0 0.0
    %204 = vmatprep.mubr.f32.mxu0 0.0
    %205 = vmatmul.mubr.f32.gmra.mxu0 %v46
    %v206 = vpop.f32.mrf.mxu0
    %v207 = vadd.f32 0.0, %v206
    %v208 = vpop.f32.mrf.mxu0
    %v209 = vadd.f32 0.0, %v208
    %210 = vdwg.mxu0
    %v211 = vmul.f32 %v207, 0.5
    %v212 = vmul.f32 %v209, 0.5
    %v213 = vmul.f32 %v124, %v124
    %v214 = vmul.f32 %v125, %v125
    %v215 = vsub.f32 %v211, %v213
    %v216 = vsub.f32 %v212, %v214
    %v217 = vmax.f32 %v215, 0.0
    %v218 = vmax.f32 %v216, 0.0
    %v219 = vlaneseq
    %v220 = vshrl.u32 %v219, 7
    %v221 = vsub.s32 0, %v220
    %v222 = vrot.slane %v124, %v221
    %v223 = vlaneseq
    %v224 = vshrl.u32 %v223, 7
    %v225 = vsub.s32 0, %v224
    %v226 = vrot.slane %v125, %v225
    %v229 = vcombine.low %v222, %v226
    %v231 = vunpack.c.l.s4 1983009808
    %v232 = vunpack.c.0.s8 %v231
    %v233 = vlaneseq
    %v234 = vshrl.u32 %v233, 7
    %v235 = vsub.s32 %v232, %v234
    %v236 = vrot.slane %v229, %v235
    %v238 = vsub.f32 %v34, %v236
    %v239 = vadd.f32 %v217, 1e-05
    %v240 = vadd.f32 %v218, 1e-05
    %v241 = vrsqrt.pop %v239
    %v242 = vrsqrt.pop %v240
    %v243 = vlaneseq
    %v244 = vshrl.u32 %v243, 7
    %v245 = vsub.s32 0, %v244
    %v246 = vrot.slane %v241, %v245
    %v247 = vlaneseq
    %v248 = vshrl.u32 %v247, 7
    %v249 = vsub.s32 0, %v248
    %v250 = vrot.slane %v242, %v249
    %v253 = vcombine.low %v246, %v250
    %v255 = vunpack.c.l.s4 1983009808
    %v256 = vunpack.c.0.s8 %v255
    %v257 = vlaneseq
    %v258 = vshrl.u32 %v257, 7
    %v259 = vsub.s32 %v256, %v258
    %v260 = vrot.slane %v253, %v259
    %v262 = vmul.f32 %v238, %v260
    %v265 = vunpack.c.l.s4 1983009808
    %v266 = vunpack.c.0.s8 %v265
    %v267 = vlaneseq
    %v268 = vshrl.u32 %v267, 7
    %v269 = vsub.s32 %v266, %v268
    %v270 = vrot.slane %v262, %v269
    %v271 = vcombine.high %v270, %v270
    %v274 = vpack.c.bf16 %v270, %v270
    %v275 = vpack.c.bf16 %v271, %v271
    %v276 = vld [vmem:[%s1] sm:$0xff]
    %v277 = vld [vmem:[%s1 + $0x8] sm:$0xff]
    %v278 = vld [vmem:[%s1 + $0x10] sm:$0xff]
    %v279 = vld [vmem:[%s1 + $0x18] sm:$0xff]
    %v280 = vld [vmem:[%s1 + $0x20] sm:$0xff]
    %v281 = vld [vmem:[%s1 + $0x28] sm:$0xff]
    %v282 = vld [vmem:[%s1 + $0x30] sm:$0xff]
    %v283 = vld [vmem:[%s1 + $0x38] sm:$0xff]
    %v284 = vld [vmem:[%s1 + $0x40] sm:$0xff]
    %v285 = vld [vmem:[%s1 + $0x48] sm:$0xff]
    %v286 = vld [vmem:[%s1 + $0x50] sm:$0xff]
    %v287 = vld [vmem:[%s1 + $0x58] sm:$0xff]
    %v288 = vld [vmem:[%s1 + $0x60] sm:$0xff]
    %v289 = vld [vmem:[%s1 + $0x68] sm:$0xff]
    %v290 = vld [vmem:[%s1 + $0x70] sm:$0xff]
    %v291 = vld [vmem:[%s1 + $0x78] sm:$0xff]
    %v292 = vld [vmem:[%s1 + $0x80] sm:$0xff]
    %v293 = vld [vmem:[%s1 + $0x88] sm:$0xff]
    %v294 = vld [vmem:[%s1 + $0x90] sm:$0xff]
    %v295 = vld [vmem:[%s1 + $0x98] sm:$0xff]
    %v296 = vld [vmem:[%s1 + $0xa0] sm:$0xff]
    %v297 = vld [vmem:[%s1 + $0xa8] sm:$0xff]
    %v298 = vld [vmem:[%s1 + $0xb0] sm:$0xff]
    %v299 = vld [vmem:[%s1 + $0xb8] sm:$0xff]
    %v300 = vld [vmem:[%s1 + $0xc0] sm:$0xff]
    %v301 = vld [vmem:[%s1 + $0xc8] sm:$0xff]
    %v302 = vld [vmem:[%s1 + $0xd0] sm:$0xff]
    %v303 = vld [vmem:[%s1 + $0xd8] sm:$0xff]
    %v304 = vld [vmem:[%s1 + $0xe0] sm:$0xff]
    %v305 = vld [vmem:[%s1 + $0xe8] sm:$0xff]
    %v306 = vld [vmem:[%s1 + $0xf0] sm:$0xff]
    %v307 = vld [vmem:[%s1 + $0xf8] sm:$0xff]
    %v308 = vld [vmem:[%s1 + $0x100] sm:$0xff]
    %v309 = vld [vmem:[%s1 + $0x108] sm:$0xff]
    %v310 = vld [vmem:[%s1 + $0x110] sm:$0xff]
    %v311 = vld [vmem:[%s1 + $0x118] sm:$0xff]
    %v312 = vld [vmem:[%s1 + $0x120] sm:$0xff]
    %v313 = vld [vmem:[%s1 + $0x128] sm:$0xff]
    %v314 = vld [vmem:[%s1 + $0x130] sm:$0xff]
    %v315 = vld [vmem:[%s1 + $0x138] sm:$0xff]
    %v316 = vld [vmem:[%s1 + $0x140] sm:$0xff]
    %v317 = vld [vmem:[%s1 + $0x148] sm:$0xff]
    %v318 = vld [vmem:[%s1 + $0x150] sm:$0xff]
    %v319 = vld [vmem:[%s1 + $0x158] sm:$0xff]
    %v320 = vld [vmem:[%s1 + $0x160] sm:$0xff]
    %v321 = vld [vmem:[%s1 + $0x168] sm:$0xff]
    %v322 = vld [vmem:[%s1 + $0x170] sm:$0xff]
    %v323 = vld [vmem:[%s1 + $0x178] sm:$0xff]
    %v324 = vld [vmem:[%s1 + $0x180] sm:$0xff]
    %v325 = vld [vmem:[%s1 + $0x188] sm:$0xff]
    %v326 = vld [vmem:[%s1 + $0x190] sm:$0xff]
    %v327 = vld [vmem:[%s1 + $0x198] sm:$0xff]
    %v328 = vld [vmem:[%s1 + $0x1a0] sm:$0xff]
    %v329 = vld [vmem:[%s1 + $0x1a8] sm:$0xff]
    %v330 = vld [vmem:[%s1 + $0x1b0] sm:$0xff]
    %v331 = vld [vmem:[%s1 + $0x1b8] sm:$0xff]
    %v332 = vld [vmem:[%s1 + $0x1c0] sm:$0xff]
    %v333 = vld [vmem:[%s1 + $0x1c8] sm:$0xff]
    %v334 = vld [vmem:[%s1 + $0x1d0] sm:$0xff]
    %v335 = vld [vmem:[%s1 + $0x1d8] sm:$0xff]
    %v336 = vld [vmem:[%s1 + $0x1e0] sm:$0xff]
    %v337 = vld [vmem:[%s1 + $0x1e8] sm:$0xff]
    %v338 = vld [vmem:[%s1 + $0x1f0] sm:$0xff]
    %v339 = vld [vmem:[%s1 + $0x1f8] sm:$0xff]
    %v340 = vld [vmem:[%s2] sm:$0xf]
    %v342 = vlaneseq
    %v343 = vshrl.u32 %v342, 7
    %v344 = vsub.s32 0, %v343
    %v345 = vrot.slane %v340, %v344
    %v346 = vlaneseq
    %v347 = vshrl.u32 %v346, 7
    %v348 = vsub.s32 1, %v347
    %v349 = vrot.slane %v340, %v348
    %v350 = vlaneseq
    %v351 = vshrl.u32 %v350, 7
    %v352 = vsub.s32 2, %v351
    %v353 = vrot.slane %v340, %v352
    %v354 = vlaneseq
    %v355 = vshrl.u32 %v354, 7
    %v356 = vsub.s32 3, %v355
    %v357 = vrot.slane %v340, %v356
    %v426 = vunpack.c.l.b16 %v276
    %v427 = vunpack.c.h.b16 %v276
    %v428 = vunpack.c.l.b16 %v277
    %v429 = vunpack.c.h.b16 %v277
    %v430 = vunpack.c.l.b16 %v278
    %v431 = vunpack.c.h.b16 %v278
    %v432 = vunpack.c.l.b16 %v279
    %v433 = vunpack.c.h.b16 %v279
    %v434 = vunpack.c.l.b16 %v280
    %v435 = vunpack.c.h.b16 %v280
    %v436 = vunpack.c.l.b16 %v281
    %v437 = vunpack.c.h.b16 %v281
    %v438 = vunpack.c.l.b16 %v282
    %v439 = vunpack.c.h.b16 %v282
    %v440 = vunpack.c.l.b16 %v283
    %v441 = vunpack.c.h.b16 %v283
    %v442 = vunpack.c.l.b16 %v284
    %v443 = vunpack.c.h.b16 %v284
    %v444 = vunpack.c.l.b16 %v285
    %v445 = vunpack.c.h.b16 %v285
    %v446 = vunpack.c.l.b16 %v286
    %v447 = vunpack.c.h.b16 %v286
    %v448 = vunpack.c.l.b16 %v287
    %v449 = vunpack.c.h.b16 %v287
    %v450 = vunpack.c.l.b16 %v288
    %v451 = vunpack.c.h.b16 %v288
    %v452 = vunpack.c.l.b16 %v289
    %v453 = vunpack.c.h.b16 %v289
    %v454 = vunpack.c.l.b16 %v290
    %v455 = vunpack.c.h.b16 %v290
    %v456 = vunpack.c.l.b16 %v291
    %v457 = vunpack.c.h.b16 %v291
    %v458 = vunpack.c.l.b16 %v292
    %v459 = vunpack.c.h.b16 %v292
    %v460 = vunpack.c.l.b16 %v293
    %v461 = vunpack.c.h.b16 %v293
    %v462 = vunpack.c.l.b16 %v294
    %v463 = vunpack.c.h.b16 %v294
    %v464 = vunpack.c.l.b16 %v295
    %v465 = vunpack.c.h.b16 %v295
    %v466 = vunpack.c.l.b16 %v296
    %v467 = vunpack.c.h.b16 %v296
    %v468 = vunpack.c.l.b16 %v297
    %v469 = vunpack.c.h.b16 %v297
    %v470 = vunpack.c.l.b16 %v298
    %v471 = vunpack.c.h.b16 %v298
    %v472 = vunpack.c.l.b16 %v299
    %v473 = vunpack.c.h.b16 %v299
    %v474 = vunpack.c.l.b16 %v300
    %v475 = vunpack.c.h.b16 %v300
    %v476 = vunpack.c.l.b16 %v301
    %v477 = vunpack.c.h.b16 %v301
    %v478 = vunpack.c.l.b16 %v302
    %v479 = vunpack.c.h.b16 %v302
    %v480 = vunpack.c.l.b16 %v303
    %v481 = vunpack.c.h.b16 %v303
    %v482 = vunpack.c.l.b16 %v304
    %v483 = vunpack.c.h.b16 %v304
    %v484 = vunpack.c.l.b16 %v305
    %v485 = vunpack.c.h.b16 %v305
    %v486 = vunpack.c.l.b16 %v306
    %v487 = vunpack.c.h.b16 %v306
    %v488 = vunpack.c.l.b16 %v307
    %v489 = vunpack.c.h.b16 %v307
    %v490 = vunpack.c.l.b16 %v308
    %v491 = vunpack.c.h.b16 %v308
    %v492 = vunpack.c.l.b16 %v309
    %v493 = vunpack.c.h.b16 %v309
    %v494 = vunpack.c.l.b16 %v310
    %v495 = vunpack.c.h.b16 %v310
    %v496 = vunpack.c.l.b16 %v311
    %v497 = vunpack.c.h.b16 %v311
    %v498 = vunpack.c.l.b16 %v312
    %v499 = vunpack.c.h.b16 %v312
    %v500 = vunpack.c.l.b16 %v313
    %v501 = vunpack.c.h.b16 %v313
    %v502 = vunpack.c.l.b16 %v314
    %v503 = vunpack.c.h.b16 %v314
    %v504 = vunpack.c.l.b16 %v315
    %v505 = vunpack.c.h.b16 %v315
    %v506 = vunpack.c.l.b16 %v316
    %v507 = vunpack.c.h.b16 %v316
    %v508 = vunpack.c.l.b16 %v317
    %v509 = vunpack.c.h.b16 %v317
    %v510 = vunpack.c.l.b16 %v318
    %v511 = vunpack.c.h.b16 %v318
    %v512 = vunpack.c.l.b16 %v319
    %v513 = vunpack.c.h.b16 %v319
    %v514 = vunpack.c.l.b16 %v320
    %v515 = vunpack.c.h.b16 %v320
    %v516 = vunpack.c.l.b16 %v321
    %v517 = vunpack.c.h.b16 %v321
    %v518 = vunpack.c.l.b16 %v322
    %v519 = vunpack.c.h.b16 %v322
    %v520 = vunpack.c.l.b16 %v323
    %v521 = vunpack.c.h.b16 %v323
    %v522 = vunpack.c.l.b16 %v324
    %v523 = vunpack.c.h.b16 %v324
    %v524 = vunpack.c.l.b16 %v325
    %v525 = vunpack.c.h.b16 %v325
    %v526 = vunpack.c.l.b16 %v326
    %v527 = vunpack.c.h.b16 %v326
    %v528 = vunpack.c.l.b16 %v327
    %v529 = vunpack.c.h.b16 %v327
    %v530 = vunpack.c.l.b16 %v328
    %v531 = vunpack.c.h.b16 %v328
    %v532 = vunpack.c.l.b16 %v329
    %v533 = vunpack.c.h.b16 %v329
    %v534 = vunpack.c.l.b16 %v330
    %v535 = vunpack.c.h.b16 %v330
    %v536 = vunpack.c.l.b16 %v331
    %v537 = vunpack.c.h.b16 %v331
    %v538 = vunpack.c.l.b16 %v332
    %v539 = vunpack.c.h.b16 %v332
    %v540 = vunpack.c.l.b16 %v333
    %v541 = vunpack.c.h.b16 %v333
    %v542 = vunpack.c.l.b16 %v334
    %v543 = vunpack.c.h.b16 %v334
    %v544 = vunpack.c.l.b16 %v335
    %v545 = vunpack.c.h.b16 %v335
    %v546 = vunpack.c.l.b16 %v336
    %v547 = vunpack.c.h.b16 %v336
    %v548 = vunpack.c.l.b16 %v337
    %v549 = vunpack.c.h.b16 %v337
    %v550 = vunpack.c.l.b16 %v338
    %v551 = vunpack.c.h.b16 %v338
    %v552 = vunpack.c.l.b16 %v339
    %v553 = vunpack.c.h.b16 %v339
    %v554 = vpack.c.b16 %v430, %v426
    %v555 = vpack.c.b16 %v431, %v427
    %v556 = vpack.c.b16 %v432, %v428
    %v557 = vpack.c.b16 %v433, %v429
    %v558 = vpack.c.b16 %v438, %v434
    %v559 = vpack.c.b16 %v439, %v435
    %v560 = vpack.c.b16 %v440, %v436
    %v561 = vpack.c.b16 %v441, %v437
    %v562 = vpack.c.b16 %v446, %v442
    %v563 = vpack.c.b16 %v447, %v443
    %v564 = vpack.c.b16 %v448, %v444
    %v565 = vpack.c.b16 %v449, %v445
    %v566 = vpack.c.b16 %v454, %v450
    %v567 = vpack.c.b16 %v455, %v451
    %v568 = vpack.c.b16 %v456, %v452
    %v569 = vpack.c.b16 %v457, %v453
    %v570 = vpack.c.b16 %v462, %v458
    %v571 = vpack.c.b16 %v463, %v459
    %v572 = vpack.c.b16 %v464, %v460
    %v573 = vpack.c.b16 %v465, %v461
    %v574 = vpack.c.b16 %v470, %v466
    %v575 = vpack.c.b16 %v471, %v467
    %v576 = vpack.c.b16 %v472, %v468
    %v577 = vpack.c.b16 %v473, %v469
    %v578 = vpack.c.b16 %v478, %v474
    %v579 = vpack.c.b16 %v479, %v475
    %v580 = vpack.c.b16 %v480, %v476
    %v581 = vpack.c.b16 %v481, %v477
    %v582 = vpack.c.b16 %v486, %v482
    %v583 = vpack.c.b16 %v487, %v483
    %v584 = vpack.c.b16 %v488, %v484
    %v585 = vpack.c.b16 %v489, %v485
    %v586 = vpack.c.b16 %v494, %v490
    %v587 = vpack.c.b16 %v495, %v491
    %v588 = vpack.c.b16 %v496, %v492
    %v589 = vpack.c.b16 %v497, %v493
    %v590 = vpack.c.b16 %v502, %v498
    %v591 = vpack.c.b16 %v503, %v499
    %v592 = vpack.c.b16 %v504, %v500
    %v593 = vpack.c.b16 %v505, %v501
    %v594 = vpack.c.b16 %v510, %v506
    %v595 = vpack.c.b16 %v511, %v507
    %v596 = vpack.c.b16 %v512, %v508
    %v597 = vpack.c.b16 %v513, %v509
    %v598 = vpack.c.b16 %v518, %v514
    %v599 = vpack.c.b16 %v519, %v515
    %v600 = vpack.c.b16 %v520, %v516
    %v601 = vpack.c.b16 %v521, %v517
    %v602 = vpack.c.b16 %v526, %v522
    %v603 = vpack.c.b16 %v527, %v523
    %v604 = vpack.c.b16 %v528, %v524
    %v605 = vpack.c.b16 %v529, %v525
    %v606 = vpack.c.b16 %v534, %v530
    %v607 = vpack.c.b16 %v535, %v531
    %v608 = vpack.c.b16 %v536, %v532
    %v609 = vpack.c.b16 %v537, %v533
    %v610 = vpack.c.b16 %v542, %v538
    %v611 = vpack.c.b16 %v543, %v539
    %v612 = vpack.c.b16 %v544, %v540
    %v613 = vpack.c.b16 %v545, %v541
    %v614 = vpack.c.b16 %v550, %v546
    %v615 = vpack.c.b16 %v551, %v547
    %v616 = vpack.c.b16 %v552, %v548
    %v617 = vpack.c.b16 %v553, %v549
    %682 = vmatprep.subr.bf16.mxu0 %v583
    %683 = vmatpush1.bf16.msra.mxu0 %v582
    %684 = vmatprep.subr.bf16.mxu0 %v579
    %685 = vmatpush1.bf16.msra.mxu0 %v578
    %686 = vmatprep.subr.bf16.mxu0 %v575
    %687 = vmatpush1.bf16.msra.mxu0 %v574
    %688 = vmatprep.subr.bf16.mxu0 %v571
    %689 = vmatpush1.bf16.msra.mxu0 %v570
    %690 = vmatprep.subr.bf16.mxu0 %v567
    %691 = vmatpush1.bf16.msra.mxu0 %v566
    %692 = vmatprep.subr.bf16.mxu0 %v563
    %693 = vmatpush1.bf16.msra.mxu0 %v562
    %694 = vmatprep.subr.bf16.mxu0 %v559
    %695 = vmatpush1.bf16.msra.mxu0 %v558
    %696 = vmatprep.subr.bf16.mxu0 %v555
    %697 = vmatpush1.bf16.msra.mxu0 %v554
    %698 = vmatprep.subr.bf16.mxu0 %v615
    %699 = vmatpush2.bf16.msra.mxu0 %v614
    %700 = vmatprep.subr.bf16.mxu0 %v611
    %701 = vmatpush2.bf16.msra.mxu0 %v610
    %702 = vmatprep.subr.bf16.mxu0 %v607
    %703 = vmatpush2.bf16.msra.mxu0 %v606
    %704 = vmatprep.subr.bf16.mxu0 %v603
    %705 = vmatpush2.bf16.msra.mxu0 %v602
    %706 = vmatprep.subr.bf16.mxu0 %v599
    %707 = vmatpush2.bf16.msra.mxu0 %v598
    %708 = vmatprep.subr.bf16.mxu0 %v595
    %709 = vmatpush2.bf16.msra.mxu0 %v594
    %710 = vmatprep.subr.bf16.mxu0 %v591
    %711 = vmatpush2.bf16.msra.mxu0 %v590
    %712 = vmatprep.subr.bf16.mxu0 %v587
    %713 = vmatpush2.bf16.msra.mxu0 %v586
    %714 = vmatprep.mubr.bf16.mxu0 %v275
    %715 = vmatmul.mubr.bf16.gmra.mxu0 %v274
    %v716 = vpop.f32.mrf.mxu0
    %v717 = vadd.f32 %v345, %v716
    %v718 = vpop.f32.mrf.mxu0
    %v719 = vadd.f32 %v349, %v718
    %v720 = vpop.f32.mrf.mxu0
    %v721 = vpop.f32.mrf.mxu0
    %722 = vdwg.mxu0
    %723 = vmatprep.subr.bf16.mxu0 %v585
    %724 = vmatpush1.bf16.msra.mxu0 %v584
    %725 = vmatprep.subr.bf16.mxu0 %v581
    %726 = vmatpush1.bf16.msra.mxu0 %v580
    %727 = vmatprep.subr.bf16.mxu0 %v577
    %728 = vmatpush1.bf16.msra.mxu0 %v576
    %729 = vmatprep.subr.bf16.mxu0 %v573
    %730 = vmatpush1.bf16.msra.mxu0 %v572
    %731 = vmatprep.subr.bf16.mxu0 %v569
    %732 = vmatpush1.bf16.msra.mxu0 %v568
    %733 = vmatprep.subr.bf16.mxu0 %v565
    %734 = vmatpush1.bf16.msra.mxu0 %v564
    %735 = vmatprep.subr.bf16.mxu0 %v561
    %736 = vmatpush1.bf16.msra.mxu0 %v560
    %737 = vmatprep.subr.bf16.mxu0 %v557
    %738 = vmatpush1.bf16.msra.mxu0 %v556
    %739 = vmatprep.subr.bf16.mxu0 %v617
    %740 = vmatpush2.bf16.msra.mxu0 %v616
    %741 = vmatprep.subr.bf16.mxu0 %v613
    %742 = vmatpush2.bf16.msra.mxu0 %v612
    %743 = vmatprep.subr.bf16.mxu0 %v609
    %744 = vmatpush2.bf16.msra.mxu0 %v608
    %745 = vmatprep.subr.bf16.mxu0 %v605
    %746 = vmatpush2.bf16.msra.mxu0 %v604
    %747 = vmatprep.subr.bf16.mxu0 %v601
    %748 = vmatpush2.bf16.msra.mxu0 %v600
    %749 = vmatprep.subr.bf16.mxu0 %v597
    %750 = vmatpush2.bf16.msra.mxu0 %v596
    %751 = vmatprep.subr.bf16.mxu0 %v593
    %752 = vmatpush2.bf16.msra.mxu0 %v592
    %753 = vmatprep.subr.bf16.mxu0 %v589
    %754 = vmatpush2.bf16.msra.mxu0 %v588
    %755 = vmatprep.mubr.bf16.mxu0 %v275
    %756 = vmatmul.mubr.bf16.gmra.mxu0 %v274
    %v757 = vpop.f32.mrf.mxu0
    %v758 = vadd.f32 %v353, %v757
    %v759 = vpop.f32.mrf.mxu0
    %v760 = vadd.f32 %v357, %v759
    %v761 = vpop.f32.mrf.mxu0
    %v762 = vpop.f32.mrf.mxu0
    %763 = vdwg.mxu0
    %v764 = vmax.f32 %v717, 0.0
    %v765 = vmax.f32 %v719, 0.0
    %v766 = vmax.f32 %v758, 0.0
    %v767 = vmax.f32 %v760, 0.0
    %v769 = vsel %vm48, %v764, 0
    %v772 = vsel %vm48, %v765, 0
    %v775 = vsel %vm48, %v766, 0
    %v778 = vsel %vm48, %v767, 0
    %780 = vmatprep.subr.mxu0 0.0
    %781 = vmatpush1.msra.mxu0 0.0
    %782 = vmatprep.subr.mxu0 0.0
    %783 = vmatpush1.msra.mxu0 0.0
    %784 = vmatprep.subr.mxu0 0.0
    %785 = vmatpush1.msra.mxu0 0.0
    %786 = vmatprep.subr.mxu0 0.0
    %787 = vmatpush1.msra.mxu0 0.0
    %788 = vmatprep.subr.mxu0 0.0
    %789 = vmatpush1.msra.mxu0 0.0
    %790 = vmatprep.subr.mxu0 0.0
    %791 = vmatpush1.msra.mxu0 0.0
    %792 = vmatprep.subr.mxu0 0.0
    %793 = vmatpush1.msra.mxu0 0.0
    %794 = vmatprep.subr.mxu0 0.0
    %795 = vmatpush1.msra.mxu0 0.0
    %796 = vmatprep.subr.mxu0 0.0
    %797 = vmatpush1.msra.mxu0 0.0
    %798 = vmatprep.subr.mxu0 0.0
    %799 = vmatpush1.msra.mxu0 0.0
    %800 = vmatprep.subr.mxu0 0.0
    %801 = vmatpush1.msra.mxu0 0.0
    %802 = vmatprep.subr.mxu0 0.0
    %803 = vmatpush1.msra.mxu0 0.0
    %804 = vmatprep.subr.mxu0 0.0
    %805 = vmatpush1.msra.mxu0 0.0
    %806 = vmatprep.subr.mxu0 0.0
    %807 = vmatpush1.msra.mxu0 0.0
    %808 = vmatprep.subr.mxu0 0.0
    %809 = vmatpush1.msra.mxu0 0.0
    %810 = vmatprep.subr.mxu0 %v772
    %811 = vmatpush1.msra.mxu0 %v769
    %812 = vmatprep.subr.mxu0 0.0
    %813 = vmatpush2.msra.mxu0 0.0
    %814 = vmatprep.subr.mxu0 0.0
    %815 = vmatpush2.msra.mxu0 0.0
    %816 = vmatprep.subr.mxu0 0.0
    %817 = vmatpush2.msra.mxu0 0.0
    %818 = vmatprep.subr.mxu0 0.0
    %819 = vmatpush2.msra.mxu0 0.0
    %820 = vmatprep.subr.mxu0 0.0
    %821 = vmatpush2.msra.mxu0 0.0
    %822 = vmatprep.subr.mxu0 0.0
    %823 = vmatpush2.msra.mxu0 0.0
    %824 = vmatprep.subr.mxu0 0.0
    %825 = vmatpush2.msra.mxu0 0.0
    %826 = vmatprep.subr.mxu0 0.0
    %827 = vmatpush2.msra.mxu0 0.0
    %828 = vmatprep.subr.mxu0 0.0
    %829 = vmatpush2.msra.mxu0 0.0
    %830 = vmatprep.subr.mxu0 0.0
    %831 = vmatpush2.msra.mxu0 0.0
    %832 = vmatprep.subr.mxu0 0.0
    %833 = vmatpush2.msra.mxu0 0.0
    %834 = vmatprep.subr.mxu0 0.0
    %835 = vmatpush2.msra.mxu0 0.0
    %836 = vmatprep.subr.mxu0 0.0
    %837 = vmatpush2.msra.mxu0 0.0
    %838 = vmatprep.subr.mxu0 0.0
    %839 = vmatpush2.msra.mxu0 0.0
    %840 = vmatprep.subr.mxu0 0.0
    %841 = vmatpush2.msra.mxu0 0.0
    %842 = vmatprep.subr.mxu0 0.0
    %843 = vmatpush2.msra.mxu0 0.0
    %844 = vmatprep.mubr.f32.mxu0 0.0
    %845 = vmatmul.mubr.f32.gmra.mxu0 %v46
    %v846 = vpop.f32.mrf.mxu0
    %v847 = vadd.f32 0.0, %v846
    %v848 = vpop.f32.mrf.mxu0
    %v849 = vadd.f32 0.0, %v848
    %850 = vdwg.mxu0
    %851 = vmatprep.subr.mxu0 0.0
    %852 = vmatpush1.msra.mxu0 0.0
    %853 = vmatprep.subr.mxu0 0.0
    %854 = vmatpush1.msra.mxu0 0.0
    %855 = vmatprep.subr.mxu0 0.0
    %856 = vmatpush1.msra.mxu0 0.0
    %857 = vmatprep.subr.mxu0 0.0
    %858 = vmatpush1.msra.mxu0 0.0
    %859 = vmatprep.subr.mxu0 0.0
    %860 = vmatpush1.msra.mxu0 0.0
    %861 = vmatprep.subr.mxu0 0.0
    %862 = vmatpush1.msra.mxu0 0.0
    %863 = vmatprep.subr.mxu0 0.0
    %864 = vmatpush1.msra.mxu0 0.0
    %865 = vmatprep.subr.mxu0 0.0
    %866 = vmatpush1.msra.mxu0 0.0
    %867 = vmatprep.subr.mxu0 0.0
    %868 = vmatpush1.msra.mxu0 0.0
    %869 = vmatprep.subr.mxu0 0.0
    %870 = vmatpush1.msra.mxu0 0.0
    %871 = vmatprep.subr.mxu0 0.0
    %872 = vmatpush1.msra.mxu0 0.0
    %873 = vmatprep.subr.mxu0 0.0
    %874 = vmatpush1.msra.mxu0 0.0
    %875 = vmatprep.subr.mxu0 0.0
    %876 = vmatpush1.msra.mxu0 0.0
    %877 = vmatprep.subr.mxu0 0.0
    %878 = vmatpush1.msra.mxu0 0.0
    %879 = vmatprep.subr.mxu0 0.0
    %880 = vmatpush1.msra.mxu0 0.0
    %881 = vmatprep.subr.mxu0 %v778
    %882 = vmatpush1.msra.mxu0 %v775
    %883 = vmatprep.subr.mxu0 0.0
    %884 = vmatpush2.msra.mxu0 0.0
    %885 = vmatprep.subr.mxu0 0.0
    %886 = vmatpush2.msra.mxu0 0.0
    %887 = vmatprep.subr.mxu0 0.0
    %888 = vmatpush2.msra.mxu0 0.0
    %889 = vmatprep.subr.mxu0 0.0
    %890 = vmatpush2.msra.mxu0 0.0
    %891 = vmatprep.subr.mxu0 0.0
    %892 = vmatpush2.msra.mxu0 0.0
    %893 = vmatprep.subr.mxu0 0.0
    %894 = vmatpush2.msra.mxu0 0.0
    %895 = vmatprep.subr.mxu0 0.0
    %896 = vmatpush2.msra.mxu0 0.0
    %897 = vmatprep.subr.mxu0 0.0
    %898 = vmatpush2.msra.mxu0 0.0
    %899 = vmatprep.subr.mxu0 0.0
    %900 = vmatpush2.msra.mxu0 0.0
    %901 = vmatprep.subr.mxu0 0.0
    %902 = vmatpush2.msra.mxu0 0.0
    %903 = vmatprep.subr.mxu0 0.0
    %904 = vmatpush2.msra.mxu0 0.0
    %905 = vmatprep.subr.mxu0 0.0
    %906 = vmatpush2.msra.mxu0 0.0
    %907 = vmatprep.subr.mxu0 0.0
    %908 = vmatpush2.msra.mxu0 0.0
    %909 = vmatprep.subr.mxu0 0.0
    %910 = vmatpush2.msra.mxu0 0.0
    %911 = vmatprep.subr.mxu0 0.0
    %912 = vmatpush2.msra.mxu0 0.0
    %913 = vmatprep.subr.mxu0 0.0
    %914 = vmatpush2.msra.mxu0 0.0
    %915 = vmatprep.mubr.f32.mxu0 0.0
    %916 = vmatmul.mubr.f32.gmra.mxu0 %v46
    %v917 = vpop.f32.mrf.mxu0
    %v918 = vadd.f32 0.0, %v917
    %v919 = vpop.f32.mrf.mxu0
    %v920 = vadd.f32 0.0, %v919
    %921 = vdwg.mxu0
    %v922 = vmul.f32 %v847, 0.5
    %v923 = vmul.f32 %v849, 0.5
    %v924 = vmul.f32 %v918, 0.5
    %v925 = vmul.f32 %v920, 0.5
    %v926 = vmul.f32 %v764, %v764
    %v927 = vmul.f32 %v765, %v765
    %v928 = vmul.f32 %v766, %v766
    %v929 = vmul.f32 %v767, %v767
    %v931 = vsel %vm48, %v926, 0
    %v934 = vsel %vm48, %v927, 0
    %v937 = vsel %vm48, %v928, 0
    %v940 = vsel %vm48, %v929, 0
    %942 = vmatprep.subr.mxu0 0.0
    %943 = vmatpush1.msra.mxu0 0.0
    %944 = vmatprep.subr.mxu0 0.0
    %945 = vmatpush1.msra.mxu0 0.0
    %946 = vmatprep.subr.mxu0 0.0
    %947 = vmatpush1.msra.mxu0 0.0
    %948 = vmatprep.subr.mxu0 0.0
    %949 = vmatpush1.msra.mxu0 0.0
    %950 = vmatprep.subr.mxu0 0.0
    %951 = vmatpush1.msra.mxu0 0.0
    %952 = vmatprep.subr.mxu0 0.0
    %953 = vmatpush1.msra.mxu0 0.0
    %954 = vmatprep.subr.mxu0 0.0
    %955 = vmatpush1.msra.mxu0 0.0
    %956 = vmatprep.subr.mxu0 0.0
    %957 = vmatpush1.msra.mxu0 0.0
    %958 = vmatprep.subr.mxu0 0.0
    %959 = vmatpush1.msra.mxu0 0.0
    %960 = vmatprep.subr.mxu0 0.0
    %961 = vmatpush1.msra.mxu0 0.0
    %962 = vmatprep.subr.mxu0 0.0
    %963 = vmatpush1.msra.mxu0 0.0
    %964 = vmatprep.subr.mxu0 0.0
    %965 = vmatpush1.msra.mxu0 0.0
    %966 = vmatprep.subr.mxu0 0.0
    %967 = vmatpush1.msra.mxu0 0.0
    %968 = vmatprep.subr.mxu0 0.0
    %969 = vmatpush1.msra.mxu0 0.0
    %970 = vmatprep.subr.mxu0 0.0
    %971 = vmatpush1.msra.mxu0 0.0
    %972 = vmatprep.subr.mxu0 %v934
    %973 = vmatpush1.msra.mxu0 %v931
    %974 = vmatprep.subr.mxu0 0.0
    %975 = vmatpush2.msra.mxu0 0.0
    %976 = vmatprep.subr.mxu0 0.0
    %977 = vmatpush2.msra.mxu0 0.0
    %978 = vmatprep.subr.mxu0 0.0
    %979 = vmatpush2.msra.mxu0 0.0
    %980 = vmatprep.subr.mxu0 0.0
    %981 = vmatpush2.msra.mxu0 0.0
    %982 = vmatprep.subr.mxu0 0.0
    %983 = vmatpush2.msra.mxu0 0.0
    %984 = vmatprep.subr.mxu0 0.0
    %985 = vmatpush2.msra.mxu0 0.0
    %986 = vmatprep.subr.mxu0 0.0
    %987 = vmatpush2.msra.mxu0 0.0
    %988 = vmatprep.subr.mxu0 0.0
    %989 = vmatpush2.msra.mxu0 0.0
    %990 = vmatprep.subr.mxu0 0.0
    %991 = vmatpush2.msra.mxu0 0.0
    %992 = vmatprep.subr.mxu0 0.0
    %993 = vmatpush2.msra.mxu0 0.0
    %994 = vmatprep.subr.mxu0 0.0
    %995 = vmatpush2.msra.mxu0 0.0
    %996 = vmatprep.subr.mxu0 0.0
    %997 = vmatpush2.msra.mxu0 0.0
    %998 = vmatprep.subr.mxu0 0.0
    %999 = vmatpush2.msra.mxu0 0.0
    %1000 = vmatprep.subr.mxu0 0.0
    %1001 = vmatpush2.msra.mxu0 0.0
    %1002 = vmatprep.subr.mxu0 0.0
    %1003 = vmatpush2.msra.mxu0 0.0
    %1004 = vmatprep.subr.mxu0 0.0
    %1005 = vmatpush2.msra.mxu0 0.0
    %1006 = vmatprep.mubr.f32.mxu0 0.0
    %1007 = vmatmul.mubr.f32.gmra.mxu0 %v46
    %v1008 = vpop.f32.mrf.mxu0
    %v1009 = vadd.f32 0.0, %v1008
    %v1010 = vpop.f32.mrf.mxu0
    %v1011 = vadd.f32 0.0, %v1010
    %1012 = vdwg.mxu0
    %1013 = vmatprep.subr.mxu0 0.0
    %1014 = vmatpush1.msra.mxu0 0.0
    %1015 = vmatprep.subr.mxu0 0.0
    %1016 = vmatpush1.msra.mxu0 0.0
    %1017 = vmatprep.subr.mxu0 0.0
    %1018 = vmatpush1.msra.mxu0 0.0
    %1019 = vmatprep.subr.mxu0 0.0
    %1020 = vmatpush1.msra.mxu0 0.0
    %1021 = vmatprep.subr.mxu0 0.0
    %1022 = vmatpush1.msra.mxu0 0.0
    %1023 = vmatprep.subr.mxu0 0.0
    %1024 = vmatpush1.msra.mxu0 0.0
    %1025 = vmatprep.subr.mxu0 0.0
    %1026 = vmatpush1.msra.mxu0 0.0
    %1027 = vmatprep.subr.mxu0 0.0
    %1028 = vmatpush1.msra.mxu0 0.0
    %1029 = vmatprep.subr.mxu0 0.0
    %1030 = vmatpush1.msra.mxu0 0.0
    %1031 = vmatprep.subr.mxu0 0.0
    %1032 = vmatpush1.msra.mxu0 0.0
    %1033 = vmatprep.subr.mxu0 0.0
    %1034 = vmatpush1.msra.mxu0 0.0
    %1035 = vmatprep.subr.mxu0 0.0
    %1036 = vmatpush1.msra.mxu0 0.0
    %1037 = vmatprep.subr.mxu0 0.0
    %1038 = vmatpush1.msra.mxu0 0.0
    %1039 = vmatprep.subr.mxu0 0.0
    %1040 = vmatpush1.msra.mxu0 0.0
    %1041 = vmatprep.subr.mxu0 0.0
    %1042 = vmatpush1.msra.mxu0 0.0
    %1043 = vmatprep.subr.mxu0 %v940
    %1044 = vmatpush1.msra.mxu0 %v937
    %1045 = vmatprep.subr.mxu0 0.0
    %1046 = vmatpush2.msra.mxu0 0.0
    %1047 = vmatprep.subr.mxu0 0.0
    %1048 = vmatpush2.msra.mxu0 0.0
    %1049 = vmatprep.subr.mxu0 0.0
    %1050 = vmatpush2.msra.mxu0 0.0
    %1051 = vmatprep.subr.mxu0 0.0
    %1052 = vmatpush2.msra.mxu0 0.0
    %1053 = vmatprep.subr.mxu0 0.0
    %1054 = vmatpush2.msra.mxu0 0.0
    %1055 = vmatprep.subr.mxu0 0.0
    %1056 = vmatpush2.msra.mxu0 0.0
    %1057 = vmatprep.subr.mxu0 0.0
    %1058 = vmatpush2.msra.mxu0 0.0
    %1059 = vmatprep.subr.mxu0 0.0
    %1060 = vmatpush2.msra.mxu0 0.0
    %1061 = vmatprep.subr.mxu0 0.0
    %1062 = vmatpush2.msra.mxu0 0.0
    %1063 = vmatprep.subr.mxu0 0.0
    %1064 = vmatpush2.msra.mxu0 0.0
    %1065 = vmatprep.subr.mxu0 0.0
    %1066 = vmatpush2.msra.mxu0 0.0
    %1067 = vmatprep.subr.mxu0 0.0
    %1068 = vmatpush2.msra.mxu0 0.0
    %1069 = vmatprep.subr.mxu0 0.0
    %1070 = vmatpush2.msra.mxu0 0.0
    %1071 = vmatprep.subr.mxu0 0.0
    %1072 = vmatpush2.msra.mxu0 0.0
    %1073 = vmatprep.subr.mxu0 0.0
    %1074 = vmatpush2.msra.mxu0 0.0
    %1075 = vmatprep.subr.mxu0 0.0
    %1076 = vmatpush2.msra.mxu0 0.0
    %1077 = vmatprep.mubr.f32.mxu0 0.0
    %1078 = vmatmul.mubr.f32.gmra.mxu0 %v46
    %v1079 = vpop.f32.mrf.mxu0
    %v1080 = vadd.f32 0.0, %v1079
    %v1081 = vpop.f32.mrf.mxu0
    %v1082 = vadd.f32 0.0, %v1081
    %1083 = vdwg.mxu0
    %v1084 = vmul.f32 %v1009, 0.5
    %v1085 = vmul.f32 %v1011, 0.5
    %v1086 = vmul.f32 %v1080, 0.5
    %v1087 = vmul.f32 %v1082, 0.5
    %v1088 = vmul.f32 %v922, %v922
    %v1089 = vmul.f32 %v923, %v923
    %v1090 = vmul.f32 %v924, %v924
    %v1091 = vmul.f32 %v925, %v925
    %v1092 = vsub.f32 %v1084, %v1088
    %v1093 = vsub.f32 %v1085, %v1089
    %v1094 = vsub.f32 %v1086, %v1090
    %v1095 = vsub.f32 %v1087, %v1091
    %v1096 = vmax.f32 %v1092, 0.0
    %v1097 = vmax.f32 %v1093, 0.0
    %v1098 = vmax.f32 %v1094, 0.0
    %v1099 = vmax.f32 %v1095, 0.0
    %v1100 = vlaneseq
    %v1101 = vshrl.u32 %v1100, 7
    %v1102 = vsub.s32 0, %v1101
    %v1103 = vrot.slane %v922, %v1102
    %v1104 = vlaneseq
    %v1105 = vshrl.u32 %v1104, 7
    %v1106 = vsub.s32 0, %v1105
    %v1107 = vrot.slane %v923, %v1106
    %v1108 = vlaneseq
    %v1109 = vshrl.u32 %v1108, 7
    %v1110 = vsub.s32 0, %v1109
    %v1111 = vrot.slane %v924, %v1110
    %v1112 = vlaneseq
    %v1113 = vshrl.u32 %v1112, 7
    %v1114 = vsub.s32 0, %v1113
    %v1115 = vrot.slane %v925, %v1114
    %v1116 = vsub.f32 %v764, %v1103
    %v1117 = vsub.f32 %v765, %v1107
    %v1118 = vsub.f32 %v766, %v1111
    %v1119 = vsub.f32 %v767, %v1115
    %v1120 = vadd.f32 %v1096, 1e-05
    %v1121 = vadd.f32 %v1097, 1e-05
    %v1122 = vadd.f32 %v1098, 1e-05
    %v1123 = vadd.f32 %v1099, 1e-05
    %v1124 = vrsqrt.pop %v1120
    %v1125 = vrsqrt.pop %v1121
    %v1126 = vrsqrt.pop %v1122
    %v1127 = vrsqrt.pop %v1123
    %v1128 = vlaneseq
    %v1129 = vshrl.u32 %v1128, 7
    %v1130 = vsub.s32 0, %v1129
    %v1131 = vrot.slane %v1124, %v1130
    %v1132 = vlaneseq
    %v1133 = vshrl.u32 %v1132, 7
    %v1134 = vsub.s32 0, %v1133
    %v1135 = vrot.slane %v1125, %v1134
    %v1136 = vlaneseq
    %v1137 = vshrl.u32 %v1136, 7
    %v1138 = vsub.s32 0, %v1137
    %v1139 = vrot.slane %v1126, %v1138
    %v1140 = vlaneseq
    %v1141 = vshrl.u32 %v1140, 7
    %v1142 = vsub.s32 0, %v1141
    %v1143 = vrot.slane %v1127, %v1142
    %v1144 = vmul.f32 %v1116, %v1131
    %v1145 = vmul.f32 %v1117, %v1135
    %v1146 = vmul.f32 %v1118, %v1139
    %v1147 = vmul.f32 %v1119, %v1143
    %v1148 = vpack.c.bf16 %v1144, %v1144
    %v1149 = vpack.c.bf16 %v1145, %v1145
    %v1150 = vpack.c.bf16 %v1146, %v1146
    %v1151 = vpack.c.bf16 %v1147, %v1147
    %v1152 = vld [vmem:[%s3] sm:$0xff]
    %v1153 = vld [vmem:[%s3 + $0x8] sm:$0xff]
    %v1154 = vld [vmem:[%s3 + $0x10] sm:$0xff]
    %v1155 = vld [vmem:[%s3 + $0x18] sm:$0xff]
    %v1156 = vld [vmem:[%s3 + $0x20] sm:$0xff]
    %v1157 = vld [vmem:[%s3 + $0x28] sm:$0xff]
    %v1158 = vld [vmem:[%s3 + $0x30] sm:$0xff]
    %v1159 = vld [vmem:[%s3 + $0x38] sm:$0xff]
    %v1160 = vld [vmem:[%s3 + $0x40] sm:$0xff]
    %v1161 = vld [vmem:[%s3 + $0x48] sm:$0xff]
    %v1162 = vld [vmem:[%s3 + $0x50] sm:$0xff]
    %v1163 = vld [vmem:[%s3 + $0x58] sm:$0xff]
    %v1164 = vld [vmem:[%s3 + $0x60] sm:$0xff]
    %v1165 = vld [vmem:[%s3 + $0x68] sm:$0xff]
    %v1166 = vld [vmem:[%s3 + $0x70] sm:$0xff]
    %v1167 = vld [vmem:[%s3 + $0x78] sm:$0xff]
    %v1168 = vld [vmem:[%s3 + $0x80] sm:$0xff]
    %v1169 = vld [vmem:[%s3 + $0x88] sm:$0xff]
    %v1170 = vld [vmem:[%s3 + $0x90] sm:$0xff]
    %v1171 = vld [vmem:[%s3 + $0x98] sm:$0xff]
    %v1172 = vld [vmem:[%s3 + $0xa0] sm:$0xff]
    %v1173 = vld [vmem:[%s3 + $0xa8] sm:$0xff]
    %v1174 = vld [vmem:[%s3 + $0xb0] sm:$0xff]
    %v1175 = vld [vmem:[%s3 + $0xb8] sm:$0xff]
    %v1176 = vld [vmem:[%s3 + $0xc0] sm:$0xff]
    %v1177 = vld [vmem:[%s3 + $0xc8] sm:$0xff]
    %v1178 = vld [vmem:[%s3 + $0xd0] sm:$0xff]
    %v1179 = vld [vmem:[%s3 + $0xd8] sm:$0xff]
    %v1180 = vld [vmem:[%s3 + $0xe0] sm:$0xff]
    %v1181 = vld [vmem:[%s3 + $0xe8] sm:$0xff]
    %v1182 = vld [vmem:[%s3 + $0xf0] sm:$0xff]
    %v1183 = vld [vmem:[%s3 + $0xf8] sm:$0xff]
    %v1184 = vld [vmem:[%s3 + $0x100] sm:$0xff]
    %v1185 = vld [vmem:[%s3 + $0x108] sm:$0xff]
    %v1186 = vld [vmem:[%s3 + $0x110] sm:$0xff]
    %v1187 = vld [vmem:[%s3 + $0x118] sm:$0xff]
    %v1188 = vld [vmem:[%s3 + $0x120] sm:$0xff]
    %v1189 = vld [vmem:[%s3 + $0x128] sm:$0xff]
    %v1190 = vld [vmem:[%s3 + $0x130] sm:$0xff]
    %v1191 = vld [vmem:[%s3 + $0x138] sm:$0xff]
    %v1192 = vld [vmem:[%s3 + $0x140] sm:$0xff]
    %v1193 = vld [vmem:[%s3 + $0x148] sm:$0xff]
    %v1194 = vld [vmem:[%s3 + $0x150] sm:$0xff]
    %v1195 = vld [vmem:[%s3 + $0x158] sm:$0xff]
    %v1196 = vld [vmem:[%s3 + $0x160] sm:$0xff]
    %v1197 = vld [vmem:[%s3 + $0x168] sm:$0xff]
    %v1198 = vld [vmem:[%s3 + $0x170] sm:$0xff]
    %v1199 = vld [vmem:[%s3 + $0x178] sm:$0xff]
    %v1200 = vld [vmem:[%s3 + $0x180] sm:$0xff]
    %v1201 = vld [vmem:[%s3 + $0x188] sm:$0xff]
    %v1202 = vld [vmem:[%s3 + $0x190] sm:$0xff]
    %v1203 = vld [vmem:[%s3 + $0x198] sm:$0xff]
    %v1204 = vld [vmem:[%s3 + $0x1a0] sm:$0xff]
    %v1205 = vld [vmem:[%s3 + $0x1a8] sm:$0xff]
    %v1206 = vld [vmem:[%s3 + $0x1b0] sm:$0xff]
    %v1207 = vld [vmem:[%s3 + $0x1b8] sm:$0xff]
    %v1208 = vld [vmem:[%s3 + $0x1c0] sm:$0xff]
    %v1209 = vld [vmem:[%s3 + $0x1c8] sm:$0xff]
    %v1210 = vld [vmem:[%s3 + $0x1d0] sm:$0xff]
    %v1211 = vld [vmem:[%s3 + $0x1d8] sm:$0xff]
    %v1212 = vld [vmem:[%s3 + $0x1e0] sm:$0xff]
    %v1213 = vld [vmem:[%s3 + $0x1e8] sm:$0xff]
    %v1214 = vld [vmem:[%s3 + $0x1f0] sm:$0xff]
    %v1215 = vld [vmem:[%s3 + $0x1f8] sm:$0xff]
    %v1216 = vld [vmem:[%s3 + $0x200] sm:$0xff]
    %v1217 = vld [vmem:[%s3 + $0x208] sm:$0xff]
    %v1218 = vld [vmem:[%s3 + $0x210] sm:$0xff]
    %v1219 = vld [vmem:[%s3 + $0x218] sm:$0xff]
    %v1220 = vld [vmem:[%s3 + $0x220] sm:$0xff]
    %v1221 = vld [vmem:[%s3 + $0x228] sm:$0xff]
    %v1222 = vld [vmem:[%s3 + $0x230] sm:$0xff]
    %v1223 = vld [vmem:[%s3 + $0x238] sm:$0xff]
    %v1224 = vld [vmem:[%s3 + $0x240] sm:$0xff]
    %v1225 = vld [vmem:[%s3 + $0x248] sm:$0xff]
    %v1226 = vld [vmem:[%s3 + $0x250] sm:$0xff]
    %v1227 = vld [vmem:[%s3 + $0x258] sm:$0xff]
    %v1228 = vld [vmem:[%s3 + $0x260] sm:$0xff]
    %v1229 = vld [vmem:[%s3 + $0x268] sm:$0xff]
    %v1230 = vld [vmem:[%s3 + $0x270] sm:$0xff]
    %v1231 = vld [vmem:[%s3 + $0x278] sm:$0xff]
    %v1232 = vld [vmem:[%s3 + $0x280] sm:$0xff]
    %v1233 = vld [vmem:[%s3 + $0x288] sm:$0xff]
    %v1234 = vld [vmem:[%s3 + $0x290] sm:$0xff]
    %v1235 = vld [vmem:[%s3 + $0x298] sm:$0xff]
    %v1236 = vld [vmem:[%s3 + $0x2a0] sm:$0xff]
    %v1237 = vld [vmem:[%s3 + $0x2a8] sm:$0xff]
    %v1238 = vld [vmem:[%s3 + $0x2b0] sm:$0xff]
    %v1239 = vld [vmem:[%s3 + $0x2b8] sm:$0xff]
    %v1240 = vld [vmem:[%s3 + $0x2c0] sm:$0xff]
    %v1241 = vld [vmem:[%s3 + $0x2c8] sm:$0xff]
    %v1242 = vld [vmem:[%s3 + $0x2d0] sm:$0xff]
    %v1243 = vld [vmem:[%s3 + $0x2d8] sm:$0xff]
    %v1244 = vld [vmem:[%s3 + $0x2e0] sm:$0xff]
    %v1245 = vld [vmem:[%s3 + $0x2e8] sm:$0xff]
    %v1246 = vld [vmem:[%s3 + $0x2f0] sm:$0xff]
    %v1247 = vld [vmem:[%s3 + $0x2f8] sm:$0xff]
    %v1248 = vld [vmem:[%s3 + $0x300] sm:$0xff]
    %v1249 = vld [vmem:[%s3 + $0x308] sm:$0xff]
    %v1250 = vld [vmem:[%s3 + $0x310] sm:$0xff]
    %v1251 = vld [vmem:[%s3 + $0x318] sm:$0xff]
    %v1252 = vld [vmem:[%s3 + $0x320] sm:$0xff]
    %v1253 = vld [vmem:[%s3 + $0x328] sm:$0xff]
    %v1254 = vld [vmem:[%s3 + $0x330] sm:$0xff]
    %v1255 = vld [vmem:[%s3 + $0x338] sm:$0xff]
    %v1256 = vld [vmem:[%s3 + $0x340] sm:$0xff]
    %v1257 = vld [vmem:[%s3 + $0x348] sm:$0xff]
    %v1258 = vld [vmem:[%s3 + $0x350] sm:$0xff]
    %v1259 = vld [vmem:[%s3 + $0x358] sm:$0xff]
    %v1260 = vld [vmem:[%s3 + $0x360] sm:$0xff]
    %v1261 = vld [vmem:[%s3 + $0x368] sm:$0xff]
    %v1262 = vld [vmem:[%s3 + $0x370] sm:$0xff]
    %v1263 = vld [vmem:[%s3 + $0x378] sm:$0xff]
    %v1264 = vld [vmem:[%s3 + $0x380] sm:$0xff]
    %v1265 = vld [vmem:[%s3 + $0x388] sm:$0xff]
    %v1266 = vld [vmem:[%s3 + $0x390] sm:$0xff]
    %v1267 = vld [vmem:[%s3 + $0x398] sm:$0xff]
    %v1268 = vld [vmem:[%s3 + $0x3a0] sm:$0xff]
    %v1269 = vld [vmem:[%s3 + $0x3a8] sm:$0xff]
    %v1270 = vld [vmem:[%s3 + $0x3b0] sm:$0xff]
    %v1271 = vld [vmem:[%s3 + $0x3b8] sm:$0xff]
    %v1272 = vld [vmem:[%s3 + $0x3c0] sm:$0xff]
    %v1273 = vld [vmem:[%s3 + $0x3c8] sm:$0xff]
    %v1274 = vld [vmem:[%s3 + $0x3d0] sm:$0xff]
    %v1275 = vld [vmem:[%s3 + $0x3d8] sm:$0xff]
    %v1276 = vld [vmem:[%s3 + $0x3e0] sm:$0xff]
    %v1277 = vld [vmem:[%s3 + $0x3e8] sm:$0xff]
    %v1278 = vld [vmem:[%s3 + $0x3f0] sm:$0xff]
    %v1279 = vld [vmem:[%s3 + $0x3f8] sm:$0xff]
    %v1280 = vld [vmem:[%s4] sm:$0xf]
    %v1282 = vlaneseq
    %v1283 = vshrl.u32 %v1282, 7
    %v1284 = vsub.s32 0, %v1283
    %v1285 = vrot.slane %v1280, %v1284
    %v1286 = vlaneseq
    %v1287 = vshrl.u32 %v1286, 7
    %v1288 = vsub.s32 1, %v1287
    %v1289 = vrot.slane %v1280, %v1288
    %v1290 = vlaneseq
    %v1291 = vshrl.u32 %v1290, 7
    %v1292 = vsub.s32 2, %v1291
    %v1293 = vrot.slane %v1280, %v1292
    %v1294 = vlaneseq
    %v1295 = vshrl.u32 %v1294, 7
    %v1296 = vsub.s32 3, %v1295
    %v1297 = vrot.slane %v1280, %v1296
    %v1430 = vunpack.c.l.b16 %v1152
    %v1431 = vunpack.c.h.b16 %v1152
    %v1432 = vunpack.c.l.b16 %v1153
    %v1433 = vunpack.c.h.b16 %v1153
    %v1434 = vunpack.c.l.b16 %v1154
    %v1435 = vunpack.c.h.b16 %v1154
    %v1436 = vunpack.c.l.b16 %v1155
    %v1437 = vunpack.c.h.b16 %v1155
    %v1438 = vunpack.c.l.b16 %v1156
    %v1439 = vunpack.c.h.b16 %v1156
    %v1440 = vunpack.c.l.b16 %v1157
    %v1441 = vunpack.c.h.b16 %v1157
    %v1442 = vunpack.c.l.b16 %v1158
    %v1443 = vunpack.c.h.b16 %v1158
    %v1444 = vunpack.c.l.b16 %v1159
    %v1445 = vunpack.c.h.b16 %v1159
    %v1446 = vunpack.c.l.b16 %v1160
    %v1447 = vunpack.c.h.b16 %v1160
    %v1448 = vunpack.c.l.b16 %v1161
    %v1449 = vunpack.c.h.b16 %v1161
    %v1450 = vunpack.c.l.b16 %v1162
    %v1451 = vunpack.c.h.b16 %v1162
    %v1452 = vunpack.c.l.b16 %v1163
    %v1453 = vunpack.c.h.b16 %v1163
    %v1454 = vunpack.c.l.b16 %v1164
    %v1455 = vunpack.c.h.b16 %v1164
    %v1456 = vunpack.c.l.b16 %v1165
    %v1457 = vunpack.c.h.b16 %v1165
    %v1458 = vunpack.c.l.b16 %v1166
    %v1459 = vunpack.c.h.b16 %v1166
    %v1460 = vunpack.c.l.b16 %v1167
    %v1461 = vunpack.c.h.b16 %v1167
    %v1462 = vunpack.c.l.b16 %v1168
    %v1463 = vunpack.c.h.b16 %v1168
    %v1464 = vunpack.c.l.b16 %v1169
    %v1465 = vunpack.c.h.b16 %v1169
    %v1466 = vunpack.c.l.b16 %v1170
    %v1467 = vunpack.c.h.b16 %v1170
    %v1468 = vunpack.c.l.b16 %v1171
    %v1469 = vunpack.c.h.b16 %v1171
    %v1470 = vunpack.c.l.b16 %v1172
    %v1471 = vunpack.c.h.b16 %v1172
    %v1472 = vunpack.c.l.b16 %v1173
    %v1473 = vunpack.c.h.b16 %v1173
    %v1474 = vunpack.c.l.b16 %v1174
    %v1475 = vunpack.c.h.b16 %v1174
    %v1476 = vunpack.c.l.b16 %v1175
    %v1477 = vunpack.c.h.b16 %v1175
    %v1478 = vunpack.c.l.b16 %v1176
    %v1479 = vunpack.c.h.b16 %v1176
    %v1480 = vunpack.c.l.b16 %v1177
    %v1481 = vunpack.c.h.b16 %v1177
    %v1482 = vunpack.c.l.b16 %v1178
    %v1483 = vunpack.c.h.b16 %v1178
    %v1484 = vunpack.c.l.b16 %v1179
    %v1485 = vunpack.c.h.b16 %v1179
    %v1486 = vunpack.c.l.b16 %v1180
    %v1487 = vunpack.c.h.b16 %v1180
    %v1488 = vunpack.c.l.b16 %v1181
    %v1489 = vunpack.c.h.b16 %v1181
    %v1490 = vunpack.c.l.b16 %v1182
    %v1491 = vunpack.c.h.b16 %v1182
    %v1492 = vunpack.c.l.b16 %v1183
    %v1493 = vunpack.c.h.b16 %v1183
    %v1494 = vunpack.c.l.b16 %v1184
    %v1495 = vunpack.c.h.b16 %v1184
    %v1496 = vunpack.c.l.b16 %v1185
    %v1497 = vunpack.c.h.b16 %v1185
    %v1498 = vunpack.c.l.b16 %v1186
    %v1499 = vunpack.c.h.b16 %v1186
    %v1500 = vunpack.c.l.b16 %v1187
    %v1501 = vunpack.c.h.b16 %v1187
    %v1502 = vunpack.c.l.b16 %v1188
    %v1503 = vunpack.c.h.b16 %v1188
    %v1504 = vunpack.c.l.b16 %v1189
    %v1505 = vunpack.c.h.b16 %v1189
    %v1506 = vunpack.c.l.b16 %v1190
    %v1507 = vunpack.c.h.b16 %v1190
    %v1508 = vunpack.c.l.b16 %v1191
    %v1509 = vunpack.c.h.b16 %v1191
    %v1510 = vunpack.c.l.b16 %v1192
    %v1511 = vunpack.c.h.b16 %v1192
    %v1512 = vunpack.c.l.b16 %v1193
    %v1513 = vunpack.c.h.b16 %v1193
    %v1514 = vunpack.c.l.b16 %v1194
    %v1515 = vunpack.c.h.b16 %v1194
    %v1516 = vunpack.c.l.b16 %v1195
    %v1517 = vunpack.c.h.b16 %v1195
    %v1518 = vunpack.c.l.b16 %v1196
    %v1519 = vunpack.c.h.b16 %v1196
    %v1520 = vunpack.c.l.b16 %v1197
    %v1521 = vunpack.c.h.b16 %v1197
    %v1522 = vunpack.c.l.b16 %v1198
    %v1523 = vunpack.c.h.b16 %v1198
    %v1524 = vunpack.c.l.b16 %v1199
    %v1525 = vunpack.c.h.b16 %v1199
    %v1526 = vunpack.c.l.b16 %v1200
    %v1527 = vunpack.c.h.b16 %v1200
    %v1528 = vunpack.c.l.b16 %v1201
    %v1529 = vunpack.c.h.b16 %v1201
    %v1530 = vunpack.c.l.b16 %v1202
    %v1531 = vunpack.c.h.b16 %v1202
    %v1532 = vunpack.c.l.b16 %v1203
    %v1533 = vunpack.c.h.b16 %v1203
    %v1534 = vunpack.c.l.b16 %v1204
    %v1535 = vunpack.c.h.b16 %v1204
    %v1536 = vunpack.c.l.b16 %v1205
    %v1537 = vunpack.c.h.b16 %v1205
    %v1538 = vunpack.c.l.b16 %v1206
    %v1539 = vunpack.c.h.b16 %v1206
    %v1540 = vunpack.c.l.b16 %v1207
    %v1541 = vunpack.c.h.b16 %v1207
    %v1542 = vunpack.c.l.b16 %v1208
    %v1543 = vunpack.c.h.b16 %v1208
    %v1544 = vunpack.c.l.b16 %v1209
    %v1545 = vunpack.c.h.b16 %v1209
    %v1546 = vunpack.c.l.b16 %v1210
    %v1547 = vunpack.c.h.b16 %v1210
    %v1548 = vunpack.c.l.b16 %v1211
    %v1549 = vunpack.c.h.b16 %v1211
    %v1550 = vunpack.c.l.b16 %v1212
    %v1551 = vunpack.c.h.b16 %v1212
    %v1552 = vunpack.c.l.b16 %v1213
    %v1553 = vunpack.c.h.b16 %v1213
    %v1554 = vunpack.c.l.b16 %v1214
    %v1555 = vunpack.c.h.b16 %v1214
    %v1556 = vunpack.c.l.b16 %v1215
    %v1557 = vunpack.c.h.b16 %v1215
    %v1558 = vunpack.c.l.b16 %v1216
    %v1559 = vunpack.c.h.b16 %v1216
    %v1560 = vunpack.c.l.b16 %v1217
    %v1561 = vunpack.c.h.b16 %v1217
    %v1562 = vunpack.c.l.b16 %v1218
    %v1563 = vunpack.c.h.b16 %v1218
    %v1564 = vunpack.c.l.b16 %v1219
    %v1565 = vunpack.c.h.b16 %v1219
    %v1566 = vunpack.c.l.b16 %v1220
    %v1567 = vunpack.c.h.b16 %v1220
    %v1568 = vunpack.c.l.b16 %v1221
    %v1569 = vunpack.c.h.b16 %v1221
    %v1570 = vunpack.c.l.b16 %v1222
    %v1571 = vunpack.c.h.b16 %v1222
    %v1572 = vunpack.c.l.b16 %v1223
    %v1573 = vunpack.c.h.b16 %v1223
    %v1574 = vunpack.c.l.b16 %v1224
    %v1575 = vunpack.c.h.b16 %v1224
    %v1576 = vunpack.c.l.b16 %v1225
    %v1577 = vunpack.c.h.b16 %v1225
    %v1578 = vunpack.c.l.b16 %v1226
    %v1579 = vunpack.c.h.b16 %v1226
    %v1580 = vunpack.c.l.b16 %v1227
    %v1581 = vunpack.c.h.b16 %v1227
    %v1582 = vunpack.c.l.b16 %v1228
    %v1583 = vunpack.c.h.b16 %v1228
    %v1584 = vunpack.c.l.b16 %v1229
    %v1585 = vunpack.c.h.b16 %v1229
    %v1586 = vunpack.c.l.b16 %v1230
    %v1587 = vunpack.c.h.b16 %v1230
    %v1588 = vunpack.c.l.b16 %v1231
    %v1589 = vunpack.c.h.b16 %v1231
    %v1590 = vunpack.c.l.b16 %v1232
    %v1591 = vunpack.c.h.b16 %v1232
    %v1592 = vunpack.c.l.b16 %v1233
    %v1593 = vunpack.c.h.b16 %v1233
    %v1594 = vunpack.c.l.b16 %v1234
    %v1595 = vunpack.c.h.b16 %v1234
    %v1596 = vunpack.c.l.b16 %v1235
    %v1597 = vunpack.c.h.b16 %v1235
    %v1598 = vunpack.c.l.b16 %v1236
    %v1599 = vunpack.c.h.b16 %v1236
    %v1600 = vunpack.c.l.b16 %v1237
    %v1601 = vunpack.c.h.b16 %v1237
    %v1602 = vunpack.c.l.b16 %v1238
    %v1603 = vunpack.c.h.b16 %v1238
    %v1604 = vunpack.c.l.b16 %v1239
    %v1605 = vunpack.c.h.b16 %v1239
    %v1606 = vunpack.c.l.b16 %v1240
    %v1607 = vunpack.c.h.b16 %v1240
    %v1608 = vunpack.c.l.b16 %v1241
    %v1609 = vunpack.c.h.b16 %v1241
    %v1610 = vunpack.c.l.b16 %v1242
    %v1611 = vunpack.c.h.b16 %v1242
    %v1612 = vunpack.c.l.b16 %v1243
    %v1613 = vunpack.c.h.b16 %v1243
    %v1614 = vunpack.c.l.b16 %v1244
    %v1615 = vunpack.c.h.b16 %v1244
    %v1616 = vunpack.c.l.b16 %v1245
    %v1617 = vunpack.c.h.b16 %v1245
    %v1618 = vunpack.c.l.b16 %v1246
    %v1619 = vunpack.c.h.b16 %v1246
    %v1620 = vunpack.c.l.b16 %v1247
    %v1621 = vunpack.c.h.b16 %v1247
    %v1622 = vunpack.c.l.b16 %v1248
    %v1623 = vunpack.c.h.b16 %v1248
    %v1624 = vunpack.c.l.b16 %v1249
    %v1625 = vunpack.c.h.b16 %v1249
    %v1626 = vunpack.c.l.b16 %v1250
    %v1627 = vunpack.c.h.b16 %v1250
    %v1628 = vunpack.c.l.b16 %v1251
    %v1629 = vunpack.c.h.b16 %v1251
    %v1630 = vunpack.c.l.b16 %v1252
    %v1631 = vunpack.c.h.b16 %v1252
    %v1632 = vunpack.c.l.b16 %v1253
    %v1633 = vunpack.c.h.b16 %v1253
    %v1634 = vunpack.c.l.b16 %v1254
    %v1635 = vunpack.c.h.b16 %v1254
    %v1636 = vunpack.c.l.b16 %v1255
    %v1637 = vunpack.c.h.b16 %v1255
    %v1638 = vunpack.c.l.b16 %v1256
    %v1639 = vunpack.c.h.b16 %v1256
    %v1640 = vunpack.c.l.b16 %v1257
    %v1641 = vunpack.c.h.b16 %v1257
    %v1642 = vunpack.c.l.b16 %v1258
    %v1643 = vunpack.c.h.b16 %v1258
    %v1644 = vunpack.c.l.b16 %v1259
    %v1645 = vunpack.c.h.b16 %v1259
    %v1646 = vunpack.c.l.b16 %v1260
    %v1647 = vunpack.c.h.b16 %v1260
    %v1648 = vunpack.c.l.b16 %v1261
    %v1649 = vunpack.c.h.b16 %v1261
    %v1650 = vunpack.c.l.b16 %v1262
    %v1651 = vunpack.c.h.b16 %v1262
    %v1652 = vunpack.c.l.b16 %v1263
    %v1653 = vunpack.c.h.b16 %v1263
    %v1654 = vunpack.c.l.b16 %v1264
    %v1655 = vunpack.c.h.b16 %v1264
    %v1656 = vunpack.c.l.b16 %v1265
    %v1657 = vunpack.c.h.b16 %v1265
    %v1658 = vunpack.c.l.b16 %v1266
    %v1659 = vunpack.c.h.b16 %v1266
    %v1660 = vunpack.c.l.b16 %v1267
    %v1661 = vunpack.c.h.b16 %v1267
    %v1662 = vunpack.c.l.b16 %v1268
    %v1663 = vunpack.c.h.b16 %v1268
    %v1664 = vunpack.c.l.b16 %v1269
    %v1665 = vunpack.c.h.b16 %v1269
    %v1666 = vunpack.c.l.b16 %v1270
    %v1667 = vunpack.c.h.b16 %v1270
    %v1668 = vunpack.c.l.b16 %v1271
    %v1669 = vunpack.c.h.b16 %v1271
    %v1670 = vunpack.c.l.b16 %v1272
    %v1671 = vunpack.c.h.b16 %v1272
    %v1672 = vunpack.c.l.b16 %v1273
    %v1673 = vunpack.c.h.b16 %v1273
    %v1674 = vunpack.c.l.b16 %v1274
    %v1675 = vunpack.c.h.b16 %v1274
    %v1676 = vunpack.c.l.b16 %v1275
    %v1677 = vunpack.c.h.b16 %v1275
    %v1678 = vunpack.c.l.b16 %v1276
    %v1679 = vunpack.c.h.b16 %v1276
    %v1680 = vunpack.c.l.b16 %v1277
    %v1681 = vunpack.c.h.b16 %v1277
    %v1682 = vunpack.c.l.b16 %v1278
    %v1683 = vunpack.c.h.b16 %v1278
    %v1684 = vunpack.c.l.b16 %v1279
    %v1685 = vunpack.c.h.b16 %v1279
    %v1686 = vpack.c.b16 %v1434, %v1430
    %v1687 = vpack.c.b16 %v1435, %v1431
    %v1688 = vpack.c.b16 %v1436, %v1432
    %v1689 = vpack.c.b16 %v1437, %v1433
    %v1690 = vpack.c.b16 %v1442, %v1438
    %v1691 = vpack.c.b16 %v1443, %v1439
    %v1692 = vpack.c.b16 %v1444, %v1440
    %v1693 = vpack.c.b16 %v1445, %v1441
    %v1694 = vpack.c.b16 %v1450, %v1446
    %v1695 = vpack.c.b16 %v1451, %v1447
    %v1696 = vpack.c.b16 %v1452, %v1448
    %v1697 = vpack.c.b16 %v1453, %v1449
    %v1698 = vpack.c.b16 %v1458, %v1454
    %v1699 = vpack.c.b16 %v1459, %v1455
    %v1700 = vpack.c.b16 %v1460, %v1456
    %v1701 = vpack.c.b16 %v1461, %v1457
    %v1702 = vpack.c.b16 %v1466, %v1462
    %v1703 = vpack.c.b16 %v1467, %v1463
    %v1704 = vpack.c.b16 %v1468, %v1464
    %v1705 = vpack.c.b16 %v1469, %v1465
    %v1706 = vpack.c.b16 %v1474, %v1470
    %v1707 = vpack.c.b16 %v1475, %v1471
    %v1708 = vpack.c.b16 %v1476, %v1472
    %v1709 = vpack.c.b16 %v1477, %v1473
    %v1710 = vpack.c.b16 %v1482, %v1478
    %v1711 = vpack.c.b16 %v1483, %v1479
    %v1712 = vpack.c.b16 %v1484, %v1480
    %v1713 = vpack.c.b16 %v1485, %v1481
    %v1714 = vpack.c.b16 %v1490, %v1486
    %v1715 = vpack.c.b16 %v1491, %v1487
    %v1716 = vpack.c.b16 %v1492, %v1488
    %v1717 = vpack.c.b16 %v1493, %v1489
    %v1718 = vpack.c.b16 %v1498, %v1494
    %v1719 = vpack.c.b16 %v1499, %v1495
    %v1720 = vpack.c.b16 %v1500, %v1496
    %v1721 = vpack.c.b16 %v1501, %v1497
    %v1722 = vpack.c.b16 %v1506, %v1502
    %v1723 = vpack.c.b16 %v1507, %v1503
    %v1724 = vpack.c.b16 %v1508, %v1504
    %v1725 = vpack.c.b16 %v1509, %v1505
    %v1726 = vpack.c.b16 %v1514, %v1510
    %v1727 = vpack.c.b16 %v1515, %v1511
    %v1728 = vpack.c.b16 %v1516, %v1512
    %v1729 = vpack.c.b16 %v1517, %v1513
    %v1730 = vpack.c.b16 %v1522, %v1518
    %v1731 = vpack.c.b16 %v1523, %v1519
    %v1732 = vpack.c.b16 %v1524, %v1520
    %v1733 = vpack.c.b16 %v1525, %v1521
    %v1734 = vpack.c.b16 %v1530, %v1526
    %v1735 = vpack.c.b16 %v1531, %v1527
    %v1736 = vpack.c.b16 %v1532, %v1528
    %v1737 = vpack.c.b16 %v1533, %v1529
    %v1738 = vpack.c.b16 %v1538, %v1534
    %v1739 = vpack.c.b16 %v1539, %v1535
    %v1740 = vpack.c.b16 %v1540, %v1536
    %v1741 = vpack.c.b16 %v1541, %v1537
    %v1742 = vpack.c.b16 %v1546, %v1542
    %v1743 = vpack.c.b16 %v1547, %v1543
    %v1744 = vpack.c.b16 %v1548, %v1544
    %v1745 = vpack.c.b16 %v1549, %v1545
    %v1746 = vpack.c.b16 %v1554, %v1550
    %v1747 = vpack.c.b16 %v1555, %v1551
    %v1748 = vpack.c.b16 %v1556, %v1552
    %v1749 = vpack.c.b16 %v1557, %v1553
    %v1750 = vpack.c.b16 %v1562, %v1558
    %v1751 = vpack.c.b16 %v1563, %v1559
    %v1752 = vpack.c.b16 %v1564, %v1560
    %v1753 = vpack.c.b16 %v1565, %v1561
    %v1754 = vpack.c.b16 %v1570, %v1566
    %v1755 = vpack.c.b16 %v1571, %v1567
    %v1756 = vpack.c.b16 %v1572, %v1568
    %v1757 = vpack.c.b16 %v1573, %v1569
    %v1758 = vpack.c.b16 %v1578, %v1574
    %v1759 = vpack.c.b16 %v1579, %v1575
    %v1760 = vpack.c.b16 %v1580, %v1576
    %v1761 = vpack.c.b16 %v1581, %v1577
    %v1762 = vpack.c.b16 %v1586, %v1582
    %v1763 = vpack.c.b16 %v1587, %v1583
    %v1764 = vpack.c.b16 %v1588, %v1584
    %v1765 = vpack.c.b16 %v1589, %v1585
    %v1766 = vpack.c.b16 %v1594, %v1590
    %v1767 = vpack.c.b16 %v1595, %v1591
    %v1768 = vpack.c.b16 %v1596, %v1592
    %v1769 = vpack.c.b16 %v1597, %v1593
    %v1770 = vpack.c.b16 %v1602, %v1598
    %v1771 = vpack.c.b16 %v1603, %v1599
    %v1772 = vpack.c.b16 %v1604, %v1600
    %v1773 = vpack.c.b16 %v1605, %v1601
    %v1774 = vpack.c.b16 %v1610, %v1606
    %v1775 = vpack.c.b16 %v1611, %v1607
    %v1776 = vpack.c.b16 %v1612, %v1608
    %v1777 = vpack.c.b16 %v1613, %v1609
    %v1778 = vpack.c.b16 %v1618, %v1614
    %v1779 = vpack.c.b16 %v1619, %v1615
    %v1780 = vpack.c.b16 %v1620, %v1616
    %v1781 = vpack.c.b16 %v1621, %v1617
    %v1782 = vpack.c.b16 %v1626, %v1622
    %v1783 = vpack.c.b16 %v1627, %v1623
    %v1784 = vpack.c.b16 %v1628, %v1624
    %v1785 = vpack.c.b16 %v1629, %v1625
    %v1786 = vpack.c.b16 %v1634, %v1630
    %v1787 = vpack.c.b16 %v1635, %v1631
    %v1788 = vpack.c.b16 %v1636, %v1632
    %v1789 = vpack.c.b16 %v1637, %v1633
    %v1790 = vpack.c.b16 %v1642, %v1638
    %v1791 = vpack.c.b16 %v1643, %v1639
    %v1792 = vpack.c.b16 %v1644, %v1640
    %v1793 = vpack.c.b16 %v1645, %v1641
    %v1794 = vpack.c.b16 %v1650, %v1646
    %v1795 = vpack.c.b16 %v1651, %v1647
    %v1796 = vpack.c.b16 %v1652, %v1648
    %v1797 = vpack.c.b16 %v1653, %v1649
    %v1798 = vpack.c.b16 %v1658, %v1654
    %v1799 = vpack.c.b16 %v1659, %v1655
    %v1800 = vpack.c.b16 %v1660, %v1656
    %v1801 = vpack.c.b16 %v1661, %v1657
    %v1802 = vpack.c.b16 %v1666, %v1662
    %v1803 = vpack.c.b16 %v1667, %v1663
    %v1804 = vpack.c.b16 %v1668, %v1664
    %v1805 = vpack.c.b16 %v1669, %v1665
    %v1806 = vpack.c.b16 %v1674, %v1670
    %v1807 = vpack.c.b16 %v1675, %v1671
    %v1808 = vpack.c.b16 %v1676, %v1672
    %v1809 = vpack.c.b16 %v1677, %v1673
    %v1810 = vpack.c.b16 %v1682, %v1678
    %v1811 = vpack.c.b16 %v1683, %v1679
    %v1812 = vpack.c.b16 %v1684, %v1680
    %v1813 = vpack.c.b16 %v1685, %v1681
    %1942 = vmatprep.subr.bf16.mxu0 %v1715
    %1943 = vmatpush1.bf16.msra.mxu0 %v1714
    %1944 = vmatprep.subr.bf16.mxu0 %v1711
    %1945 = vmatpush1.bf16.msra.mxu0 %v1710
    %1946 = vmatprep.subr.bf16.mxu0 %v1707
    %1947 = vmatpush1.bf16.msra.mxu0 %v1706
    %1948 = vmatprep.subr.bf16.mxu0 %v1703
    %1949 = vmatpush1.bf16.msra.mxu0 %v1702
    %1950 = vmatprep.subr.bf16.mxu0 %v1699
    %1951 = vmatpush1.bf16.msra.mxu0 %v1698
    %1952 = vmatprep.subr.bf16.mxu0 %v1695
    %1953 = vmatpush1.bf16.msra.mxu0 %v1694
    %1954 = vmatprep.subr.bf16.mxu0 %v1691
    %1955 = vmatpush1.bf16.msra.mxu0 %v1690
    %1956 = vmatprep.subr.bf16.mxu0 %v1687
    %1957 = vmatpush1.bf16.msra.mxu0 %v1686
    %1958 = vmatprep.subr.bf16.mxu0 %v1747
    %1959 = vmatpush2.bf16.msra.mxu0 %v1746
    %1960 = vmatprep.subr.bf16.mxu0 %v1743
    %1961 = vmatpush2.bf16.msra.mxu0 %v1742
    %1962 = vmatprep.subr.bf16.mxu0 %v1739
    %1963 = vmatpush2.bf16.msra.mxu0 %v1738
    %1964 = vmatprep.subr.bf16.mxu0 %v1735
    %1965 = vmatpush2.bf16.msra.mxu0 %v1734
    %1966 = vmatprep.subr.bf16.mxu0 %v1731
    %1967 = vmatpush2.bf16.msra.mxu0 %v1730
    %1968 = vmatprep.subr.bf16.mxu0 %v1727
    %1969 = vmatpush2.bf16.msra.mxu0 %v1726
    %1970 = vmatprep.subr.bf16.mxu0 %v1723
    %1971 = vmatpush2.bf16.msra.mxu0 %v1722
    %1972 = vmatprep.subr.bf16.mxu0 %v1719
    %1973 = vmatpush2.bf16.msra.mxu0 %v1718
    %1974 = vmatprep.mubr.bf16.mxu0 %v1149
    %1975 = vmatmul.mubr.bf16.gmra.mxu0 %v1148
    %v1976 = vpop.f32.mrf.mxu0
    %v1977 = vadd.f32 %v1285, %v1976
    %v1978 = vpop.f32.mrf.mxu0
    %v1979 = vadd.f32 %v1289, %v1978
    %v1980 = vpop.f32.mrf.mxu0
    %v1981 = vpop.f32.mrf.mxu0
    %1982 = vdwg.mxu0
    %1983 = vmatprep.subr.bf16.mxu0 %v1779
    %1984 = vmatpush1.bf16.msra.mxu0 %v1778
    %1985 = vmatprep.subr.bf16.mxu0 %v1775
    %1986 = vmatpush1.bf16.msra.mxu0 %v1774
    %1987 = vmatprep.subr.bf16.mxu0 %v1771
    %1988 = vmatpush1.bf16.msra.mxu0 %v1770
    %1989 = vmatprep.subr.bf16.mxu0 %v1767
    %1990 = vmatpush1.bf16.msra.mxu0 %v1766
    %1991 = vmatprep.subr.bf16.mxu0 %v1763
    %1992 = vmatpush1.bf16.msra.mxu0 %v1762
    %1993 = vmatprep.subr.bf16.mxu0 %v1759
    %1994 = vmatpush1.bf16.msra.mxu0 %v1758
    %1995 = vmatprep.subr.bf16.mxu0 %v1755
    %1996 = vmatpush1.bf16.msra.mxu0 %v1754
    %1997 = vmatprep.subr.bf16.mxu0 %v1751
    %1998 = vmatpush1.bf16.msra.mxu0 %v1750
    %1999 = vmatprep.subr.bf16.mxu0 %v1811
    %2000 = vmatpush2.bf16.msra.mxu0 %v1810
    %2001 = vmatprep.subr.bf16.mxu0 %v1807
    %2002 = vmatpush2.bf16.msra.mxu0 %v1806
    %2003 = vmatprep.subr.bf16.mxu0 %v1803
    %2004 = vmatpush2.bf16.msra.mxu0 %v1802
    %2005 = vmatprep.subr.bf16.mxu0 %v1799
    %2006 = vmatpush2.bf16.msra.mxu0 %v1798
    %2007 = vmatprep.subr.bf16.mxu0 %v1795
    %2008 = vmatpush2.bf16.msra.mxu0 %v1794
    %2009 = vmatprep.subr.bf16.mxu0 %v1791
    %2010 = vmatpush2.bf16.msra.mxu0 %v1790
    %2011 = vmatprep.subr.bf16.mxu0 %v1787
    %2012 = vmatpush2.bf16.msra.mxu0 %v1786
    %2013 = vmatprep.subr.bf16.mxu0 %v1783
    %2014 = vmatpush2.bf16.msra.mxu0 %v1782
    %2015 = vmatprep.mubr.bf16.mxu0 %v1151
    %2016 = vmatmul.mubr.bf16.gmra.mxu0 %v1150
    %v2017 = vpop.f32.mrf.mxu0
    %v2018 = vadd.f32 %v1977, %v2017
    %v2019 = vpop.f32.mrf.mxu0
    %v2020 = vadd.f32 %v1979, %v2019
    %v2021 = vpop.f32.mrf.mxu0
    %v2022 = vpop.f32.mrf.mxu0
    %2023 = vdwg.mxu0
    %2024 = vmatprep.subr.bf16.mxu0 %v1717
    %2025 = vmatpush1.bf16.msra.mxu0 %v1716
    %2026 = vmatprep.subr.bf16.mxu0 %v1713
    %2027 = vmatpush1.bf16.msra.mxu0 %v1712
    %2028 = vmatprep.subr.bf16.mxu0 %v1709
    %2029 = vmatpush1.bf16.msra.mxu0 %v1708
    %2030 = vmatprep.subr.bf16.mxu0 %v1705
    %2031 = vmatpush1.bf16.msra.mxu0 %v1704
    %2032 = vmatprep.subr.bf16.mxu0 %v1701
    %2033 = vmatpush1.bf16.msra.mxu0 %v1700
    %2034 = vmatprep.subr.bf16.mxu0 %v1697
    %2035 = vmatpush1.bf16.msra.mxu0 %v1696
    %2036 = vmatprep.subr.bf16.mxu0 %v1693
    %2037 = vmatpush1.bf16.msra.mxu0 %v1692
    %2038 = vmatprep.subr.bf16.mxu0 %v1689
    %2039 = vmatpush1.bf16.msra.mxu0 %v1688
    %2040 = vmatprep.subr.bf16.mxu0 %v1749
    %2041 = vmatpush2.bf16.msra.mxu0 %v1748
    %2042 = vmatprep.subr.bf16.mxu0 %v1745
    %2043 = vmatpush2.bf16.msra.mxu0 %v1744
    %2044 = vmatprep.subr.bf16.mxu0 %v1741
    %2045 = vmatpush2.bf16.msra.mxu0 %v1740
    %2046 = vmatprep.subr.bf16.mxu0 %v1737
    %2047 = vmatpush2.bf16.msra.mxu0 %v1736
    %2048 = vmatprep.subr.bf16.mxu0 %v1733
    %2049 = vmatpush2.bf16.msra.mxu0 %v1732
    %2050 = vmatprep.subr.bf16.mxu0 %v1729
    %2051 = vmatpush2.bf16.msra.mxu0 %v1728
    %2052 = vmatprep.subr.bf16.mxu0 %v1725
    %2053 = vmatpush2.bf16.msra.mxu0 %v1724
    %2054 = vmatprep.subr.bf16.mxu0 %v1721
    %2055 = vmatpush2.bf16.msra.mxu0 %v1720
    %2056 = vmatprep.mubr.bf16.mxu0 %v1149
    %2057 = vmatmul.mubr.bf16.gmra.mxu0 %v1148
    %v2058 = vpop.f32.mrf.mxu0
    %v2059 = vadd.f32 %v1293, %v2058
    %v2060 = vpop.f32.mrf.mxu0
    %v2061 = vadd.f32 %v1297, %v2060
    %v2062 = vpop.f32.mrf.mxu0
    %v2063 = vpop.f32.mrf.mxu0
    %2064 = vdwg.mxu0
    %2065 = vmatprep.subr.bf16.mxu0 %v1781
    %2066 = vmatpush1.bf16.msra.mxu0 %v1780
    %2067 = vmatprep.subr.bf16.mxu0 %v1777
    %2068 = vmatpush1.bf16.msra.mxu0 %v1776
    %2069 = vmatprep.subr.bf16.mxu0 %v1773
    %2070 = vmatpush1.bf16.msra.mxu0 %v1772
    %2071 = vmatprep.subr.bf16.mxu0 %v1769
    %2072 = vmatpush1.bf16.msra.mxu0 %v1768
    %2073 = vmatprep.subr.bf16.mxu0 %v1765
    %2074 = vmatpush1.bf16.msra.mxu0 %v1764
    %2075 = vmatprep.subr.bf16.mxu0 %v1761
    %2076 = vmatpush1.bf16.msra.mxu0 %v1760
    %2077 = vmatprep.subr.bf16.mxu0 %v1757
    %2078 = vmatpush1.bf16.msra.mxu0 %v1756
    %2079 = vmatprep.subr.bf16.mxu0 %v1753
    %2080 = vmatpush1.bf16.msra.mxu0 %v1752
    %2081 = vmatprep.subr.bf16.mxu0 %v1813
    %2082 = vmatpush2.bf16.msra.mxu0 %v1812
    %2083 = vmatprep.subr.bf16.mxu0 %v1809
    %2084 = vmatpush2.bf16.msra.mxu0 %v1808
    %2085 = vmatprep.subr.bf16.mxu0 %v1805
    %2086 = vmatpush2.bf16.msra.mxu0 %v1804
    %2087 = vmatprep.subr.bf16.mxu0 %v1801
    %2088 = vmatpush2.bf16.msra.mxu0 %v1800
    %2089 = vmatprep.subr.bf16.mxu0 %v1797
    %2090 = vmatpush2.bf16.msra.mxu0 %v1796
    %2091 = vmatprep.subr.bf16.mxu0 %v1793
    %2092 = vmatpush2.bf16.msra.mxu0 %v1792
    %2093 = vmatprep.subr.bf16.mxu0 %v1789
    %2094 = vmatpush2.bf16.msra.mxu0 %v1788
    %2095 = vmatprep.subr.bf16.mxu0 %v1785
    %2096 = vmatpush2.bf16.msra.mxu0 %v1784
    %2097 = vmatprep.mubr.bf16.mxu0 %v1151
    %2098 = vmatmul.mubr.bf16.gmra.mxu0 %v1150
    %v2099 = vpop.f32.mrf.mxu0
    %v2100 = vadd.f32 %v2059, %v2099
    %v2101 = vpop.f32.mrf.mxu0
    %v2102 = vadd.f32 %v2061, %v2101
    %v2103 = vpop.f32.mrf.mxu0
    %v2104 = vpop.f32.mrf.mxu0
    %2105 = vdwg.mxu0
    %v2106 = vmax.f32 %v2018, 0.0
    %v2107 = vmax.f32 %v2020, 0.0
    %v2108 = vmax.f32 %v2100, 0.0
    %v2109 = vmax.f32 %v2102, 0.0
    %v2111 = vsel %vm48, %v2106, 0
    %v2114 = vsel %vm48, %v2107, 0
    %v2117 = vsel %vm48, %v2108, 0
    %v2120 = vsel %vm48, %v2109, 0
    %2122 = vmatprep.subr.mxu0 0.0
    %2123 = vmatpush1.msra.mxu0 0.0
    %2124 = vmatprep.subr.mxu0 0.0
    %2125 = vmatpush1.msra.mxu0 0.0
    %2126 = vmatprep.subr.mxu0 0.0
    %2127 = vmatpush1.msra.mxu0 0.0
    %2128 = vmatprep.subr.mxu0 0.0
    %2129 = vmatpush1.msra.mxu0 0.0
    %2130 = vmatprep.subr.mxu0 0.0
    %2131 = vmatpush1.msra.mxu0 0.0
    %2132 = vmatprep.subr.mxu0 0.0
    %2133 = vmatpush1.msra.mxu0 0.0
    %2134 = vmatprep.subr.mxu0 0.0
    %2135 = vmatpush1.msra.mxu0 0.0
    %2136 = vmatprep.subr.mxu0 0.0
    %2137 = vmatpush1.msra.mxu0 0.0
    %2138 = vmatprep.subr.mxu0 0.0
    %2139 = vmatpush1.msra.mxu0 0.0
    %2140 = vmatprep.subr.mxu0 0.0
    %2141 = vmatpush1.msra.mxu0 0.0
    %2142 = vmatprep.subr.mxu0 0.0
    %2143 = vmatpush1.msra.mxu0 0.0
    %2144 = vmatprep.subr.mxu0 0.0
    %2145 = vmatpush1.msra.mxu0 0.0
    %2146 = vmatprep.subr.mxu0 0.0
    %2147 = vmatpush1.msra.mxu0 0.0
    %2148 = vmatprep.subr.mxu0 0.0
    %2149 = vmatpush1.msra.mxu0 0.0
    %2150 = vmatprep.subr.mxu0 0.0
    %2151 = vmatpush1.msra.mxu0 0.0
    %2152 = vmatprep.subr.mxu0 %v2114
    %2153 = vmatpush1.msra.mxu0 %v2111
    %2154 = vmatprep.subr.mxu0 0.0
    %2155 = vmatpush2.msra.mxu0 0.0
    %2156 = vmatprep.subr.mxu0 0.0
    %2157 = vmatpush2.msra.mxu0 0.0
    %2158 = vmatprep.subr.mxu0 0.0
    %2159 = vmatpush2.msra.mxu0 0.0
    %2160 = vmatprep.subr.mxu0 0.0
    %2161 = vmatpush2.msra.mxu0 0.0
    %2162 = vmatprep.subr.mxu0 0.0
    %2163 = vmatpush2.msra.mxu0 0.0
    %2164 = vmatprep.subr.mxu0 0.0
    %2165 = vmatpush2.msra.mxu0 0.0
    %2166 = vmatprep.subr.mxu0 0.0
    %2167 = vmatpush2.msra.mxu0 0.0
    %2168 = vmatprep.subr.mxu0 0.0
    %2169 = vmatpush2.msra.mxu0 0.0
    %2170 = vmatprep.subr.mxu0 0.0
    %2171 = vmatpush2.msra.mxu0 0.0
    %2172 = vmatprep.subr.mxu0 0.0
    %2173 = vmatpush2.msra.mxu0 0.0
    %2174 = vmatprep.subr.mxu0 0.0
    %2175 = vmatpush2.msra.mxu0 0.0
    %2176 = vmatprep.subr.mxu0 0.0
    %2177 = vmatpush2.msra.mxu0 0.0
    %2178 = vmatprep.subr.mxu0 0.0
    %2179 = vmatpush2.msra.mxu0 0.0
    %2180 = vmatprep.subr.mxu0 0.0
    %2181 = vmatpush2.msra.mxu0 0.0
    %2182 = vmatprep.subr.mxu0 0.0
    %2183 = vmatpush2.msra.mxu0 0.0
    %2184 = vmatprep.subr.mxu0 0.0
    %2185 = vmatpush2.msra.mxu0 0.0
    %2186 = vmatprep.mubr.f32.mxu0 0.0
    %2187 = vmatmul.mubr.f32.gmra.mxu0 %v46
    %v2188 = vpop.f32.mrf.mxu0
    %v2189 = vadd.f32 0.0, %v2188
    %v2190 = vpop.f32.mrf.mxu0
    %v2191 = vadd.f32 0.0, %v2190
    %2192 = vdwg.mxu0
    %2193 = vmatprep.subr.mxu0 0.0
    %2194 = vmatpush1.msra.mxu0 0.0
    %2195 = vmatprep.subr.mxu0 0.0
    %2196 = vmatpush1.msra.mxu0 0.0
    %2197 = vmatprep.subr.mxu0 0.0
    %2198 = vmatpush1.msra.mxu0 0.0
    %2199 = vmatprep.subr.mxu0 0.0
    %2200 = vmatpush1.msra.mxu0 0.0
    %2201 = vmatprep.subr.mxu0 0.0
    %2202 = vmatpush1.msra.mxu0 0.0
    %2203 = vmatprep.subr.mxu0 0.0
    %2204 = vmatpush1.msra.mxu0 0.0
    %2205 = vmatprep.subr.mxu0 0.0
    %2206 = vmatpush1.msra.mxu0 0.0
    %2207 = vmatprep.subr.mxu0 0.0
    %2208 = vmatpush1.msra.mxu0 0.0
    %2209 = vmatprep.subr.mxu0 0.0
    %2210 = vmatpush1.msra.mxu0 0.0
    %2211 = vmatprep.subr.mxu0 0.0
    %2212 = vmatpush1.msra.mxu0 0.0
    %2213 = vmatprep.subr.mxu0 0.0
    %2214 = vmatpush1.msra.mxu0 0.0
    %2215 = vmatprep.subr.mxu0 0.0
    %2216 = vmatpush1.msra.mxu0 0.0
    %2217 = vmatprep.subr.mxu0 0.0
    %2218 = vmatpush1.msra.mxu0 0.0
    %2219 = vmatprep.subr.mxu0 0.0
    %2220 = vmatpush1.msra.mxu0 0.0
    %2221 = vmatprep.subr.mxu0 0.0
    %2222 = vmatpush1.msra.mxu0 0.0
    %2223 = vmatprep.subr.mxu0 %v2120
    %2224 = vmatpush1.msra.mxu0 %v2117
    %2225 = vmatprep.subr.mxu0 0.0
    %2226 = vmatpush2.msra.mxu0 0.0
    %2227 = vmatprep.subr.mxu0 0.0
    %2228 = vmatpush2.msra.mxu0 0.0
    %2229 = vmatprep.subr.mxu0 0.0
    %2230 = vmatpush2.msra.mxu0 0.0
    %2231 = vmatprep.subr.mxu0 0.0
    %2232 = vmatpush2.msra.mxu0 0.0
    %2233 = vmatprep.subr.mxu0 0.0
    %2234 = vmatpush2.msra.mxu0 0.0
    %2235 = vmatprep.subr.mxu0 0.0
    %2236 = vmatpush2.msra.mxu0 0.0
    %2237 = vmatprep.subr.mxu0 0.0
    %2238 = vmatpush2.msra.mxu0 0.0
    %2239 = vmatprep.subr.mxu0 0.0
    %2240 = vmatpush2.msra.mxu0 0.0
    %2241 = vmatprep.subr.mxu0 0.0
    %2242 = vmatpush2.msra.mxu0 0.0
    %2243 = vmatprep.subr.mxu0 0.0
    %2244 = vmatpush2.msra.mxu0 0.0
    %2245 = vmatprep.subr.mxu0 0.0
    %2246 = vmatpush2.msra.mxu0 0.0
    %2247 = vmatprep.subr.mxu0 0.0
    %2248 = vmatpush2.msra.mxu0 0.0
    %2249 = vmatprep.subr.mxu0 0.0
    %2250 = vmatpush2.msra.mxu0 0.0
    %2251 = vmatprep.subr.mxu0 0.0
    %2252 = vmatpush2.msra.mxu0 0.0
    %2253 = vmatprep.subr.mxu0 0.0
    %2254 = vmatpush2.msra.mxu0 0.0
    %2255 = vmatprep.subr.mxu0 0.0
    %2256 = vmatpush2.msra.mxu0 0.0
    %2257 = vmatprep.mubr.f32.mxu0 0.0
    %2258 = vmatmul.mubr.f32.gmra.mxu0 %v46
    %v2259 = vpop.f32.mrf.mxu0
    %v2260 = vadd.f32 0.0, %v2259
    %v2261 = vpop.f32.mrf.mxu0
    %v2262 = vadd.f32 0.0, %v2261
    %2263 = vdwg.mxu0
    %v2264 = vmul.f32 %v2189, 0.5
    %v2265 = vmul.f32 %v2191, 0.5
    %v2266 = vmul.f32 %v2260, 0.5
    %v2267 = vmul.f32 %v2262, 0.5
    %v2268 = vmul.f32 %v2106, %v2106
    %v2269 = vmul.f32 %v2107, %v2107
    %v2270 = vmul.f32 %v2108, %v2108
    %v2271 = vmul.f32 %v2109, %v2109
    %v2273 = vsel %vm48, %v2268, 0
    %v2276 = vsel %vm48, %v2269, 0
    %v2279 = vsel %vm48, %v2270, 0
    %v2282 = vsel %vm48, %v2271, 0
    %2284 = vmatprep.subr.mxu0 0.0
    %2285 = vmatpush1.msra.mxu0 0.0
    %2286 = vmatprep.subr.mxu0 0.0
    %2287 = vmatpush1.msra.mxu0 0.0
    %2288 = vmatprep.subr.mxu0 0.0
    %2289 = vmatpush1.msra.mxu0 0.0
    %2290 = vmatprep.subr.mxu0 0.0
    %2291 = vmatpush1.msra.mxu0 0.0
    %2292 = vmatprep.subr.mxu0 0.0
    %2293 = vmatpush1.msra.mxu0 0.0
    %2294 = vmatprep.subr.mxu0 0.0
    %2295 = vmatpush1.msra.mxu0 0.0
    %2296 = vmatprep.subr.mxu0 0.0
    %2297 = vmatpush1.msra.mxu0 0.0
    %2298 = vmatprep.subr.mxu0 0.0
    %2299 = vmatpush1.msra.mxu0 0.0
    %2300 = vmatprep.subr.mxu0 0.0
    %2301 = vmatpush1.msra.mxu0 0.0
    %2302 = vmatprep.subr.mxu0 0.0
    %2303 = vmatpush1.msra.mxu0 0.0
    %2304 = vmatprep.subr.mxu0 0.0
    %2305 = vmatpush1.msra.mxu0 0.0
    %2306 = vmatprep.subr.mxu0 0.0
    %2307 = vmatpush1.msra.mxu0 0.0
    %2308 = vmatprep.subr.mxu0 0.0
    %2309 = vmatpush1.msra.mxu0 0.0
    %2310 = vmatprep.subr.mxu0 0.0
    %2311 = vmatpush1.msra.mxu0 0.0
    %2312 = vmatprep.subr.mxu0 0.0
    %2313 = vmatpush1.msra.mxu0 0.0
    %2314 = vmatprep.subr.mxu0 %v2276
    %2315 = vmatpush1.msra.mxu0 %v2273
    %2316 = vmatprep.subr.mxu0 0.0
    %2317 = vmatpush2.msra.mxu0 0.0
    %2318 = vmatprep.subr.mxu0 0.0
    %2319 = vmatpush2.msra.mxu0 0.0
    %2320 = vmatprep.subr.mxu0 0.0
    %2321 = vmatpush2.msra.mxu0 0.0
    %2322 = vmatprep.subr.mxu0 0.0
    %2323 = vmatpush2.msra.mxu0 0.0
    %2324 = vmatprep.subr.mxu0 0.0
    %2325 = vmatpush2.msra.mxu0 0.0
    %2326 = vmatprep.subr.mxu0 0.0
    %2327 = vmatpush2.msra.mxu0 0.0
    %2328 = vmatprep.subr.mxu0 0.0
    %2329 = vmatpush2.msra.mxu0 0.0
    %2330 = vmatprep.subr.mxu0 0.0
    %2331 = vmatpush2.msra.mxu0 0.0
    %2332 = vmatprep.subr.mxu0 0.0
    %2333 = vmatpush2.msra.mxu0 0.0
    %2334 = vmatprep.subr.mxu0 0.0
    %2335 = vmatpush2.msra.mxu0 0.0
    %2336 = vmatprep.subr.mxu0 0.0
    %2337 = vmatpush2.msra.mxu0 0.0
    %2338 = vmatprep.subr.mxu0 0.0
    %2339 = vmatpush2.msra.mxu0 0.0
    %2340 = vmatprep.subr.mxu0 0.0
    %2341 = vmatpush2.msra.mxu0 0.0
    %2342 = vmatprep.subr.mxu0 0.0
    %2343 = vmatpush2.msra.mxu0 0.0
    %2344 = vmatprep.subr.mxu0 0.0
    %2345 = vmatpush2.msra.mxu0 0.0
    %2346 = vmatprep.subr.mxu0 0.0
    %2347 = vmatpush2.msra.mxu0 0.0
    %2348 = vmatprep.mubr.f32.mxu0 0.0
    %2349 = vmatmul.mubr.f32.gmra.mxu0 %v46
    %v2350 = vpop.f32.mrf.mxu0
    %v2351 = vadd.f32 0.0, %v2350
    %v2352 = vpop.f32.mrf.mxu0
    %v2353 = vadd.f32 0.0, %v2352
    %2354 = vdwg.mxu0
    %2355 = vmatprep.subr.mxu0 0.0
    %2356 = vmatpush1.msra.mxu0 0.0
    %2357 = vmatprep.subr.mxu0 0.0
    %2358 = vmatpush1.msra.mxu0 0.0
    %2359 = vmatprep.subr.mxu0 0.0
    %2360 = vmatpush1.msra.mxu0 0.0
    %2361 = vmatprep.subr.mxu0 0.0
    %2362 = vmatpush1.msra.mxu0 0.0
    %2363 = vmatprep.subr.mxu0 0.0
    %2364 = vmatpush1.msra.mxu0 0.0
    %2365 = vmatprep.subr.mxu0 0.0
    %2366 = vmatpush1.msra.mxu0 0.0
    %2367 = vmatprep.subr.mxu0 0.0
    %2368 = vmatpush1.msra.mxu0 0.0
    %2369 = vmatprep.subr.mxu0 0.0
    %2370 = vmatpush1.msra.mxu0 0.0
    %2371 = vmatprep.subr.mxu0 0.0
    %2372 = vmatpush1.msra.mxu0 0.0
    %2373 = vmatprep.subr.mxu0 0.0
    %2374 = vmatpush1.msra.mxu0 0.0
    %2375 = vmatprep.subr.mxu0 0.0
    %2376 = vmatpush1.msra.mxu0 0.0
    %2377 = vmatprep.subr.mxu0 0.0
    %2378 = vmatpush1.msra.mxu0 0.0
    %2379 = vmatprep.subr.mxu0 0.0
    %2380 = vmatpush1.msra.mxu0 0.0
    %2381 = vmatprep.subr.mxu0 0.0
    %2382 = vmatpush1.msra.mxu0 0.0
    %2383 = vmatprep.subr.mxu0 0.0
    %2384 = vmatpush1.msra.mxu0 0.0
    %2385 = vmatprep.subr.mxu0 %v2282
    %2386 = vmatpush1.msra.mxu0 %v2279
    %2387 = vmatprep.subr.mxu0 0.0
    %2388 = vmatpush2.msra.mxu0 0.0
    %2389 = vmatprep.subr.mxu0 0.0
    %2390 = vmatpush2.msra.mxu0 0.0
    %2391 = vmatprep.subr.mxu0 0.0
    %2392 = vmatpush2.msra.mxu0 0.0
    %2393 = vmatprep.subr.mxu0 0.0
    %2394 = vmatpush2.msra.mxu0 0.0
    %2395 = vmatprep.subr.mxu0 0.0
    %2396 = vmatpush2.msra.mxu0 0.0
    %2397 = vmatprep.subr.mxu0 0.0
    %2398 = vmatpush2.msra.mxu0 0.0
    %2399 = vmatprep.subr.mxu0 0.0
    %2400 = vmatpush2.msra.mxu0 0.0
    %2401 = vmatprep.subr.mxu0 0.0
    %2402 = vmatpush2.msra.mxu0 0.0
    %2403 = vmatprep.subr.mxu0 0.0
    %2404 = vmatpush2.msra.mxu0 0.0
    %2405 = vmatprep.subr.mxu0 0.0
    %2406 = vmatpush2.msra.mxu0 0.0
    %2407 = vmatprep.subr.mxu0 0.0
    %2408 = vmatpush2.msra.mxu0 0.0
    %2409 = vmatprep.subr.mxu0 0.0
    %2410 = vmatpush2.msra.mxu0 0.0
    %2411 = vmatprep.subr.mxu0 0.0
    %2412 = vmatpush2.msra.mxu0 0.0
    %2413 = vmatprep.subr.mxu0 0.0
    %2414 = vmatpush2.msra.mxu0 0.0
    %2415 = vmatprep.subr.mxu0 0.0
    %2416 = vmatpush2.msra.mxu0 0.0
    %2417 = vmatprep.subr.mxu0 0.0
    %2418 = vmatpush2.msra.mxu0 0.0
    %2419 = vmatprep.mubr.f32.mxu0 0.0
    %2420 = vmatmul.mubr.f32.gmra.mxu0 %v46
    %v2421 = vpop.f32.mrf.mxu0
    %v2422 = vadd.f32 0.0, %v2421
    %v2423 = vpop.f32.mrf.mxu0
    %v2424 = vadd.f32 0.0, %v2423
    %2425 = vdwg.mxu0
    %v2426 = vmul.f32 %v2351, 0.5
    %v2427 = vmul.f32 %v2353, 0.5
    %v2428 = vmul.f32 %v2422, 0.5
    %v2429 = vmul.f32 %v2424, 0.5
    %v2430 = vmul.f32 %v2264, %v2264
    %v2431 = vmul.f32 %v2265, %v2265
    %v2432 = vmul.f32 %v2266, %v2266
    %v2433 = vmul.f32 %v2267, %v2267
    %v2434 = vsub.f32 %v2426, %v2430
    %v2435 = vsub.f32 %v2427, %v2431
    %v2436 = vsub.f32 %v2428, %v2432
    %v2437 = vsub.f32 %v2429, %v2433
    %v2438 = vmax.f32 %v2434, 0.0
    %v2439 = vmax.f32 %v2435, 0.0
    %v2440 = vmax.f32 %v2436, 0.0
    %v2441 = vmax.f32 %v2437, 0.0
    %v2442 = vlaneseq
    %v2443 = vshrl.u32 %v2442, 7
    %v2444 = vsub.s32 0, %v2443
    %v2445 = vrot.slane %v2264, %v2444
    %v2446 = vlaneseq
    %v2447 = vshrl.u32 %v2446, 7
    %v2448 = vsub.s32 0, %v2447
    %v2449 = vrot.slane %v2265, %v2448
    %v2450 = vlaneseq
    %v2451 = vshrl.u32 %v2450, 7
    %v2452 = vsub.s32 0, %v2451
    %v2453 = vrot.slane %v2266, %v2452
    %v2454 = vlaneseq
    %v2455 = vshrl.u32 %v2454, 7
    %v2456 = vsub.s32 0, %v2455
    %v2457 = vrot.slane %v2267, %v2456
    %v2458 = vsub.f32 %v2106, %v2445
    %v2459 = vsub.f32 %v2107, %v2449
    %v2460 = vsub.f32 %v2108, %v2453
    %v2461 = vsub.f32 %v2109, %v2457
    %v2462 = vadd.f32 %v2438, 1e-05
    %v2463 = vadd.f32 %v2439, 1e-05
    %v2464 = vadd.f32 %v2440, 1e-05
    %v2465 = vadd.f32 %v2441, 1e-05
    %v2466 = vrsqrt.pop %v2462
    %v2467 = vrsqrt.pop %v2463
    %v2468 = vrsqrt.pop %v2464
    %v2469 = vrsqrt.pop %v2465
    %v2470 = vlaneseq
    %v2471 = vshrl.u32 %v2470, 7
    %v2472 = vsub.s32 0, %v2471
    %v2473 = vrot.slane %v2466, %v2472
    %v2474 = vlaneseq
    %v2475 = vshrl.u32 %v2474, 7
    %v2476 = vsub.s32 0, %v2475
    %v2477 = vrot.slane %v2467, %v2476
    %v2478 = vlaneseq
    %v2479 = vshrl.u32 %v2478, 7
    %v2480 = vsub.s32 0, %v2479
    %v2481 = vrot.slane %v2468, %v2480
    %v2482 = vlaneseq
    %v2483 = vshrl.u32 %v2482, 7
    %v2484 = vsub.s32 0, %v2483
    %v2485 = vrot.slane %v2469, %v2484
    %v2486 = vmul.f32 %v2458, %v2473
    %v2487 = vmul.f32 %v2459, %v2477
    %v2488 = vmul.f32 %v2460, %v2481
    %v2489 = vmul.f32 %v2461, %v2485
    %v2490 = vpack.c.bf16 %v2486, %v2486
    %v2491 = vpack.c.bf16 %v2487, %v2487
    %v2492 = vpack.c.bf16 %v2488, %v2488
    %v2493 = vpack.c.bf16 %v2489, %v2489
    %v2494 = vld [vmem:[%s5] sm:$0xf]
    %v2495 = vld [vmem:[%s5 + $0x4] sm:$0xf]
    %v2496 = vld [vmem:[%s5 + $0x8] sm:$0xf]
    %v2497 = vld [vmem:[%s5 + $0xc] sm:$0xf]
    %v2498 = vld [vmem:[%s5 + $0x10] sm:$0xf]
    %v2499 = vld [vmem:[%s5 + $0x14] sm:$0xf]
    %v2500 = vld [vmem:[%s5 + $0x18] sm:$0xf]
    %v2501 = vld [vmem:[%s5 + $0x1c] sm:$0xf]
    %v2502 = vld [vmem:[%s5 + $0x20] sm:$0xf]
    %v2503 = vld [vmem:[%s5 + $0x24] sm:$0xf]
    %v2504 = vld [vmem:[%s5 + $0x28] sm:$0xf]
    %v2505 = vld [vmem:[%s5 + $0x2c] sm:$0xf]
    %v2506 = vld [vmem:[%s5 + $0x30] sm:$0xf]
    %v2507 = vld [vmem:[%s5 + $0x34] sm:$0xf]
    %v2508 = vld [vmem:[%s5 + $0x38] sm:$0xf]
    %v2509 = vld [vmem:[%s5 + $0x3c] sm:$0xf]
    %v2510 = vld [vmem:[%s5 + $0x40] sm:$0xf]
    %v2511 = vld [vmem:[%s5 + $0x44] sm:$0xf]
    %v2512 = vld [vmem:[%s5 + $0x48] sm:$0xf]
    %v2513 = vld [vmem:[%s5 + $0x4c] sm:$0xf]
    %v2514 = vld [vmem:[%s5 + $0x50] sm:$0xf]
    %v2515 = vld [vmem:[%s5 + $0x54] sm:$0xf]
    %v2516 = vld [vmem:[%s5 + $0x58] sm:$0xf]
    %v2517 = vld [vmem:[%s5 + $0x5c] sm:$0xf]
    %v2518 = vld [vmem:[%s5 + $0x60] sm:$0xf]
    %v2519 = vld [vmem:[%s5 + $0x64] sm:$0xf]
    %v2520 = vld [vmem:[%s5 + $0x68] sm:$0xf]
    %v2521 = vld [vmem:[%s5 + $0x6c] sm:$0xf]
    %v2522 = vld [vmem:[%s5 + $0x70] sm:$0xf]
    %v2523 = vld [vmem:[%s5 + $0x74] sm:$0xf]
    %v2524 = vld [vmem:[%s5 + $0x78] sm:$0xf]
    %v2525 = vld [vmem:[%s5 + $0x7c] sm:$0xf]
    %v2526 = vld [vmem:[%s5 + $0x80] sm:$0xf]
    %v2527 = vld [vmem:[%s5 + $0x84] sm:$0xf]
    %v2528 = vld [vmem:[%s5 + $0x88] sm:$0xf]
    %v2529 = vld [vmem:[%s5 + $0x8c] sm:$0xf]
    %v2530 = vld [vmem:[%s5 + $0x90] sm:$0xf]
    %v2531 = vld [vmem:[%s5 + $0x94] sm:$0xf]
    %v2532 = vld [vmem:[%s5 + $0x98] sm:$0xf]
    %v2533 = vld [vmem:[%s5 + $0x9c] sm:$0xf]
    %v2534 = vld [vmem:[%s5 + $0xa0] sm:$0xf]
    %v2535 = vld [vmem:[%s5 + $0xa4] sm:$0xf]
    %v2536 = vld [vmem:[%s5 + $0xa8] sm:$0xf]
    %v2537 = vld [vmem:[%s5 + $0xac] sm:$0xf]
    %v2538 = vld [vmem:[%s5 + $0xb0] sm:$0xf]
    %v2539 = vld [vmem:[%s5 + $0xb4] sm:$0xf]
    %v2540 = vld [vmem:[%s5 + $0xb8] sm:$0xf]
    %v2541 = vld [vmem:[%s5 + $0xbc] sm:$0xf]
    %v2542 = vld [vmem:[%s5 + $0xc0] sm:$0xf]
    %v2543 = vld [vmem:[%s5 + $0xc4] sm:$0xf]
    %v2544 = vld [vmem:[%s5 + $0xc8] sm:$0xf]
    %v2545 = vld [vmem:[%s5 + $0xcc] sm:$0xf]
    %v2546 = vld [vmem:[%s5 + $0xd0] sm:$0xf]
    %v2547 = vld [vmem:[%s5 + $0xd4] sm:$0xf]
    %v2548 = vld [vmem:[%s5 + $0xd8] sm:$0xf]
    %v2549 = vld [vmem:[%s5 + $0xdc] sm:$0xf]
    %v2550 = vld [vmem:[%s5 + $0xe0] sm:$0xf]
    %v2551 = vld [vmem:[%s5 + $0xe4] sm:$0xf]
    %v2552 = vld [vmem:[%s5 + $0xe8] sm:$0xf]
    %v2553 = vld [vmem:[%s5 + $0xec] sm:$0xf]
    %v2554 = vld [vmem:[%s5 + $0xf0] sm:$0xf]
    %v2555 = vld [vmem:[%s5 + $0xf4] sm:$0xf]
    %v2556 = vld [vmem:[%s5 + $0xf8] sm:$0xf]
    %v2557 = vld [vmem:[%s5 + $0xfc] sm:$0xf]
    %v2558 = vld [vmem:[%s6] sm:$0x1]
    %v2560 = vlaneseq
    %v2561 = vshrl.u32 %v2560, 7
    %v2562 = vsub.s32 0, %v2561
    %v2563 = vrot.slane %v2558, %v2562
    %v2629 = vunpack.c.l.b16 %v2494
    %v2630 = vunpack.c.l.b16 %v2495
    %v2631 = vunpack.c.l.b16 %v2496
    %v2632 = vunpack.c.l.b16 %v2497
    %v2633 = vunpack.c.l.b16 %v2498
    %v2634 = vunpack.c.l.b16 %v2499
    %v2635 = vunpack.c.l.b16 %v2500
    %v2636 = vunpack.c.l.b16 %v2501
    %v2637 = vunpack.c.l.b16 %v2502
    %v2638 = vunpack.c.l.b16 %v2503
    %v2639 = vunpack.c.l.b16 %v2504
    %v2640 = vunpack.c.l.b16 %v2505
    %v2641 = vunpack.c.l.b16 %v2506
    %v2642 = vunpack.c.l.b16 %v2507
    %v2643 = vunpack.c.l.b16 %v2508
    %v2644 = vunpack.c.l.b16 %v2509
    %v2645 = vunpack.c.l.b16 %v2510
    %v2646 = vunpack.c.l.b16 %v2511
    %v2647 = vunpack.c.l.b16 %v2512
    %v2648 = vunpack.c.l.b16 %v2513
    %v2649 = vunpack.c.l.b16 %v2514
    %v2650 = vunpack.c.l.b16 %v2515
    %v2651 = vunpack.c.l.b16 %v2516
    %v2652 = vunpack.c.l.b16 %v2517
    %v2653 = vunpack.c.l.b16 %v2518
    %v2654 = vunpack.c.l.b16 %v2519
    %v2655 = vunpack.c.l.b16 %v2520
    %v2656 = vunpack.c.l.b16 %v2521
    %v2657 = vunpack.c.l.b16 %v2522
    %v2658 = vunpack.c.l.b16 %v2523
    %v2659 = vunpack.c.l.b16 %v2524
    %v2660 = vunpack.c.l.b16 %v2525
    %v2661 = vunpack.c.l.b16 %v2526
    %v2662 = vunpack.c.l.b16 %v2527
    %v2663 = vunpack.c.l.b16 %v2528
    %v2664 = vunpack.c.l.b16 %v2529
    %v2665 = vunpack.c.l.b16 %v2530
    %v2666 = vunpack.c.l.b16 %v2531
    %v2667 = vunpack.c.l.b16 %v2532
    %v2668 = vunpack.c.l.b16 %v2533
    %v2669 = vunpack.c.l.b16 %v2534
    %v2670 = vunpack.c.l.b16 %v2535
    %v2671 = vunpack.c.l.b16 %v2536
    %v2672 = vunpack.c.l.b16 %v2537
    %v2673 = vunpack.c.l.b16 %v2538
    %v2674 = vunpack.c.l.b16 %v2539
    %v2675 = vunpack.c.l.b16 %v2540
    %v2676 = vunpack.c.l.b16 %v2541
    %v2677 = vunpack.c.l.b16 %v2542
    %v2678 = vunpack.c.l.b16 %v2543
    %v2679 = vunpack.c.l.b16 %v2544
    %v2680 = vunpack.c.l.b16 %v2545
    %v2681 = vunpack.c.l.b16 %v2546
    %v2682 = vunpack.c.l.b16 %v2547
    %v2683 = vunpack.c.l.b16 %v2548
    %v2684 = vunpack.c.l.b16 %v2549
    %v2685 = vunpack.c.l.b16 %v2550
    %v2686 = vunpack.c.l.b16 %v2551
    %v2687 = vunpack.c.l.b16 %v2552
    %v2688 = vunpack.c.l.b16 %v2553
    %v2689 = vunpack.c.l.b16 %v2554
    %v2690 = vunpack.c.l.b16 %v2555
    %v2691 = vunpack.c.l.b16 %v2556
    %v2692 = vunpack.c.l.b16 %v2557
    %v2693 = vpack.c.b16 %v2630, %v2629
    %v2694 = vpack.c.b16 %v2632, %v2631
    %v2695 = vpack.c.b16 %v2634, %v2633
    %v2696 = vpack.c.b16 %v2636, %v2635
    %v2697 = vpack.c.b16 %v2638, %v2637
    %v2698 = vpack.c.b16 %v2640, %v2639
    %v2699 = vpack.c.b16 %v2642, %v2641
    %v2700 = vpack.c.b16 %v2644, %v2643
    %v2701 = vpack.c.b16 %v2646, %v2645
    %v2702 = vpack.c.b16 %v2648, %v2647
    %v2703 = vpack.c.b16 %v2650, %v2649
    %v2704 = vpack.c.b16 %v2652, %v2651
    %v2705 = vpack.c.b16 %v2654, %v2653
    %v2706 = vpack.c.b16 %v2656, %v2655
    %v2707 = vpack.c.b16 %v2658, %v2657
    %v2708 = vpack.c.b16 %v2660, %v2659
    %v2709 = vpack.c.b16 %v2662, %v2661
    %v2710 = vpack.c.b16 %v2664, %v2663
    %v2711 = vpack.c.b16 %v2666, %v2665
    %v2712 = vpack.c.b16 %v2668, %v2667
    %v2713 = vpack.c.b16 %v2670, %v2669
    %v2714 = vpack.c.b16 %v2672, %v2671
    %v2715 = vpack.c.b16 %v2674, %v2673
    %v2716 = vpack.c.b16 %v2676, %v2675
    %v2717 = vpack.c.b16 %v2678, %v2677
    %v2718 = vpack.c.b16 %v2680, %v2679
    %v2719 = vpack.c.b16 %v2682, %v2681
    %v2720 = vpack.c.b16 %v2684, %v2683
    %v2721 = vpack.c.b16 %v2686, %v2685
    %v2722 = vpack.c.b16 %v2688, %v2687
    %v2723 = vpack.c.b16 %v2690, %v2689
    %v2724 = vpack.c.b16 %v2692, %v2691
    %2757 = vmatprep.subr.bf16.mxu0 0
    %2758 = vmatpush1.bf16.msra.mxu0 %v2700
    %2759 = vmatprep.subr.bf16.mxu0 0
    %2760 = vmatpush1.bf16.msra.mxu0 %v2699
    %2761 = vmatprep.subr.bf16.mxu0 0
    %2762 = vmatpush1.bf16.msra.mxu0 %v2698
    %2763 = vmatprep.subr.bf16.mxu0 0
    %2764 = vmatpush1.bf16.msra.mxu0 %v2697
    %2765 = vmatprep.subr.bf16.mxu0 0
    %2766 = vmatpush1.bf16.msra.mxu0 %v2696
    %2767 = vmatprep.subr.bf16.mxu0 0
    %2768 = vmatpush1.bf16.msra.mxu0 %v2695
    %2769 = vmatprep.subr.bf16.mxu0 0
    %2770 = vmatpush1.bf16.msra.mxu0 %v2694
    %2771 = vmatprep.subr.bf16.mxu0 0
    %2772 = vmatpush1.bf16.msra.mxu0 %v2693
    %2773 = vmatprep.subr.bf16.mxu0 0
    %2774 = vmatpush2.bf16.msra.mxu0 %v2708
    %2775 = vmatprep.subr.bf16.mxu0 0
    %2776 = vmatpush2.bf16.msra.mxu0 %v2707
    %2777 = vmatprep.subr.bf16.mxu0 0
    %2778 = vmatpush2.bf16.msra.mxu0 %v2706
    %2779 = vmatprep.subr.bf16.mxu0 0
    %2780 = vmatpush2.bf16.msra.mxu0 %v2705
    %2781 = vmatprep.subr.bf16.mxu0 0
    %2782 = vmatpush2.bf16.msra.mxu0 %v2704
    %2783 = vmatprep.subr.bf16.mxu0 0
    %2784 = vmatpush2.bf16.msra.mxu0 %v2703
    %2785 = vmatprep.subr.bf16.mxu0 0
    %2786 = vmatpush2.bf16.msra.mxu0 %v2702
    %2787 = vmatprep.subr.bf16.mxu0 0
    %2788 = vmatpush2.bf16.msra.mxu0 %v2701
    %2789 = vmatprep.mubr.bf16.mxu0 %v2491
    %2790 = vmatmul.mubr.bf16.gmra.mxu0 %v2490
    %v2791 = vpop.f32.mrf.mxu0
    %v2792 = vadd.f32 %v2563, %v2791
    %v2793 = vpop.f32.mrf.mxu0
    %v2794 = vpop.f32.mrf.mxu0
    %v2795 = vpop.f32.mrf.mxu0
    %2796 = vdwg.mxu0
    %2797 = vmatprep.subr.bf16.mxu0 0
    %2798 = vmatpush1.bf16.msra.mxu0 %v2716
    %2799 = vmatprep.subr.bf16.mxu0 0
    %2800 = vmatpush1.bf16.msra.mxu0 %v2715
    %2801 = vmatprep.subr.bf16.mxu0 0
    %2802 = vmatpush1.bf16.msra.mxu0 %v2714
    %2803 = vmatprep.subr.bf16.mxu0 0
    %2804 = vmatpush1.bf16.msra.mxu0 %v2713
    %2805 = vmatprep.subr.bf16.mxu0 0
    %2806 = vmatpush1.bf16.msra.mxu0 %v2712
    %2807 = vmatprep.subr.bf16.mxu0 0
    %2808 = vmatpush1.bf16.msra.mxu0 %v2711
    %2809 = vmatprep.subr.bf16.mxu0 0
    %2810 = vmatpush1.bf16.msra.mxu0 %v2710
    %2811 = vmatprep.subr.bf16.mxu0 0
    %2812 = vmatpush1.bf16.msra.mxu0 %v2709
    %2813 = vmatprep.subr.bf16.mxu0 0
    %2814 = vmatpush2.bf16.msra.mxu0 %v2724
    %2815 = vmatprep.subr.bf16.mxu0 0
    %2816 = vmatpush2.bf16.msra.mxu0 %v2723
    %2817 = vmatprep.subr.bf16.mxu0 0
    %2818 = vmatpush2.bf16.msra.mxu0 %v2722
    %2819 = vmatprep.subr.bf16.mxu0 0
    %2820 = vmatpush2.bf16.msra.mxu0 %v2721
    %2821 = vmatprep.subr.bf16.mxu0 0
    %2822 = vmatpush2.bf16.msra.mxu0 %v2720
    %2823 = vmatprep.subr.bf16.mxu0 0
    %2824 = vmatpush2.bf16.msra.mxu0 %v2719
    %2825 = vmatprep.subr.bf16.mxu0 0
    %2826 = vmatpush2.bf16.msra.mxu0 %v2718
    %2827 = vmatprep.subr.bf16.mxu0 0
    %2828 = vmatpush2.bf16.msra.mxu0 %v2717
    %2829 = vmatprep.mubr.bf16.mxu0 %v2493
    %2830 = vmatmul.mubr.bf16.gmra.mxu0 %v2492
    %v2831 = vpop.f32.mrf.mxu0
    %v2832 = vadd.f32 %v2792, %v2831
    %v2833 = vpop.f32.mrf.mxu0
    %v2834 = vpop.f32.mrf.mxu0
    %v2835 = vpop.f32.mrf.mxu0
    %2836 = vdwg.mxu0
    %v2837 = vmax.f32 %v2832, 0.0
    %v2839 = vsel %vm48, %v2837, 0
    %2841 = vmatprep.subr.mxu0 0.0
    %2842 = vmatpush1.msra.mxu0 0.0
    %2843 = vmatprep.subr.mxu0 0.0
    %2844 = vmatpush1.msra.mxu0 0.0
    %2845 = vmatprep.subr.mxu0 0.0
    %2846 = vmatpush1.msra.mxu0 0.0
    %2847 = vmatprep.subr.mxu0 0.0
    %2848 = vmatpush1.msra.mxu0 0.0
    %2849 = vmatprep.subr.mxu0 0.0
    %2850 = vmatpush1.msra.mxu0 0.0
    %2851 = vmatprep.subr.mxu0 0.0
    %2852 = vmatpush1.msra.mxu0 0.0
    %2853 = vmatprep.subr.mxu0 0.0
    %2854 = vmatpush1.msra.mxu0 0.0
    %2855 = vmatprep.subr.mxu0 0.0
    %2856 = vmatpush1.msra.mxu0 0.0
    %2857 = vmatprep.subr.mxu0 0.0
    %2858 = vmatpush1.msra.mxu0 0.0
    %2859 = vmatprep.subr.mxu0 0.0
    %2860 = vmatpush1.msra.mxu0 0.0
    %2861 = vmatprep.subr.mxu0 0.0
    %2862 = vmatpush1.msra.mxu0 0.0
    %2863 = vmatprep.subr.mxu0 0.0
    %2864 = vmatpush1.msra.mxu0 0.0
    %2865 = vmatprep.subr.mxu0 0.0
    %2866 = vmatpush1.msra.mxu0 0.0
    %2867 = vmatprep.subr.mxu0 0.0
    %2868 = vmatpush1.msra.mxu0 0.0
    %2869 = vmatprep.subr.mxu0 0.0
    %2870 = vmatpush1.msra.mxu0 0.0
    %2871 = vmatprep.subr.mxu0 0.0
    %2872 = vmatpush1.msra.mxu0 %v2839
    %2873 = vmatprep.subr.mxu0 0.0
    %2874 = vmatpush2.msra.mxu0 0.0
    %2875 = vmatprep.subr.mxu0 0.0
    %2876 = vmatpush2.msra.mxu0 0.0
    %2877 = vmatprep.subr.mxu0 0.0
    %2878 = vmatpush2.msra.mxu0 0.0
    %2879 = vmatprep.subr.mxu0 0.0
    %2880 = vmatpush2.msra.mxu0 0.0
    %2881 = vmatprep.subr.mxu0 0.0
    %2882 = vmatpush2.msra.mxu0 0.0
    %2883 = vmatprep.subr.mxu0 0.0
    %2884 = vmatpush2.msra.mxu0 0.0
    %2885 = vmatprep.subr.mxu0 0.0
    %2886 = vmatpush2.msra.mxu0 0.0
    %2887 = vmatprep.subr.mxu0 0.0
    %2888 = vmatpush2.msra.mxu0 0.0
    %2889 = vmatprep.subr.mxu0 0.0
    %2890 = vmatpush2.msra.mxu0 0.0
    %2891 = vmatprep.subr.mxu0 0.0
    %2892 = vmatpush2.msra.mxu0 0.0
    %2893 = vmatprep.subr.mxu0 0.0
    %2894 = vmatpush2.msra.mxu0 0.0
    %2895 = vmatprep.subr.mxu0 0.0
    %2896 = vmatpush2.msra.mxu0 0.0
    %2897 = vmatprep.subr.mxu0 0.0
    %2898 = vmatpush2.msra.mxu0 0.0
    %2899 = vmatprep.subr.mxu0 0.0
    %2900 = vmatpush2.msra.mxu0 0.0
    %2901 = vmatprep.subr.mxu0 0.0
    %2902 = vmatpush2.msra.mxu0 0.0
    %2903 = vmatprep.subr.mxu0 0.0
    %2904 = vmatpush2.msra.mxu0 0.0
    %2905 = vmatprep.mubr.f32.mxu0 0.0
    %2906 = vmatmul.mubr.f32.gmra.mxu0 %v46
    %v2907 = vpop.f32.mrf.mxu0
    %v2908 = vadd.f32 0.0, %v2907
    %v2909 = vpop.f32.mrf.mxu0
    %2910 = vdwg.mxu0
    %v2911 = vmul.f32 %v2908, 0.5
    %v2912 = vmul.f32 %v2837, %v2837
    %v2914 = vsel %vm48, %v2912, 0
    %2916 = vmatprep.subr.mxu0 0.0
    %2917 = vmatpush1.msra.mxu0 0.0
    %2918 = vmatprep.subr.mxu0 0.0
    %2919 = vmatpush1.msra.mxu0 0.0
    %2920 = vmatprep.subr.mxu0 0.0
    %2921 = vmatpush1.msra.mxu0 0.0
    %2922 = vmatprep.subr.mxu0 0.0
    %2923 = vmatpush1.msra.mxu0 0.0
    %2924 = vmatprep.subr.mxu0 0.0
    %2925 = vmatpush1.msra.mxu0 0.0
    %2926 = vmatprep.subr.mxu0 0.0
    %2927 = vmatpush1.msra.mxu0 0.0
    %2928 = vmatprep.subr.mxu0 0.0
    %2929 = vmatpush1.msra.mxu0 0.0
    %2930 = vmatprep.subr.mxu0 0.0
    %2931 = vmatpush1.msra.mxu0 0.0
    %2932 = vmatprep.subr.mxu0 0.0
    %2933 = vmatpush1.msra.mxu0 0.0
    %2934 = vmatprep.subr.mxu0 0.0
    %2935 = vmatpush1.msra.mxu0 0.0
    %2936 = vmatprep.subr.mxu0 0.0
    %2937 = vmatpush1.msra.mxu0 0.0
    %2938 = vmatprep.subr.mxu0 0.0
    %2939 = vmatpush1.msra.mxu0 0.0
    %2940 = vmatprep.subr.mxu0 0.0
    %2941 = vmatpush1.msra.mxu0 0.0
    %2942 = vmatprep.subr.mxu0 0.0
    %2943 = vmatpush1.msra.mxu0 0.0
    %2944 = vmatprep.subr.mxu0 0.0
    %2945 = vmatpush1.msra.mxu0 0.0
    %2946 = vmatprep.subr.mxu0 0.0
    %2947 = vmatpush1.msra.mxu0 %v2914
    %2948 = vmatprep.subr.mxu0 0.0
    %2949 = vmatpush2.msra.mxu0 0.0
    %2950 = vmatprep.subr.mxu0 0.0
    %2951 = vmatpush2.msra.mxu0 0.0
    %2952 = vmatprep.subr.mxu0 0.0
    %2953 = vmatpush2.msra.mxu0 0.0
    %2954 = vmatprep.subr.mxu0 0.0
    %2955 = vmatpush2.msra.mxu0 0.0
    %2956 = vmatprep.subr.mxu0 0.0
    %2957 = vmatpush2.msra.mxu0 0.0
    %2958 = vmatprep.subr.mxu0 0.0
    %2959 = vmatpush2.msra.mxu0 0.0
    %2960 = vmatprep.subr.mxu0 0.0
    %2961 = vmatpush2.msra.mxu0 0.0
    %2962 = vmatprep.subr.mxu0 0.0
    %2963 = vmatpush2.msra.mxu0 0.0
    %2964 = vmatprep.subr.mxu0 0.0
    %2965 = vmatpush2.msra.mxu0 0.0
    %2966 = vmatprep.subr.mxu0 0.0
    %2967 = vmatpush2.msra.mxu0 0.0
    %2968 = vmatprep.subr.mxu0 0.0
    %2969 = vmatpush2.msra.mxu0 0.0
    %2970 = vmatprep.subr.mxu0 0.0
    %2971 = vmatpush2.msra.mxu0 0.0
    %2972 = vmatprep.subr.mxu0 0.0
    %2973 = vmatpush2.msra.mxu0 0.0
    %2974 = vmatprep.subr.mxu0 0.0
    %2975 = vmatpush2.msra.mxu0 0.0
    %2976 = vmatprep.subr.mxu0 0.0
    %2977 = vmatpush2.msra.mxu0 0.0
    %2978 = vmatprep.subr.mxu0 0.0
    %2979 = vmatpush2.msra.mxu0 0.0
    %2980 = vmatprep.mubr.f32.mxu0 0.0
    %2981 = vmatmul.mubr.f32.gmra.mxu0 %v46
    %v2982 = vpop.f32.mrf.mxu0
    %v2983 = vadd.f32 0.0, %v2982
    %v2984 = vpop.f32.mrf.mxu0
    %2985 = vdwg.mxu0
    %v2986 = vmul.f32 %v2983, 0.5
    %v2987 = vmul.f32 %v2911, %v2911
    %v2988 = vsub.f32 %v2986, %v2987
    %v2989 = vmax.f32 %v2988, 0.0
    %v2990 = vlaneseq
    %v2991 = vshrl.u32 %v2990, 7
    %v2992 = vsub.s32 0, %v2991
    %v2993 = vrot.slane %v2911, %v2992
    %v2994 = vsub.f32 %v2837, %v2993
    %v2995 = vadd.f32 %v2989, 1e-05
    %v2996 = vrsqrt.pop %v2995
    %v2997 = vlaneseq
    %v2998 = vshrl.u32 %v2997, 7
    %v2999 = vsub.s32 0, %v2998
    %v3000 = vrot.slane %v2996, %v2999
    %v3001 = vmul.f32 %v2994, %v3000
    %v3002 = vpack.c.bf16 %v3001, %v3001
    %v3003 = vld [vmem:[%s7] sm:$0xf]
    %v3004 = vld [vmem:[%s7 + $0x4] sm:$0xf]
    %v3005 = vld [vmem:[%s7 + $0x8] sm:$0xf]
    %v3006 = vld [vmem:[%s7 + $0xc] sm:$0xf]
    %v3007 = vld [vmem:[%s7 + $0x10] sm:$0xf]
    %v3008 = vld [vmem:[%s7 + $0x14] sm:$0xf]
    %v3009 = vld [vmem:[%s7 + $0x18] sm:$0xf]
    %v3010 = vld [vmem:[%s7 + $0x1c] sm:$0xf]
    %v3011 = vld [vmem:[%s7 + $0x20] sm:$0xf]
    %v3012 = vld [vmem:[%s7 + $0x24] sm:$0xf]
    %v3013 = vld [vmem:[%s7 + $0x28] sm:$0xf]
    %v3014 = vld [vmem:[%s7 + $0x2c] sm:$0xf]
    %v3015 = vld [vmem:[%s7 + $0x30] sm:$0xf]
    %v3016 = vld [vmem:[%s7 + $0x34] sm:$0xf]
    %v3017 = vld [vmem:[%s7 + $0x38] sm:$0xf]
    %v3018 = vld [vmem:[%s7 + $0x3c] sm:$0xf]
    %v3019 = vld [vmem:[%s8] sm:$0x1]
    %v3021 = vlaneseq
    %v3022 = vshrl.u32 %v3021, 7
    %v3023 = vsub.s32 0, %v3022
    %v3024 = vrot.slane %v3019, %v3023
    %v3042 = vunpack.c.l.b16 %v3003
    %v3043 = vunpack.c.l.b16 %v3004
    %v3044 = vunpack.c.l.b16 %v3005
    %v3045 = vunpack.c.l.b16 %v3006
    %v3046 = vunpack.c.l.b16 %v3007
    %v3047 = vunpack.c.l.b16 %v3008
    %v3048 = vunpack.c.l.b16 %v3009
    %v3049 = vunpack.c.l.b16 %v3010
    %v3050 = vunpack.c.l.b16 %v3011
    %v3051 = vunpack.c.l.b16 %v3012
    %v3052 = vunpack.c.l.b16 %v3013
    %v3053 = vunpack.c.l.b16 %v3014
    %v3054 = vunpack.c.l.b16 %v3015
    %v3055 = vunpack.c.l.b16 %v3016
    %v3056 = vunpack.c.l.b16 %v3017
    %v3057 = vunpack.c.l.b16 %v3018
    %v3058 = vpack.c.b16 %v3043, %v3042
    %v3059 = vpack.c.b16 %v3045, %v3044
    %v3060 = vpack.c.b16 %v3047, %v3046
    %v3061 = vpack.c.b16 %v3049, %v3048
    %v3062 = vpack.c.b16 %v3051, %v3050
    %v3063 = vpack.c.b16 %v3053, %v3052
    %v3064 = vpack.c.b16 %v3055, %v3054
    %v3065 = vpack.c.b16 %v3057, %v3056
    %3074 = vmatprep.subr.bf16.mxu0 0
    %3075 = vmatpush1.bf16.msra.mxu0 %v3065
    %3076 = vmatprep.subr.bf16.mxu0 0
    %3077 = vmatpush1.bf16.msra.mxu0 %v3064
    %3078 = vmatprep.subr.bf16.mxu0 0
    %3079 = vmatpush1.bf16.msra.mxu0 %v3063
    %3080 = vmatprep.subr.bf16.mxu0 0
    %3081 = vmatpush1.bf16.msra.mxu0 %v3062
    %3082 = vmatprep.subr.bf16.mxu0 0
    %3083 = vmatpush1.bf16.msra.mxu0 %v3061
    %3084 = vmatprep.subr.bf16.mxu0 0
    %3085 = vmatpush1.bf16.msra.mxu0 %v3060
    %3086 = vmatprep.subr.bf16.mxu0 0
    %3087 = vmatpush1.bf16.msra.mxu0 %v3059
    %3088 = vmatprep.subr.bf16.mxu0 0
    %3089 = vmatpush1.bf16.msra.mxu0 %v3058
    %3090 = vmatprep.subr.bf16.mxu0 0
    %3091 = vmatpush2.bf16.msra.mxu0 0
    %3092 = vmatprep.subr.bf16.mxu0 0
    %3093 = vmatpush2.bf16.msra.mxu0 0
    %3094 = vmatprep.subr.bf16.mxu0 0
    %3095 = vmatpush2.bf16.msra.mxu0 0
    %3096 = vmatprep.subr.bf16.mxu0 0
    %3097 = vmatpush2.bf16.msra.mxu0 0
    %3098 = vmatprep.subr.bf16.mxu0 0
    %3099 = vmatpush2.bf16.msra.mxu0 0
    %3100 = vmatprep.subr.bf16.mxu0 0
    %3101 = vmatpush2.bf16.msra.mxu0 0
    %3102 = vmatprep.subr.bf16.mxu0 0
    %3103 = vmatpush2.bf16.msra.mxu0 0
    %3104 = vmatprep.subr.bf16.mxu0 0
    %3105 = vmatpush2.bf16.msra.mxu0 0
    %3106 = vmatprep.mubr.bf16.mxu0 0
    %3107 = vmatmul.mubr.bf16.gmra.mxu0 %v3002
    %v3108 = vpop.f32.mrf.mxu0
    %v3109 = vadd.f32 %v3024, %v3108
    %v3110 = vpop.f32.mrf.mxu0
    %v3111 = vpop.f32.mrf.mxu0
    %v3112 = vpop.f32.mrf.mxu0
    %3113 = vdwg.mxu0
    %3114 = vst [vmem:[#allocation2] sm:$0x3] %v3109
    // Predicated region
    $region38: #{drugban_forward.15} parent=1 // pred_check
      _
    $region39: #{drugban_forward.15} parent=1 // pred_check_branch
      %3116 = sbr.rel (0) target = $region41
    $region40: #{drugban_forward.15} parent=1 // pred_region
      %s3118 = ssub.s32 32, 32
      %3119 = vsyncadd [#allocation3], %s3118
      %s3121 = sshll.u32 [#allocation2], 4
      %s3122 = int_to_ptr.vmem [resolvable:$true] %s3121
      %3124 = dma.vmem_to_hbm [thread:$0]  %s3122, 32, %s9, [#allocation3]
    $region41: #{drugban_forward.15} parent=1 // pred_fallthru
      _
    // Predicated region
    $region42: #{drugban_forward.15} parent=1 // pred_check
      _
    $region43: #{drugban_forward.15} parent=1 // pred_check_branch
      %3126 = sbr.rel (0) target = $region45
    $region44: #{drugban_forward.15} parent=1 // pred_region
      %3127 = dma.done [#allocation3], 32
    $region45: #{drugban_forward.15} parent=1 // pred_fallthru
      _
    %3128 = vsyncpa [#allocation3], 1

</llo_original>
